<compile_context>
chip_gen: v5e
topology: v5e:2x2
jax: 0.10.0
libtpu: 0.0.40
codegen_flags: <defaults>
</compile_context>

<pallas_src>
import functools

import jax
import jax.numpy as jnp
from jax.experimental import pallas as pl
from jax.experimental.pallas import tpu as pltpu

STATE_LENGTH = 4
ACTION_SPACE = 4

_VMEM_LIMIT = 32 * 1024 * 1024  # safe scoped-VMEM budget on v5e/v6e/v7x


# ----------------------------------------------------------------------------
# Fused conv stack: conv1(8x8,s4) -> conv2(4x4,s2) -> conv3(3x3,s1), one image
# per grid step.  Strides were eliminated up front:
#   * the input arrives as block-8 space-to-depth: (11, 11, 8*8*4=256)
#   * conv1's weight is expanded so its output lands directly in conv2's
#     block-2 s2d layout (10, 10, 4*32=128) -- the 4 output parities become
#     extra output channels.
#   * conv2 / conv3 then only need kernel-2 / kernel-3 stride-1 static slices.
# ----------------------------------------------------------------------------
def _fused_conv_kernel(x_ref, w1_ref, b1_ref, w2_ref, b2_ref, w3_ref, b3_ref,
                       o_ref):
    x = x_ref[0]                                         # (11, 11, 256) bf16

    # conv1: 4 shifted matmuls, output already in conv2's s2d layout.
    acc = None
    for i in range(2):
        for j in range(2):
            p = x[i:i + 10, j:j + 10, :].reshape(100, 256)
            d = jnp.dot(p, w1_ref[i * 2 + j],
                        preferred_element_type=jnp.float32)
            acc = d if acc is None else acc + d
    h1 = jnp.maximum(acc + b1_ref[...], 0.0).astype(jnp.bfloat16)
    h1 = h1.reshape(10, 10, 128)                         # (a, b, parity*32+c)

    # conv2: kernel 2, stride 1 on the s2d activations -> (9, 9, 64).
    acc = None
    for i in range(2):
        for j in range(2):
            p = h1[i:i + 9, j:j + 9, :].reshape(81, 128)
            d = jnp.dot(p, w2_ref[i * 2 + j],
                        preferred_element_type=jnp.float32)
            acc = d if acc is None else acc + d
    h2 = jnp.maximum(acc + b2_ref[...], 0.0).astype(jnp.bfloat16)
    h2 = h2.reshape(9, 9, 64)

    # conv3: kernel 3, stride 1 -> (49, 64) rows in (h, w) order.
    acc = None
    for i in range(3):
        for j in range(3):
            p = h2[i:i + 7, j:j + 7, :].reshape(49, 64)
            d = jnp.dot(p, w3_ref[i * 3 + j],
                        preferred_element_type=jnp.float32)
            acc = d if acc is None else acc + d
    h3 = jnp.maximum(acc + b3_ref[...], 0.0)
    o_ref[0] = h3.astype(o_ref.dtype)                    # (49, 64) bf16


def fused_conv(x_s2d, w1, b1, w2, b2, w3, b3):
    """x_s2d:(N,11,11,256) bf16 -> conv3 output (N,49,64) bf16, (h,w,c) order."""
    N = x_s2d.shape[0]
    return pl.pallas_call(
        _fused_conv_kernel,
        out_shape=jax.ShapeDtypeStruct((N, 49, 64), jnp.bfloat16),
        grid=(N,),
        in_specs=[
            pl.BlockSpec((1, 11, 11, 256), lambda n: (n, 0, 0, 0)),
            pl.BlockSpec((4, 256, 128), lambda n: (0, 0, 0)),   # conv1 (resident)
            pl.BlockSpec((1, 128), lambda n: (0, 0)),
            pl.BlockSpec((4, 128, 64), lambda n: (0, 0, 0)),    # conv2
            pl.BlockSpec((1, 64), lambda n: (0, 0)),
            pl.BlockSpec((9, 64, 64), lambda n: (0, 0, 0)),     # conv3
            pl.BlockSpec((1, 64), lambda n: (0, 0)),
        ],
        out_specs=pl.BlockSpec((1, 49, 64), lambda n: (n, 0, 0)),
        compiler_params=pltpu.CompilerParams(
            dimension_semantics=("parallel",),
            vmem_limit_bytes=_VMEM_LIMIT,
        ),
    )(x_s2d, w1, b1, w2, b2, w3, b3)


# ----------------------------------------------------------------------------
# Fused fc1|fc2 -> ReLU -> (advantage|value) -> dueling combine.
# Grid walks column tiles of the int8 fc weight slab; each tile is a complete
# fc output slice (full-K reduction), so per-tile dequant+ReLU is exact; the
# head GEMM accumulates into a tiny f32 VMEM scratch; epilogue on last step.
# ----------------------------------------------------------------------------
def _mlp_dueling_kernel(flat_ref, wq_ref, scale_ref, bfc_ref, whead_ref,
                        bhead_ref, o_ref, acc_ref, *, action_space):
    j = pl.program_id(0)

    @pl.when(j == 0)
    def _():
        acc_ref[...] = jnp.zeros_like(acc_ref)

    x = flat_ref[...]                                              # (B,3136) bf16
    w = wq_ref[...].astype(jnp.bfloat16)                           # int8 -> bf16 (exact)
    h = jnp.dot(x, w, preferred_element_type=jnp.float32)          # (B, tn)
    h = h * scale_ref[...] + bfc_ref[...]                          # per-col dequant+bias
    h = jnp.maximum(h, 0.0).astype(jnp.bfloat16)
    acc_ref[...] += jnp.dot(h, whead_ref[...],
                            preferred_element_type=jnp.float32)    # (B, A+1)

    @pl.when(j == pl.num_programs(0) - 1)
    def _():
        logits = acc_ref[...] + bhead_ref[...]                     # (B, A+1)
        adv = logits[:, :action_space]                             # (B, A)
        val = logits[:, action_space:]                             # (B, 1)
        out = val + adv - jnp.mean(adv, axis=1, keepdims=True)     # == .expand()
        o_ref[...] = out.astype(o_ref.dtype)


def mlp_dueling_head(flat, wq, scale, bfc, whead, bhead, action_space, *, tn=256):
    B, K = flat.shape
    H2 = wq.shape[1]
    assert H2 % tn == 0
    kernel = functools.partial(_mlp_dueling_kernel, action_space=action_space)
    return pl.pallas_call(
        kernel,
        out_shape=jax.ShapeDtypeStruct((B, action_space), jnp.float32),
        grid=(H2 // tn,),
        in_specs=[
            pl.BlockSpec((B, K), lambda j: (0, 0)),                  # flat, resident
            pl.BlockSpec((K, tn), lambda j: (0, j)),                 # int8 fc col-tile
            pl.BlockSpec((1, tn), lambda j: (0, j)),                 # per-col scale
            pl.BlockSpec((1, tn), lambda j: (0, j)),                 # fc bias tile
            pl.BlockSpec((tn, action_space + 1), lambda j: (j, 0)),  # head row-tile
            pl.BlockSpec((1, action_space + 1), lambda j: (0, 0)),   # head bias
        ],
        out_specs=pl.BlockSpec((B, action_space), lambda j: (0, 0)),
        scratch_shapes=[pltpu.VMEM((B, action_space + 1), jnp.float32)],
        compiler_params=pltpu.CompilerParams(
            dimension_semantics=("arbitrary",),   # head reduction axis
            vmem_limit_bytes=_VMEM_LIMIT,
        ),
    )(flat, wq, scale, bfc, whead, bhead)


# ----------------------------------------------------------------------------
# Parameter init (PyTorch layout) + one-time conversion to kernel layout
# ----------------------------------------------------------------------------
def _kaiming(key, shape, fan_in):
    return ((2.0 / fan_in) ** 0.5) * jax.random.normal(key, shape, dtype=jnp.float32)


def init_torch_params(key, action_space):
    ks = jax.random.split(key, 14)
    tp = {}
    tp["conv1_w"] = _kaiming(ks[0], (32, STATE_LENGTH, 8, 8), STATE_LENGTH * 8 * 8)
    tp["conv1_b"] = 0.01 * jax.random.normal(ks[1], (32,), dtype=jnp.float32)
    tp["conv2_w"] = _kaiming(ks[2], (64, 32, 4, 4), 32 * 4 * 4)
    tp["conv2_b"] = 0.01 * jax.random.normal(ks[3], (64,), dtype=jnp.float32)
    tp["conv3_w"] = _kaiming(ks[4], (64, 64, 3, 3), 64 * 3 * 3)
    tp["conv3_b"] = 0.01 * jax.random.normal(ks[5], (64,), dtype=jnp.float32)
    tp["fc1_w"] = _kaiming(ks[6], (512, 64 * 7 * 7), 64 * 7 * 7)
    tp["fc1_b"] = 0.01 * jax.random.normal(ks[7], (512,), dtype=jnp.float32)
    tp["fc2_w"] = _kaiming(ks[8], (512, 64 * 7 * 7), 64 * 7 * 7)
    tp["fc2_b"] = 0.01 * jax.random.normal(ks[9], (512,), dtype=jnp.float32)
    tp["adv_w"] = _kaiming(ks[10], (action_space, 512), 512)
    tp["adv_b"] = 0.01 * jax.random.normal(ks[11], (action_space,), dtype=jnp.float32)
    tp["val_w"] = _kaiming(ks[12], (1, 512), 512)
    tp["val_b"] = 0.01 * jax.random.normal(ks[13], (1,), dtype=jnp.float32)
    return tp


def _conv1_s2d_weight(w):
    """(32,4,8,8) torch conv1 weight -> (4, 256, 128) bf16.

    Row index (per block-offset i*2+j): u*32 + v*4 + c over the block-8 s2d
    input channels.  Column index: (rh*2+rw)*32 + oc, i.e. the 4 output
    parities become extra channels so the result is already in conv2's
    block-2 s2d layout.  Weight rows that would fall outside the 8x8 kernel
    for a given parity are zero.
    """
    wt = w.transpose(2, 3, 1, 0)                         # (kh, kw, c, oc)
    cols = []
    for rh in range(2):
        for rw in range(2):
            b = jnp.zeros((16, 16, 4, 32), jnp.float32)
            b = b.at[4 * rh:4 * rh + 8, 4 * rw:4 * rw + 8].set(wt)
            b = b.reshape(2, 8, 2, 8, 4, 32).transpose(0, 2, 1, 3, 4, 5)
            cols.append(b.reshape(4, 256, 32))           # (i*2+j, u*32+v*4+c, oc)
    return jnp.concatenate(cols, axis=-1).astype(jnp.bfloat16)


def _conv2_s2d_weight(w):
    """(64,32,4,4) torch conv2 weight -> (4, 128, 64) bf16, rows in conv2-s2d order."""
    wt = w.transpose(2, 3, 1, 0)                         # (kh, kw, ic, oc)
    wt = wt.reshape(2, 2, 2, 2, 32, 64)                  # (i, rh, j, rw, ic, oc)
    wt = wt.transpose(0, 2, 1, 3, 4, 5)                  # (i, j, rh, rw, ic, oc)
    return wt.reshape(4, 128, 64).astype(jnp.bfloat16)


def _conv3_weight(w):
    """(64,64,3,3) -> (9, 64, 64) bf16, one (ic,oc) slab per (kh,kw)."""
    return w.transpose(2, 3, 1, 0).reshape(9, 64, 64).astype(jnp.bfloat16)


def prepare_params(tp, action_space):
    """Convert PyTorch-layout params to kernel layout ONCE (no per-call glue)."""
    kp = {}
    kp["conv1_w"] = _conv1_s2d_weight(tp["conv1_w"])
    kp["conv1_b"] = jnp.tile(tp["conv1_b"], 4).reshape(1, 128)   # per parity block
    kp["conv2_w"] = _conv2_s2d_weight(tp["conv2_w"])
    kp["conv2_b"] = tp["conv2_b"].reshape(1, 64)
    kp["conv3_w"] = _conv3_weight(tp["conv3_w"])
    kp["conv3_b"] = tp["conv3_b"].reshape(1, 64)

    def fc_mat(w):  # torch (512, 3136) with input order (c,h,w) -> (3136, 512) in (h,w,c)
        return w.reshape(512, 64, 7, 7).transpose(2, 3, 1, 0).reshape(64 * 7 * 7, 512)

    # fused fc1|fc2 weight, int8 per-column quantized (dequant in-kernel)
    fc_w = jnp.concatenate([fc_mat(tp["fc1_w"]), fc_mat(tp["fc2_w"])], axis=1)  # (3136,1024)
    scale = jnp.maximum(jnp.max(jnp.abs(fc_w), axis=0, keepdims=True), 1e-12) / 127.0
    kp["fc_wq"] = jnp.clip(jnp.round(fc_w / scale), -127.0, 127.0).astype(jnp.int8)
    kp["fc_scale"] = scale.astype(jnp.float32)                                  # (1,1024)
    kp["fc_b"] = jnp.concatenate([tp["fc1_b"], tp["fc2_b"]]).reshape(1, -1)     # (1,1024)

    # block-diagonal head weight: cols [0:A] = advantage(x1), col A = value(x2)
    a = action_space
    whead = jnp.zeros((1024, a + 1), jnp.float32)
    whead = whead.at[:512, :a].set(tp["adv_w"].T)
    whead = whead.at[512:, a:].set(tp["val_w"].T)
    kp["head_w"] = whead.astype(jnp.bfloat16)
    kp["head_b"] = jnp.concatenate([tp["adv_b"], tp["val_b"]]).reshape(1, a + 1)
    return kp


# ----------------------------------------------------------------------------
# Forward pass (mirrors Net.forward) and a pure-JAX reference
# ----------------------------------------------------------------------------
@jax.jit
def net_forward(kp, x_nchw):
    # x_nchw: (N, 4, 84, 84) f32
    N = x_nchw.shape[0]
    # Block-8 space-to-depth of the input: pure layout, done once in XLA.
    x = x_nchw.astype(jnp.bfloat16).transpose(0, 2, 3, 1)            # (N,84,84,4)
    x = jnp.pad(x, ((0, 0), (0, 4), (0, 4), (0, 0)))                 # (N,88,88,4)
    x = x.reshape(N, 11, 8, 11, 8, STATE_LENGTH)
    x = x.transpose(0, 1, 3, 2, 4, 5).reshape(N, 11, 11, 8 * 8 * STATE_LENGTH)

    h = fused_conv(x, kp["conv1_w"], kp["conv1_b"], kp["conv2_w"], kp["conv2_b"],
                   kp["conv3_w"], kp["conv3_b"])                     # (N,49,64) bf16
    flat = h.reshape(N, 49 * 64)                                     # contiguous, free
    return mlp_dueling_head(flat, kp["fc_wq"], kp["fc_scale"], kp["fc_b"],
                            kp["head_w"], kp["head_b"], ACTION_SPACE)  # (N, A) f32


def reference_forward(tp, x):
    # Pure-JAX NCHW f32 reference using the original PyTorch-layout params.
    dn = ("NCHW", "OIHW", "NCHW")
    h = jax.lax.conv_general_dilated(x, tp["conv1_w"], (4, 4), "VALID", dimension_numbers=dn)
    h = jax.nn.relu(h + tp["conv1_b"].reshape(1, -1, 1, 1))
    h = jax.lax.conv_general_dilated(h, tp["conv2_w"], (2, 2), "VALID", dimension_numbers=dn)
    h = jax.nn.relu(h + tp["conv2_b"].reshape(1, -1, 1, 1))
    h = jax.lax.conv_general_dilated(h, tp["conv3_w"], (1, 1), "VALID", dimension_numbers=dn)
    h = jax.nn.relu(h + tp["conv3_b"].reshape(1, -1, 1, 1))
    flat = h.reshape(h.shape[0], -1)
    x1 = jax.nn.relu(flat @ tp["fc1_w"].T + tp["fc1_b"])
    adv = x1 @ tp["adv_w"].T + tp["adv_b"]
    x2 = jax.nn.relu(flat @ tp["fc2_w"].T + tp["fc2_b"])
    val = x2 @ tp["val_w"].T + tp["val_b"]
    return val + adv - adv.mean(axis=1, keepdims=True)


if __name__ == "__main__":
    key = jax.random.PRNGKey(0)
    pkey, xkey = jax.random.split(key)
    torch_params = init_torch_params(pkey, ACTION_SPACE)
    kernel_params = prepare_params(torch_params, ACTION_SPACE)

    # fc layers hard-code 64*7*7, which implies 84x84 Atari inputs.
    x = jax.random.normal(xkey, (2, STATE_LENGTH, 84, 84), dtype=jnp.float32)

    out = net_forward(kernel_params, x)
    jax.block_until_ready(out)
    assert out.shape == (2, ACTION_SPACE) and out.dtype == jnp.float32

    ref = reference_forward(torch_params, x)
    max_err = float(jnp.max(jnp.abs(out - ref)))
    # bf16 activations/weights + int8 fc quantization => small, bounded drift.
    tol = 0.08 * (float(jnp.max(jnp.abs(ref))) + 1.0)
    assert max_err <= tol, f"mismatch: max_err={max_err} tol={tol}"

    print("KERNEL_OK")
</pallas_src>

<mosaic_0001>
module attributes {stable_mosaic.version = 11 : i64} {
  func.func @_fused_conv_kernel(%arg0: i32, %arg1: memref<1x11x11x256xbf16, #tpu.memory_space<vmem>>, %arg2: memref<4x256x128xbf16, #tpu.memory_space<vmem>>, %arg3: memref<1x128xf32, #tpu.memory_space<vmem>>, %arg4: memref<4x128x64xbf16, #tpu.memory_space<vmem>>, %arg5: memref<1x64xf32, #tpu.memory_space<vmem>>, %arg6: memref<9x64x64xbf16, #tpu.memory_space<vmem>>, %arg7: memref<1x64xf32, #tpu.memory_space<vmem>>, %arg8: memref<1x49x64xbf16, #tpu.memory_space<vmem>>) attributes {dimension_semantics = [#tpu.dimension_semantics<parallel>], iteration_bounds = array<i64: 2>, scalar_prefetch = 0 : i64, scratch_operands = 0 : i64, tpu.core_type = #tpu.core_type<tc>, window_params = [{transform_indices = @transform_0, window_bounds = array<i64: 1, 11, 11, 256>}, {pipeline_mode = #tpu.pipeline_mode<synchronous>, transform_indices = @transform_1, window_bounds = array<i64: 4, 256, 128>}, {pipeline_mode = #tpu.pipeline_mode<synchronous>, transform_indices = @transform_2, window_bounds = array<i64: 1, 128>}, {pipeline_mode = #tpu.pipeline_mode<synchronous>, transform_indices = @transform_3, window_bounds = array<i64: 4, 128, 64>}, {pipeline_mode = #tpu.pipeline_mode<synchronous>, transform_indices = @transform_4, window_bounds = array<i64: 1, 64>}, {pipeline_mode = #tpu.pipeline_mode<synchronous>, transform_indices = @transform_5, window_bounds = array<i64: 9, 64, 64>}, {pipeline_mode = #tpu.pipeline_mode<synchronous>, transform_indices = @transform_6, window_bounds = array<i64: 1, 64>}, {transform_indices = @transform_7, window_bounds = array<i64: 1, 49, 64>}]} {
    %c0 = arith.constant 0 : index
    %c0_0 = arith.constant 0 : index
    %c0_1 = arith.constant 0 : index
    %c0_2 = arith.constant 0 : index
    %0 = vector.load %arg1[%c0, %c0_0, %c0_1, %c0_2] : memref<1x11x11x256xbf16, #tpu.memory_space<vmem>>, vector<1x11x11x256xbf16>
    %1 = vector.shape_cast %0 : vector<1x11x11x256xbf16> to vector<11x11x256xbf16>
    %2 = vector.extract_strided_slice %1 {offsets = [0, 0, 0], sizes = [10, 10, 256], strides = [1, 1, 1]} : vector<11x11x256xbf16> to vector<10x10x256xbf16>
    %3 = vector.shape_cast %2 : vector<10x10x256xbf16> to vector<100x256xbf16>
    %c0_3 = arith.constant 0 : index
    %c0_4 = arith.constant 0 : index
    %c0_5 = arith.constant 0 : index
    %4 = vector.load %arg2[%c0_3, %c0_4, %c0_5] : memref<4x256x128xbf16, #tpu.memory_space<vmem>>, vector<1x256x128xbf16>
    %5 = vector.shape_cast %4 : vector<1x256x128xbf16> to vector<256x128xbf16>
    %cst = arith.constant dense<0.000000e+00> : vector<100x128xf32>
    %6 = tpu.matmul %3, %5, %cst {dimension_numbers = #tpu.dot_dimension_numbers<[1], [0], [0], [1], [0, 0, 1, 1], [], []>} : vector<100x256xbf16>, vector<256x128xbf16>, vector<100x128xf32> -> vector<100x128xf32>
    %7 = vector.extract_strided_slice %1 {offsets = [0, 1, 0], sizes = [10, 10, 256], strides = [1, 1, 1]} : vector<11x11x256xbf16> to vector<10x10x256xbf16>
    %8 = vector.shape_cast %7 : vector<10x10x256xbf16> to vector<100x256xbf16>
    %c1 = arith.constant 1 : index
    %c0_6 = arith.constant 0 : index
    %c0_7 = arith.constant 0 : index
    %9 = vector.load %arg2[%c1, %c0_6, %c0_7] : memref<4x256x128xbf16, #tpu.memory_space<vmem>>, vector<1x256x128xbf16>
    %10 = vector.shape_cast %9 : vector<1x256x128xbf16> to vector<256x128xbf16>
    %cst_8 = arith.constant dense<0.000000e+00> : vector<100x128xf32>
    %11 = tpu.matmul %8, %10, %cst_8 {dimension_numbers = #tpu.dot_dimension_numbers<[1], [0], [0], [1], [0, 0, 1, 1], [], []>} : vector<100x256xbf16>, vector<256x128xbf16>, vector<100x128xf32> -> vector<100x128xf32>
    %12 = arith.addf %6, %11 : vector<100x128xf32>
    %13 = vector.extract_strided_slice %1 {offsets = [1, 0, 0], sizes = [10, 10, 256], strides = [1, 1, 1]} : vector<11x11x256xbf16> to vector<10x10x256xbf16>
    %14 = vector.shape_cast %13 : vector<10x10x256xbf16> to vector<100x256xbf16>
    %c2 = arith.constant 2 : index
    %c0_9 = arith.constant 0 : index
    %c0_10 = arith.constant 0 : index
    %15 = vector.load %arg2[%c2, %c0_9, %c0_10] : memref<4x256x128xbf16, #tpu.memory_space<vmem>>, vector<1x256x128xbf16>
    %16 = vector.shape_cast %15 : vector<1x256x128xbf16> to vector<256x128xbf16>
    %cst_11 = arith.constant dense<0.000000e+00> : vector<100x128xf32>
    %17 = tpu.matmul %14, %16, %cst_11 {dimension_numbers = #tpu.dot_dimension_numbers<[1], [0], [0], [1], [0, 0, 1, 1], [], []>} : vector<100x256xbf16>, vector<256x128xbf16>, vector<100x128xf32> -> vector<100x128xf32>
    %18 = arith.addf %12, %17 : vector<100x128xf32>
    %19 = vector.extract_strided_slice %1 {offsets = [1, 1, 0], sizes = [10, 10, 256], strides = [1, 1, 1]} : vector<11x11x256xbf16> to vector<10x10x256xbf16>
    %20 = vector.shape_cast %19 : vector<10x10x256xbf16> to vector<100x256xbf16>
    %c3 = arith.constant 3 : index
    %c0_12 = arith.constant 0 : index
    %c0_13 = arith.constant 0 : index
    %21 = vector.load %arg2[%c3, %c0_12, %c0_13] : memref<4x256x128xbf16, #tpu.memory_space<vmem>>, vector<1x256x128xbf16>
    %22 = vector.shape_cast %21 : vector<1x256x128xbf16> to vector<256x128xbf16>
    %cst_14 = arith.constant dense<0.000000e+00> : vector<100x128xf32>
    %23 = tpu.matmul %20, %22, %cst_14 {dimension_numbers = #tpu.dot_dimension_numbers<[1], [0], [0], [1], [0, 0, 1, 1], [], []>} : vector<100x256xbf16>, vector<256x128xbf16>, vector<100x128xf32> -> vector<100x128xf32>
    %24 = arith.addf %18, %23 : vector<100x128xf32>
    %c0_15 = arith.constant 0 : index
    %c0_16 = arith.constant 0 : index
    %25 = vector.load %arg3[%c0_15, %c0_16] : memref<1x128xf32, #tpu.memory_space<vmem>>, vector<1x128xf32>
    %26 = vector.broadcast %25 : vector<1x128xf32> to vector<100x128xf32>
    %27 = arith.addf %24, %26 : vector<100x128xf32>
    %cst_17 = arith.constant 0.000000e+00 : f32
    %28 = vector.broadcast %cst_17 : f32 to vector<100x128xf32>
    %29 = arith.maximumf %27, %28 : vector<100x128xf32>
    %30 = arith.truncf %29 : vector<100x128xf32> to vector<100x128xbf16>
    %31 = vector.shape_cast %30 : vector<100x128xbf16> to vector<10x10x128xbf16>
    %32 = vector.extract_strided_slice %31 {offsets = [0, 0, 0], sizes = [9, 9, 128], strides = [1, 1, 1]} : vector<10x10x128xbf16> to vector<9x9x128xbf16>
    %33 = vector.shape_cast %32 : vector<9x9x128xbf16> to vector<81x128xbf16>
    %c0_18 = arith.constant 0 : index
    %c0_19 = arith.constant 0 : index
    %c0_20 = arith.constant 0 : index
    %34 = vector.load %arg4[%c0_18, %c0_19, %c0_20] : memref<4x128x64xbf16, #tpu.memory_space<vmem>>, vector<1x128x64xbf16>
    %35 = vector.shape_cast %34 : vector<1x128x64xbf16> to vector<128x64xbf16>
    %cst_21 = arith.constant dense<0.000000e+00> : vector<81x64xf32>
    %36 = tpu.matmul %33, %35, %cst_21 {dimension_numbers = #tpu.dot_dimension_numbers<[1], [0], [0], [1], [0, 0, 1, 1], [], []>} : vector<81x128xbf16>, vector<128x64xbf16>, vector<81x64xf32> -> vector<81x64xf32>
    %37 = vector.extract_strided_slice %31 {offsets = [0, 1, 0], sizes = [9, 9, 128], strides = [1, 1, 1]} : vector<10x10x128xbf16> to vector<9x9x128xbf16>
    %38 = vector.shape_cast %37 : vector<9x9x128xbf16> to vector<81x128xbf16>
    %c1_22 = arith.constant 1 : index
    %c0_23 = arith.constant 0 : index
    %c0_24 = arith.constant 0 : index
    %39 = vector.load %arg4[%c1_22, %c0_23, %c0_24] : memref<4x128x64xbf16, #tpu.memory_space<vmem>>, vector<1x128x64xbf16>
    %40 = vector.shape_cast %39 : vector<1x128x64xbf16> to vector<128x64xbf16>
    %cst_25 = arith.constant dense<0.000000e+00> : vector<81x64xf32>
    %41 = tpu.matmul %38, %40, %cst_25 {dimension_numbers = #tpu.dot_dimension_numbers<[1], [0], [0], [1], [0, 0, 1, 1], [], []>} : vector<81x128xbf16>, vector<128x64xbf16>, vector<81x64xf32> -> vector<81x64xf32>
    %42 = arith.addf %36, %41 : vector<81x64xf32>
    %43 = vector.extract_strided_slice %31 {offsets = [1, 0, 0], sizes = [9, 9, 128], strides = [1, 1, 1]} : vector<10x10x128xbf16> to vector<9x9x128xbf16>
    %44 = vector.shape_cast %43 : vector<9x9x128xbf16> to vector<81x128xbf16>
    %c2_26 = arith.constant 2 : index
    %c0_27 = arith.constant 0 : index
    %c0_28 = arith.constant 0 : index
    %45 = vector.load %arg4[%c2_26, %c0_27, %c0_28] : memref<4x128x64xbf16, #tpu.memory_space<vmem>>, vector<1x128x64xbf16>
    %46 = vector.shape_cast %45 : vector<1x128x64xbf16> to vector<128x64xbf16>
    %cst_29 = arith.constant dense<0.000000e+00> : vector<81x64xf32>
    %47 = tpu.matmul %44, %46, %cst_29 {dimension_numbers = #tpu.dot_dimension_numbers<[1], [0], [0], [1], [0, 0, 1, 1], [], []>} : vector<81x128xbf16>, vector<128x64xbf16>, vector<81x64xf32> -> vector<81x64xf32>
    %48 = arith.addf %42, %47 : vector<81x64xf32>
    %49 = vector.extract_strided_slice %31 {offsets = [1, 1, 0], sizes = [9, 9, 128], strides = [1, 1, 1]} : vector<10x10x128xbf16> to vector<9x9x128xbf16>
    %50 = vector.shape_cast %49 : vector<9x9x128xbf16> to vector<81x128xbf16>
    %c3_30 = arith.constant 3 : index
    %c0_31 = arith.constant 0 : index
    %c0_32 = arith.constant 0 : index
    %51 = vector.load %arg4[%c3_30, %c0_31, %c0_32] : memref<4x128x64xbf16, #tpu.memory_space<vmem>>, vector<1x128x64xbf16>
    %52 = vector.shape_cast %51 : vector<1x128x64xbf16> to vector<128x64xbf16>
    %cst_33 = arith.constant dense<0.000000e+00> : vector<81x64xf32>
    %53 = tpu.matmul %50, %52, %cst_33 {dimension_numbers = #tpu.dot_dimension_numbers<[1], [0], [0], [1], [0, 0, 1, 1], [], []>} : vector<81x128xbf16>, vector<128x64xbf16>, vector<81x64xf32> -> vector<81x64xf32>
    %54 = arith.addf %48, %53 : vector<81x64xf32>
    %c0_34 = arith.constant 0 : index
    %c0_35 = arith.constant 0 : index
    %55 = vector.load %arg5[%c0_34, %c0_35] : memref<1x64xf32, #tpu.memory_space<vmem>>, vector<1x64xf32>
    %56 = vector.broadcast %55 : vector<1x64xf32> to vector<81x64xf32>
    %57 = arith.addf %54, %56 : vector<81x64xf32>
    %cst_36 = arith.constant 0.000000e+00 : f32
    %58 = vector.broadcast %cst_36 : f32 to vector<81x64xf32>
    %59 = arith.maximumf %57, %58 : vector<81x64xf32>
    %60 = arith.truncf %59 : vector<81x64xf32> to vector<81x64xbf16>
    %61 = vector.shape_cast %60 : vector<81x64xbf16> to vector<9x9x64xbf16>
    %62 = vector.extract_strided_slice %61 {offsets = [0, 0, 0], sizes = [7, 7, 64], strides = [1, 1, 1]} : vector<9x9x64xbf16> to vector<7x7x64xbf16>
    %63 = vector.shape_cast %62 : vector<7x7x64xbf16> to vector<49x64xbf16>
    %c0_37 = arith.constant 0 : index
    %c0_38 = arith.constant 0 : index
    %c0_39 = arith.constant 0 : index
    %64 = vector.load %arg6[%c0_37, %c0_38, %c0_39] : memref<9x64x64xbf16, #tpu.memory_space<vmem>>, vector<1x64x64xbf16>
    %65 = vector.shape_cast %64 : vector<1x64x64xbf16> to vector<64x64xbf16>
    %cst_40 = arith.constant dense<0.000000e+00> : vector<49x64xf32>
    %66 = tpu.matmul %63, %65, %cst_40 {dimension_numbers = #tpu.dot_dimension_numbers<[1], [0], [0], [1], [0, 0, 1, 1], [], []>} : vector<49x64xbf16>, vector<64x64xbf16>, vector<49x64xf32> -> vector<49x64xf32>
    %67 = vector.extract_strided_slice %61 {offsets = [0, 1, 0], sizes = [7, 7, 64], strides = [1, 1, 1]} : vector<9x9x64xbf16> to vector<7x7x64xbf16>
    %68 = vector.shape_cast %67 : vector<7x7x64xbf16> to vector<49x64xbf16>
    %c1_41 = arith.constant 1 : index
    %c0_42 = arith.constant 0 : index
    %c0_43 = arith.constant 0 : index
    %69 = vector.load %arg6[%c1_41, %c0_42, %c0_43] : memref<9x64x64xbf16, #tpu.memory_space<vmem>>, vector<1x64x64xbf16>
    %70 = vector.shape_cast %69 : vector<1x64x64xbf16> to vector<64x64xbf16>
    %cst_44 = arith.constant dense<0.000000e+00> : vector<49x64xf32>
    %71 = tpu.matmul %68, %70, %cst_44 {dimension_numbers = #tpu.dot_dimension_numbers<[1], [0], [0], [1], [0, 0, 1, 1], [], []>} : vector<49x64xbf16>, vector<64x64xbf16>, vector<49x64xf32> -> vector<49x64xf32>
    %72 = arith.addf %66, %71 : vector<49x64xf32>
    %73 = vector.extract_strided_slice %61 {offsets = [0, 2, 0], sizes = [7, 7, 64], strides = [1, 1, 1]} : vector<9x9x64xbf16> to vector<7x7x64xbf16>
    %74 = vector.shape_cast %73 : vector<7x7x64xbf16> to vector<49x64xbf16>
    %c2_45 = arith.constant 2 : index
    %c0_46 = arith.constant 0 : index
    %c0_47 = arith.constant 0 : index
    %75 = vector.load %arg6[%c2_45, %c0_46, %c0_47] : memref<9x64x64xbf16, #tpu.memory_space<vmem>>, vector<1x64x64xbf16>
    %76 = vector.shape_cast %75 : vector<1x64x64xbf16> to vector<64x64xbf16>
    %cst_48 = arith.constant dense<0.000000e+00> : vector<49x64xf32>
    %77 = tpu.matmul %74, %76, %cst_48 {dimension_numbers = #tpu.dot_dimension_numbers<[1], [0], [0], [1], [0, 0, 1, 1], [], []>} : vector<49x64xbf16>, vector<64x64xbf16>, vector<49x64xf32> -> vector<49x64xf32>
    %78 = arith.addf %72, %77 : vector<49x64xf32>
    %79 = vector.extract_strided_slice %61 {offsets = [1, 0, 0], sizes = [7, 7, 64], strides = [1, 1, 1]} : vector<9x9x64xbf16> to vector<7x7x64xbf16>
    %80 = vector.shape_cast %79 : vector<7x7x64xbf16> to vector<49x64xbf16>
    %c3_49 = arith.constant 3 : index
    %c0_50 = arith.constant 0 : index
    %c0_51 = arith.constant 0 : index
    %81 = vector.load %arg6[%c3_49, %c0_50, %c0_51] : memref<9x64x64xbf16, #tpu.memory_space<vmem>>, vector<1x64x64xbf16>
    %82 = vector.shape_cast %81 : vector<1x64x64xbf16> to vector<64x64xbf16>
    %cst_52 = arith.constant dense<0.000000e+00> : vector<49x64xf32>
    %83 = tpu.matmul %80, %82, %cst_52 {dimension_numbers = #tpu.dot_dimension_numbers<[1], [0], [0], [1], [0, 0, 1, 1], [], []>} : vector<49x64xbf16>, vector<64x64xbf16>, vector<49x64xf32> -> vector<49x64xf32>
    %84 = arith.addf %78, %83 : vector<49x64xf32>
    %85 = vector.extract_strided_slice %61 {offsets = [1, 1, 0], sizes = [7, 7, 64], strides = [1, 1, 1]} : vector<9x9x64xbf16> to vector<7x7x64xbf16>
    %86 = vector.shape_cast %85 : vector<7x7x64xbf16> to vector<49x64xbf16>
    %c4 = arith.constant 4 : index
    %c0_53 = arith.constant 0 : index
    %c0_54 = arith.constant 0 : index
    %87 = vector.load %arg6[%c4, %c0_53, %c0_54] : memref<9x64x64xbf16, #tpu.memory_space<vmem>>, vector<1x64x64xbf16>
    %88 = vector.shape_cast %87 : vector<1x64x64xbf16> to vector<64x64xbf16>
    %cst_55 = arith.constant dense<0.000000e+00> : vector<49x64xf32>
    %89 = tpu.matmul %86, %88, %cst_55 {dimension_numbers = #tpu.dot_dimension_numbers<[1], [0], [0], [1], [0, 0, 1, 1], [], []>} : vector<49x64xbf16>, vector<64x64xbf16>, vector<49x64xf32> -> vector<49x64xf32>
    %90 = arith.addf %84, %89 : vector<49x64xf32>
    %91 = vector.extract_strided_slice %61 {offsets = [1, 2, 0], sizes = [7, 7, 64], strides = [1, 1, 1]} : vector<9x9x64xbf16> to vector<7x7x64xbf16>
    %92 = vector.shape_cast %91 : vector<7x7x64xbf16> to vector<49x64xbf16>
    %c5 = arith.constant 5 : index
    %c0_56 = arith.constant 0 : index
    %c0_57 = arith.constant 0 : index
    %93 = vector.load %arg6[%c5, %c0_56, %c0_57] : memref<9x64x64xbf16, #tpu.memory_space<vmem>>, vector<1x64x64xbf16>
    %94 = vector.shape_cast %93 : vector<1x64x64xbf16> to vector<64x64xbf16>
    %cst_58 = arith.constant dense<0.000000e+00> : vector<49x64xf32>
    %95 = tpu.matmul %92, %94, %cst_58 {dimension_numbers = #tpu.dot_dimension_numbers<[1], [0], [0], [1], [0, 0, 1, 1], [], []>} : vector<49x64xbf16>, vector<64x64xbf16>, vector<49x64xf32> -> vector<49x64xf32>
    %96 = arith.addf %90, %95 : vector<49x64xf32>
    %97 = vector.extract_strided_slice %61 {offsets = [2, 0, 0], sizes = [7, 7, 64], strides = [1, 1, 1]} : vector<9x9x64xbf16> to vector<7x7x64xbf16>
    %98 = vector.shape_cast %97 : vector<7x7x64xbf16> to vector<49x64xbf16>
    %c6 = arith.constant 6 : index
    %c0_59 = arith.constant 0 : index
    %c0_60 = arith.constant 0 : index
    %99 = vector.load %arg6[%c6, %c0_59, %c0_60] : memref<9x64x64xbf16, #tpu.memory_space<vmem>>, vector<1x64x64xbf16>
    %100 = vector.shape_cast %99 : vector<1x64x64xbf16> to vector<64x64xbf16>
    %cst_61 = arith.constant dense<0.000000e+00> : vector<49x64xf32>
    %101 = tpu.matmul %98, %100, %cst_61 {dimension_numbers = #tpu.dot_dimension_numbers<[1], [0], [0], [1], [0, 0, 1, 1], [], []>} : vector<49x64xbf16>, vector<64x64xbf16>, vector<49x64xf32> -> vector<49x64xf32>
    %102 = arith.addf %96, %101 : vector<49x64xf32>
    %103 = vector.extract_strided_slice %61 {offsets = [2, 1, 0], sizes = [7, 7, 64], strides = [1, 1, 1]} : vector<9x9x64xbf16> to vector<7x7x64xbf16>
    %104 = vector.shape_cast %103 : vector<7x7x64xbf16> to vector<49x64xbf16>
    %c7 = arith.constant 7 : index
    %c0_62 = arith.constant 0 : index
    %c0_63 = arith.constant 0 : index
    %105 = vector.load %arg6[%c7, %c0_62, %c0_63] : memref<9x64x64xbf16, #tpu.memory_space<vmem>>, vector<1x64x64xbf16>
    %106 = vector.shape_cast %105 : vector<1x64x64xbf16> to vector<64x64xbf16>
    %cst_64 = arith.constant dense<0.000000e+00> : vector<49x64xf32>
    %107 = tpu.matmul %104, %106, %cst_64 {dimension_numbers = #tpu.dot_dimension_numbers<[1], [0], [0], [1], [0, 0, 1, 1], [], []>} : vector<49x64xbf16>, vector<64x64xbf16>, vector<49x64xf32> -> vector<49x64xf32>
    %108 = arith.addf %102, %107 : vector<49x64xf32>
    %109 = vector.extract_strided_slice %61 {offsets = [2, 2, 0], sizes = [7, 7, 64], strides = [1, 1, 1]} : vector<9x9x64xbf16> to vector<7x7x64xbf16>
    %110 = vector.shape_cast %109 : vector<7x7x64xbf16> to vector<49x64xbf16>
    %c8 = arith.constant 8 : index
    %c0_65 = arith.constant 0 : index
    %c0_66 = arith.constant 0 : index
    %111 = vector.load %arg6[%c8, %c0_65, %c0_66] : memref<9x64x64xbf16, #tpu.memory_space<vmem>>, vector<1x64x64xbf16>
    %112 = vector.shape_cast %111 : vector<1x64x64xbf16> to vector<64x64xbf16>
    %cst_67 = arith.constant dense<0.000000e+00> : vector<49x64xf32>
    %113 = tpu.matmul %110, %112, %cst_67 {dimension_numbers = #tpu.dot_dimension_numbers<[1], [0], [0], [1], [0, 0, 1, 1], [], []>} : vector<49x64xbf16>, vector<64x64xbf16>, vector<49x64xf32> -> vector<49x64xf32>
    %114 = arith.addf %108, %113 : vector<49x64xf32>
    %c0_68 = arith.constant 0 : index
    %c0_69 = arith.constant 0 : index
    %115 = vector.load %arg7[%c0_68, %c0_69] : memref<1x64xf32, #tpu.memory_space<vmem>>, vector<1x64xf32>
    %116 = vector.broadcast %115 : vector<1x64xf32> to vector<49x64xf32>
    %117 = arith.addf %114, %116 : vector<49x64xf32>
    %cst_70 = arith.constant 0.000000e+00 : f32
    %118 = vector.broadcast %cst_70 : f32 to vector<49x64xf32>
    %119 = arith.maximumf %117, %118 : vector<49x64xf32>
    %120 = arith.truncf %119 : vector<49x64xf32> to vector<49x64xbf16>
    %c0_71 = arith.constant 0 : index
    %c0_72 = arith.constant 0 : index
    %c0_73 = arith.constant 0 : index
    %121 = vector.load %arg8[%c0_71, %c0_72, %c0_73] : memref<1x49x64xbf16, #tpu.memory_space<vmem>>, vector<1x49x64xbf16>
    %122 = vector.shape_cast %121 : vector<1x49x64xbf16> to vector<49x64xbf16>
    %123 = vector.shape_cast %120 : vector<49x64xbf16> to vector<1x49x64xbf16>
    tpu.vector_store %arg8[%c0_71, %c0_72, %c0_73], %123 {strides = array<i32>} : memref<1x49x64xbf16, #tpu.memory_space<vmem>>, vector<1x49x64xbf16>,
    return
  }
  func.func @transform_0(%arg0: i32) -> (i32, i32, i32, i32) {
    %c0_i32 = arith.constant 0 : i32
    %c0_i32_0 = arith.constant 0 : i32
    %c0_i32_1 = arith.constant 0 : i32
    %c0_i32_2 = arith.constant 0 : i32
    return %arg0, %c0_i32, %c0_i32_0, %c0_i32_1 : i32, i32, i32, i32
  }
  func.func @transform_1(%arg0: i32) -> (i32, i32, i32) {
    %c0_i32 = arith.constant 0 : i32
    %c0_i32_0 = arith.constant 0 : i32
    %c0_i32_1 = arith.constant 0 : i32
    %c0_i32_2 = arith.constant 0 : i32
    return %c0_i32, %c0_i32_0, %c0_i32_1 : i32, i32, i32
  }
  func.func @transform_2(%arg0: i32) -> (i32, i32) {
    %c0_i32 = arith.constant 0 : i32
    %c0_i32_0 = arith.constant 0 : i32
    %c0_i32_1 = arith.constant 0 : i32
    return %c0_i32, %c0_i32_0 : i32, i32
  }
  func.func @transform_3(%arg0: i32) -> (i32, i32, i32) {
    %c0_i32 = arith.constant 0 : i32
    %c0_i32_0 = arith.constant 0 : i32
    %c0_i32_1 = arith.constant 0 : i32
    %c0_i32_2 = arith.constant 0 : i32
    return %c0_i32, %c0_i32_0, %c0_i32_1 : i32, i32, i32
  }
  func.func @transform_4(%arg0: i32) -> (i32, i32) {
    %c0_i32 = arith.constant 0 : i32
    %c0_i32_0 = arith.constant 0 : i32
    %c0_i32_1 = arith.constant 0 : i32
    return %c0_i32, %c0_i32_0 : i32, i32
  }
  func.func @transform_5(%arg0: i32) -> (i32, i32, i32) {
    %c0_i32 = arith.constant 0 : i32
    %c0_i32_0 = arith.constant 0 : i32
    %c0_i32_1 = arith.constant 0 : i32
    %c0_i32_2 = arith.constant 0 : i32
    return %c0_i32, %c0_i32_0, %c0_i32_1 : i32, i32, i32
  }
  func.func @transform_6(%arg0: i32) -> (i32, i32) {
    %c0_i32 = arith.constant 0 : i32
    %c0_i32_0 = arith.constant 0 : i32
    %c0_i32_1 = arith.constant 0 : i32
    return %c0_i32, %c0_i32_0 : i32, i32
  }
  func.func @transform_7(%arg0: i32) -> (i32, i32, i32) {
    %c0_i32 = arith.constant 0 : i32
    %c0_i32_0 = arith.constant 0 : i32
    %c0_i32_1 = arith.constant 0 : i32
    return %arg0, %c0_i32, %c0_i32_0 : i32, i32, i32
  }
}

module attributes {stable_mosaic.version = 11 : i64} {
  func.func @_mlp_dueling_kernel(%arg0: i32, %arg1: memref<2x3136xbf16, #tpu.memory_space<vmem>>, %arg2: memref<3136x256xi8, #tpu.memory_space<vmem>>, %arg3: memref<1x256xf32, #tpu.memory_space<vmem>>, %arg4: memref<1x256xf32, #tpu.memory_space<vmem>>, %arg5: memref<256x5xbf16, #tpu.memory_space<vmem>>, %arg6: memref<1x5xf32, #tpu.memory_space<vmem>>, %arg7: memref<2x4xf32, #tpu.memory_space<vmem>>, %arg8: memref<2x5xf32, #tpu.memory_space<vmem>>) attributes {dimension_semantics = [#tpu.dimension_semantics<arbitrary>], iteration_bounds = array<i64: 4>, scalar_prefetch = 0 : i64, scratch_operands = 1 : i64, tpu.core_type = #tpu.core_type<tc>, window_params = [{pipeline_mode = #tpu.pipeline_mode<synchronous>, transform_indices = @transform_0, window_bounds = array<i64: 2, 3136>}, {transform_indices = @transform_1, window_bounds = array<i64: 3136, 256>}, {transform_indices = @transform_2, window_bounds = array<i64: 1, 256>}, {transform_indices = @transform_3, window_bounds = array<i64: 1, 256>}, {transform_indices = @transform_4, window_bounds = array<i64: 256, 5>}, {pipeline_mode = #tpu.pipeline_mode<synchronous>, transform_indices = @transform_5, window_bounds = array<i64: 1, 5>}, {pipeline_mode = #tpu.pipeline_mode<synchronous>, transform_indices = @transform_6, window_bounds = array<i64: 2, 4>}]} {
    %c0_i32 = arith.constant 0 : i32
    %0 = arith.cmpi eq, %arg0, %c0_i32 : i32
    %1 = arith.extui %0 : i1 to i32
    %c0_i32_0 = arith.constant 0 : i32
    %2 = arith.cmpi ne, %1, %c0_i32_0 : i32
    scf.if %2 {
      %cst_17 = arith.constant 0.000000e+00 : f32
      %24 = vector.broadcast %cst_17 : f32 to vector<2x5xf32>
      %c0_18 = arith.constant 0 : index
      %c0_19 = arith.constant 0 : index
      %25 = vector.load %arg8[%c0_18, %c0_19] : memref<2x5xf32, #tpu.memory_space<vmem>>, vector<2x5xf32>
      tpu.vector_store %arg8[%c0_18, %c0_19], %24 {strides = array<i32>} : memref<2x5xf32, #tpu.memory_space<vmem>>, vector<2x5xf32>,
    } else {
    }
    %c0 = arith.constant 0 : index
    %c0_1 = arith.constant 0 : index
    %3 = vector.load %arg1[%c0, %c0_1] : memref<2x3136xbf16, #tpu.memory_space<vmem>>, vector<2x3136xbf16>
    %c0_2 = arith.constant 0 : index
    %c0_3 = arith.constant 0 : index
    %4 = vector.load %arg2[%c0_2, %c0_3] : memref<3136x256xi8, #tpu.memory_space<vmem>>, vector<3136x256xi8>
    %5 = arith.sitofp %4 : vector<3136x256xi8> to vector<3136x256xbf16>
    %cst = arith.constant dense<0.000000e+00> : vector<2x256xf32>
    %6 = tpu.matmul %3, %5, %cst {dimension_numbers = #tpu.dot_dimension_numbers<[1], [0], [0], [1], [0, 0, 1, 1], [], []>} : vector<2x3136xbf16>, vector<3136x256xbf16>, vector<2x256xf32> -> vector<2x256xf32>
    %c0_4 = arith.constant 0 : index
    %c0_5 = arith.constant 0 : index
    %7 = vector.load %arg3[%c0_4, %c0_5] : memref<1x256xf32, #tpu.memory_space<vmem>>, vector<1x256xf32>
    %8 = vector.broadcast %7 : vector<1x256xf32> to vector<2x256xf32>
    %9 = arith.mulf %6, %8 : vector<2x256xf32>
    %c0_6 = arith.constant 0 : index
    %c0_7 = arith.constant 0 : index
    %10 = vector.load %arg4[%c0_6, %c0_7] : memref<1x256xf32, #tpu.memory_space<vmem>>, vector<1x256xf32>
    %11 = vector.broadcast %10 : vector<1x256xf32> to vector<2x256xf32>
    %12 = arith.addf %9, %11 : vector<2x256xf32>
    %cst_8 = arith.constant 0.000000e+00 : f32
    %13 = vector.broadcast %cst_8 : f32 to vector<2x256xf32>
    %14 = arith.maximumf %12, %13 : vector<2x256xf32>
    %15 = arith.truncf %14 : vector<2x256xf32> to vector<2x256xbf16>
    %c0_9 = arith.constant 0 : index
    %c0_10 = arith.constant 0 : index
    %16 = vector.load %arg8[%c0_9, %c0_10] : memref<2x5xf32, #tpu.memory_space<vmem>>, vector<2x5xf32>
    %c0_11 = arith.constant 0 : index
    %c0_12 = arith.constant 0 : index
    %17 = vector.load %arg5[%c0_11, %c0_12] : memref<256x5xbf16, #tpu.memory_space<vmem>>, vector<256x5xbf16>
    %cst_13 = arith.constant dense<0.000000e+00> : vector<2x5xf32>
    %18 = tpu.matmul %15, %17, %cst_13 {dimension_numbers = #tpu.dot_dimension_numbers<[1], [0], [0], [1], [0, 0, 1, 1], [], []>} : vector<2x256xbf16>, vector<256x5xbf16>, vector<2x5xf32> -> vector<2x5xf32>
    %19 = arith.addf %16, %18 : vector<2x5xf32>
    %c0_14 = arith.constant 0 : index
    %c0_15 = arith.constant 0 : index
    %20 = vector.load %arg8[%c0_14, %c0_15] : memref<2x5xf32, #tpu.memory_space<vmem>>, vector<2x5xf32>
    tpu.vector_store %arg8[%c0_14, %c0_15], %19 {strides = array<i32>} : memref<2x5xf32, #tpu.memory_space<vmem>>, vector<2x5xf32>,
    %c3_i32 = arith.constant 3 : i32
    %21 = arith.cmpi eq, %arg0, %c3_i32 : i32
    %22 = arith.extui %21 : i1 to i32
    %c0_i32_16 = arith.constant 0 : i32
    %23 = arith.cmpi ne, %22, %c0_i32_16 : i32
    scf.if %23 {
      %c0_17 = arith.constant 0 : index
      %c0_18 = arith.constant 0 : index
      %24 = vector.load %arg8[%c0_17, %c0_18] : memref<2x5xf32, #tpu.memory_space<vmem>>, vector<2x5xf32>
      %c0_19 = arith.constant 0 : index
      %c0_20 = arith.constant 0 : index
      %25 = vector.load %arg6[%c0_19, %c0_20] : memref<1x5xf32, #tpu.memory_space<vmem>>, vector<1x5xf32>
      %26 = vector.broadcast %25 : vector<1x5xf32> to vector<2x5xf32>
      %27 = arith.addf %24, %26 : vector<2x5xf32>
      %28 = vector.extract_strided_slice %27 {offsets = [0, 0], sizes = [2, 4], strides = [1, 1]} : vector<2x5xf32> to vector<2x4xf32>
      %29 = vector.extract_strided_slice %27 {offsets = [0, 4], sizes = [2, 1], strides = [1, 1]} : vector<2x5xf32> to vector<2x1xf32>
      %30 = vector.broadcast %29 : vector<2x1xf32> to vector<2x4xf32>
      %31 = arith.addf %30, %28 : vector<2x4xf32>
      %cst_21 = arith.constant dense<0.000000e+00> : vector<2xf32>
      %32 = vector.multi_reduction <add>, %28, %cst_21 [1] : vector<2x4xf32> to vector<2xf32>
      %33 = vector.shape_cast %32 : vector<2xf32> to vector<2x1xf32>
      %cst_22 = arith.constant 4.000000e+00 : f32
      %34 = vector.broadcast %cst_22 : f32 to vector<2x1xf32>
      %35 = arith.divf %33, %34 : vector<2x1xf32>
      %36 = vector.broadcast %35 : vector<2x1xf32> to vector<2x4xf32>
      %37 = arith.subf %31, %36 : vector<2x4xf32>
      %c0_23 = arith.constant 0 : index
      %c0_24 = arith.constant 0 : index
      %38 = vector.load %arg7[%c0_23, %c0_24] : memref<2x4xf32, #tpu.memory_space<vmem>>, vector<2x4xf32>
      tpu.vector_store %arg7[%c0_23, %c0_24], %37 {strides = array<i32>} : memref<2x4xf32, #tpu.memory_space<vmem>>, vector<2x4xf32>,
    } else {
    }
    return
  }
  func.func @transform_0(%arg0: i32) -> (i32, i32) {
    %c0_i32 = arith.constant 0 : i32
    %c0_i32_0 = arith.constant 0 : i32
    %c0_i32_1 = arith.constant 0 : i32
    return %c0_i32, %c0_i32_0 : i32, i32
  }
  func.func @transform_1(%arg0: i32) -> (i32, i32) {
    %c0_i32 = arith.constant 0 : i32
    %c0_i32_0 = arith.constant 0 : i32
    return %c0_i32, %arg0 : i32, i32
  }
  func.func @transform_2(%arg0: i32) -> (i32, i32) {
    %c0_i32 = arith.constant 0 : i32
    %c0_i32_0 = arith.constant 0 : i32
    return %c0_i32, %arg0 : i32, i32
  }
  func.func @transform_3(%arg0: i32) -> (i32, i32) {
    %c0_i32 = arith.constant 0 : i32
    %c0_i32_0 = arith.constant 0 : i32
    return %c0_i32, %arg0 : i32, i32
  }
  func.func @transform_4(%arg0: i32) -> (i32, i32) {
    %c0_i32 = arith.constant 0 : i32
    %c0_i32_0 = arith.constant 0 : i32
    return %arg0, %c0_i32 : i32, i32
  }
  func.func @transform_5(%arg0: i32) -> (i32, i32) {
    %c0_i32 = arith.constant 0 : i32
    %c0_i32_0 = arith.constant 0 : i32
    %c0_i32_1 = arith.constant 0 : i32
    return %c0_i32, %c0_i32_0 : i32, i32
  }
  func.func @transform_6(%arg0: i32) -> (i32, i32) {
    %c0_i32 = arith.constant 0 : i32
    %c0_i32_0 = arith.constant 0 : i32
    %c0_i32_1 = arith.constant 0 : i32
    return %c0_i32, %c0_i32_0 : i32, i32
  }
}

</mosaic_0001>

<llo_original>
// kernel: net_forward.3
$region0: #{net_forward.3}
  #allocation0 [shape = 'u32[]', space=smem, size = 0x4, offset = 0x4, fixed_abs, tag = 'smem constant byte address 0x4 - core index']
  #allocation1 [shape = 'u32[72,128]{1,0:T(1,128)}', space=vmem, size = 0x9000, scoped, tag = 'internal scratch']
  #allocation2 [shape = 'f32[2,5]{1,0:T(2,128)}', space=vmem, size = 0x400, scoped, tag = 'scratch operand']
  %s0 = inlined_call_operand.vmem [shape: bf16[2,3136], index: 0, kind: input, shape index: {}]
  %s1 = inlined_call_operand.vmem [shape: s8[3136,1024], index: 1, kind: input, shape index: {}]
  %s2 = inlined_call_operand.vmem [shape: f32[1,1024], index: 2, kind: input, shape index: {}]
  %s3 = inlined_call_operand.vmem [shape: f32[1,1024], index: 3, kind: input, shape index: {}]
  %s4 = inlined_call_operand.vmem [shape: bf16[1024,5], index: 4, kind: input, shape index: {}]
  %s5 = inlined_call_operand.vmem [shape: f32[1,5], index: 5, kind: input, shape index: {}]
  %s6 = inlined_call_operand.hbm [shape: f32[2,4], index: 6, kind: output, shape index: {}]
  %s7 = sld [smem:[#allocation0]]
  $region88: #{net_forward.3} parent=0
    _
  %s9 = ssub.s32 1, %s7
  %s10 = scalar_select 0, %s9, %s7
  $region1: #{net_forward.3} parent=0
    #allocation3 [shape = 'u8[1605632]{0}', space=vmem, size = 0x188000, scoped, tag = 'input window, operand 1']
    #allocation4 [shape = 'u8[1024]{0}', space=vmem, size = 0x400, scoped, tag = 'output window, operand 0, single buffered']
    #allocation5 [shape = 's32[2]{0}', space=sflag, size = 0x8, scoped, tag = 'scoped memory for net_forward.3']
    %11 = vsyncpa [#allocation5], 0
    loop: start=0, step=1, limit=6
    $region2: #{net_forward.3} parent=1 // loop_pre_header
      _
    $region3: #{net_forward.3} parent=1 // loop_header
      %s13 = sphi 0, %s17
      %p14 = scmp.ge.s32.totalorder %s13, 6
      %s21 = sphi 0, %s21
      %s23 = sphi 0, %s21
      %s24 = sphi 0, %s23
      %s38 = sphi 0, %s24
      %s44 = sphi 0, %s46
      %s47 = sphi 0, %s44
      %s48 = sphi 0, %s47
      %s64 = sphi 0, %s48
      %s70 = sphi 0, %s72
      %s73 = sphi 0, %s70
      %s74 = sphi 0, %s73
      %s90 = sphi 0, %s74
      %s96 = sphi 0, %s98
      %s99 = sphi 0, %s96
      %s100 = sphi 0, %s99
      %s116 = sphi 0, %s100
      %s122 = sphi 0, %s124
      %s125 = sphi 0, %s122
      %s126 = sphi 0, %s125
      %s142 = sphi 0, %s126
      %s146 = sphi 0, %s146
      %s148 = sphi 0, %s146
      %s149 = sphi 0, %s148
      %s163 = sphi 0, %s149
      %s167 = sphi 0, %s167
      %s169 = sphi 0, %s167
      %s170 = sphi 0, %s169
      %s184 = sphi 0, %s170
    $region4: #{net_forward.3} parent=1 // loop_header_branch
      %16 = sbr.rel (%p14) target = $region8
    $region5: #{net_forward.3} parent=1 // loop_body
      %s18 = ssub.s32 %s13, 1
      %s19 = ssub.s32 %s13, 2
      %s20 = sadd.s32 %s13, 1
      %s22 = sadd.s32 %s21, 1
      %p25 = scmp.eq.s32.totalorder %s13, 3
      %p26 = scmp.ne.s32.totalorder %s21, %s23
      %p27 = scmp.eq.s32.totalorder %s13, 0
      %p28 = por %p26, %p27
      %p29 = scmp.ne.s32.totalorder %s21, %s23
      %p30 = scmp.eq.s32.totalorder %s18, 3
      %p31 = por %p29, %p30
      %p32 = scmp.ne.s32.totalorder %s23, %s24
      %p33 = scmp.eq.s32.totalorder %s18, 0
      %p34 = por %p32, %p33
      %p35 = scmp.ne.s32.totalorder %s23, %s24
      %p36 = scmp.eq.s32.totalorder %s19, 3
      %p37 = por %p35, %p36
      %p39 = scmp.ne.s32.totalorder %s24, %s38
      %p40 = scmp.eq.s32.totalorder %s19, 0
      %p41 = por %p39, %p40
      %s42 = ssub.s32 %s13, %s20
      %p43 = scmp.eq.s32.totalorder %s42, 0
      %s45 = sadd.s32 %s44, 1
      %s46 = scalar_select %p43, %s44, %s45
      %p49 = pneg %p43
      %p50 = scmp.eq.s32.totalorder %s13, 3
      %p51 = por %p49, %p50
      %p52 = scmp.ne.s32.totalorder %s44, %s47
      %p53 = scmp.eq.s32.totalorder %s13, 0
      %p54 = por %p52, %p53
      %p55 = scmp.ne.s32.totalorder %s44, %s47
      %p56 = scmp.eq.s32.totalorder %s18, 3
      %p57 = por %p55, %p56
      %p58 = scmp.ne.s32.totalorder %s47, %s48
      %p59 = scmp.eq.s32.totalorder %s18, 0
      %p60 = por %p58, %p59
      %p61 = scmp.ne.s32.totalorder %s47, %s48
      %p62 = scmp.eq.s32.totalorder %s19, 3
      %p63 = por %p61, %p62
      %p65 = scmp.ne.s32.totalorder %s48, %s64
      %p66 = scmp.eq.s32.totalorder %s19, 0
      %p67 = por %p65, %p66
      %s68 = ssub.s32 %s13, %s20
      %p69 = scmp.eq.s32.totalorder %s68, 0
      %s71 = sadd.s32 %s70, 1
      %s72 = scalar_select %p69, %s70, %s71
      %p75 = pneg %p69
      %p76 = scmp.eq.s32.totalorder %s13, 3
      %p77 = por %p75, %p76
      %p78 = scmp.ne.s32.totalorder %s70, %s73
      %p79 = scmp.eq.s32.totalorder %s13, 0
      %p80 = por %p78, %p79
      %p81 = scmp.ne.s32.totalorder %s70, %s73
      %p82 = scmp.eq.s32.totalorder %s18, 3
      %p83 = por %p81, %p82
      %p84 = scmp.ne.s32.totalorder %s73, %s74
      %p85 = scmp.eq.s32.totalorder %s18, 0
      %p86 = por %p84, %p85
      %p87 = scmp.ne.s32.totalorder %s73, %s74
      %p88 = scmp.eq.s32.totalorder %s19, 3
      %p89 = por %p87, %p88
      %p91 = scmp.ne.s32.totalorder %s74, %s90
      %p92 = scmp.eq.s32.totalorder %s19, 0
      %p93 = por %p91, %p92
      %s94 = ssub.s32 %s13, %s20
      %p95 = scmp.eq.s32.totalorder %s94, 0
      %s97 = sadd.s32 %s96, 1
      %s98 = scalar_select %p95, %s96, %s97
      %p101 = pneg %p95
      %p102 = scmp.eq.s32.totalorder %s13, 3
      %p103 = por %p101, %p102
      %p104 = scmp.ne.s32.totalorder %s96, %s99
      %p105 = scmp.eq.s32.totalorder %s13, 0
      %p106 = por %p104, %p105
      %p107 = scmp.ne.s32.totalorder %s96, %s99
      %p108 = scmp.eq.s32.totalorder %s18, 3
      %p109 = por %p107, %p108
      %p110 = scmp.ne.s32.totalorder %s99, %s100
      %p111 = scmp.eq.s32.totalorder %s18, 0
      %p112 = por %p110, %p111
      %p113 = scmp.ne.s32.totalorder %s99, %s100
      %p114 = scmp.eq.s32.totalorder %s19, 3
      %p115 = por %p113, %p114
      %p117 = scmp.ne.s32.totalorder %s100, %s116
      %p118 = scmp.eq.s32.totalorder %s19, 0
      %p119 = por %p117, %p118
      %s120 = ssub.s32 %s13, %s20
      %p121 = scmp.eq.s32.totalorder %s120, 0
      %s123 = sadd.s32 %s122, 1
      %s124 = scalar_select %p121, %s122, %s123
      %p127 = pneg %p121
      %p128 = scmp.eq.s32.totalorder %s13, 3
      %p129 = por %p127, %p128
      %p130 = scmp.ne.s32.totalorder %s122, %s125
      %p131 = scmp.eq.s32.totalorder %s13, 0
      %p132 = por %p130, %p131
      %p133 = scmp.ne.s32.totalorder %s122, %s125
      %p134 = scmp.eq.s32.totalorder %s18, 3
      %p135 = por %p133, %p134
      %p136 = scmp.ne.s32.totalorder %s125, %s126
      %p137 = scmp.eq.s32.totalorder %s18, 0
      %p138 = por %p136, %p137
      %p139 = scmp.ne.s32.totalorder %s125, %s126
      %p140 = scmp.eq.s32.totalorder %s19, 3
      %p141 = por %p139, %p140
      %p143 = scmp.ne.s32.totalorder %s126, %s142
      %p144 = scmp.eq.s32.totalorder %s19, 0
      %p145 = por %p143, %p144
      %s147 = sadd.s32 %s146, 1
      %p150 = scmp.eq.s32.totalorder %s13, 3
      %p151 = scmp.ne.s32.totalorder %s146, %s148
      %p152 = scmp.eq.s32.totalorder %s13, 0
      %p153 = por %p151, %p152
      %p154 = scmp.ne.s32.totalorder %s146, %s148
      %p155 = scmp.eq.s32.totalorder %s18, 3
      %p156 = por %p154, %p155
      %p157 = scmp.ne.s32.totalorder %s148, %s149
      %p158 = scmp.eq.s32.totalorder %s18, 0
      %p159 = por %p157, %p158
      %p160 = scmp.ne.s32.totalorder %s148, %s149
      %p161 = scmp.eq.s32.totalorder %s19, 3
      %p162 = por %p160, %p161
      %p164 = scmp.ne.s32.totalorder %s149, %s163
      %p165 = scmp.eq.s32.totalorder %s19, 0
      %p166 = por %p164, %p165
      %s168 = sadd.s32 %s167, 1
      %p171 = scmp.eq.s32.totalorder %s13, 3
      %p172 = scmp.ne.s32.totalorder %s167, %s169
      %p173 = scmp.eq.s32.totalorder %s13, 0
      %p174 = por %p172, %p173
      %p175 = scmp.ne.s32.totalorder %s167, %s169
      %p176 = scmp.eq.s32.totalorder %s18, 3
      %p177 = por %p175, %p176
      %p178 = scmp.ne.s32.totalorder %s169, %s170
      %p179 = scmp.eq.s32.totalorder %s18, 0
      %p180 = por %p178, %p179
      %p181 = scmp.ne.s32.totalorder %s169, %s170
      %p182 = scmp.eq.s32.totalorder %s19, 3
      %p183 = por %p181, %p182
      %p185 = scmp.ne.s32.totalorder %s170, %s184
      %p186 = scmp.eq.s32.totalorder %s19, 0
      %p187 = por %p185, %p186
      %p188 = scmp.le.s32.totalorder 1, %s13
      %p189 = scmp.lt.s32.totalorder %s13, 5
      %p190 = pnand %p188, %p189
      %p191 = pneg %p190
      // Predicated region
      $region9: #{net_forward.3} parent=5 // pred_check
        _
      $region10: #{net_forward.3} parent=5 // pred_check_branch
        %193 = sbr.rel (%p190) target = $region12
      $region11: #{net_forward.3} parent=5 // pred_region
        %s194 = ssub.s32 %s13, 1
        // Predicated region
        $region13: #{net_forward.3} parent=11 // pred_check
          %p195 = pneg %p34
        $region14: #{net_forward.3} parent=11 // pred_check_branch
          %197 = sbr.rel (%p195) target = $region16
        $region15: #{net_forward.3} parent=11 // pred_region
          _
        $region16: #{net_forward.3} parent=11 // pred_fallthru
          _
        // Predicated region
        $region17: #{net_forward.3} parent=11 // pred_check
          %p198 = pneg %p159
        $region18: #{net_forward.3} parent=11 // pred_check_branch
          %200 = sbr.rel (%p198) target = $region20
        $region19: #{net_forward.3} parent=11 // pred_region
          _
        $region20: #{net_forward.3} parent=11 // pred_fallthru
          _
      $region12: #{net_forward.3} parent=5 // pred_fallthru
        _
      %p201 = scmp.lt.s32.totalorder %s13, 4
      // Predicated region
      $region21: #{net_forward.3} parent=5 // pred_check
        %p202 = pneg %p201
      $region22: #{net_forward.3} parent=5 // pred_check_branch
        %204 = sbr.rel (%p202) target = $region24
      $region23: #{net_forward.3} parent=5 // pred_region
        // Predicated region
        $region25: #{net_forward.3} parent=23 // pred_check
          %p205 = pneg %p54
        $region26: #{net_forward.3} parent=23 // pred_check_branch
          %207 = sbr.rel (%p205) target = $region28
        $region27: #{net_forward.3} parent=23 // pred_region
          %s208 = sand.u32 %s44, 1
          %s209 = sand.u32 %s44, 1
          %s210 = smul.addr %s209, 1568
          %s211 = scalar_lea.vmem [#allocation3], %s210
          %s212 = smul.u32 2, %s13
          %s213 = smul.addr %s212, 8
          %s214 = scalar_lea.vmem %s1, %s213
          // Predicated region
          $region29: #{net_forward.3} parent=27 // pred_check
            _
          $region30: #{net_forward.3} parent=27 // pred_check_branch
            %216 = sbr.rel (0) target = $region32
          $region31: #{net_forward.3} parent=27 // pred_region
            // Predicated region
            $region33: #{net_forward.3} parent=31 // pred_check
              _
            $region34: #{net_forward.3} parent=31 // pred_check_branch
              %218 = sbr.rel (0) target = $region36
            $region35: #{net_forward.3} parent=31 // pred_region
              loop: start=0, step=1, limit=1
              $region37: #{net_forward.3} parent=35 // loop_pre_header
                _
              $region38: #{net_forward.3} parent=35 // loop_header
                %s220 = sphi 0, %s224
                %p221 = scmp.ge.s32.totalorder %s220, 1
                %s225 = sphi %s214, %s214
                %s226 = sphi %s211, %s211
              $region39: #{net_forward.3} parent=35 // loop_header_branch
                %223 = sbr.rel (%p221) target = $region43
              $region40: #{net_forward.3} parent=35 // loop_body
                %v227 = vld [vmem:[%s225] sm:$0xff]
                %228 = vst [vmem:[%s226] sm:$0xff] %v227
                %v229 = vld [vmem:[%s225 + $0x8] sm:$0xff]
                %230 = vst [vmem:[%s226 + $0x8] sm:$0xff] %v229
                %v231 = vld [vmem:[%s225 + $0x40] sm:$0xff]
                %232 = vst [vmem:[%s226 + $0x10] sm:$0xff] %v231
                %v233 = vld [vmem:[%s225 + $0x48] sm:$0xff]
                %234 = vst [vmem:[%s226 + $0x18] sm:$0xff] %v233
                %v235 = vld [vmem:[%s225 + $0x80] sm:$0xff]
                %236 = vst [vmem:[%s226 + $0x20] sm:$0xff] %v235
                %v237 = vld [vmem:[%s225 + $0x88] sm:$0xff]
                %238 = vst [vmem:[%s226 + $0x28] sm:$0xff] %v237
                %v239 = vld [vmem:[%s225 + $0xc0] sm:$0xff]
                %240 = vst [vmem:[%s226 + $0x30] sm:$0xff] %v239
                %v241 = vld [vmem:[%s225 + $0xc8] sm:$0xff]
                %242 = vst [vmem:[%s226 + $0x38] sm:$0xff] %v241
                %v243 = vld [vmem:[%s225 + $0x100] sm:$0xff]
                %244 = vst [vmem:[%s226 + $0x40] sm:$0xff] %v243
                %v245 = vld [vmem:[%s225 + $0x108] sm:$0xff]
                %246 = vst [vmem:[%s226 + $0x48] sm:$0xff] %v245
                %v247 = vld [vmem:[%s225 + $0x140] sm:$0xff]
                %248 = vst [vmem:[%s226 + $0x50] sm:$0xff] %v247
                %v249 = vld [vmem:[%s225 + $0x148] sm:$0xff]
                %250 = vst [vmem:[%s226 + $0x58] sm:$0xff] %v249
                %v251 = vld [vmem:[%s225 + $0x180] sm:$0xff]
                %252 = vst [vmem:[%s226 + $0x60] sm:$0xff] %v251
                %v253 = vld [vmem:[%s225 + $0x188] sm:$0xff]
                %254 = vst [vmem:[%s226 + $0x68] sm:$0xff] %v253
                %v255 = vld [vmem:[%s225 + $0x1c0] sm:$0xff]
                %256 = vst [vmem:[%s226 + $0x70] sm:$0xff] %v255
                %v257 = vld [vmem:[%s225 + $0x1c8] sm:$0xff]
                %258 = vst [vmem:[%s226 + $0x78] sm:$0xff] %v257
                %v259 = vld [vmem:[%s225 + $0x200] sm:$0xff]
                %260 = vst [vmem:[%s226 + $0x80] sm:$0xff] %v259
                %v261 = vld [vmem:[%s225 + $0x208] sm:$0xff]
                %262 = vst [vmem:[%s226 + $0x88] sm:$0xff] %v261
                %v263 = vld [vmem:[%s225 + $0x240] sm:$0xff]
                %264 = vst [vmem:[%s226 + $0x90] sm:$0xff] %v263
                %v265 = vld [vmem:[%s225 + $0x248] sm:$0xff]
                %266 = vst [vmem:[%s226 + $0x98] sm:$0xff] %v265
                %v267 = vld [vmem:[%s225 + $0x280] sm:$0xff]
                %268 = vst [vmem:[%s226 + $0xa0] sm:$0xff] %v267
                %v269 = vld [vmem:[%s225 + $0x288] sm:$0xff]
                %270 = vst [vmem:[%s226 + $0xa8] sm:$0xff] %v269
                %v271 = vld [vmem:[%s225 + $0x2c0] sm:$0xff]
                %272 = vst [vmem:[%s226 + $0xb0] sm:$0xff] %v271
                %v273 = vld [vmem:[%s225 + $0x2c8] sm:$0xff]
                %274 = vst [vmem:[%s226 + $0xb8] sm:$0xff] %v273
                %v275 = vld [vmem:[%s225 + $0x300] sm:$0xff]
                %276 = vst [vmem:[%s226 + $0xc0] sm:$0xff] %v275
                %v277 = vld [vmem:[%s225 + $0x308] sm:$0xff]
                %278 = vst [vmem:[%s226 + $0xc8] sm:$0xff] %v277
                %v279 = vld [vmem:[%s225 + $0x340] sm:$0xff]
                %280 = vst [vmem:[%s226 + $0xd0] sm:$0xff] %v279
                %v281 = vld [vmem:[%s225 + $0x348] sm:$0xff]
                %282 = vst [vmem:[%s226 + $0xd8] sm:$0xff] %v281
                %v283 = vld [vmem:[%s225 + $0x380] sm:$0xff]
                %284 = vst [vmem:[%s226 + $0xe0] sm:$0xff] %v283
                %v285 = vld [vmem:[%s225 + $0x388] sm:$0xff]
                %286 = vst [vmem:[%s226 + $0xe8] sm:$0xff] %v285
                %v287 = vld [vmem:[%s225 + $0x3c0] sm:$0xff]
                %288 = vst [vmem:[%s226 + $0xf0] sm:$0xff] %v287
                %v289 = vld [vmem:[%s225 + $0x3c8] sm:$0xff]
                %290 = vst [vmem:[%s226 + $0xf8] sm:$0xff] %v289
                %v291 = vld [vmem:[%s225 + $0x400] sm:$0xff]
                %292 = vst [vmem:[%s226 + $0x100] sm:$0xff] %v291
                %v293 = vld [vmem:[%s225 + $0x408] sm:$0xff]
                %294 = vst [vmem:[%s226 + $0x108] sm:$0xff] %v293
                %v295 = vld [vmem:[%s225 + $0x440] sm:$0xff]
                %296 = vst [vmem:[%s226 + $0x110] sm:$0xff] %v295
                %v297 = vld [vmem:[%s225 + $0x448] sm:$0xff]
                %298 = vst [vmem:[%s226 + $0x118] sm:$0xff] %v297
                %v299 = vld [vmem:[%s225 + $0x480] sm:$0xff]
                %300 = vst [vmem:[%s226 + $0x120] sm:$0xff] %v299
                %v301 = vld [vmem:[%s225 + $0x488] sm:$0xff]
                %302 = vst [vmem:[%s226 + $0x128] sm:$0xff] %v301
                %v303 = vld [vmem:[%s225 + $0x4c0] sm:$0xff]
                %304 = vst [vmem:[%s226 + $0x130] sm:$0xff] %v303
                %v305 = vld [vmem:[%s225 + $0x4c8] sm:$0xff]
                %306 = vst [vmem:[%s226 + $0x138] sm:$0xff] %v305
                %v307 = vld [vmem:[%s225 + $0x500] sm:$0xff]
                %308 = vst [vmem:[%s226 + $0x140] sm:$0xff] %v307
                %v309 = vld [vmem:[%s225 + $0x508] sm:$0xff]
                %310 = vst [vmem:[%s226 + $0x148] sm:$0xff] %v309
                %v311 = vld [vmem:[%s225 + $0x540] sm:$0xff]
                %312 = vst [vmem:[%s226 + $0x150] sm:$0xff] %v311
                %v313 = vld [vmem:[%s225 + $0x548] sm:$0xff]
                %314 = vst [vmem:[%s226 + $0x158] sm:$0xff] %v313
                %v315 = vld [vmem:[%s225 + $0x580] sm:$0xff]
                %316 = vst [vmem:[%s226 + $0x160] sm:$0xff] %v315
                %v317 = vld [vmem:[%s225 + $0x588] sm:$0xff]
                %318 = vst [vmem:[%s226 + $0x168] sm:$0xff] %v317
                %v319 = vld [vmem:[%s225 + $0x5c0] sm:$0xff]
                %320 = vst [vmem:[%s226 + $0x170] sm:$0xff] %v319
                %v321 = vld [vmem:[%s225 + $0x5c8] sm:$0xff]
                %322 = vst [vmem:[%s226 + $0x178] sm:$0xff] %v321
                %v323 = vld [vmem:[%s225 + $0x600] sm:$0xff]
                %324 = vst [vmem:[%s226 + $0x180] sm:$0xff] %v323
                %v325 = vld [vmem:[%s225 + $0x608] sm:$0xff]
                %326 = vst [vmem:[%s226 + $0x188] sm:$0xff] %v325
                %v327 = vld [vmem:[%s225 + $0x640] sm:$0xff]
                %328 = vst [vmem:[%s226 + $0x190] sm:$0xff] %v327
                %v329 = vld [vmem:[%s225 + $0x648] sm:$0xff]
                %330 = vst [vmem:[%s226 + $0x198] sm:$0xff] %v329
                %v331 = vld [vmem:[%s225 + $0x680] sm:$0xff]
                %332 = vst [vmem:[%s226 + $0x1a0] sm:$0xff] %v331
                %v333 = vld [vmem:[%s225 + $0x688] sm:$0xff]
                %334 = vst [vmem:[%s226 + $0x1a8] sm:$0xff] %v333
                %v335 = vld [vmem:[%s225 + $0x6c0] sm:$0xff]
                %336 = vst [vmem:[%s226 + $0x1b0] sm:$0xff] %v335
                %v337 = vld [vmem:[%s225 + $0x6c8] sm:$0xff]
                %338 = vst [vmem:[%s226 + $0x1b8] sm:$0xff] %v337
                %v339 = vld [vmem:[%s225 + $0x700] sm:$0xff]
                %340 = vst [vmem:[%s226 + $0x1c0] sm:$0xff] %v339
                %v341 = vld [vmem:[%s225 + $0x708] sm:$0xff]
                %342 = vst [vmem:[%s226 + $0x1c8] sm:$0xff] %v341
                %v343 = vld [vmem:[%s225 + $0x740] sm:$0xff]
                %344 = vst [vmem:[%s226 + $0x1d0] sm:$0xff] %v343
                %v345 = vld [vmem:[%s225 + $0x748] sm:$0xff]
                %346 = vst [vmem:[%s226 + $0x1d8] sm:$0xff] %v345
                %v347 = vld [vmem:[%s225 + $0x780] sm:$0xff]
                %348 = vst [vmem:[%s226 + $0x1e0] sm:$0xff] %v347
                %v349 = vld [vmem:[%s225 + $0x788] sm:$0xff]
                %350 = vst [vmem:[%s226 + $0x1e8] sm:$0xff] %v349
                %v351 = vld [vmem:[%s225 + $0x7c0] sm:$0xff]
                %352 = vst [vmem:[%s226 + $0x1f0] sm:$0xff] %v351
                %v353 = vld [vmem:[%s225 + $0x7c8] sm:$0xff]
                %354 = vst [vmem:[%s226 + $0x1f8] sm:$0xff] %v353
                %v355 = vld [vmem:[%s225 + $0x800] sm:$0xff]
                %356 = vst [vmem:[%s226 + $0x200] sm:$0xff] %v355
                %v357 = vld [vmem:[%s225 + $0x808] sm:$0xff]
                %358 = vst [vmem:[%s226 + $0x208] sm:$0xff] %v357
                %v359 = vld [vmem:[%s225 + $0x840] sm:$0xff]
                %360 = vst [vmem:[%s226 + $0x210] sm:$0xff] %v359
                %v361 = vld [vmem:[%s225 + $0x848] sm:$0xff]
                %362 = vst [vmem:[%s226 + $0x218] sm:$0xff] %v361
                %v363 = vld [vmem:[%s225 + $0x880] sm:$0xff]
                %364 = vst [vmem:[%s226 + $0x220] sm:$0xff] %v363
                %v365 = vld [vmem:[%s225 + $0x888] sm:$0xff]
                %366 = vst [vmem:[%s226 + $0x228] sm:$0xff] %v365
                %v367 = vld [vmem:[%s225 + $0x8c0] sm:$0xff]
                %368 = vst [vmem:[%s226 + $0x230] sm:$0xff] %v367
                %v369 = vld [vmem:[%s225 + $0x8c8] sm:$0xff]
                %370 = vst [vmem:[%s226 + $0x238] sm:$0xff] %v369
                %v371 = vld [vmem:[%s225 + $0x900] sm:$0xff]
                %372 = vst [vmem:[%s226 + $0x240] sm:$0xff] %v371
                %v373 = vld [vmem:[%s225 + $0x908] sm:$0xff]
                %374 = vst [vmem:[%s226 + $0x248] sm:$0xff] %v373
                %v375 = vld [vmem:[%s225 + $0x940] sm:$0xff]
                %376 = vst [vmem:[%s226 + $0x250] sm:$0xff] %v375
                %v377 = vld [vmem:[%s225 + $0x948] sm:$0xff]
                %378 = vst [vmem:[%s226 + $0x258] sm:$0xff] %v377
                %v379 = vld [vmem:[%s225 + $0x980] sm:$0xff]
                %380 = vst [vmem:[%s226 + $0x260] sm:$0xff] %v379
                %v381 = vld [vmem:[%s225 + $0x988] sm:$0xff]
                %382 = vst [vmem:[%s226 + $0x268] sm:$0xff] %v381
                %v383 = vld [vmem:[%s225 + $0x9c0] sm:$0xff]
                %384 = vst [vmem:[%s226 + $0x270] sm:$0xff] %v383
                %v385 = vld [vmem:[%s225 + $0x9c8] sm:$0xff]
                %386 = vst [vmem:[%s226 + $0x278] sm:$0xff] %v385
                %v387 = vld [vmem:[%s225 + $0xa00] sm:$0xff]
                %388 = vst [vmem:[%s226 + $0x280] sm:$0xff] %v387
                %v389 = vld [vmem:[%s225 + $0xa08] sm:$0xff]
                %390 = vst [vmem:[%s226 + $0x288] sm:$0xff] %v389
                %v391 = vld [vmem:[%s225 + $0xa40] sm:$0xff]
                %392 = vst [vmem:[%s226 + $0x290] sm:$0xff] %v391
                %v393 = vld [vmem:[%s225 + $0xa48] sm:$0xff]
                %394 = vst [vmem:[%s226 + $0x298] sm:$0xff] %v393
                %v395 = vld [vmem:[%s225 + $0xa80] sm:$0xff]
                %396 = vst [vmem:[%s226 + $0x2a0] sm:$0xff] %v395
                %v397 = vld [vmem:[%s225 + $0xa88] sm:$0xff]
                %398 = vst [vmem:[%s226 + $0x2a8] sm:$0xff] %v397
                %v399 = vld [vmem:[%s225 + $0xac0] sm:$0xff]
                %400 = vst [vmem:[%s226 + $0x2b0] sm:$0xff] %v399
                %v401 = vld [vmem:[%s225 + $0xac8] sm:$0xff]
                %402 = vst [vmem:[%s226 + $0x2b8] sm:$0xff] %v401
                %v403 = vld [vmem:[%s225 + $0xb00] sm:$0xff]
                %404 = vst [vmem:[%s226 + $0x2c0] sm:$0xff] %v403
                %v405 = vld [vmem:[%s225 + $0xb08] sm:$0xff]
                %406 = vst [vmem:[%s226 + $0x2c8] sm:$0xff] %v405
                %v407 = vld [vmem:[%s225 + $0xb40] sm:$0xff]
                %408 = vst [vmem:[%s226 + $0x2d0] sm:$0xff] %v407
                %v409 = vld [vmem:[%s225 + $0xb48] sm:$0xff]
                %410 = vst [vmem:[%s226 + $0x2d8] sm:$0xff] %v409
                %v411 = vld [vmem:[%s225 + $0xb80] sm:$0xff]
                %412 = vst [vmem:[%s226 + $0x2e0] sm:$0xff] %v411
                %v413 = vld [vmem:[%s225 + $0xb88] sm:$0xff]
                %414 = vst [vmem:[%s226 + $0x2e8] sm:$0xff] %v413
                %v415 = vld [vmem:[%s225 + $0xbc0] sm:$0xff]
                %416 = vst [vmem:[%s226 + $0x2f0] sm:$0xff] %v415
                %v417 = vld [vmem:[%s225 + $0xbc8] sm:$0xff]
                %418 = vst [vmem:[%s226 + $0x2f8] sm:$0xff] %v417
                %v419 = vld [vmem:[%s225 + $0xc00] sm:$0xff]
                %420 = vst [vmem:[%s226 + $0x300] sm:$0xff] %v419
                %v421 = vld [vmem:[%s225 + $0xc08] sm:$0xff]
                %422 = vst [vmem:[%s226 + $0x308] sm:$0xff] %v421
                %v423 = vld [vmem:[%s225 + $0xc40] sm:$0xff]
                %424 = vst [vmem:[%s226 + $0x310] sm:$0xff] %v423
                %v425 = vld [vmem:[%s225 + $0xc48] sm:$0xff]
                %426 = vst [vmem:[%s226 + $0x318] sm:$0xff] %v425
                %v427 = vld [vmem:[%s225 + $0xc80] sm:$0xff]
                %428 = vst [vmem:[%s226 + $0x320] sm:$0xff] %v427
                %v429 = vld [vmem:[%s225 + $0xc88] sm:$0xff]
                %430 = vst [vmem:[%s226 + $0x328] sm:$0xff] %v429
                %v431 = vld [vmem:[%s225 + $0xcc0] sm:$0xff]
                %432 = vst [vmem:[%s226 + $0x330] sm:$0xff] %v431
                %v433 = vld [vmem:[%s225 + $0xcc8] sm:$0xff]
                %434 = vst [vmem:[%s226 + $0x338] sm:$0xff] %v433
                %v435 = vld [vmem:[%s225 + $0xd00] sm:$0xff]
                %436 = vst [vmem:[%s226 + $0x340] sm:$0xff] %v435
                %v437 = vld [vmem:[%s225 + $0xd08] sm:$0xff]
                %438 = vst [vmem:[%s226 + $0x348] sm:$0xff] %v437
                %v439 = vld [vmem:[%s225 + $0xd40] sm:$0xff]
                %440 = vst [vmem:[%s226 + $0x350] sm:$0xff] %v439
                %v441 = vld [vmem:[%s225 + $0xd48] sm:$0xff]
                %442 = vst [vmem:[%s226 + $0x358] sm:$0xff] %v441
                %v443 = vld [vmem:[%s225 + $0xd80] sm:$0xff]
                %444 = vst [vmem:[%s226 + $0x360] sm:$0xff] %v443
                %v445 = vld [vmem:[%s225 + $0xd88] sm:$0xff]
                %446 = vst [vmem:[%s226 + $0x368] sm:$0xff] %v445
                %v447 = vld [vmem:[%s225 + $0xdc0] sm:$0xff]
                %448 = vst [vmem:[%s226 + $0x370] sm:$0xff] %v447
                %v449 = vld [vmem:[%s225 + $0xdc8] sm:$0xff]
                %450 = vst [vmem:[%s226 + $0x378] sm:$0xff] %v449
                %v451 = vld [vmem:[%s225 + $0xe00] sm:$0xff]
                %452 = vst [vmem:[%s226 + $0x380] sm:$0xff] %v451
                %v453 = vld [vmem:[%s225 + $0xe08] sm:$0xff]
                %454 = vst [vmem:[%s226 + $0x388] sm:$0xff] %v453
                %v455 = vld [vmem:[%s225 + $0xe40] sm:$0xff]
                %456 = vst [vmem:[%s226 + $0x390] sm:$0xff] %v455
                %v457 = vld [vmem:[%s225 + $0xe48] sm:$0xff]
                %458 = vst [vmem:[%s226 + $0x398] sm:$0xff] %v457
                %v459 = vld [vmem:[%s225 + $0xe80] sm:$0xff]
                %460 = vst [vmem:[%s226 + $0x3a0] sm:$0xff] %v459
                %v461 = vld [vmem:[%s225 + $0xe88] sm:$0xff]
                %462 = vst [vmem:[%s226 + $0x3a8] sm:$0xff] %v461
                %v463 = vld [vmem:[%s225 + $0xec0] sm:$0xff]
                %464 = vst [vmem:[%s226 + $0x3b0] sm:$0xff] %v463
                %v465 = vld [vmem:[%s225 + $0xec8] sm:$0xff]
                %466 = vst [vmem:[%s226 + $0x3b8] sm:$0xff] %v465
                %v467 = vld [vmem:[%s225 + $0xf00] sm:$0xff]
                %468 = vst [vmem:[%s226 + $0x3c0] sm:$0xff] %v467
                %v469 = vld [vmem:[%s225 + $0xf08] sm:$0xff]
                %470 = vst [vmem:[%s226 + $0x3c8] sm:$0xff] %v469
                %v471 = vld [vmem:[%s225 + $0xf40] sm:$0xff]
                %472 = vst [vmem:[%s226 + $0x3d0] sm:$0xff] %v471
                %v473 = vld [vmem:[%s225 + $0xf48] sm:$0xff]
                %474 = vst [vmem:[%s226 + $0x3d8] sm:$0xff] %v473
                %v475 = vld [vmem:[%s225 + $0xf80] sm:$0xff]
                %476 = vst [vmem:[%s226 + $0x3e0] sm:$0xff] %v475
                %v477 = vld [vmem:[%s225 + $0xf88] sm:$0xff]
                %478 = vst [vmem:[%s226 + $0x3e8] sm:$0xff] %v477
                %v479 = vld [vmem:[%s225 + $0xfc0] sm:$0xff]
                %480 = vst [vmem:[%s226 + $0x3f0] sm:$0xff] %v479
                %v481 = vld [vmem:[%s225 + $0xfc8] sm:$0xff]
                %482 = vst [vmem:[%s226 + $0x3f8] sm:$0xff] %v481
                %v483 = vld [vmem:[%s225 + $0x1000] sm:$0xff]
                %484 = vst [vmem:[%s226 + $0x400] sm:$0xff] %v483
                %v485 = vld [vmem:[%s225 + $0x1008] sm:$0xff]
                %486 = vst [vmem:[%s226 + $0x408] sm:$0xff] %v485
                %v487 = vld [vmem:[%s225 + $0x1040] sm:$0xff]
                %488 = vst [vmem:[%s226 + $0x410] sm:$0xff] %v487
                %v489 = vld [vmem:[%s225 + $0x1048] sm:$0xff]
                %490 = vst [vmem:[%s226 + $0x418] sm:$0xff] %v489
                %v491 = vld [vmem:[%s225 + $0x1080] sm:$0xff]
                %492 = vst [vmem:[%s226 + $0x420] sm:$0xff] %v491
                %v493 = vld [vmem:[%s225 + $0x1088] sm:$0xff]
                %494 = vst [vmem:[%s226 + $0x428] sm:$0xff] %v493
                %v495 = vld [vmem:[%s225 + $0x10c0] sm:$0xff]
                %496 = vst [vmem:[%s226 + $0x430] sm:$0xff] %v495
                %v497 = vld [vmem:[%s225 + $0x10c8] sm:$0xff]
                %498 = vst [vmem:[%s226 + $0x438] sm:$0xff] %v497
                %v499 = vld [vmem:[%s225 + $0x1100] sm:$0xff]
                %500 = vst [vmem:[%s226 + $0x440] sm:$0xff] %v499
                %v501 = vld [vmem:[%s225 + $0x1108] sm:$0xff]
                %502 = vst [vmem:[%s226 + $0x448] sm:$0xff] %v501
                %v503 = vld [vmem:[%s225 + $0x1140] sm:$0xff]
                %504 = vst [vmem:[%s226 + $0x450] sm:$0xff] %v503
                %v505 = vld [vmem:[%s225 + $0x1148] sm:$0xff]
                %506 = vst [vmem:[%s226 + $0x458] sm:$0xff] %v505
                %v507 = vld [vmem:[%s225 + $0x1180] sm:$0xff]
                %508 = vst [vmem:[%s226 + $0x460] sm:$0xff] %v507
                %v509 = vld [vmem:[%s225 + $0x1188] sm:$0xff]
                %510 = vst [vmem:[%s226 + $0x468] sm:$0xff] %v509
                %v511 = vld [vmem:[%s225 + $0x11c0] sm:$0xff]
                %512 = vst [vmem:[%s226 + $0x470] sm:$0xff] %v511
                %v513 = vld [vmem:[%s225 + $0x11c8] sm:$0xff]
                %514 = vst [vmem:[%s226 + $0x478] sm:$0xff] %v513
                %v515 = vld [vmem:[%s225 + $0x1200] sm:$0xff]
                %516 = vst [vmem:[%s226 + $0x480] sm:$0xff] %v515
                %v517 = vld [vmem:[%s225 + $0x1208] sm:$0xff]
                %518 = vst [vmem:[%s226 + $0x488] sm:$0xff] %v517
                %v519 = vld [vmem:[%s225 + $0x1240] sm:$0xff]
                %520 = vst [vmem:[%s226 + $0x490] sm:$0xff] %v519
                %v521 = vld [vmem:[%s225 + $0x1248] sm:$0xff]
                %522 = vst [vmem:[%s226 + $0x498] sm:$0xff] %v521
                %v523 = vld [vmem:[%s225 + $0x1280] sm:$0xff]
                %524 = vst [vmem:[%s226 + $0x4a0] sm:$0xff] %v523
                %v525 = vld [vmem:[%s225 + $0x1288] sm:$0xff]
                %526 = vst [vmem:[%s226 + $0x4a8] sm:$0xff] %v525
                %v527 = vld [vmem:[%s225 + $0x12c0] sm:$0xff]
                %528 = vst [vmem:[%s226 + $0x4b0] sm:$0xff] %v527
                %v529 = vld [vmem:[%s225 + $0x12c8] sm:$0xff]
                %530 = vst [vmem:[%s226 + $0x4b8] sm:$0xff] %v529
                %v531 = vld [vmem:[%s225 + $0x1300] sm:$0xff]
                %532 = vst [vmem:[%s226 + $0x4c0] sm:$0xff] %v531
                %v533 = vld [vmem:[%s225 + $0x1308] sm:$0xff]
                %534 = vst [vmem:[%s226 + $0x4c8] sm:$0xff] %v533
                %v535 = vld [vmem:[%s225 + $0x1340] sm:$0xff]
                %536 = vst [vmem:[%s226 + $0x4d0] sm:$0xff] %v535
                %v537 = vld [vmem:[%s225 + $0x1348] sm:$0xff]
                %538 = vst [vmem:[%s226 + $0x4d8] sm:$0xff] %v537
                %v539 = vld [vmem:[%s225 + $0x1380] sm:$0xff]
                %540 = vst [vmem:[%s226 + $0x4e0] sm:$0xff] %v539
                %v541 = vld [vmem:[%s225 + $0x1388] sm:$0xff]
                %542 = vst [vmem:[%s226 + $0x4e8] sm:$0xff] %v541
                %v543 = vld [vmem:[%s225 + $0x13c0] sm:$0xff]
                %544 = vst [vmem:[%s226 + $0x4f0] sm:$0xff] %v543
                %v545 = vld [vmem:[%s225 + $0x13c8] sm:$0xff]
                %546 = vst [vmem:[%s226 + $0x4f8] sm:$0xff] %v545
                %v547 = vld [vmem:[%s225 + $0x1400] sm:$0xff]
                %548 = vst [vmem:[%s226 + $0x500] sm:$0xff] %v547
                %v549 = vld [vmem:[%s225 + $0x1408] sm:$0xff]
                %550 = vst [vmem:[%s226 + $0x508] sm:$0xff] %v549
                %v551 = vld [vmem:[%s225 + $0x1440] sm:$0xff]
                %552 = vst [vmem:[%s226 + $0x510] sm:$0xff] %v551
                %v553 = vld [vmem:[%s225 + $0x1448] sm:$0xff]
                %554 = vst [vmem:[%s226 + $0x518] sm:$0xff] %v553
                %v555 = vld [vmem:[%s225 + $0x1480] sm:$0xff]
                %556 = vst [vmem:[%s226 + $0x520] sm:$0xff] %v555
                %v557 = vld [vmem:[%s225 + $0x1488] sm:$0xff]
                %558 = vst [vmem:[%s226 + $0x528] sm:$0xff] %v557
                %v559 = vld [vmem:[%s225 + $0x14c0] sm:$0xff]
                %560 = vst [vmem:[%s226 + $0x530] sm:$0xff] %v559
                %v561 = vld [vmem:[%s225 + $0x14c8] sm:$0xff]
                %562 = vst [vmem:[%s226 + $0x538] sm:$0xff] %v561
                %v563 = vld [vmem:[%s225 + $0x1500] sm:$0xff]
                %564 = vst [vmem:[%s226 + $0x540] sm:$0xff] %v563
                %v565 = vld [vmem:[%s225 + $0x1508] sm:$0xff]
                %566 = vst [vmem:[%s226 + $0x548] sm:$0xff] %v565
                %v567 = vld [vmem:[%s225 + $0x1540] sm:$0xff]
                %568 = vst [vmem:[%s226 + $0x550] sm:$0xff] %v567
                %v569 = vld [vmem:[%s225 + $0x1548] sm:$0xff]
                %570 = vst [vmem:[%s226 + $0x558] sm:$0xff] %v569
                %v571 = vld [vmem:[%s225 + $0x1580] sm:$0xff]
                %572 = vst [vmem:[%s226 + $0x560] sm:$0xff] %v571
                %v573 = vld [vmem:[%s225 + $0x1588] sm:$0xff]
                %574 = vst [vmem:[%s226 + $0x568] sm:$0xff] %v573
                %v575 = vld [vmem:[%s225 + $0x15c0] sm:$0xff]
                %576 = vst [vmem:[%s226 + $0x570] sm:$0xff] %v575
                %v577 = vld [vmem:[%s225 + $0x15c8] sm:$0xff]
                %578 = vst [vmem:[%s226 + $0x578] sm:$0xff] %v577
                %v579 = vld [vmem:[%s225 + $0x1600] sm:$0xff]
                %580 = vst [vmem:[%s226 + $0x580] sm:$0xff] %v579
                %v581 = vld [vmem:[%s225 + $0x1608] sm:$0xff]
                %582 = vst [vmem:[%s226 + $0x588] sm:$0xff] %v581
                %v583 = vld [vmem:[%s225 + $0x1640] sm:$0xff]
                %584 = vst [vmem:[%s226 + $0x590] sm:$0xff] %v583
                %v585 = vld [vmem:[%s225 + $0x1648] sm:$0xff]
                %586 = vst [vmem:[%s226 + $0x598] sm:$0xff] %v585
                %v587 = vld [vmem:[%s225 + $0x1680] sm:$0xff]
                %588 = vst [vmem:[%s226 + $0x5a0] sm:$0xff] %v587
                %v589 = vld [vmem:[%s225 + $0x1688] sm:$0xff]
                %590 = vst [vmem:[%s226 + $0x5a8] sm:$0xff] %v589
                %v591 = vld [vmem:[%s225 + $0x16c0] sm:$0xff]
                %592 = vst [vmem:[%s226 + $0x5b0] sm:$0xff] %v591
                %v593 = vld [vmem:[%s225 + $0x16c8] sm:$0xff]
                %594 = vst [vmem:[%s226 + $0x5b8] sm:$0xff] %v593
                %v595 = vld [vmem:[%s225 + $0x1700] sm:$0xff]
                %596 = vst [vmem:[%s226 + $0x5c0] sm:$0xff] %v595
                %v597 = vld [vmem:[%s225 + $0x1708] sm:$0xff]
                %598 = vst [vmem:[%s226 + $0x5c8] sm:$0xff] %v597
                %v599 = vld [vmem:[%s225 + $0x1740] sm:$0xff]
                %600 = vst [vmem:[%s226 + $0x5d0] sm:$0xff] %v599
                %v601 = vld [vmem:[%s225 + $0x1748] sm:$0xff]
                %602 = vst [vmem:[%s226 + $0x5d8] sm:$0xff] %v601
                %v603 = vld [vmem:[%s225 + $0x1780] sm:$0xff]
                %604 = vst [vmem:[%s226 + $0x5e0] sm:$0xff] %v603
                %v605 = vld [vmem:[%s225 + $0x1788] sm:$0xff]
                %606 = vst [vmem:[%s226 + $0x5e8] sm:$0xff] %v605
                %v607 = vld [vmem:[%s225 + $0x17c0] sm:$0xff]
                %608 = vst [vmem:[%s226 + $0x5f0] sm:$0xff] %v607
                %v609 = vld [vmem:[%s225 + $0x17c8] sm:$0xff]
                %610 = vst [vmem:[%s226 + $0x5f8] sm:$0xff] %v609
                %v611 = vld [vmem:[%s225 + $0x1800] sm:$0xff]
                %612 = vst [vmem:[%s226 + $0x600] sm:$0xff] %v611
                %v613 = vld [vmem:[%s225 + $0x1808] sm:$0xff]
                %614 = vst [vmem:[%s226 + $0x608] sm:$0xff] %v613
                %v615 = vld [vmem:[%s225 + $0x1840] sm:$0xff]
                %616 = vst [vmem:[%s226 + $0x610] sm:$0xff] %v615
                %v617 = vld [vmem:[%s225 + $0x1848] sm:$0xff]
                %618 = vst [vmem:[%s226 + $0x618] sm:$0xff] %v617
              $region41: #{net_forward.3} parent=35 // loop_footer
                %s224 = sadd.s32 1, %s220
              $region42: #{net_forward.3} parent=35 // loop_footer_branch
                %219 = sbr.rel target = $region38
              $region43: #{net_forward.3} parent=35 // loop_exit
                _
            $region36: #{net_forward.3} parent=31 // pred_fallthru
              _
            // Predicated region
            $region44: #{net_forward.3} parent=31 // pred_check
              _
            $region45: #{net_forward.3} parent=31 // pred_check_branch
              %620 = sbr.rel target = $region47
            $region46: #{net_forward.3} parent=31 // pred_region
              _
            $region47: #{net_forward.3} parent=31 // pred_fallthru
              _
          $region32: #{net_forward.3} parent=27 // pred_fallthru
            _
          %621 = vnop
        $region28: #{net_forward.3} parent=23 // pred_fallthru
          _
        // Predicated region
        $region48: #{net_forward.3} parent=23 // pred_check
          %p622 = pneg %p80
        $region49: #{net_forward.3} parent=23 // pred_check_branch
          %624 = sbr.rel (%p622) target = $region51
        $region50: #{net_forward.3} parent=23 // pred_region
          %s625 = smul.u32 2, %s13
          %p626 = scmp.lt.s32.totalorder %s625, 7
          %s627 = scalar_select %p626, %s625, 7
          %s628 = scalar_lea.vmem %s2, %s627
          %s629 = smul.u32 2, %s13
        $region51: #{net_forward.3} parent=23 // pred_fallthru
          _
        // Predicated region
        $region52: #{net_forward.3} parent=23 // pred_check
          %p630 = pneg %p106
        $region53: #{net_forward.3} parent=23 // pred_check_branch
          %632 = sbr.rel (%p630) target = $region55
        $region54: #{net_forward.3} parent=23 // pred_region
          %s633 = smul.u32 2, %s13
          %p634 = scmp.lt.s32.totalorder %s633, 7
          %s635 = scalar_select %p634, %s633, 7
          %s636 = scalar_lea.vmem %s3, %s635
          %s637 = smul.u32 2, %s13
        $region55: #{net_forward.3} parent=23 // pred_fallthru
          _
        // Predicated region
        $region56: #{net_forward.3} parent=23 // pred_check
          %p638 = pneg %p132
        $region57: #{net_forward.3} parent=23 // pred_check_branch
          %640 = sbr.rel (%p638) target = $region59
        $region58: #{net_forward.3} parent=23 // pred_region
          %s641 = smul.u32 32, %s13
          %p642 = scmp.lt.s32.totalorder %s641, 127
          %s643 = scalar_select %p642, %s641, 127
          %s644 = smul.addr %s643, 4
          %s645 = scalar_lea.vmem %s4, %s644
          %s646 = smul.u32 32, %s13
        $region59: #{net_forward.3} parent=23 // pred_fallthru
          _
      $region24: #{net_forward.3} parent=5 // pred_fallthru
        _
      %p647 = scmp.le.s32.totalorder 1, %s13
      %p648 = scmp.lt.s32.totalorder %s13, 5
      %p649 = pnand %p647, %p648
      %p650 = pneg %p649
      // Predicated region
      $region60: #{net_forward.3} parent=5 // pred_check
        _
      $region61: #{net_forward.3} parent=5 // pred_check_branch
        %652 = sbr.rel (%p649) target = $region63
      $region62: #{net_forward.3} parent=5 // pred_region
        %s653 = ssub.s32 %s13, 1
        %s654 = sand.u32 %s47, 1
        %s655 = sand.u32 %s47, 1
        %s656 = smul.addr %s655, 1568
        %s657 = scalar_lea.vmem [#allocation3], %s656
        // Predicated region
        $region64: #{net_forward.3} parent=62 // pred_check
          %p658 = pneg %p60
        $region65: #{net_forward.3} parent=62 // pred_check_branch
          %660 = sbr.rel (%p658) target = $region67
        $region66: #{net_forward.3} parent=62 // pred_region
          _
        $region67: #{net_forward.3} parent=62 // pred_fallthru
          _
        %p661 = pneg %p34
        %p662 = pneg %p31
        %s663 = sand.u32 %s47, 1
        %s664 = sand.u32 %s47, 1
        %s665 = smul.addr %s664, 1568
        %s666 = scalar_lea.vmem [#allocation3], %s665
        %p667 = pneg %p60
        %p668 = pneg %p57
        %s669 = smul.u32 2, %s18
        %p670 = scmp.lt.s32.totalorder %s669, 7
        %s671 = scalar_select %p670, %s669, 7
        %s672 = scalar_lea.vmem %s2, %s671
        %p673 = pneg %p86
        %p674 = pneg %p83
        %s675 = smul.u32 2, %s18
        %p676 = scmp.lt.s32.totalorder %s675, 7
        %s677 = scalar_select %p676, %s675, 7
        %s678 = scalar_lea.vmem %s3, %s677
        %p679 = pneg %p112
        %p680 = pneg %p109
        %s681 = smul.u32 32, %s18
        %p682 = scmp.lt.s32.totalorder %s681, 127
        %s683 = scalar_select %p682, %s681, 127
        %s684 = smul.addr %s683, 4
        %s685 = scalar_lea.vmem %s4, %s684
        %p686 = pneg %p138
        %p687 = pneg %p135
        %p688 = pneg %p159
        %p689 = pneg %p156
        %p690 = pneg %p180
        %p691 = pneg %p177
        %s692 = smul.u32 2, %s18
        %s693 = smul.u32 2, %s18
        %p694 = scmp.lt.s32.totalorder %s693, 7
        %s695 = scalar_select %p694, %s693, 7
        %s696 = scalar_lea.vmem %s2, %s695
        %s697 = smul.u32 2, %s18
        %s698 = smul.u32 2, %s18
        %p699 = scmp.lt.s32.totalorder %s698, 7
        %s700 = scalar_select %p699, %s698, 7
        %s701 = scalar_lea.vmem %s3, %s700
        %s702 = smul.u32 2, %s18
        %s703 = smul.u32 32, %s18
        %p704 = scmp.lt.s32.totalorder %s703, 127
        %s705 = scalar_select %p704, %s703, 127
        %s706 = smul.addr %s705, 4
        %s707 = scalar_lea.vmem %s4, %s706
        %s708 = smul.u32 32, %s18
        %p710 = scmp.eq.s32.totalorder %s18, 0
        // Predicated region
        $region68: #{net_forward.3} parent=62 // pred_check
          %p711 = pneg %p710
        $region69: #{net_forward.3} parent=62 // pred_check_branch
          %713 = sbr.rel (%p711) target = $region71
        $region70: #{net_forward.3} parent=62 // pred_region
          %vm714 = vcmask 33792
          %715 = vst.msk [vmem:[#allocation2] sm:$0x3] %vm714, 0.0
        $region71: #{net_forward.3} parent=62 // pred_fallthru
          _
        %v716 = vld [vmem:[%s0] sm:$0xff]
        %v717 = vld [vmem:[%s0 + $0x8] sm:$0xff]
        %v718 = vld [vmem:[%s0 + $0x10] sm:$0xff]
        %v719 = vld [vmem:[%s0 + $0x18] sm:$0x1]
        %v720 = vld [vmem:[%s657] sm:$0xff]
        %v721 = vld [vmem:[%s657 + $0x8] sm:$0xff]
        %v722 = vld [vmem:[%s657 + $0x10] sm:$0xff]
        %v723 = vld [vmem:[%s657 + $0x18] sm:$0xff]
        %v724 = vld [vmem:[%s657 + $0x20] sm:$0xff]
        %v725 = vld [vmem:[%s657 + $0x28] sm:$0xff]
        %v726 = vld [vmem:[%s657 + $0x30] sm:$0xff]
        %v727 = vld [vmem:[%s657 + $0x38] sm:$0xff]
        %v728 = vld [vmem:[%s657 + $0x40] sm:$0xff]
        %v729 = vld [vmem:[%s657 + $0x48] sm:$0xff]
        %v730 = vld [vmem:[%s657 + $0x50] sm:$0xff]
        %v731 = vld [vmem:[%s657 + $0x58] sm:$0xff]
        %v732 = vld [vmem:[%s657 + $0x60] sm:$0xff]
        %v733 = vld [vmem:[%s657 + $0x68] sm:$0xff]
        %v734 = vld [vmem:[%s657 + $0x70] sm:$0xff]
        %v735 = vld [vmem:[%s657 + $0x78] sm:$0xff]
        %v736 = vld [vmem:[%s657 + $0x80] sm:$0xff]
        %v737 = vld [vmem:[%s657 + $0x88] sm:$0xff]
        %v738 = vld [vmem:[%s657 + $0x90] sm:$0xff]
        %v739 = vld [vmem:[%s657 + $0x98] sm:$0xff]
        %v740 = vld [vmem:[%s657 + $0xa0] sm:$0xff]
        %v741 = vld [vmem:[%s657 + $0xa8] sm:$0xff]
        %v742 = vld [vmem:[%s657 + $0xb0] sm:$0xff]
        %v743 = vld [vmem:[%s657 + $0xb8] sm:$0xff]
        %v744 = vld [vmem:[%s657 + $0xc0] sm:$0xff]
        %v745 = vld [vmem:[%s657 + $0xc8] sm:$0xff]
        %v746 = vld [vmem:[%s657 + $0xd0] sm:$0xff]
        %v747 = vld [vmem:[%s657 + $0xd8] sm:$0xff]
        %v748 = vld [vmem:[%s657 + $0xe0] sm:$0xff]
        %v749 = vld [vmem:[%s657 + $0xe8] sm:$0xff]
        %v750 = vld [vmem:[%s657 + $0xf0] sm:$0xff]
        %v751 = vld [vmem:[%s657 + $0xf8] sm:$0xff]
        %v752 = vld [vmem:[%s657 + $0x100] sm:$0xff]
        %v753 = vld [vmem:[%s657 + $0x108] sm:$0xff]
        %v754 = vld [vmem:[%s657 + $0x110] sm:$0xff]
        %v755 = vld [vmem:[%s657 + $0x118] sm:$0xff]
        %v756 = vld [vmem:[%s657 + $0x120] sm:$0xff]
        %v757 = vld [vmem:[%s657 + $0x128] sm:$0xff]
        %v758 = vld [vmem:[%s657 + $0x130] sm:$0xff]
        %v759 = vld [vmem:[%s657 + $0x138] sm:$0xff]
        %v760 = vld [vmem:[%s657 + $0x140] sm:$0xff]
        %v761 = vld [vmem:[%s657 + $0x148] sm:$0xff]
        %v762 = vld [vmem:[%s657 + $0x150] sm:$0xff]
        %v763 = vld [vmem:[%s657 + $0x158] sm:$0xff]
        %v764 = vld [vmem:[%s657 + $0x160] sm:$0xff]
        %v765 = vld [vmem:[%s657 + $0x168] sm:$0xff]
        %v766 = vld [vmem:[%s657 + $0x170] sm:$0xff]
        %v767 = vld [vmem:[%s657 + $0x178] sm:$0xff]
        %v768 = vld [vmem:[%s657 + $0x180] sm:$0xff]
        %v769 = vld [vmem:[%s657 + $0x188] sm:$0xff]
        %v770 = vld [vmem:[%s657 + $0x190] sm:$0xff]
        %v771 = vld [vmem:[%s657 + $0x198] sm:$0xff]
        %v772 = vld [vmem:[%s657 + $0x1a0] sm:$0xff]
        %v773 = vld [vmem:[%s657 + $0x1a8] sm:$0xff]
        %v774 = vld [vmem:[%s657 + $0x1b0] sm:$0xff]
        %v775 = vld [vmem:[%s657 + $0x1b8] sm:$0xff]
        %v776 = vld [vmem:[%s657 + $0x1c0] sm:$0xff]
        %v777 = vld [vmem:[%s657 + $0x1c8] sm:$0xff]
        %v778 = vld [vmem:[%s657 + $0x1d0] sm:$0xff]
        %v779 = vld [vmem:[%s657 + $0x1d8] sm:$0xff]
        %v780 = vld [vmem:[%s657 + $0x1e0] sm:$0xff]
        %v781 = vld [vmem:[%s657 + $0x1e8] sm:$0xff]
        %v782 = vld [vmem:[%s657 + $0x1f0] sm:$0xff]
        %v783 = vld [vmem:[%s657 + $0x1f8] sm:$0xff]
        %v784 = vld [vmem:[%s657 + $0x200] sm:$0xff]
        %v785 = vld [vmem:[%s657 + $0x208] sm:$0xff]
        %v786 = vld [vmem:[%s657 + $0x210] sm:$0xff]
        %v787 = vld [vmem:[%s657 + $0x218] sm:$0xff]
        %v788 = vld [vmem:[%s657 + $0x220] sm:$0xff]
        %v789 = vld [vmem:[%s657 + $0x228] sm:$0xff]
        %v790 = vld [vmem:[%s657 + $0x230] sm:$0xff]
        %v791 = vld [vmem:[%s657 + $0x238] sm:$0xff]
        %v792 = vld [vmem:[%s657 + $0x240] sm:$0xff]
        %v793 = vld [vmem:[%s657 + $0x248] sm:$0xff]
        %v794 = vld [vmem:[%s657 + $0x250] sm:$0xff]
        %v795 = vld [vmem:[%s657 + $0x258] sm:$0xff]
        %v796 = vld [vmem:[%s657 + $0x260] sm:$0xff]
        %v797 = vld [vmem:[%s657 + $0x268] sm:$0xff]
        %v798 = vld [vmem:[%s657 + $0x270] sm:$0xff]
        %v799 = vld [vmem:[%s657 + $0x278] sm:$0xff]
        %v800 = vld [vmem:[%s657 + $0x280] sm:$0xff]
        %v801 = vld [vmem:[%s657 + $0x288] sm:$0xff]
        %v802 = vld [vmem:[%s657 + $0x290] sm:$0xff]
        %v803 = vld [vmem:[%s657 + $0x298] sm:$0xff]
        %v804 = vld [vmem:[%s657 + $0x2a0] sm:$0xff]
        %v805 = vld [vmem:[%s657 + $0x2a8] sm:$0xff]
        %v806 = vld [vmem:[%s657 + $0x2b0] sm:$0xff]
        %v807 = vld [vmem:[%s657 + $0x2b8] sm:$0xff]
        %v808 = vld [vmem:[%s657 + $0x2c0] sm:$0xff]
        %v809 = vld [vmem:[%s657 + $0x2c8] sm:$0xff]
        %v810 = vld [vmem:[%s657 + $0x2d0] sm:$0xff]
        %v811 = vld [vmem:[%s657 + $0x2d8] sm:$0xff]
        %v812 = vld [vmem:[%s657 + $0x2e0] sm:$0xff]
        %v813 = vld [vmem:[%s657 + $0x2e8] sm:$0xff]
        %v814 = vld [vmem:[%s657 + $0x2f0] sm:$0xff]
        %v815 = vld [vmem:[%s657 + $0x2f8] sm:$0xff]
        %v816 = vld [vmem:[%s657 + $0x300] sm:$0xff]
        %v817 = vld [vmem:[%s657 + $0x308] sm:$0xff]
        %v818 = vld [vmem:[%s657 + $0x310] sm:$0xff]
        %v819 = vld [vmem:[%s657 + $0x318] sm:$0xff]
        %v820 = vld [vmem:[%s657 + $0x320] sm:$0xff]
        %v821 = vld [vmem:[%s657 + $0x328] sm:$0xff]
        %v822 = vld [vmem:[%s657 + $0x330] sm:$0xff]
        %v823 = vld [vmem:[%s657 + $0x338] sm:$0xff]
        %v824 = vld [vmem:[%s657 + $0x340] sm:$0xff]
        %v825 = vld [vmem:[%s657 + $0x348] sm:$0xff]
        %v826 = vld [vmem:[%s657 + $0x350] sm:$0xff]
        %v827 = vld [vmem:[%s657 + $0x358] sm:$0xff]
        %v828 = vld [vmem:[%s657 + $0x360] sm:$0xff]
        %v829 = vld [vmem:[%s657 + $0x368] sm:$0xff]
        %v830 = vld [vmem:[%s657 + $0x370] sm:$0xff]
        %v831 = vld [vmem:[%s657 + $0x378] sm:$0xff]
        %v832 = vld [vmem:[%s657 + $0x380] sm:$0xff]
        %v833 = vld [vmem:[%s657 + $0x388] sm:$0xff]
        %v834 = vld [vmem:[%s657 + $0x390] sm:$0xff]
        %v835 = vld [vmem:[%s657 + $0x398] sm:$0xff]
        %v836 = vld [vmem:[%s657 + $0x3a0] sm:$0xff]
        %v837 = vld [vmem:[%s657 + $0x3a8] sm:$0xff]
        %v838 = vld [vmem:[%s657 + $0x3b0] sm:$0xff]
        %v839 = vld [vmem:[%s657 + $0x3b8] sm:$0xff]
        %v840 = vld [vmem:[%s657 + $0x3c0] sm:$0xff]
        %v841 = vld [vmem:[%s657 + $0x3c8] sm:$0xff]
        %v842 = vld [vmem:[%s657 + $0x3d0] sm:$0xff]
        %v843 = vld [vmem:[%s657 + $0x3d8] sm:$0xff]
        %v844 = vld [vmem:[%s657 + $0x3e0] sm:$0xff]
        %v845 = vld [vmem:[%s657 + $0x3e8] sm:$0xff]
        %v846 = vld [vmem:[%s657 + $0x3f0] sm:$0xff]
        %v847 = vld [vmem:[%s657 + $0x3f8] sm:$0xff]
        %v848 = vld [vmem:[%s657 + $0x400] sm:$0xff]
        %v849 = vld [vmem:[%s657 + $0x408] sm:$0xff]
        %v850 = vld [vmem:[%s657 + $0x410] sm:$0xff]
        %v851 = vld [vmem:[%s657 + $0x418] sm:$0xff]
        %v852 = vld [vmem:[%s657 + $0x420] sm:$0xff]
        %v853 = vld [vmem:[%s657 + $0x428] sm:$0xff]
        %v854 = vld [vmem:[%s657 + $0x430] sm:$0xff]
        %v855 = vld [vmem:[%s657 + $0x438] sm:$0xff]
        %v856 = vld [vmem:[%s657 + $0x440] sm:$0xff]
        %v857 = vld [vmem:[%s657 + $0x448] sm:$0xff]
        %v858 = vld [vmem:[%s657 + $0x450] sm:$0xff]
        %v859 = vld [vmem:[%s657 + $0x458] sm:$0xff]
        %v860 = vld [vmem:[%s657 + $0x460] sm:$0xff]
        %v861 = vld [vmem:[%s657 + $0x468] sm:$0xff]
        %v862 = vld [vmem:[%s657 + $0x470] sm:$0xff]
        %v863 = vld [vmem:[%s657 + $0x478] sm:$0xff]
        %v864 = vld [vmem:[%s657 + $0x480] sm:$0xff]
        %v865 = vld [vmem:[%s657 + $0x488] sm:$0xff]
        %v866 = vld [vmem:[%s657 + $0x490] sm:$0xff]
        %v867 = vld [vmem:[%s657 + $0x498] sm:$0xff]
        %v868 = vld [vmem:[%s657 + $0x4a0] sm:$0xff]
        %v869 = vld [vmem:[%s657 + $0x4a8] sm:$0xff]
        %v870 = vld [vmem:[%s657 + $0x4b0] sm:$0xff]
        %v871 = vld [vmem:[%s657 + $0x4b8] sm:$0xff]
        %v872 = vld [vmem:[%s657 + $0x4c0] sm:$0xff]
        %v873 = vld [vmem:[%s657 + $0x4c8] sm:$0xff]
        %v874 = vld [vmem:[%s657 + $0x4d0] sm:$0xff]
        %v875 = vld [vmem:[%s657 + $0x4d8] sm:$0xff]
        %v876 = vld [vmem:[%s657 + $0x4e0] sm:$0xff]
        %v877 = vld [vmem:[%s657 + $0x4e8] sm:$0xff]
        %v878 = vld [vmem:[%s657 + $0x4f0] sm:$0xff]
        %v879 = vld [vmem:[%s657 + $0x4f8] sm:$0xff]
        %v880 = vld [vmem:[%s657 + $0x500] sm:$0xff]
        %v881 = vld [vmem:[%s657 + $0x508] sm:$0xff]
        %v882 = vld [vmem:[%s657 + $0x510] sm:$0xff]
        %v883 = vld [vmem:[%s657 + $0x518] sm:$0xff]
        %v884 = vld [vmem:[%s657 + $0x520] sm:$0xff]
        %v885 = vld [vmem:[%s657 + $0x528] sm:$0xff]
        %v886 = vld [vmem:[%s657 + $0x530] sm:$0xff]
        %v887 = vld [vmem:[%s657 + $0x538] sm:$0xff]
        %v888 = vld [vmem:[%s657 + $0x540] sm:$0xff]
        %v889 = vld [vmem:[%s657 + $0x548] sm:$0xff]
        %v890 = vld [vmem:[%s657 + $0x550] sm:$0xff]
        %v891 = vld [vmem:[%s657 + $0x558] sm:$0xff]
        %v892 = vld [vmem:[%s657 + $0x560] sm:$0xff]
        %v893 = vld [vmem:[%s657 + $0x568] sm:$0xff]
        %v894 = vld [vmem:[%s657 + $0x570] sm:$0xff]
        %v895 = vld [vmem:[%s657 + $0x578] sm:$0xff]
        %v896 = vld [vmem:[%s657 + $0x580] sm:$0xff]
        %v897 = vld [vmem:[%s657 + $0x588] sm:$0xff]
        %v898 = vld [vmem:[%s657 + $0x590] sm:$0xff]
        %v899 = vld [vmem:[%s657 + $0x598] sm:$0xff]
        %v900 = vld [vmem:[%s657 + $0x5a0] sm:$0xff]
        %v901 = vld [vmem:[%s657 + $0x5a8] sm:$0xff]
        %v902 = vld [vmem:[%s657 + $0x5b0] sm:$0xff]
        %v903 = vld [vmem:[%s657 + $0x5b8] sm:$0xff]
        %v904 = vld [vmem:[%s657 + $0x5c0] sm:$0xff]
        %v905 = vld [vmem:[%s657 + $0x5c8] sm:$0xff]
        %v906 = vld [vmem:[%s657 + $0x5d0] sm:$0xff]
        %v907 = vld [vmem:[%s657 + $0x5d8] sm:$0xff]
        %v908 = vld [vmem:[%s657 + $0x5e0] sm:$0xff]
        %v909 = vld [vmem:[%s657 + $0x5e8] sm:$0xff]
        %v910 = vld [vmem:[%s657 + $0x5f0] sm:$0xff]
        %v911 = vld [vmem:[%s657 + $0x5f8] sm:$0xff]
        %v912 = vld [vmem:[%s657 + $0x600] sm:$0xff]
        %v913 = vld [vmem:[%s657 + $0x608] sm:$0xff]
        %v914 = vld [vmem:[%s657 + $0x610] sm:$0xff]
        %v915 = vld [vmem:[%s657 + $0x618] sm:$0xff]
        %v916 = vunpack.c.0.s8 %v720
        %v917 = vunpack.c.0.s8 %v721
        %v918 = vunpack.c.1.s8 %v720
        %v919 = vunpack.c.1.s8 %v721
        %v920 = vunpack.c.2.s8 %v720
        %v921 = vunpack.c.2.s8 %v721
        %v922 = vunpack.c.3.s8 %v720
        %v923 = vunpack.c.3.s8 %v721
        %v924 = vunpack.c.0.s8 %v722
        %v925 = vunpack.c.0.s8 %v723
        %v926 = vunpack.c.1.s8 %v722
        %v927 = vunpack.c.1.s8 %v723
        %v928 = vunpack.c.2.s8 %v722
        %v929 = vunpack.c.2.s8 %v723
        %v930 = vunpack.c.3.s8 %v722
        %v931 = vunpack.c.3.s8 %v723
        %v932 = vunpack.c.0.s8 %v724
        %v933 = vunpack.c.0.s8 %v725
        %v934 = vunpack.c.1.s8 %v724
        %v935 = vunpack.c.1.s8 %v725
        %v936 = vunpack.c.2.s8 %v724
        %v937 = vunpack.c.2.s8 %v725
        %v938 = vunpack.c.3.s8 %v724
        %v939 = vunpack.c.3.s8 %v725
        %v940 = vunpack.c.0.s8 %v726
        %v941 = vunpack.c.0.s8 %v727
        %v942 = vunpack.c.1.s8 %v726
        %v943 = vunpack.c.1.s8 %v727
        %v944 = vunpack.c.2.s8 %v726
        %v945 = vunpack.c.2.s8 %v727
        %v946 = vunpack.c.3.s8 %v726
        %v947 = vunpack.c.3.s8 %v727
        %v948 = vunpack.c.0.s8 %v728
        %v949 = vunpack.c.0.s8 %v729
        %v950 = vunpack.c.1.s8 %v728
        %v951 = vunpack.c.1.s8 %v729
        %v952 = vunpack.c.2.s8 %v728
        %v953 = vunpack.c.2.s8 %v729
        %v954 = vunpack.c.3.s8 %v728
        %v955 = vunpack.c.3.s8 %v729
        %v956 = vunpack.c.0.s8 %v730
        %v957 = vunpack.c.0.s8 %v731
        %v958 = vunpack.c.1.s8 %v730
        %v959 = vunpack.c.1.s8 %v731
        %v960 = vunpack.c.2.s8 %v730
        %v961 = vunpack.c.2.s8 %v731
        %v962 = vunpack.c.3.s8 %v730
        %v963 = vunpack.c.3.s8 %v731
        %v964 = vunpack.c.0.s8 %v732
        %v965 = vunpack.c.0.s8 %v733
        %v966 = vunpack.c.1.s8 %v732
        %v967 = vunpack.c.1.s8 %v733
        %v968 = vunpack.c.2.s8 %v732
        %v969 = vunpack.c.2.s8 %v733
        %v970 = vunpack.c.3.s8 %v732
        %v971 = vunpack.c.3.s8 %v733
        %v972 = vunpack.c.0.s8 %v734
        %v973 = vunpack.c.0.s8 %v735
        %v974 = vunpack.c.1.s8 %v734
        %v975 = vunpack.c.1.s8 %v735
        %v976 = vunpack.c.2.s8 %v734
        %v977 = vunpack.c.2.s8 %v735
        %v978 = vunpack.c.3.s8 %v734
        %v979 = vunpack.c.3.s8 %v735
        %v980 = vunpack.c.0.s8 %v736
        %v981 = vunpack.c.0.s8 %v737
        %v982 = vunpack.c.1.s8 %v736
        %v983 = vunpack.c.1.s8 %v737
        %v984 = vunpack.c.2.s8 %v736
        %v985 = vunpack.c.2.s8 %v737
        %v986 = vunpack.c.3.s8 %v736
        %v987 = vunpack.c.3.s8 %v737
        %v988 = vunpack.c.0.s8 %v738
        %v989 = vunpack.c.0.s8 %v739
        %v990 = vunpack.c.1.s8 %v738
        %v991 = vunpack.c.1.s8 %v739
        %v992 = vunpack.c.2.s8 %v738
        %v993 = vunpack.c.2.s8 %v739
        %v994 = vunpack.c.3.s8 %v738
        %v995 = vunpack.c.3.s8 %v739
        %v996 = vunpack.c.0.s8 %v740
        %v997 = vunpack.c.0.s8 %v741
        %v998 = vunpack.c.1.s8 %v740
        %v999 = vunpack.c.1.s8 %v741
        %v1000 = vunpack.c.2.s8 %v740
        %v1001 = vunpack.c.2.s8 %v741
        %v1002 = vunpack.c.3.s8 %v740
        %v1003 = vunpack.c.3.s8 %v741
        %v1004 = vunpack.c.0.s8 %v742
        %v1005 = vunpack.c.0.s8 %v743
        %v1006 = vunpack.c.1.s8 %v742
        %v1007 = vunpack.c.1.s8 %v743
        %v1008 = vunpack.c.2.s8 %v742
        %v1009 = vunpack.c.2.s8 %v743
        %v1010 = vunpack.c.3.s8 %v742
        %v1011 = vunpack.c.3.s8 %v743
        %v1012 = vunpack.c.0.s8 %v744
        %v1013 = vunpack.c.0.s8 %v745
        %v1014 = vunpack.c.1.s8 %v744
        %v1015 = vunpack.c.1.s8 %v745
        %v1016 = vunpack.c.2.s8 %v744
        %v1017 = vunpack.c.2.s8 %v745
        %v1018 = vunpack.c.3.s8 %v744
        %v1019 = vunpack.c.3.s8 %v745
        %v1020 = vunpack.c.0.s8 %v746
        %v1021 = vunpack.c.0.s8 %v747
        %v1022 = vunpack.c.1.s8 %v746
        %v1023 = vunpack.c.1.s8 %v747
        %v1024 = vunpack.c.2.s8 %v746
        %v1025 = vunpack.c.2.s8 %v747
        %v1026 = vunpack.c.3.s8 %v746
        %v1027 = vunpack.c.3.s8 %v747
        %v1028 = vunpack.c.0.s8 %v748
        %v1029 = vunpack.c.0.s8 %v749
        %v1030 = vunpack.c.1.s8 %v748
        %v1031 = vunpack.c.1.s8 %v749
        %v1032 = vunpack.c.2.s8 %v748
        %v1033 = vunpack.c.2.s8 %v749
        %v1034 = vunpack.c.3.s8 %v748
        %v1035 = vunpack.c.3.s8 %v749
        %v1036 = vunpack.c.0.s8 %v750
        %v1037 = vunpack.c.0.s8 %v751
        %v1038 = vunpack.c.1.s8 %v750
        %v1039 = vunpack.c.1.s8 %v751
        %v1040 = vunpack.c.2.s8 %v750
        %v1041 = vunpack.c.2.s8 %v751
        %v1042 = vunpack.c.3.s8 %v750
        %v1043 = vunpack.c.3.s8 %v751
        %v1044 = vunpack.c.0.s8 %v752
        %v1045 = vunpack.c.0.s8 %v753
        %v1046 = vunpack.c.1.s8 %v752
        %v1047 = vunpack.c.1.s8 %v753
        %v1048 = vunpack.c.2.s8 %v752
        %v1049 = vunpack.c.2.s8 %v753
        %v1050 = vunpack.c.3.s8 %v752
        %v1051 = vunpack.c.3.s8 %v753
        %v1052 = vunpack.c.0.s8 %v754
        %v1053 = vunpack.c.0.s8 %v755
        %v1054 = vunpack.c.1.s8 %v754
        %v1055 = vunpack.c.1.s8 %v755
        %v1056 = vunpack.c.2.s8 %v754
        %v1057 = vunpack.c.2.s8 %v755
        %v1058 = vunpack.c.3.s8 %v754
        %v1059 = vunpack.c.3.s8 %v755
        %v1060 = vunpack.c.0.s8 %v756
        %v1061 = vunpack.c.0.s8 %v757
        %v1062 = vunpack.c.1.s8 %v756
        %v1063 = vunpack.c.1.s8 %v757
        %v1064 = vunpack.c.2.s8 %v756
        %v1065 = vunpack.c.2.s8 %v757
        %v1066 = vunpack.c.3.s8 %v756
        %v1067 = vunpack.c.3.s8 %v757
        %v1068 = vunpack.c.0.s8 %v758
        %v1069 = vunpack.c.0.s8 %v759
        %v1070 = vunpack.c.1.s8 %v758
        %v1071 = vunpack.c.1.s8 %v759
        %v1072 = vunpack.c.2.s8 %v758
        %v1073 = vunpack.c.2.s8 %v759
        %v1074 = vunpack.c.3.s8 %v758
        %v1075 = vunpack.c.3.s8 %v759
        %v1076 = vunpack.c.0.s8 %v760
        %v1077 = vunpack.c.0.s8 %v761
        %v1078 = vunpack.c.1.s8 %v760
        %v1079 = vunpack.c.1.s8 %v761
        %v1080 = vunpack.c.2.s8 %v760
        %v1081 = vunpack.c.2.s8 %v761
        %v1082 = vunpack.c.3.s8 %v760
        %v1083 = vunpack.c.3.s8 %v761
        %v1084 = vunpack.c.0.s8 %v762
        %v1085 = vunpack.c.0.s8 %v763
        %v1086 = vunpack.c.1.s8 %v762
        %v1087 = vunpack.c.1.s8 %v763
        %v1088 = vunpack.c.2.s8 %v762
        %v1089 = vunpack.c.2.s8 %v763
        %v1090 = vunpack.c.3.s8 %v762
        %v1091 = vunpack.c.3.s8 %v763
        %v1092 = vunpack.c.0.s8 %v764
        %v1093 = vunpack.c.0.s8 %v765
        %v1094 = vunpack.c.1.s8 %v764
        %v1095 = vunpack.c.1.s8 %v765
        %v1096 = vunpack.c.2.s8 %v764
        %v1097 = vunpack.c.2.s8 %v765
        %v1098 = vunpack.c.3.s8 %v764
        %v1099 = vunpack.c.3.s8 %v765
        %v1100 = vunpack.c.0.s8 %v766
        %v1101 = vunpack.c.0.s8 %v767
        %v1102 = vunpack.c.1.s8 %v766
        %v1103 = vunpack.c.1.s8 %v767
        %v1104 = vunpack.c.2.s8 %v766
        %v1105 = vunpack.c.2.s8 %v767
        %v1106 = vunpack.c.3.s8 %v766
        %v1107 = vunpack.c.3.s8 %v767
        %v1108 = vunpack.c.0.s8 %v768
        %v1109 = vunpack.c.0.s8 %v769
        %v1110 = vunpack.c.1.s8 %v768
        %v1111 = vunpack.c.1.s8 %v769
        %v1112 = vunpack.c.2.s8 %v768
        %v1113 = vunpack.c.2.s8 %v769
        %v1114 = vunpack.c.3.s8 %v768
        %v1115 = vunpack.c.3.s8 %v769
        %v1116 = vunpack.c.0.s8 %v770
        %v1117 = vunpack.c.0.s8 %v771
        %v1118 = vunpack.c.1.s8 %v770
        %v1119 = vunpack.c.1.s8 %v771
        %v1120 = vunpack.c.2.s8 %v770
        %v1121 = vunpack.c.2.s8 %v771
        %v1122 = vunpack.c.3.s8 %v770
        %v1123 = vunpack.c.3.s8 %v771
        %v1124 = vunpack.c.0.s8 %v772
        %v1125 = vunpack.c.0.s8 %v773
        %v1126 = vunpack.c.1.s8 %v772
        %v1127 = vunpack.c.1.s8 %v773
        %v1128 = vunpack.c.2.s8 %v772
        %v1129 = vunpack.c.2.s8 %v773
        %v1130 = vunpack.c.3.s8 %v772
        %v1131 = vunpack.c.3.s8 %v773
        %v1132 = vunpack.c.0.s8 %v774
        %v1133 = vunpack.c.0.s8 %v775
        %v1134 = vunpack.c.1.s8 %v774
        %v1135 = vunpack.c.1.s8 %v775
        %v1136 = vunpack.c.2.s8 %v774
        %v1137 = vunpack.c.2.s8 %v775
        %v1138 = vunpack.c.3.s8 %v774
        %v1139 = vunpack.c.3.s8 %v775
        %v1140 = vunpack.c.0.s8 %v776
        %v1141 = vunpack.c.0.s8 %v777
        %v1142 = vunpack.c.1.s8 %v776
        %v1143 = vunpack.c.1.s8 %v777
        %v1144 = vunpack.c.2.s8 %v776
        %v1145 = vunpack.c.2.s8 %v777
        %v1146 = vunpack.c.3.s8 %v776
        %v1147 = vunpack.c.3.s8 %v777
        %v1148 = vunpack.c.0.s8 %v778
        %v1149 = vunpack.c.0.s8 %v779
        %v1150 = vunpack.c.1.s8 %v778
        %v1151 = vunpack.c.1.s8 %v779
        %v1152 = vunpack.c.2.s8 %v778
        %v1153 = vunpack.c.2.s8 %v779
        %v1154 = vunpack.c.3.s8 %v778
        %v1155 = vunpack.c.3.s8 %v779
        %v1156 = vunpack.c.0.s8 %v780
        %v1157 = vunpack.c.0.s8 %v781
        %v1158 = vunpack.c.1.s8 %v780
        %v1159 = vunpack.c.1.s8 %v781
        %v1160 = vunpack.c.2.s8 %v780
        %v1161 = vunpack.c.2.s8 %v781
        %v1162 = vunpack.c.3.s8 %v780
        %v1163 = vunpack.c.3.s8 %v781
        %v1164 = vunpack.c.0.s8 %v782
        %v1165 = vunpack.c.0.s8 %v783
        %v1166 = vunpack.c.1.s8 %v782
        %v1167 = vunpack.c.1.s8 %v783
        %v1168 = vunpack.c.2.s8 %v782
        %v1169 = vunpack.c.2.s8 %v783
        %v1170 = vunpack.c.3.s8 %v782
        %v1171 = vunpack.c.3.s8 %v783
        %v1172 = vunpack.c.0.s8 %v784
        %v1173 = vunpack.c.0.s8 %v785
        %v1174 = vunpack.c.1.s8 %v784
        %v1175 = vunpack.c.1.s8 %v785
        %v1176 = vunpack.c.2.s8 %v784
        %v1177 = vunpack.c.2.s8 %v785
        %v1178 = vunpack.c.3.s8 %v784
        %v1179 = vunpack.c.3.s8 %v785
        %v1180 = vunpack.c.0.s8 %v786
        %v1181 = vunpack.c.0.s8 %v787
        %v1182 = vunpack.c.1.s8 %v786
        %v1183 = vunpack.c.1.s8 %v787
        %v1184 = vunpack.c.2.s8 %v786
        %v1185 = vunpack.c.2.s8 %v787
        %v1186 = vunpack.c.3.s8 %v786
        %v1187 = vunpack.c.3.s8 %v787
        %v1188 = vunpack.c.0.s8 %v788
        %v1189 = vunpack.c.0.s8 %v789
        %v1190 = vunpack.c.1.s8 %v788
        %v1191 = vunpack.c.1.s8 %v789
        %v1192 = vunpack.c.2.s8 %v788
        %v1193 = vunpack.c.2.s8 %v789
        %v1194 = vunpack.c.3.s8 %v788
        %v1195 = vunpack.c.3.s8 %v789
        %v1196 = vunpack.c.0.s8 %v790
        %v1197 = vunpack.c.0.s8 %v791
        %v1198 = vunpack.c.1.s8 %v790
        %v1199 = vunpack.c.1.s8 %v791
        %v1200 = vunpack.c.2.s8 %v790
        %v1201 = vunpack.c.2.s8 %v791
        %v1202 = vunpack.c.3.s8 %v790
        %v1203 = vunpack.c.3.s8 %v791
        %v1204 = vunpack.c.0.s8 %v792
        %v1205 = vunpack.c.0.s8 %v793
        %v1206 = vunpack.c.1.s8 %v792
        %v1207 = vunpack.c.1.s8 %v793
        %v1208 = vunpack.c.2.s8 %v792
        %v1209 = vunpack.c.2.s8 %v793
        %v1210 = vunpack.c.3.s8 %v792
        %v1211 = vunpack.c.3.s8 %v793
        %v1212 = vunpack.c.0.s8 %v794
        %v1213 = vunpack.c.0.s8 %v795
        %v1214 = vunpack.c.1.s8 %v794
        %v1215 = vunpack.c.1.s8 %v795
        %v1216 = vunpack.c.2.s8 %v794
        %v1217 = vunpack.c.2.s8 %v795
        %v1218 = vunpack.c.3.s8 %v794
        %v1219 = vunpack.c.3.s8 %v795
        %v1220 = vunpack.c.0.s8 %v796
        %v1221 = vunpack.c.0.s8 %v797
        %v1222 = vunpack.c.1.s8 %v796
        %v1223 = vunpack.c.1.s8 %v797
        %v1224 = vunpack.c.2.s8 %v796
        %v1225 = vunpack.c.2.s8 %v797
        %v1226 = vunpack.c.3.s8 %v796
        %v1227 = vunpack.c.3.s8 %v797
        %v1228 = vunpack.c.0.s8 %v798
        %v1229 = vunpack.c.0.s8 %v799
        %v1230 = vunpack.c.1.s8 %v798
        %v1231 = vunpack.c.1.s8 %v799
        %v1232 = vunpack.c.2.s8 %v798
        %v1233 = vunpack.c.2.s8 %v799
        %v1234 = vunpack.c.3.s8 %v798
        %v1235 = vunpack.c.3.s8 %v799
        %v1236 = vunpack.c.0.s8 %v800
        %v1237 = vunpack.c.0.s8 %v801
        %v1238 = vunpack.c.1.s8 %v800
        %v1239 = vunpack.c.1.s8 %v801
        %v1240 = vunpack.c.2.s8 %v800
        %v1241 = vunpack.c.2.s8 %v801
        %v1242 = vunpack.c.3.s8 %v800
        %v1243 = vunpack.c.3.s8 %v801
        %v1244 = vunpack.c.0.s8 %v802
        %v1245 = vunpack.c.0.s8 %v803
        %v1246 = vunpack.c.1.s8 %v802
        %v1247 = vunpack.c.1.s8 %v803
        %v1248 = vunpack.c.2.s8 %v802
        %v1249 = vunpack.c.2.s8 %v803
        %v1250 = vunpack.c.3.s8 %v802
        %v1251 = vunpack.c.3.s8 %v803
        %v1252 = vunpack.c.0.s8 %v804
        %v1253 = vunpack.c.0.s8 %v805
        %v1254 = vunpack.c.1.s8 %v804
        %v1255 = vunpack.c.1.s8 %v805
        %v1256 = vunpack.c.2.s8 %v804
        %v1257 = vunpack.c.2.s8 %v805
        %v1258 = vunpack.c.3.s8 %v804
        %v1259 = vunpack.c.3.s8 %v805
        %v1260 = vunpack.c.0.s8 %v806
        %v1261 = vunpack.c.0.s8 %v807
        %v1262 = vunpack.c.1.s8 %v806
        %v1263 = vunpack.c.1.s8 %v807
        %v1264 = vunpack.c.2.s8 %v806
        %v1265 = vunpack.c.2.s8 %v807
        %v1266 = vunpack.c.3.s8 %v806
        %v1267 = vunpack.c.3.s8 %v807
        %v1268 = vunpack.c.0.s8 %v808
        %v1269 = vunpack.c.0.s8 %v809
        %v1270 = vunpack.c.1.s8 %v808
        %v1271 = vunpack.c.1.s8 %v809
        %v1272 = vunpack.c.2.s8 %v808
        %v1273 = vunpack.c.2.s8 %v809
        %v1274 = vunpack.c.3.s8 %v808
        %v1275 = vunpack.c.3.s8 %v809
        %v1276 = vunpack.c.0.s8 %v810
        %v1277 = vunpack.c.0.s8 %v811
        %v1278 = vunpack.c.1.s8 %v810
        %v1279 = vunpack.c.1.s8 %v811
        %v1280 = vunpack.c.2.s8 %v810
        %v1281 = vunpack.c.2.s8 %v811
        %v1282 = vunpack.c.3.s8 %v810
        %v1283 = vunpack.c.3.s8 %v811
        %v1284 = vunpack.c.0.s8 %v812
        %v1285 = vunpack.c.0.s8 %v813
        %v1286 = vunpack.c.1.s8 %v812
        %v1287 = vunpack.c.1.s8 %v813
        %v1288 = vunpack.c.2.s8 %v812
        %v1289 = vunpack.c.2.s8 %v813
        %v1290 = vunpack.c.3.s8 %v812
        %v1291 = vunpack.c.3.s8 %v813
        %v1292 = vunpack.c.0.s8 %v814
        %v1293 = vunpack.c.0.s8 %v815
        %v1294 = vunpack.c.1.s8 %v814
        %v1295 = vunpack.c.1.s8 %v815
        %v1296 = vunpack.c.2.s8 %v814
        %v1297 = vunpack.c.2.s8 %v815
        %v1298 = vunpack.c.3.s8 %v814
        %v1299 = vunpack.c.3.s8 %v815
        %v1300 = vunpack.c.0.s8 %v816
        %v1301 = vunpack.c.0.s8 %v817
        %v1302 = vunpack.c.1.s8 %v816
        %v1303 = vunpack.c.1.s8 %v817
        %v1304 = vunpack.c.2.s8 %v816
        %v1305 = vunpack.c.2.s8 %v817
        %v1306 = vunpack.c.3.s8 %v816
        %v1307 = vunpack.c.3.s8 %v817
        %v1308 = vunpack.c.0.s8 %v818
        %v1309 = vunpack.c.0.s8 %v819
        %v1310 = vunpack.c.1.s8 %v818
        %v1311 = vunpack.c.1.s8 %v819
        %v1312 = vunpack.c.2.s8 %v818
        %v1313 = vunpack.c.2.s8 %v819
        %v1314 = vunpack.c.3.s8 %v818
        %v1315 = vunpack.c.3.s8 %v819
        %v1316 = vunpack.c.0.s8 %v820
        %v1317 = vunpack.c.0.s8 %v821
        %v1318 = vunpack.c.1.s8 %v820
        %v1319 = vunpack.c.1.s8 %v821
        %v1320 = vunpack.c.2.s8 %v820
        %v1321 = vunpack.c.2.s8 %v821
        %v1322 = vunpack.c.3.s8 %v820
        %v1323 = vunpack.c.3.s8 %v821
        %v1324 = vunpack.c.0.s8 %v822
        %v1325 = vunpack.c.0.s8 %v823
        %v1326 = vunpack.c.1.s8 %v822
        %v1327 = vunpack.c.1.s8 %v823
        %v1328 = vunpack.c.2.s8 %v822
        %v1329 = vunpack.c.2.s8 %v823
        %v1330 = vunpack.c.3.s8 %v822
        %v1331 = vunpack.c.3.s8 %v823
        %v1332 = vunpack.c.0.s8 %v824
        %v1333 = vunpack.c.0.s8 %v825
        %v1334 = vunpack.c.1.s8 %v824
        %v1335 = vunpack.c.1.s8 %v825
        %v1336 = vunpack.c.2.s8 %v824
        %v1337 = vunpack.c.2.s8 %v825
        %v1338 = vunpack.c.3.s8 %v824
        %v1339 = vunpack.c.3.s8 %v825
        %v1340 = vunpack.c.0.s8 %v826
        %v1341 = vunpack.c.0.s8 %v827
        %v1342 = vunpack.c.1.s8 %v826
        %v1343 = vunpack.c.1.s8 %v827
        %v1344 = vunpack.c.2.s8 %v826
        %v1345 = vunpack.c.2.s8 %v827
        %v1346 = vunpack.c.3.s8 %v826
        %v1347 = vunpack.c.3.s8 %v827
        %v1348 = vunpack.c.0.s8 %v828
        %v1349 = vunpack.c.0.s8 %v829
        %v1350 = vunpack.c.1.s8 %v828
        %v1351 = vunpack.c.1.s8 %v829
        %v1352 = vunpack.c.2.s8 %v828
        %v1353 = vunpack.c.2.s8 %v829
        %v1354 = vunpack.c.3.s8 %v828
        %v1355 = vunpack.c.3.s8 %v829
        %v1356 = vunpack.c.0.s8 %v830
        %v1357 = vunpack.c.0.s8 %v831
        %v1358 = vunpack.c.1.s8 %v830
        %v1359 = vunpack.c.1.s8 %v831
        %v1360 = vunpack.c.2.s8 %v830
        %v1361 = vunpack.c.2.s8 %v831
        %v1362 = vunpack.c.3.s8 %v830
        %v1363 = vunpack.c.3.s8 %v831
        %v1364 = vunpack.c.0.s8 %v832
        %v1365 = vunpack.c.0.s8 %v833
        %v1366 = vunpack.c.1.s8 %v832
        %v1367 = vunpack.c.1.s8 %v833
        %v1368 = vunpack.c.2.s8 %v832
        %v1369 = vunpack.c.2.s8 %v833
        %v1370 = vunpack.c.3.s8 %v832
        %v1371 = vunpack.c.3.s8 %v833
        %v1372 = vunpack.c.0.s8 %v834
        %v1373 = vunpack.c.0.s8 %v835
        %v1374 = vunpack.c.1.s8 %v834
        %v1375 = vunpack.c.1.s8 %v835
        %v1376 = vunpack.c.2.s8 %v834
        %v1377 = vunpack.c.2.s8 %v835
        %v1378 = vunpack.c.3.s8 %v834
        %v1379 = vunpack.c.3.s8 %v835
        %v1380 = vunpack.c.0.s8 %v836
        %v1381 = vunpack.c.0.s8 %v837
        %v1382 = vunpack.c.1.s8 %v836
        %v1383 = vunpack.c.1.s8 %v837
        %v1384 = vunpack.c.2.s8 %v836
        %v1385 = vunpack.c.2.s8 %v837
        %v1386 = vunpack.c.3.s8 %v836
        %v1387 = vunpack.c.3.s8 %v837
        %v1388 = vunpack.c.0.s8 %v838
        %v1389 = vunpack.c.0.s8 %v839
        %v1390 = vunpack.c.1.s8 %v838
        %v1391 = vunpack.c.1.s8 %v839
        %v1392 = vunpack.c.2.s8 %v838
        %v1393 = vunpack.c.2.s8 %v839
        %v1394 = vunpack.c.3.s8 %v838
        %v1395 = vunpack.c.3.s8 %v839
        %v1396 = vunpack.c.0.s8 %v840
        %v1397 = vunpack.c.0.s8 %v841
        %v1398 = vunpack.c.1.s8 %v840
        %v1399 = vunpack.c.1.s8 %v841
        %v1400 = vunpack.c.2.s8 %v840
        %v1401 = vunpack.c.2.s8 %v841
        %v1402 = vunpack.c.3.s8 %v840
        %v1403 = vunpack.c.3.s8 %v841
        %v1404 = vunpack.c.0.s8 %v842
        %v1405 = vunpack.c.0.s8 %v843
        %v1406 = vunpack.c.1.s8 %v842
        %v1407 = vunpack.c.1.s8 %v843
        %v1408 = vunpack.c.2.s8 %v842
        %v1409 = vunpack.c.2.s8 %v843
        %v1410 = vunpack.c.3.s8 %v842
        %v1411 = vunpack.c.3.s8 %v843
        %v1412 = vunpack.c.0.s8 %v844
        %v1413 = vunpack.c.0.s8 %v845
        %v1414 = vunpack.c.1.s8 %v844
        %v1415 = vunpack.c.1.s8 %v845
        %v1416 = vunpack.c.2.s8 %v844
        %v1417 = vunpack.c.2.s8 %v845
        %v1418 = vunpack.c.3.s8 %v844
        %v1419 = vunpack.c.3.s8 %v845
        %v1420 = vunpack.c.0.s8 %v846
        %v1421 = vunpack.c.0.s8 %v847
        %v1422 = vunpack.c.1.s8 %v846
        %v1423 = vunpack.c.1.s8 %v847
        %v1424 = vunpack.c.2.s8 %v846
        %v1425 = vunpack.c.2.s8 %v847
        %v1426 = vunpack.c.3.s8 %v846
        %v1427 = vunpack.c.3.s8 %v847
        %v1428 = vunpack.c.0.s8 %v848
        %v1429 = vunpack.c.0.s8 %v849
        %v1430 = vunpack.c.1.s8 %v848
        %v1431 = vunpack.c.1.s8 %v849
        %v1432 = vunpack.c.2.s8 %v848
        %v1433 = vunpack.c.2.s8 %v849
        %v1434 = vunpack.c.3.s8 %v848
        %v1435 = vunpack.c.3.s8 %v849
        %v1436 = vunpack.c.0.s8 %v850
        %v1437 = vunpack.c.0.s8 %v851
        %v1438 = vunpack.c.1.s8 %v850
        %v1439 = vunpack.c.1.s8 %v851
        %v1440 = vunpack.c.2.s8 %v850
        %v1441 = vunpack.c.2.s8 %v851
        %v1442 = vunpack.c.3.s8 %v850
        %v1443 = vunpack.c.3.s8 %v851
        %v1444 = vunpack.c.0.s8 %v852
        %v1445 = vunpack.c.0.s8 %v853
        %v1446 = vunpack.c.1.s8 %v852
        %v1447 = vunpack.c.1.s8 %v853
        %v1448 = vunpack.c.2.s8 %v852
        %v1449 = vunpack.c.2.s8 %v853
        %v1450 = vunpack.c.3.s8 %v852
        %v1451 = vunpack.c.3.s8 %v853
        %v1452 = vunpack.c.0.s8 %v854
        %v1453 = vunpack.c.0.s8 %v855
        %v1454 = vunpack.c.1.s8 %v854
        %v1455 = vunpack.c.1.s8 %v855
        %v1456 = vunpack.c.2.s8 %v854
        %v1457 = vunpack.c.2.s8 %v855
        %v1458 = vunpack.c.3.s8 %v854
        %v1459 = vunpack.c.3.s8 %v855
        %v1460 = vunpack.c.0.s8 %v856
        %v1461 = vunpack.c.0.s8 %v857
        %v1462 = vunpack.c.1.s8 %v856
        %v1463 = vunpack.c.1.s8 %v857
        %v1464 = vunpack.c.2.s8 %v856
        %v1465 = vunpack.c.2.s8 %v857
        %v1466 = vunpack.c.3.s8 %v856
        %v1467 = vunpack.c.3.s8 %v857
        %v1468 = vunpack.c.0.s8 %v858
        %v1469 = vunpack.c.0.s8 %v859
        %v1470 = vunpack.c.1.s8 %v858
        %v1471 = vunpack.c.1.s8 %v859
        %v1472 = vunpack.c.2.s8 %v858
        %v1473 = vunpack.c.2.s8 %v859
        %v1474 = vunpack.c.3.s8 %v858
        %v1475 = vunpack.c.3.s8 %v859
        %v1476 = vunpack.c.0.s8 %v860
        %v1477 = vunpack.c.0.s8 %v861
        %v1478 = vunpack.c.1.s8 %v860
        %v1479 = vunpack.c.1.s8 %v861
        %v1480 = vunpack.c.2.s8 %v860
        %v1481 = vunpack.c.2.s8 %v861
        %v1482 = vunpack.c.3.s8 %v860
        %v1483 = vunpack.c.3.s8 %v861
        %v1484 = vunpack.c.0.s8 %v862
        %v1485 = vunpack.c.0.s8 %v863
        %v1486 = vunpack.c.1.s8 %v862
        %v1487 = vunpack.c.1.s8 %v863
        %v1488 = vunpack.c.2.s8 %v862
        %v1489 = vunpack.c.2.s8 %v863
        %v1490 = vunpack.c.3.s8 %v862
        %v1491 = vunpack.c.3.s8 %v863
        %v1492 = vunpack.c.0.s8 %v864
        %v1493 = vunpack.c.0.s8 %v865
        %v1494 = vunpack.c.1.s8 %v864
        %v1495 = vunpack.c.1.s8 %v865
        %v1496 = vunpack.c.2.s8 %v864
        %v1497 = vunpack.c.2.s8 %v865
        %v1498 = vunpack.c.3.s8 %v864
        %v1499 = vunpack.c.3.s8 %v865
        %v1500 = vunpack.c.0.s8 %v866
        %v1501 = vunpack.c.0.s8 %v867
        %v1502 = vunpack.c.1.s8 %v866
        %v1503 = vunpack.c.1.s8 %v867
        %v1504 = vunpack.c.2.s8 %v866
        %v1505 = vunpack.c.2.s8 %v867
        %v1506 = vunpack.c.3.s8 %v866
        %v1507 = vunpack.c.3.s8 %v867
        %v1508 = vunpack.c.0.s8 %v868
        %v1509 = vunpack.c.0.s8 %v869
        %v1510 = vunpack.c.1.s8 %v868
        %v1511 = vunpack.c.1.s8 %v869
        %v1512 = vunpack.c.2.s8 %v868
        %v1513 = vunpack.c.2.s8 %v869
        %v1514 = vunpack.c.3.s8 %v868
        %v1515 = vunpack.c.3.s8 %v869
        %v1516 = vunpack.c.0.s8 %v870
        %v1517 = vunpack.c.0.s8 %v871
        %v1518 = vunpack.c.1.s8 %v870
        %v1519 = vunpack.c.1.s8 %v871
        %v1520 = vunpack.c.2.s8 %v870
        %v1521 = vunpack.c.2.s8 %v871
        %v1522 = vunpack.c.3.s8 %v870
        %v1523 = vunpack.c.3.s8 %v871
        %v1524 = vunpack.c.0.s8 %v872
        %v1525 = vunpack.c.0.s8 %v873
        %v1526 = vunpack.c.1.s8 %v872
        %v1527 = vunpack.c.1.s8 %v873
        %v1528 = vunpack.c.2.s8 %v872
        %v1529 = vunpack.c.2.s8 %v873
        %v1530 = vunpack.c.3.s8 %v872
        %v1531 = vunpack.c.3.s8 %v873
        %v1532 = vunpack.c.0.s8 %v874
        %v1533 = vunpack.c.0.s8 %v875
        %v1534 = vunpack.c.1.s8 %v874
        %v1535 = vunpack.c.1.s8 %v875
        %v1536 = vunpack.c.2.s8 %v874
        %v1537 = vunpack.c.2.s8 %v875
        %v1538 = vunpack.c.3.s8 %v874
        %v1539 = vunpack.c.3.s8 %v875
        %v1540 = vunpack.c.0.s8 %v876
        %v1541 = vunpack.c.0.s8 %v877
        %v1542 = vunpack.c.1.s8 %v876
        %v1543 = vunpack.c.1.s8 %v877
        %v1544 = vunpack.c.2.s8 %v876
        %v1545 = vunpack.c.2.s8 %v877
        %v1546 = vunpack.c.3.s8 %v876
        %v1547 = vunpack.c.3.s8 %v877
        %v1548 = vunpack.c.0.s8 %v878
        %v1549 = vunpack.c.0.s8 %v879
        %v1550 = vunpack.c.1.s8 %v878
        %v1551 = vunpack.c.1.s8 %v879
        %v1552 = vunpack.c.2.s8 %v878
        %v1553 = vunpack.c.2.s8 %v879
        %v1554 = vunpack.c.3.s8 %v878
        %v1555 = vunpack.c.3.s8 %v879
        %v1556 = vunpack.c.0.s8 %v880
        %v1557 = vunpack.c.0.s8 %v881
        %v1558 = vunpack.c.1.s8 %v880
        %v1559 = vunpack.c.1.s8 %v881
        %v1560 = vunpack.c.2.s8 %v880
        %v1561 = vunpack.c.2.s8 %v881
        %v1562 = vunpack.c.3.s8 %v880
        %v1563 = vunpack.c.3.s8 %v881
        %v1564 = vunpack.c.0.s8 %v882
        %v1565 = vunpack.c.0.s8 %v883
        %v1566 = vunpack.c.1.s8 %v882
        %v1567 = vunpack.c.1.s8 %v883
        %v1568 = vunpack.c.2.s8 %v882
        %v1569 = vunpack.c.2.s8 %v883
        %v1570 = vunpack.c.3.s8 %v882
        %v1571 = vunpack.c.3.s8 %v883
        %v1572 = vunpack.c.0.s8 %v884
        %v1573 = vunpack.c.0.s8 %v885
        %v1574 = vunpack.c.1.s8 %v884
        %v1575 = vunpack.c.1.s8 %v885
        %v1576 = vunpack.c.2.s8 %v884
        %v1577 = vunpack.c.2.s8 %v885
        %v1578 = vunpack.c.3.s8 %v884
        %v1579 = vunpack.c.3.s8 %v885
        %v1580 = vunpack.c.0.s8 %v886
        %v1581 = vunpack.c.0.s8 %v887
        %v1582 = vunpack.c.1.s8 %v886
        %v1583 = vunpack.c.1.s8 %v887
        %v1584 = vunpack.c.2.s8 %v886
        %v1585 = vunpack.c.2.s8 %v887
        %v1586 = vunpack.c.3.s8 %v886
        %v1587 = vunpack.c.3.s8 %v887
        %v1588 = vunpack.c.0.s8 %v888
        %v1589 = vunpack.c.0.s8 %v889
        %v1590 = vunpack.c.1.s8 %v888
        %v1591 = vunpack.c.1.s8 %v889
        %v1592 = vunpack.c.2.s8 %v888
        %v1593 = vunpack.c.2.s8 %v889
        %v1594 = vunpack.c.3.s8 %v888
        %v1595 = vunpack.c.3.s8 %v889
        %v1596 = vunpack.c.0.s8 %v890
        %v1597 = vunpack.c.0.s8 %v891
        %v1598 = vunpack.c.1.s8 %v890
        %v1599 = vunpack.c.1.s8 %v891
        %v1600 = vunpack.c.2.s8 %v890
        %v1601 = vunpack.c.2.s8 %v891
        %v1602 = vunpack.c.3.s8 %v890
        %v1603 = vunpack.c.3.s8 %v891
        %v1604 = vunpack.c.0.s8 %v892
        %v1605 = vunpack.c.0.s8 %v893
        %v1606 = vunpack.c.1.s8 %v892
        %v1607 = vunpack.c.1.s8 %v893
        %v1608 = vunpack.c.2.s8 %v892
        %v1609 = vunpack.c.2.s8 %v893
        %v1610 = vunpack.c.3.s8 %v892
        %v1611 = vunpack.c.3.s8 %v893
        %v1612 = vunpack.c.0.s8 %v894
        %v1613 = vunpack.c.0.s8 %v895
        %v1614 = vunpack.c.1.s8 %v894
        %v1615 = vunpack.c.1.s8 %v895
        %v1616 = vunpack.c.2.s8 %v894
        %v1617 = vunpack.c.2.s8 %v895
        %v1618 = vunpack.c.3.s8 %v894
        %v1619 = vunpack.c.3.s8 %v895
        %v1620 = vunpack.c.0.s8 %v896
        %v1621 = vunpack.c.0.s8 %v897
        %v1622 = vunpack.c.1.s8 %v896
        %v1623 = vunpack.c.1.s8 %v897
        %v1624 = vunpack.c.2.s8 %v896
        %v1625 = vunpack.c.2.s8 %v897
        %v1626 = vunpack.c.3.s8 %v896
        %v1627 = vunpack.c.3.s8 %v897
        %v1628 = vunpack.c.0.s8 %v898
        %v1629 = vunpack.c.0.s8 %v899
        %v1630 = vunpack.c.1.s8 %v898
        %v1631 = vunpack.c.1.s8 %v899
        %v1632 = vunpack.c.2.s8 %v898
        %v1633 = vunpack.c.2.s8 %v899
        %v1634 = vunpack.c.3.s8 %v898
        %v1635 = vunpack.c.3.s8 %v899
        %v1636 = vunpack.c.0.s8 %v900
        %v1637 = vunpack.c.0.s8 %v901
        %v1638 = vunpack.c.1.s8 %v900
        %v1639 = vunpack.c.1.s8 %v901
        %v1640 = vunpack.c.2.s8 %v900
        %v1641 = vunpack.c.2.s8 %v901
        %v1642 = vunpack.c.3.s8 %v900
        %v1643 = vunpack.c.3.s8 %v901
        %v1644 = vunpack.c.0.s8 %v902
        %v1645 = vunpack.c.0.s8 %v903
        %v1646 = vunpack.c.1.s8 %v902
        %v1647 = vunpack.c.1.s8 %v903
        %v1648 = vunpack.c.2.s8 %v902
        %v1649 = vunpack.c.2.s8 %v903
        %v1650 = vunpack.c.3.s8 %v902
        %v1651 = vunpack.c.3.s8 %v903
        %v1652 = vunpack.c.0.s8 %v904
        %v1653 = vunpack.c.0.s8 %v905
        %v1654 = vunpack.c.1.s8 %v904
        %v1655 = vunpack.c.1.s8 %v905
        %v1656 = vunpack.c.2.s8 %v904
        %v1657 = vunpack.c.2.s8 %v905
        %v1658 = vunpack.c.3.s8 %v904
        %v1659 = vunpack.c.3.s8 %v905
        %v1660 = vunpack.c.0.s8 %v906
        %v1661 = vunpack.c.0.s8 %v907
        %v1662 = vunpack.c.1.s8 %v906
        %v1663 = vunpack.c.1.s8 %v907
        %v1664 = vunpack.c.2.s8 %v906
        %v1665 = vunpack.c.2.s8 %v907
        %v1666 = vunpack.c.3.s8 %v906
        %v1667 = vunpack.c.3.s8 %v907
        %v1668 = vunpack.c.0.s8 %v908
        %v1669 = vunpack.c.0.s8 %v909
        %v1670 = vunpack.c.1.s8 %v908
        %v1671 = vunpack.c.1.s8 %v909
        %v1672 = vunpack.c.2.s8 %v908
        %v1673 = vunpack.c.2.s8 %v909
        %v1674 = vunpack.c.3.s8 %v908
        %v1675 = vunpack.c.3.s8 %v909
        %v1676 = vunpack.c.0.s8 %v910
        %v1677 = vunpack.c.0.s8 %v911
        %v1678 = vunpack.c.1.s8 %v910
        %v1679 = vunpack.c.1.s8 %v911
        %v1680 = vunpack.c.2.s8 %v910
        %v1681 = vunpack.c.2.s8 %v911
        %v1682 = vunpack.c.3.s8 %v910
        %v1683 = vunpack.c.3.s8 %v911
        %v1684 = vunpack.c.0.s8 %v912
        %v1685 = vunpack.c.0.s8 %v913
        %v1686 = vunpack.c.1.s8 %v912
        %v1687 = vunpack.c.1.s8 %v913
        %v1688 = vunpack.c.2.s8 %v912
        %v1689 = vunpack.c.2.s8 %v913
        %v1690 = vunpack.c.3.s8 %v912
        %v1691 = vunpack.c.3.s8 %v913
        %v1692 = vunpack.c.0.s8 %v914
        %v1693 = vunpack.c.0.s8 %v915
        %v1694 = vunpack.c.1.s8 %v914
        %v1695 = vunpack.c.1.s8 %v915
        %v1696 = vunpack.c.2.s8 %v914
        %v1697 = vunpack.c.2.s8 %v915
        %v1698 = vunpack.c.3.s8 %v914
        %v1699 = vunpack.c.3.s8 %v915
        %v1700 = vcvt.s32.f32 %v916
        %v1701 = vcvt.s32.f32 %v917
        %v1702 = vcvt.s32.f32 %v918
        %v1703 = vcvt.s32.f32 %v919
        %v1704 = vcvt.s32.f32 %v920
        %v1705 = vcvt.s32.f32 %v921
        %v1706 = vcvt.s32.f32 %v922
        %v1707 = vcvt.s32.f32 %v923
        %v1708 = vcvt.s32.f32 %v924
        %v1709 = vcvt.s32.f32 %v925
        %v1710 = vcvt.s32.f32 %v926
        %v1711 = vcvt.s32.f32 %v927
        %v1712 = vcvt.s32.f32 %v928
        %v1713 = vcvt.s32.f32 %v929
        %v1714 = vcvt.s32.f32 %v930
        %v1715 = vcvt.s32.f32 %v931
        %v1716 = vcvt.s32.f32 %v932
        %v1717 = vcvt.s32.f32 %v933
        %v1718 = vcvt.s32.f32 %v934
        %v1719 = vcvt.s32.f32 %v935
        %v1720 = vcvt.s32.f32 %v936
        %v1721 = vcvt.s32.f32 %v937
        %v1722 = vcvt.s32.f32 %v938
        %v1723 = vcvt.s32.f32 %v939
        %v1724 = vcvt.s32.f32 %v940
        %v1725 = vcvt.s32.f32 %v941
        %v1726 = vcvt.s32.f32 %v942
        %v1727 = vcvt.s32.f32 %v943
        %v1728 = vcvt.s32.f32 %v944
        %v1729 = vcvt.s32.f32 %v945
        %v1730 = vcvt.s32.f32 %v946
        %v1731 = vcvt.s32.f32 %v947
        %v1732 = vcvt.s32.f32 %v948
        %v1733 = vcvt.s32.f32 %v949
        %v1734 = vcvt.s32.f32 %v950
        %v1735 = vcvt.s32.f32 %v951
        %v1736 = vcvt.s32.f32 %v952
        %v1737 = vcvt.s32.f32 %v953
        %v1738 = vcvt.s32.f32 %v954
        %v1739 = vcvt.s32.f32 %v955
        %v1740 = vcvt.s32.f32 %v956
        %v1741 = vcvt.s32.f32 %v957
        %v1742 = vcvt.s32.f32 %v958
        %v1743 = vcvt.s32.f32 %v959
        %v1744 = vcvt.s32.f32 %v960
        %v1745 = vcvt.s32.f32 %v961
        %v1746 = vcvt.s32.f32 %v962
        %v1747 = vcvt.s32.f32 %v963
        %v1748 = vcvt.s32.f32 %v964
        %v1749 = vcvt.s32.f32 %v965
        %v1750 = vcvt.s32.f32 %v966
        %v1751 = vcvt.s32.f32 %v967
        %v1752 = vcvt.s32.f32 %v968
        %v1753 = vcvt.s32.f32 %v969
        %v1754 = vcvt.s32.f32 %v970
        %v1755 = vcvt.s32.f32 %v971
        %v1756 = vcvt.s32.f32 %v972
        %v1757 = vcvt.s32.f32 %v973
        %v1758 = vcvt.s32.f32 %v974
        %v1759 = vcvt.s32.f32 %v975
        %v1760 = vcvt.s32.f32 %v976
        %v1761 = vcvt.s32.f32 %v977
        %v1762 = vcvt.s32.f32 %v978
        %v1763 = vcvt.s32.f32 %v979
        %v1764 = vcvt.s32.f32 %v980
        %v1765 = vcvt.s32.f32 %v981
        %v1766 = vcvt.s32.f32 %v982
        %v1767 = vcvt.s32.f32 %v983
        %v1768 = vcvt.s32.f32 %v984
        %v1769 = vcvt.s32.f32 %v985
        %v1770 = vcvt.s32.f32 %v986
        %v1771 = vcvt.s32.f32 %v987
        %v1772 = vcvt.s32.f32 %v988
        %v1773 = vcvt.s32.f32 %v989
        %v1774 = vcvt.s32.f32 %v990
        %v1775 = vcvt.s32.f32 %v991
        %v1776 = vcvt.s32.f32 %v992
        %v1777 = vcvt.s32.f32 %v993
        %v1778 = vcvt.s32.f32 %v994
        %v1779 = vcvt.s32.f32 %v995
        %v1780 = vcvt.s32.f32 %v996
        %v1781 = vcvt.s32.f32 %v997
        %v1782 = vcvt.s32.f32 %v998
        %v1783 = vcvt.s32.f32 %v999
        %v1784 = vcvt.s32.f32 %v1000
        %v1785 = vcvt.s32.f32 %v1001
        %v1786 = vcvt.s32.f32 %v1002
        %v1787 = vcvt.s32.f32 %v1003
        %v1788 = vcvt.s32.f32 %v1004
        %v1789 = vcvt.s32.f32 %v1005
        %v1790 = vcvt.s32.f32 %v1006
        %v1791 = vcvt.s32.f32 %v1007
        %v1792 = vcvt.s32.f32 %v1008
        %v1793 = vcvt.s32.f32 %v1009
        %v1794 = vcvt.s32.f32 %v1010
        %v1795 = vcvt.s32.f32 %v1011
        %v1796 = vcvt.s32.f32 %v1012
        %v1797 = vcvt.s32.f32 %v1013
        %v1798 = vcvt.s32.f32 %v1014
        %v1799 = vcvt.s32.f32 %v1015
        %v1800 = vcvt.s32.f32 %v1016
        %v1801 = vcvt.s32.f32 %v1017
        %v1802 = vcvt.s32.f32 %v1018
        %v1803 = vcvt.s32.f32 %v1019
        %v1804 = vcvt.s32.f32 %v1020
        %v1805 = vcvt.s32.f32 %v1021
        %v1806 = vcvt.s32.f32 %v1022
        %v1807 = vcvt.s32.f32 %v1023
        %v1808 = vcvt.s32.f32 %v1024
        %v1809 = vcvt.s32.f32 %v1025
        %v1810 = vcvt.s32.f32 %v1026
        %v1811 = vcvt.s32.f32 %v1027
        %v1812 = vcvt.s32.f32 %v1028
        %v1813 = vcvt.s32.f32 %v1029
        %v1814 = vcvt.s32.f32 %v1030
        %v1815 = vcvt.s32.f32 %v1031
        %v1816 = vcvt.s32.f32 %v1032
        %v1817 = vcvt.s32.f32 %v1033
        %v1818 = vcvt.s32.f32 %v1034
        %v1819 = vcvt.s32.f32 %v1035
        %v1820 = vcvt.s32.f32 %v1036
        %v1821 = vcvt.s32.f32 %v1037
        %v1822 = vcvt.s32.f32 %v1038
        %v1823 = vcvt.s32.f32 %v1039
        %v1824 = vcvt.s32.f32 %v1040
        %v1825 = vcvt.s32.f32 %v1041
        %v1826 = vcvt.s32.f32 %v1042
        %v1827 = vcvt.s32.f32 %v1043
        %v1828 = vcvt.s32.f32 %v1044
        %v1829 = vcvt.s32.f32 %v1045
        %v1830 = vcvt.s32.f32 %v1046
        %v1831 = vcvt.s32.f32 %v1047
        %v1832 = vcvt.s32.f32 %v1048
        %v1833 = vcvt.s32.f32 %v1049
        %v1834 = vcvt.s32.f32 %v1050
        %v1835 = vcvt.s32.f32 %v1051
        %v1836 = vcvt.s32.f32 %v1052
        %v1837 = vcvt.s32.f32 %v1053
        %v1838 = vcvt.s32.f32 %v1054
        %v1839 = vcvt.s32.f32 %v1055
        %v1840 = vcvt.s32.f32 %v1056
        %v1841 = vcvt.s32.f32 %v1057
        %v1842 = vcvt.s32.f32 %v1058
        %v1843 = vcvt.s32.f32 %v1059
        %v1844 = vcvt.s32.f32 %v1060
        %v1845 = vcvt.s32.f32 %v1061
        %v1846 = vcvt.s32.f32 %v1062
        %v1847 = vcvt.s32.f32 %v1063
        %v1848 = vcvt.s32.f32 %v1064
        %v1849 = vcvt.s32.f32 %v1065
        %v1850 = vcvt.s32.f32 %v1066
        %v1851 = vcvt.s32.f32 %v1067
        %v1852 = vcvt.s32.f32 %v1068
        %v1853 = vcvt.s32.f32 %v1069
        %v1854 = vcvt.s32.f32 %v1070
        %v1855 = vcvt.s32.f32 %v1071
        %v1856 = vcvt.s32.f32 %v1072
        %v1857 = vcvt.s32.f32 %v1073
        %v1858 = vcvt.s32.f32 %v1074
        %v1859 = vcvt.s32.f32 %v1075
        %v1860 = vcvt.s32.f32 %v1076
        %v1861 = vcvt.s32.f32 %v1077
        %v1862 = vcvt.s32.f32 %v1078
        %v1863 = vcvt.s32.f32 %v1079
        %v1864 = vcvt.s32.f32 %v1080
        %v1865 = vcvt.s32.f32 %v1081
        %v1866 = vcvt.s32.f32 %v1082
        %v1867 = vcvt.s32.f32 %v1083
        %v1868 = vcvt.s32.f32 %v1084
        %v1869 = vcvt.s32.f32 %v1085
        %v1870 = vcvt.s32.f32 %v1086
        %v1871 = vcvt.s32.f32 %v1087
        %v1872 = vcvt.s32.f32 %v1088
        %v1873 = vcvt.s32.f32 %v1089
        %v1874 = vcvt.s32.f32 %v1090
        %v1875 = vcvt.s32.f32 %v1091
        %v1876 = vcvt.s32.f32 %v1092
        %v1877 = vcvt.s32.f32 %v1093
        %v1878 = vcvt.s32.f32 %v1094
        %v1879 = vcvt.s32.f32 %v1095
        %v1880 = vcvt.s32.f32 %v1096
        %v1881 = vcvt.s32.f32 %v1097
        %v1882 = vcvt.s32.f32 %v1098
        %v1883 = vcvt.s32.f32 %v1099
        %v1884 = vcvt.s32.f32 %v1100
        %v1885 = vcvt.s32.f32 %v1101
        %v1886 = vcvt.s32.f32 %v1102
        %v1887 = vcvt.s32.f32 %v1103
        %v1888 = vcvt.s32.f32 %v1104
        %v1889 = vcvt.s32.f32 %v1105
        %v1890 = vcvt.s32.f32 %v1106
        %v1891 = vcvt.s32.f32 %v1107
        %v1892 = vcvt.s32.f32 %v1108
        %v1893 = vcvt.s32.f32 %v1109
        %v1894 = vcvt.s32.f32 %v1110
        %v1895 = vcvt.s32.f32 %v1111
        %v1896 = vcvt.s32.f32 %v1112
        %v1897 = vcvt.s32.f32 %v1113
        %v1898 = vcvt.s32.f32 %v1114
        %v1899 = vcvt.s32.f32 %v1115
        %v1900 = vcvt.s32.f32 %v1116
        %v1901 = vcvt.s32.f32 %v1117
        %v1902 = vcvt.s32.f32 %v1118
        %v1903 = vcvt.s32.f32 %v1119
        %v1904 = vcvt.s32.f32 %v1120
        %v1905 = vcvt.s32.f32 %v1121
        %v1906 = vcvt.s32.f32 %v1122
        %v1907 = vcvt.s32.f32 %v1123
        %v1908 = vcvt.s32.f32 %v1124
        %v1909 = vcvt.s32.f32 %v1125
        %v1910 = vcvt.s32.f32 %v1126
        %v1911 = vcvt.s32.f32 %v1127
        %v1912 = vcvt.s32.f32 %v1128
        %v1913 = vcvt.s32.f32 %v1129
        %v1914 = vcvt.s32.f32 %v1130
        %v1915 = vcvt.s32.f32 %v1131
        %v1916 = vcvt.s32.f32 %v1132
        %v1917 = vcvt.s32.f32 %v1133
        %v1918 = vcvt.s32.f32 %v1134
        %v1919 = vcvt.s32.f32 %v1135
        %v1920 = vcvt.s32.f32 %v1136
        %v1921 = vcvt.s32.f32 %v1137
        %v1922 = vcvt.s32.f32 %v1138
        %v1923 = vcvt.s32.f32 %v1139
        %v1924 = vcvt.s32.f32 %v1140
        %v1925 = vcvt.s32.f32 %v1141
        %v1926 = vcvt.s32.f32 %v1142
        %v1927 = vcvt.s32.f32 %v1143
        %v1928 = vcvt.s32.f32 %v1144
        %v1929 = vcvt.s32.f32 %v1145
        %v1930 = vcvt.s32.f32 %v1146
        %v1931 = vcvt.s32.f32 %v1147
        %v1932 = vcvt.s32.f32 %v1148
        %v1933 = vcvt.s32.f32 %v1149
        %v1934 = vcvt.s32.f32 %v1150
        %v1935 = vcvt.s32.f32 %v1151
        %v1936 = vcvt.s32.f32 %v1152
        %v1937 = vcvt.s32.f32 %v1153
        %v1938 = vcvt.s32.f32 %v1154
        %v1939 = vcvt.s32.f32 %v1155
        %v1940 = vcvt.s32.f32 %v1156
        %v1941 = vcvt.s32.f32 %v1157
        %v1942 = vcvt.s32.f32 %v1158
        %v1943 = vcvt.s32.f32 %v1159
        %v1944 = vcvt.s32.f32 %v1160
        %v1945 = vcvt.s32.f32 %v1161
        %v1946 = vcvt.s32.f32 %v1162
        %v1947 = vcvt.s32.f32 %v1163
        %v1948 = vcvt.s32.f32 %v1164
        %v1949 = vcvt.s32.f32 %v1165
        %v1950 = vcvt.s32.f32 %v1166
        %v1951 = vcvt.s32.f32 %v1167
        %v1952 = vcvt.s32.f32 %v1168
        %v1953 = vcvt.s32.f32 %v1169
        %v1954 = vcvt.s32.f32 %v1170
        %v1955 = vcvt.s32.f32 %v1171
        %v1956 = vcvt.s32.f32 %v1172
        %v1957 = vcvt.s32.f32 %v1173
        %v1958 = vcvt.s32.f32 %v1174
        %v1959 = vcvt.s32.f32 %v1175
        %v1960 = vcvt.s32.f32 %v1176
        %v1961 = vcvt.s32.f32 %v1177
        %v1962 = vcvt.s32.f32 %v1178
        %v1963 = vcvt.s32.f32 %v1179
        %v1964 = vcvt.s32.f32 %v1180
        %v1965 = vcvt.s32.f32 %v1181
        %v1966 = vcvt.s32.f32 %v1182
        %v1967 = vcvt.s32.f32 %v1183
        %v1968 = vcvt.s32.f32 %v1184
        %v1969 = vcvt.s32.f32 %v1185
        %v1970 = vcvt.s32.f32 %v1186
        %v1971 = vcvt.s32.f32 %v1187
        %v1972 = vcvt.s32.f32 %v1188
        %v1973 = vcvt.s32.f32 %v1189
        %v1974 = vcvt.s32.f32 %v1190
        %v1975 = vcvt.s32.f32 %v1191
        %v1976 = vcvt.s32.f32 %v1192
        %v1977 = vcvt.s32.f32 %v1193
        %v1978 = vcvt.s32.f32 %v1194
        %v1979 = vcvt.s32.f32 %v1195
        %v1980 = vcvt.s32.f32 %v1196
        %v1981 = vcvt.s32.f32 %v1197
        %v1982 = vcvt.s32.f32 %v1198
        %v1983 = vcvt.s32.f32 %v1199
        %v1984 = vcvt.s32.f32 %v1200
        %v1985 = vcvt.s32.f32 %v1201
        %v1986 = vcvt.s32.f32 %v1202
        %v1987 = vcvt.s32.f32 %v1203
        %v1988 = vcvt.s32.f32 %v1204
        %v1989 = vcvt.s32.f32 %v1205
        %v1990 = vcvt.s32.f32 %v1206
        %v1991 = vcvt.s32.f32 %v1207
        %v1992 = vcvt.s32.f32 %v1208
        %v1993 = vcvt.s32.f32 %v1209
        %v1994 = vcvt.s32.f32 %v1210
        %v1995 = vcvt.s32.f32 %v1211
        %v1996 = vcvt.s32.f32 %v1212
        %v1997 = vcvt.s32.f32 %v1213
        %v1998 = vcvt.s32.f32 %v1214
        %v1999 = vcvt.s32.f32 %v1215
        %v2000 = vcvt.s32.f32 %v1216
        %v2001 = vcvt.s32.f32 %v1217
        %v2002 = vcvt.s32.f32 %v1218
        %v2003 = vcvt.s32.f32 %v1219
        %v2004 = vcvt.s32.f32 %v1220
        %v2005 = vcvt.s32.f32 %v1221
        %v2006 = vcvt.s32.f32 %v1222
        %v2007 = vcvt.s32.f32 %v1223
        %v2008 = vcvt.s32.f32 %v1224
        %v2009 = vcvt.s32.f32 %v1225
        %v2010 = vcvt.s32.f32 %v1226
        %v2011 = vcvt.s32.f32 %v1227
        %v2012 = vcvt.s32.f32 %v1228
        %v2013 = vcvt.s32.f32 %v1229
        %v2014 = vcvt.s32.f32 %v1230
        %v2015 = vcvt.s32.f32 %v1231
        %v2016 = vcvt.s32.f32 %v1232
        %v2017 = vcvt.s32.f32 %v1233
        %v2018 = vcvt.s32.f32 %v1234
        %v2019 = vcvt.s32.f32 %v1235
        %v2020 = vcvt.s32.f32 %v1236
        %v2021 = vcvt.s32.f32 %v1237
        %v2022 = vcvt.s32.f32 %v1238
        %v2023 = vcvt.s32.f32 %v1239
        %v2024 = vcvt.s32.f32 %v1240
        %v2025 = vcvt.s32.f32 %v1241
        %v2026 = vcvt.s32.f32 %v1242
        %v2027 = vcvt.s32.f32 %v1243
        %v2028 = vcvt.s32.f32 %v1244
        %v2029 = vcvt.s32.f32 %v1245
        %v2030 = vcvt.s32.f32 %v1246
        %v2031 = vcvt.s32.f32 %v1247
        %v2032 = vcvt.s32.f32 %v1248
        %v2033 = vcvt.s32.f32 %v1249
        %v2034 = vcvt.s32.f32 %v1250
        %v2035 = vcvt.s32.f32 %v1251
        %v2036 = vcvt.s32.f32 %v1252
        %v2037 = vcvt.s32.f32 %v1253
        %v2038 = vcvt.s32.f32 %v1254
        %v2039 = vcvt.s32.f32 %v1255
        %v2040 = vcvt.s32.f32 %v1256
        %v2041 = vcvt.s32.f32 %v1257
        %v2042 = vcvt.s32.f32 %v1258
        %v2043 = vcvt.s32.f32 %v1259
        %v2044 = vcvt.s32.f32 %v1260
        %v2045 = vcvt.s32.f32 %v1261
        %v2046 = vcvt.s32.f32 %v1262
        %v2047 = vcvt.s32.f32 %v1263
        %v2048 = vcvt.s32.f32 %v1264
        %v2049 = vcvt.s32.f32 %v1265
        %v2050 = vcvt.s32.f32 %v1266
        %v2051 = vcvt.s32.f32 %v1267
        %v2052 = vcvt.s32.f32 %v1268
        %v2053 = vcvt.s32.f32 %v1269
        %v2054 = vcvt.s32.f32 %v1270
        %v2055 = vcvt.s32.f32 %v1271
        %v2056 = vcvt.s32.f32 %v1272
        %v2057 = vcvt.s32.f32 %v1273
        %v2058 = vcvt.s32.f32 %v1274
        %v2059 = vcvt.s32.f32 %v1275
        %v2060 = vcvt.s32.f32 %v1276
        %v2061 = vcvt.s32.f32 %v1277
        %v2062 = vcvt.s32.f32 %v1278
        %v2063 = vcvt.s32.f32 %v1279
        %v2064 = vcvt.s32.f32 %v1280
        %v2065 = vcvt.s32.f32 %v1281
        %v2066 = vcvt.s32.f32 %v1282
        %v2067 = vcvt.s32.f32 %v1283
        %v2068 = vcvt.s32.f32 %v1284
        %v2069 = vcvt.s32.f32 %v1285
        %v2070 = vcvt.s32.f32 %v1286
        %v2071 = vcvt.s32.f32 %v1287
        %v2072 = vcvt.s32.f32 %v1288
        %v2073 = vcvt.s32.f32 %v1289
        %v2074 = vcvt.s32.f32 %v1290
        %v2075 = vcvt.s32.f32 %v1291
        %v2076 = vcvt.s32.f32 %v1292
        %v2077 = vcvt.s32.f32 %v1293
        %v2078 = vcvt.s32.f32 %v1294
        %v2079 = vcvt.s32.f32 %v1295
        %v2080 = vcvt.s32.f32 %v1296
        %v2081 = vcvt.s32.f32 %v1297
        %v2082 = vcvt.s32.f32 %v1298
        %v2083 = vcvt.s32.f32 %v1299
        %v2084 = vcvt.s32.f32 %v1300
        %v2085 = vcvt.s32.f32 %v1301
        %v2086 = vcvt.s32.f32 %v1302
        %v2087 = vcvt.s32.f32 %v1303
        %v2088 = vcvt.s32.f32 %v1304
        %v2089 = vcvt.s32.f32 %v1305
        %v2090 = vcvt.s32.f32 %v1306
        %v2091 = vcvt.s32.f32 %v1307
        %v2092 = vcvt.s32.f32 %v1308
        %v2093 = vcvt.s32.f32 %v1309
        %v2094 = vcvt.s32.f32 %v1310
        %v2095 = vcvt.s32.f32 %v1311
        %v2096 = vcvt.s32.f32 %v1312
        %v2097 = vcvt.s32.f32 %v1313
        %v2098 = vcvt.s32.f32 %v1314
        %v2099 = vcvt.s32.f32 %v1315
        %v2100 = vcvt.s32.f32 %v1316
        %v2101 = vcvt.s32.f32 %v1317
        %v2102 = vcvt.s32.f32 %v1318
        %v2103 = vcvt.s32.f32 %v1319
        %v2104 = vcvt.s32.f32 %v1320
        %v2105 = vcvt.s32.f32 %v1321
        %v2106 = vcvt.s32.f32 %v1322
        %v2107 = vcvt.s32.f32 %v1323
        %v2108 = vcvt.s32.f32 %v1324
        %v2109 = vcvt.s32.f32 %v1325
        %v2110 = vcvt.s32.f32 %v1326
        %v2111 = vcvt.s32.f32 %v1327
        %v2112 = vcvt.s32.f32 %v1328
        %v2113 = vcvt.s32.f32 %v1329
        %v2114 = vcvt.s32.f32 %v1330
        %v2115 = vcvt.s32.f32 %v1331
        %v2116 = vcvt.s32.f32 %v1332
        %v2117 = vcvt.s32.f32 %v1333
        %v2118 = vcvt.s32.f32 %v1334
        %v2119 = vcvt.s32.f32 %v1335
        %v2120 = vcvt.s32.f32 %v1336
        %v2121 = vcvt.s32.f32 %v1337
        %v2122 = vcvt.s32.f32 %v1338
        %v2123 = vcvt.s32.f32 %v1339
        %v2124 = vcvt.s32.f32 %v1340
        %v2125 = vcvt.s32.f32 %v1341
        %v2126 = vcvt.s32.f32 %v1342
        %v2127 = vcvt.s32.f32 %v1343
        %v2128 = vcvt.s32.f32 %v1344
        %v2129 = vcvt.s32.f32 %v1345
        %v2130 = vcvt.s32.f32 %v1346
        %v2131 = vcvt.s32.f32 %v1347
        %v2132 = vcvt.s32.f32 %v1348
        %v2133 = vcvt.s32.f32 %v1349
        %v2134 = vcvt.s32.f32 %v1350
        %v2135 = vcvt.s32.f32 %v1351
        %v2136 = vcvt.s32.f32 %v1352
        %v2137 = vcvt.s32.f32 %v1353
        %v2138 = vcvt.s32.f32 %v1354
        %v2139 = vcvt.s32.f32 %v1355
        %v2140 = vcvt.s32.f32 %v1356
        %v2141 = vcvt.s32.f32 %v1357
        %v2142 = vcvt.s32.f32 %v1358
        %v2143 = vcvt.s32.f32 %v1359
        %v2144 = vcvt.s32.f32 %v1360
        %v2145 = vcvt.s32.f32 %v1361
        %v2146 = vcvt.s32.f32 %v1362
        %v2147 = vcvt.s32.f32 %v1363
        %v2148 = vcvt.s32.f32 %v1364
        %v2149 = vcvt.s32.f32 %v1365
        %v2150 = vcvt.s32.f32 %v1366
        %v2151 = vcvt.s32.f32 %v1367
        %v2152 = vcvt.s32.f32 %v1368
        %v2153 = vcvt.s32.f32 %v1369
        %v2154 = vcvt.s32.f32 %v1370
        %v2155 = vcvt.s32.f32 %v1371
        %v2156 = vcvt.s32.f32 %v1372
        %v2157 = vcvt.s32.f32 %v1373
        %v2158 = vcvt.s32.f32 %v1374
        %v2159 = vcvt.s32.f32 %v1375
        %v2160 = vcvt.s32.f32 %v1376
        %v2161 = vcvt.s32.f32 %v1377
        %v2162 = vcvt.s32.f32 %v1378
        %v2163 = vcvt.s32.f32 %v1379
        %v2164 = vcvt.s32.f32 %v1380
        %v2165 = vcvt.s32.f32 %v1381
        %v2166 = vcvt.s32.f32 %v1382
        %v2167 = vcvt.s32.f32 %v1383
        %v2168 = vcvt.s32.f32 %v1384
        %v2169 = vcvt.s32.f32 %v1385
        %v2170 = vcvt.s32.f32 %v1386
        %v2171 = vcvt.s32.f32 %v1387
        %v2172 = vcvt.s32.f32 %v1388
        %v2173 = vcvt.s32.f32 %v1389
        %v2174 = vcvt.s32.f32 %v1390
        %v2175 = vcvt.s32.f32 %v1391
        %v2176 = vcvt.s32.f32 %v1392
        %v2177 = vcvt.s32.f32 %v1393
        %v2178 = vcvt.s32.f32 %v1394
        %v2179 = vcvt.s32.f32 %v1395
        %v2180 = vcvt.s32.f32 %v1396
        %v2181 = vcvt.s32.f32 %v1397
        %v2182 = vcvt.s32.f32 %v1398
        %v2183 = vcvt.s32.f32 %v1399
        %v2184 = vcvt.s32.f32 %v1400
        %v2185 = vcvt.s32.f32 %v1401
        %v2186 = vcvt.s32.f32 %v1402
        %v2187 = vcvt.s32.f32 %v1403
        %v2188 = vcvt.s32.f32 %v1404
        %v2189 = vcvt.s32.f32 %v1405
        %v2190 = vcvt.s32.f32 %v1406
        %v2191 = vcvt.s32.f32 %v1407
        %v2192 = vcvt.s32.f32 %v1408
        %v2193 = vcvt.s32.f32 %v1409
        %v2194 = vcvt.s32.f32 %v1410
        %v2195 = vcvt.s32.f32 %v1411
        %v2196 = vcvt.s32.f32 %v1412
        %v2197 = vcvt.s32.f32 %v1413
        %v2198 = vcvt.s32.f32 %v1414
        %v2199 = vcvt.s32.f32 %v1415
        %v2200 = vcvt.s32.f32 %v1416
        %v2201 = vcvt.s32.f32 %v1417
        %v2202 = vcvt.s32.f32 %v1418
        %v2203 = vcvt.s32.f32 %v1419
        %v2204 = vcvt.s32.f32 %v1420
        %v2205 = vcvt.s32.f32 %v1421
        %v2206 = vcvt.s32.f32 %v1422
        %v2207 = vcvt.s32.f32 %v1423
        %v2208 = vcvt.s32.f32 %v1424
        %v2209 = vcvt.s32.f32 %v1425
        %v2210 = vcvt.s32.f32 %v1426
        %v2211 = vcvt.s32.f32 %v1427
        %v2212 = vcvt.s32.f32 %v1428
        %v2213 = vcvt.s32.f32 %v1429
        %v2214 = vcvt.s32.f32 %v1430
        %v2215 = vcvt.s32.f32 %v1431
        %v2216 = vcvt.s32.f32 %v1432
        %v2217 = vcvt.s32.f32 %v1433
        %v2218 = vcvt.s32.f32 %v1434
        %v2219 = vcvt.s32.f32 %v1435
        %v2220 = vcvt.s32.f32 %v1436
        %v2221 = vcvt.s32.f32 %v1437
        %v2222 = vcvt.s32.f32 %v1438
        %v2223 = vcvt.s32.f32 %v1439
        %v2224 = vcvt.s32.f32 %v1440
        %v2225 = vcvt.s32.f32 %v1441
        %v2226 = vcvt.s32.f32 %v1442
        %v2227 = vcvt.s32.f32 %v1443
        %v2228 = vcvt.s32.f32 %v1444
        %v2229 = vcvt.s32.f32 %v1445
        %v2230 = vcvt.s32.f32 %v1446
        %v2231 = vcvt.s32.f32 %v1447
        %v2232 = vcvt.s32.f32 %v1448
        %v2233 = vcvt.s32.f32 %v1449
        %v2234 = vcvt.s32.f32 %v1450
        %v2235 = vcvt.s32.f32 %v1451
        %v2236 = vcvt.s32.f32 %v1452
        %v2237 = vcvt.s32.f32 %v1453
        %v2238 = vcvt.s32.f32 %v1454
        %v2239 = vcvt.s32.f32 %v1455
        %v2240 = vcvt.s32.f32 %v1456
        %v2241 = vcvt.s32.f32 %v1457
        %v2242 = vcvt.s32.f32 %v1458
        %v2243 = vcvt.s32.f32 %v1459
        %v2244 = vcvt.s32.f32 %v1460
        %v2245 = vcvt.s32.f32 %v1461
        %v2246 = vcvt.s32.f32 %v1462
        %v2247 = vcvt.s32.f32 %v1463
        %v2248 = vcvt.s32.f32 %v1464
        %v2249 = vcvt.s32.f32 %v1465
        %v2250 = vcvt.s32.f32 %v1466
        %v2251 = vcvt.s32.f32 %v1467
        %v2252 = vcvt.s32.f32 %v1468
        %v2253 = vcvt.s32.f32 %v1469
        %v2254 = vcvt.s32.f32 %v1470
        %v2255 = vcvt.s32.f32 %v1471
        %v2256 = vcvt.s32.f32 %v1472
        %v2257 = vcvt.s32.f32 %v1473
        %v2258 = vcvt.s32.f32 %v1474
        %v2259 = vcvt.s32.f32 %v1475
        %v2260 = vcvt.s32.f32 %v1476
        %v2261 = vcvt.s32.f32 %v1477
        %v2262 = vcvt.s32.f32 %v1478
        %v2263 = vcvt.s32.f32 %v1479
        %v2264 = vcvt.s32.f32 %v1480
        %v2265 = vcvt.s32.f32 %v1481
        %v2266 = vcvt.s32.f32 %v1482
        %v2267 = vcvt.s32.f32 %v1483
        %v2268 = vcvt.s32.f32 %v1484
        %v2269 = vcvt.s32.f32 %v1485
        %v2270 = vcvt.s32.f32 %v1486
        %v2271 = vcvt.s32.f32 %v1487
        %v2272 = vcvt.s32.f32 %v1488
        %v2273 = vcvt.s32.f32 %v1489
        %v2274 = vcvt.s32.f32 %v1490
        %v2275 = vcvt.s32.f32 %v1491
        %v2276 = vcvt.s32.f32 %v1492
        %v2277 = vcvt.s32.f32 %v1493
        %v2278 = vcvt.s32.f32 %v1494
        %v2279 = vcvt.s32.f32 %v1495
        %v2280 = vcvt.s32.f32 %v1496
        %v2281 = vcvt.s32.f32 %v1497
        %v2282 = vcvt.s32.f32 %v1498
        %v2283 = vcvt.s32.f32 %v1499
        %v2284 = vcvt.s32.f32 %v1500
        %v2285 = vcvt.s32.f32 %v1501
        %v2286 = vcvt.s32.f32 %v1502
        %v2287 = vcvt.s32.f32 %v1503
        %v2288 = vcvt.s32.f32 %v1504
        %v2289 = vcvt.s32.f32 %v1505
        %v2290 = vcvt.s32.f32 %v1506
        %v2291 = vcvt.s32.f32 %v1507
        %v2292 = vcvt.s32.f32 %v1508
        %v2293 = vcvt.s32.f32 %v1509
        %v2294 = vcvt.s32.f32 %v1510
        %v2295 = vcvt.s32.f32 %v1511
        %v2296 = vcvt.s32.f32 %v1512
        %v2297 = vcvt.s32.f32 %v1513
        %v2298 = vcvt.s32.f32 %v1514
        %v2299 = vcvt.s32.f32 %v1515
        %v2300 = vcvt.s32.f32 %v1516
        %v2301 = vcvt.s32.f32 %v1517
        %v2302 = vcvt.s32.f32 %v1518
        %v2303 = vcvt.s32.f32 %v1519
        %v2304 = vcvt.s32.f32 %v1520
        %v2305 = vcvt.s32.f32 %v1521
        %v2306 = vcvt.s32.f32 %v1522
        %v2307 = vcvt.s32.f32 %v1523
        %v2308 = vcvt.s32.f32 %v1524
        %v2309 = vcvt.s32.f32 %v1525
        %v2310 = vcvt.s32.f32 %v1526
        %v2311 = vcvt.s32.f32 %v1527
        %v2312 = vcvt.s32.f32 %v1528
        %v2313 = vcvt.s32.f32 %v1529
        %v2314 = vcvt.s32.f32 %v1530
        %v2315 = vcvt.s32.f32 %v1531
        %v2316 = vcvt.s32.f32 %v1532
        %v2317 = vcvt.s32.f32 %v1533
        %v2318 = vcvt.s32.f32 %v1534
        %v2319 = vcvt.s32.f32 %v1535
        %v2320 = vcvt.s32.f32 %v1536
        %v2321 = vcvt.s32.f32 %v1537
        %v2322 = vcvt.s32.f32 %v1538
        %v2323 = vcvt.s32.f32 %v1539
        %v2324 = vcvt.s32.f32 %v1540
        %v2325 = vcvt.s32.f32 %v1541
        %v2326 = vcvt.s32.f32 %v1542
        %v2327 = vcvt.s32.f32 %v1543
        %v2328 = vcvt.s32.f32 %v1544
        %v2329 = vcvt.s32.f32 %v1545
        %v2330 = vcvt.s32.f32 %v1546
        %v2331 = vcvt.s32.f32 %v1547
        %v2332 = vcvt.s32.f32 %v1548
        %v2333 = vcvt.s32.f32 %v1549
        %v2334 = vcvt.s32.f32 %v1550
        %v2335 = vcvt.s32.f32 %v1551
        %v2336 = vcvt.s32.f32 %v1552
        %v2337 = vcvt.s32.f32 %v1553
        %v2338 = vcvt.s32.f32 %v1554
        %v2339 = vcvt.s32.f32 %v1555
        %v2340 = vcvt.s32.f32 %v1556
        %v2341 = vcvt.s32.f32 %v1557
        %v2342 = vcvt.s32.f32 %v1558
        %v2343 = vcvt.s32.f32 %v1559
        %v2344 = vcvt.s32.f32 %v1560
        %v2345 = vcvt.s32.f32 %v1561
        %v2346 = vcvt.s32.f32 %v1562
        %v2347 = vcvt.s32.f32 %v1563
        %v2348 = vcvt.s32.f32 %v1564
        %v2349 = vcvt.s32.f32 %v1565
        %v2350 = vcvt.s32.f32 %v1566
        %v2351 = vcvt.s32.f32 %v1567
        %v2352 = vcvt.s32.f32 %v1568
        %v2353 = vcvt.s32.f32 %v1569
        %v2354 = vcvt.s32.f32 %v1570
        %v2355 = vcvt.s32.f32 %v1571
        %v2356 = vcvt.s32.f32 %v1572
        %v2357 = vcvt.s32.f32 %v1573
        %v2358 = vcvt.s32.f32 %v1574
        %v2359 = vcvt.s32.f32 %v1575
        %v2360 = vcvt.s32.f32 %v1576
        %v2361 = vcvt.s32.f32 %v1577
        %v2362 = vcvt.s32.f32 %v1578
        %v2363 = vcvt.s32.f32 %v1579
        %v2364 = vcvt.s32.f32 %v1580
        %v2365 = vcvt.s32.f32 %v1581
        %v2366 = vcvt.s32.f32 %v1582
        %v2367 = vcvt.s32.f32 %v1583
        %v2368 = vcvt.s32.f32 %v1584
        %v2369 = vcvt.s32.f32 %v1585
        %v2370 = vcvt.s32.f32 %v1586
        %v2371 = vcvt.s32.f32 %v1587
        %v2372 = vcvt.s32.f32 %v1588
        %v2373 = vcvt.s32.f32 %v1589
        %v2374 = vcvt.s32.f32 %v1590
        %v2375 = vcvt.s32.f32 %v1591
        %v2376 = vcvt.s32.f32 %v1592
        %v2377 = vcvt.s32.f32 %v1593
        %v2378 = vcvt.s32.f32 %v1594
        %v2379 = vcvt.s32.f32 %v1595
        %v2380 = vcvt.s32.f32 %v1596
        %v2381 = vcvt.s32.f32 %v1597
        %v2382 = vcvt.s32.f32 %v1598
        %v2383 = vcvt.s32.f32 %v1599
        %v2384 = vcvt.s32.f32 %v1600
        %v2385 = vcvt.s32.f32 %v1601
        %v2386 = vcvt.s32.f32 %v1602
        %v2387 = vcvt.s32.f32 %v1603
        %v2388 = vcvt.s32.f32 %v1604
        %v2389 = vcvt.s32.f32 %v1605
        %v2390 = vcvt.s32.f32 %v1606
        %v2391 = vcvt.s32.f32 %v1607
        %v2392 = vcvt.s32.f32 %v1608
        %v2393 = vcvt.s32.f32 %v1609
        %v2394 = vcvt.s32.f32 %v1610
        %v2395 = vcvt.s32.f32 %v1611
        %v2396 = vcvt.s32.f32 %v1612
        %v2397 = vcvt.s32.f32 %v1613
        %v2398 = vcvt.s32.f32 %v1614
        %v2399 = vcvt.s32.f32 %v1615
        %v2400 = vcvt.s32.f32 %v1616
        %v2401 = vcvt.s32.f32 %v1617
        %v2402 = vcvt.s32.f32 %v1618
        %v2403 = vcvt.s32.f32 %v1619
        %v2404 = vcvt.s32.f32 %v1620
        %v2405 = vcvt.s32.f32 %v1621
        %v2406 = vcvt.s32.f32 %v1622
        %v2407 = vcvt.s32.f32 %v1623
        %v2408 = vcvt.s32.f32 %v1624
        %v2409 = vcvt.s32.f32 %v1625
        %v2410 = vcvt.s32.f32 %v1626
        %v2411 = vcvt.s32.f32 %v1627
        %v2412 = vcvt.s32.f32 %v1628
        %v2413 = vcvt.s32.f32 %v1629
        %v2414 = vcvt.s32.f32 %v1630
        %v2415 = vcvt.s32.f32 %v1631
        %v2416 = vcvt.s32.f32 %v1632
        %v2417 = vcvt.s32.f32 %v1633
        %v2418 = vcvt.s32.f32 %v1634
        %v2419 = vcvt.s32.f32 %v1635
        %v2420 = vcvt.s32.f32 %v1636
        %v2421 = vcvt.s32.f32 %v1637
        %v2422 = vcvt.s32.f32 %v1638
        %v2423 = vcvt.s32.f32 %v1639
        %v2424 = vcvt.s32.f32 %v1640
        %v2425 = vcvt.s32.f32 %v1641
        %v2426 = vcvt.s32.f32 %v1642
        %v2427 = vcvt.s32.f32 %v1643
        %v2428 = vcvt.s32.f32 %v1644
        %v2429 = vcvt.s32.f32 %v1645
        %v2430 = vcvt.s32.f32 %v1646
        %v2431 = vcvt.s32.f32 %v1647
        %v2432 = vcvt.s32.f32 %v1648
        %v2433 = vcvt.s32.f32 %v1649
        %v2434 = vcvt.s32.f32 %v1650
        %v2435 = vcvt.s32.f32 %v1651
        %v2436 = vcvt.s32.f32 %v1652
        %v2437 = vcvt.s32.f32 %v1653
        %v2438 = vcvt.s32.f32 %v1654
        %v2439 = vcvt.s32.f32 %v1655
        %v2440 = vcvt.s32.f32 %v1656
        %v2441 = vcvt.s32.f32 %v1657
        %v2442 = vcvt.s32.f32 %v1658
        %v2443 = vcvt.s32.f32 %v1659
        %v2444 = vcvt.s32.f32 %v1660
        %v2445 = vcvt.s32.f32 %v1661
        %v2446 = vcvt.s32.f32 %v1662
        %v2447 = vcvt.s32.f32 %v1663
        %v2448 = vcvt.s32.f32 %v1664
        %v2449 = vcvt.s32.f32 %v1665
        %v2450 = vcvt.s32.f32 %v1666
        %v2451 = vcvt.s32.f32 %v1667
        %v2452 = vcvt.s32.f32 %v1668
        %v2453 = vcvt.s32.f32 %v1669
        %v2454 = vcvt.s32.f32 %v1670
        %v2455 = vcvt.s32.f32 %v1671
        %v2456 = vcvt.s32.f32 %v1672
        %v2457 = vcvt.s32.f32 %v1673
        %v2458 = vcvt.s32.f32 %v1674
        %v2459 = vcvt.s32.f32 %v1675
        %v2460 = vcvt.s32.f32 %v1676
        %v2461 = vcvt.s32.f32 %v1677
        %v2462 = vcvt.s32.f32 %v1678
        %v2463 = vcvt.s32.f32 %v1679
        %v2464 = vcvt.s32.f32 %v1680
        %v2465 = vcvt.s32.f32 %v1681
        %v2466 = vcvt.s32.f32 %v1682
        %v2467 = vcvt.s32.f32 %v1683
        %v2468 = vcvt.s32.f32 %v1684
        %v2469 = vcvt.s32.f32 %v1685
        %v2470 = vcvt.s32.f32 %v1686
        %v2471 = vcvt.s32.f32 %v1687
        %v2472 = vcvt.s32.f32 %v1688
        %v2473 = vcvt.s32.f32 %v1689
        %v2474 = vcvt.s32.f32 %v1690
        %v2475 = vcvt.s32.f32 %v1691
        %v2476 = vcvt.s32.f32 %v1692
        %v2477 = vcvt.s32.f32 %v1693
        %v2478 = vcvt.s32.f32 %v1694
        %v2479 = vcvt.s32.f32 %v1695
        %v2480 = vcvt.s32.f32 %v1696
        %v2481 = vcvt.s32.f32 %v1697
        %v2482 = vcvt.s32.f32 %v1698
        %v2483 = vcvt.s32.f32 %v1699
        %v2484 = vpack.c.bf16 %v1702, %v1700
        %v2485 = vpack.c.bf16 %v1703, %v1701
        %v2486 = vpack.c.bf16 %v1706, %v1704
        %v2487 = vpack.c.bf16 %v1707, %v1705
        %v2488 = vpack.c.bf16 %v1710, %v1708
        %v2489 = vpack.c.bf16 %v1711, %v1709
        %v2490 = vpack.c.bf16 %v1714, %v1712
        %v2491 = vpack.c.bf16 %v1715, %v1713
        %v2492 = vpack.c.bf16 %v1718, %v1716
        %v2493 = vpack.c.bf16 %v1719, %v1717
        %v2494 = vpack.c.bf16 %v1722, %v1720
        %v2495 = vpack.c.bf16 %v1723, %v1721
        %v2496 = vpack.c.bf16 %v1726, %v1724
        %v2497 = vpack.c.bf16 %v1727, %v1725
        %v2498 = vpack.c.bf16 %v1730, %v1728
        %v2499 = vpack.c.bf16 %v1731, %v1729
        %v2500 = vpack.c.bf16 %v1734, %v1732
        %v2501 = vpack.c.bf16 %v1735, %v1733
        %v2502 = vpack.c.bf16 %v1738, %v1736
        %v2503 = vpack.c.bf16 %v1739, %v1737
        %v2504 = vpack.c.bf16 %v1742, %v1740
        %v2505 = vpack.c.bf16 %v1743, %v1741
        %v2506 = vpack.c.bf16 %v1746, %v1744
        %v2507 = vpack.c.bf16 %v1747, %v1745
        %v2508 = vpack.c.bf16 %v1750, %v1748
        %v2509 = vpack.c.bf16 %v1751, %v1749
        %v2510 = vpack.c.bf16 %v1754, %v1752
        %v2511 = vpack.c.bf16 %v1755, %v1753
        %v2512 = vpack.c.bf16 %v1758, %v1756
        %v2513 = vpack.c.bf16 %v1759, %v1757
        %v2514 = vpack.c.bf16 %v1762, %v1760
        %v2515 = vpack.c.bf16 %v1763, %v1761
        %v2516 = vpack.c.bf16 %v1766, %v1764
        %v2517 = vpack.c.bf16 %v1767, %v1765
        %v2518 = vpack.c.bf16 %v1770, %v1768
        %v2519 = vpack.c.bf16 %v1771, %v1769
        %v2520 = vpack.c.bf16 %v1774, %v1772
        %v2521 = vpack.c.bf16 %v1775, %v1773
        %v2522 = vpack.c.bf16 %v1778, %v1776
        %v2523 = vpack.c.bf16 %v1779, %v1777
        %v2524 = vpack.c.bf16 %v1782, %v1780
        %v2525 = vpack.c.bf16 %v1783, %v1781
        %v2526 = vpack.c.bf16 %v1786, %v1784
        %v2527 = vpack.c.bf16 %v1787, %v1785
        %v2528 = vpack.c.bf16 %v1790, %v1788
        %v2529 = vpack.c.bf16 %v1791, %v1789
        %v2530 = vpack.c.bf16 %v1794, %v1792
        %v2531 = vpack.c.bf16 %v1795, %v1793
        %v2532 = vpack.c.bf16 %v1798, %v1796
        %v2533 = vpack.c.bf16 %v1799, %v1797
        %v2534 = vpack.c.bf16 %v1802, %v1800
        %v2535 = vpack.c.bf16 %v1803, %v1801
        %v2536 = vpack.c.bf16 %v1806, %v1804
        %v2537 = vpack.c.bf16 %v1807, %v1805
        %v2538 = vpack.c.bf16 %v1810, %v1808
        %v2539 = vpack.c.bf16 %v1811, %v1809
        %v2540 = vpack.c.bf16 %v1814, %v1812
        %v2541 = vpack.c.bf16 %v1815, %v1813
        %v2542 = vpack.c.bf16 %v1818, %v1816
        %v2543 = vpack.c.bf16 %v1819, %v1817
        %v2544 = vpack.c.bf16 %v1822, %v1820
        %v2545 = vpack.c.bf16 %v1823, %v1821
        %v2546 = vpack.c.bf16 %v1826, %v1824
        %v2547 = vpack.c.bf16 %v1827, %v1825
        %v2548 = vpack.c.bf16 %v1830, %v1828
        %v2549 = vpack.c.bf16 %v1831, %v1829
        %v2550 = vpack.c.bf16 %v1834, %v1832
        %v2551 = vpack.c.bf16 %v1835, %v1833
        %v2552 = vpack.c.bf16 %v1838, %v1836
        %v2553 = vpack.c.bf16 %v1839, %v1837
        %v2554 = vpack.c.bf16 %v1842, %v1840
        %v2555 = vpack.c.bf16 %v1843, %v1841
        %v2556 = vpack.c.bf16 %v1846, %v1844
        %v2557 = vpack.c.bf16 %v1847, %v1845
        %v2558 = vpack.c.bf16 %v1850, %v1848
        %v2559 = vpack.c.bf16 %v1851, %v1849
        %v2560 = vpack.c.bf16 %v1854, %v1852
        %v2561 = vpack.c.bf16 %v1855, %v1853
        %v2562 = vpack.c.bf16 %v1858, %v1856
        %v2563 = vpack.c.bf16 %v1859, %v1857
        %v2564 = vpack.c.bf16 %v1862, %v1860
        %v2565 = vpack.c.bf16 %v1863, %v1861
        %v2566 = vpack.c.bf16 %v1866, %v1864
        %v2567 = vpack.c.bf16 %v1867, %v1865
        %v2568 = vpack.c.bf16 %v1870, %v1868
        %v2569 = vpack.c.bf16 %v1871, %v1869
        %v2570 = vpack.c.bf16 %v1874, %v1872
        %v2571 = vpack.c.bf16 %v1875, %v1873
        %v2572 = vpack.c.bf16 %v1878, %v1876
        %v2573 = vpack.c.bf16 %v1879, %v1877
        %v2574 = vpack.c.bf16 %v1882, %v1880
        %v2575 = vpack.c.bf16 %v1883, %v1881
        %v2576 = vpack.c.bf16 %v1886, %v1884
        %v2577 = vpack.c.bf16 %v1887, %v1885
        %v2578 = vpack.c.bf16 %v1890, %v1888
        %v2579 = vpack.c.bf16 %v1891, %v1889
        %v2580 = vpack.c.bf16 %v1894, %v1892
        %v2581 = vpack.c.bf16 %v1895, %v1893
        %v2582 = vpack.c.bf16 %v1898, %v1896
        %v2583 = vpack.c.bf16 %v1899, %v1897
        %v2584 = vpack.c.bf16 %v1902, %v1900
        %v2585 = vpack.c.bf16 %v1903, %v1901
        %v2586 = vpack.c.bf16 %v1906, %v1904
        %v2587 = vpack.c.bf16 %v1907, %v1905
        %v2588 = vpack.c.bf16 %v1910, %v1908
        %v2589 = vpack.c.bf16 %v1911, %v1909
        %v2590 = vpack.c.bf16 %v1914, %v1912
        %v2591 = vpack.c.bf16 %v1915, %v1913
        %v2592 = vpack.c.bf16 %v1918, %v1916
        %v2593 = vpack.c.bf16 %v1919, %v1917
        %v2594 = vpack.c.bf16 %v1922, %v1920
        %v2595 = vpack.c.bf16 %v1923, %v1921
        %v2596 = vpack.c.bf16 %v1926, %v1924
        %v2597 = vpack.c.bf16 %v1927, %v1925
        %v2598 = vpack.c.bf16 %v1930, %v1928
        %v2599 = vpack.c.bf16 %v1931, %v1929
        %v2600 = vpack.c.bf16 %v1934, %v1932
        %v2601 = vpack.c.bf16 %v1935, %v1933
        %v2602 = vpack.c.bf16 %v1938, %v1936
        %v2603 = vpack.c.bf16 %v1939, %v1937
        %v2604 = vpack.c.bf16 %v1942, %v1940
        %v2605 = vpack.c.bf16 %v1943, %v1941
        %v2606 = vpack.c.bf16 %v1946, %v1944
        %v2607 = vpack.c.bf16 %v1947, %v1945
        %v2608 = vpack.c.bf16 %v1950, %v1948
        %v2609 = vpack.c.bf16 %v1951, %v1949
        %v2610 = vpack.c.bf16 %v1954, %v1952
        %v2611 = vpack.c.bf16 %v1955, %v1953
        %v2612 = vpack.c.bf16 %v1958, %v1956
        %v2613 = vpack.c.bf16 %v1959, %v1957
        %v2614 = vpack.c.bf16 %v1962, %v1960
        %v2615 = vpack.c.bf16 %v1963, %v1961
        %v2616 = vpack.c.bf16 %v1966, %v1964
        %v2617 = vpack.c.bf16 %v1967, %v1965
        %v2618 = vpack.c.bf16 %v1970, %v1968
        %v2619 = vpack.c.bf16 %v1971, %v1969
        %v2620 = vpack.c.bf16 %v1974, %v1972
        %v2621 = vpack.c.bf16 %v1975, %v1973
        %v2622 = vpack.c.bf16 %v1978, %v1976
        %v2623 = vpack.c.bf16 %v1979, %v1977
        %v2624 = vpack.c.bf16 %v1982, %v1980
        %v2625 = vpack.c.bf16 %v1983, %v1981
        %v2626 = vpack.c.bf16 %v1986, %v1984
        %v2627 = vpack.c.bf16 %v1987, %v1985
        %v2628 = vpack.c.bf16 %v1990, %v1988
        %v2629 = vpack.c.bf16 %v1991, %v1989
        %v2630 = vpack.c.bf16 %v1994, %v1992
        %v2631 = vpack.c.bf16 %v1995, %v1993
        %v2632 = vpack.c.bf16 %v1998, %v1996
        %v2633 = vpack.c.bf16 %v1999, %v1997
        %v2634 = vpack.c.bf16 %v2002, %v2000
        %v2635 = vpack.c.bf16 %v2003, %v2001
        %v2636 = vpack.c.bf16 %v2006, %v2004
        %v2637 = vpack.c.bf16 %v2007, %v2005
        %v2638 = vpack.c.bf16 %v2010, %v2008
        %v2639 = vpack.c.bf16 %v2011, %v2009
        %v2640 = vpack.c.bf16 %v2014, %v2012
        %v2641 = vpack.c.bf16 %v2015, %v2013
        %v2642 = vpack.c.bf16 %v2018, %v2016
        %v2643 = vpack.c.bf16 %v2019, %v2017
        %v2644 = vpack.c.bf16 %v2022, %v2020
        %v2645 = vpack.c.bf16 %v2023, %v2021
        %v2646 = vpack.c.bf16 %v2026, %v2024
        %v2647 = vpack.c.bf16 %v2027, %v2025
        %v2648 = vpack.c.bf16 %v2030, %v2028
        %v2649 = vpack.c.bf16 %v2031, %v2029
        %v2650 = vpack.c.bf16 %v2034, %v2032
        %v2651 = vpack.c.bf16 %v2035, %v2033
        %v2652 = vpack.c.bf16 %v2038, %v2036
        %v2653 = vpack.c.bf16 %v2039, %v2037
        %v2654 = vpack.c.bf16 %v2042, %v2040
        %v2655 = vpack.c.bf16 %v2043, %v2041
        %v2656 = vpack.c.bf16 %v2046, %v2044
        %v2657 = vpack.c.bf16 %v2047, %v2045
        %v2658 = vpack.c.bf16 %v2050, %v2048
        %v2659 = vpack.c.bf16 %v2051, %v2049
        %v2660 = vpack.c.bf16 %v2054, %v2052
        %v2661 = vpack.c.bf16 %v2055, %v2053
        %v2662 = vpack.c.bf16 %v2058, %v2056
        %v2663 = vpack.c.bf16 %v2059, %v2057
        %v2664 = vpack.c.bf16 %v2062, %v2060
        %v2665 = vpack.c.bf16 %v2063, %v2061
        %v2666 = vpack.c.bf16 %v2066, %v2064
        %v2667 = vpack.c.bf16 %v2067, %v2065
        %v2668 = vpack.c.bf16 %v2070, %v2068
        %v2669 = vpack.c.bf16 %v2071, %v2069
        %v2670 = vpack.c.bf16 %v2074, %v2072
        %v2671 = vpack.c.bf16 %v2075, %v2073
        %v2672 = vpack.c.bf16 %v2078, %v2076
        %v2673 = vpack.c.bf16 %v2079, %v2077
        %v2674 = vpack.c.bf16 %v2082, %v2080
        %v2675 = vpack.c.bf16 %v2083, %v2081
        %v2676 = vpack.c.bf16 %v2086, %v2084
        %v2677 = vpack.c.bf16 %v2087, %v2085
        %v2678 = vpack.c.bf16 %v2090, %v2088
        %v2679 = vpack.c.bf16 %v2091, %v2089
        %v2680 = vpack.c.bf16 %v2094, %v2092
        %v2681 = vpack.c.bf16 %v2095, %v2093
        %v2682 = vpack.c.bf16 %v2098, %v2096
        %v2683 = vpack.c.bf16 %v2099, %v2097
        %v2684 = vpack.c.bf16 %v2102, %v2100
        %v2685 = vpack.c.bf16 %v2103, %v2101
        %v2686 = vpack.c.bf16 %v2106, %v2104
        %v2687 = vpack.c.bf16 %v2107, %v2105
        %v2688 = vpack.c.bf16 %v2110, %v2108
        %v2689 = vpack.c.bf16 %v2111, %v2109
        %v2690 = vpack.c.bf16 %v2114, %v2112
        %v2691 = vpack.c.bf16 %v2115, %v2113
        %v2692 = vpack.c.bf16 %v2118, %v2116
        %v2693 = vpack.c.bf16 %v2119, %v2117
        %v2694 = vpack.c.bf16 %v2122, %v2120
        %v2695 = vpack.c.bf16 %v2123, %v2121
        %v2696 = vpack.c.bf16 %v2126, %v2124
        %v2697 = vpack.c.bf16 %v2127, %v2125
        %v2698 = vpack.c.bf16 %v2130, %v2128
        %v2699 = vpack.c.bf16 %v2131, %v2129
        %v2700 = vpack.c.bf16 %v2134, %v2132
        %v2701 = vpack.c.bf16 %v2135, %v2133
        %v2702 = vpack.c.bf16 %v2138, %v2136
        %v2703 = vpack.c.bf16 %v2139, %v2137
        %v2704 = vpack.c.bf16 %v2142, %v2140
        %v2705 = vpack.c.bf16 %v2143, %v2141
        %v2706 = vpack.c.bf16 %v2146, %v2144
        %v2707 = vpack.c.bf16 %v2147, %v2145
        %v2708 = vpack.c.bf16 %v2150, %v2148
        %v2709 = vpack.c.bf16 %v2151, %v2149
        %v2710 = vpack.c.bf16 %v2154, %v2152
        %v2711 = vpack.c.bf16 %v2155, %v2153
        %v2712 = vpack.c.bf16 %v2158, %v2156
        %v2713 = vpack.c.bf16 %v2159, %v2157
        %v2714 = vpack.c.bf16 %v2162, %v2160
        %v2715 = vpack.c.bf16 %v2163, %v2161
        %v2716 = vpack.c.bf16 %v2166, %v2164
        %v2717 = vpack.c.bf16 %v2167, %v2165
        %v2718 = vpack.c.bf16 %v2170, %v2168
        %v2719 = vpack.c.bf16 %v2171, %v2169
        %v2720 = vpack.c.bf16 %v2174, %v2172
        %v2721 = vpack.c.bf16 %v2175, %v2173
        %v2722 = vpack.c.bf16 %v2178, %v2176
        %v2723 = vpack.c.bf16 %v2179, %v2177
        %v2724 = vpack.c.bf16 %v2182, %v2180
        %v2725 = vpack.c.bf16 %v2183, %v2181
        %v2726 = vpack.c.bf16 %v2186, %v2184
        %v2727 = vpack.c.bf16 %v2187, %v2185
        %v2728 = vpack.c.bf16 %v2190, %v2188
        %v2729 = vpack.c.bf16 %v2191, %v2189
        %v2730 = vpack.c.bf16 %v2194, %v2192
        %v2731 = vpack.c.bf16 %v2195, %v2193
        %v2732 = vpack.c.bf16 %v2198, %v2196
        %v2733 = vpack.c.bf16 %v2199, %v2197
        %v2734 = vpack.c.bf16 %v2202, %v2200
        %v2735 = vpack.c.bf16 %v2203, %v2201
        %v2736 = vpack.c.bf16 %v2206, %v2204
        %v2737 = vpack.c.bf16 %v2207, %v2205
        %v2738 = vpack.c.bf16 %v2210, %v2208
        %v2739 = vpack.c.bf16 %v2211, %v2209
        %v2740 = vpack.c.bf16 %v2214, %v2212
        %v2741 = vpack.c.bf16 %v2215, %v2213
        %v2742 = vpack.c.bf16 %v2218, %v2216
        %v2743 = vpack.c.bf16 %v2219, %v2217
        %v2744 = vpack.c.bf16 %v2222, %v2220
        %v2745 = vpack.c.bf16 %v2223, %v2221
        %v2746 = vpack.c.bf16 %v2226, %v2224
        %v2747 = vpack.c.bf16 %v2227, %v2225
        %v2748 = vpack.c.bf16 %v2230, %v2228
        %v2749 = vpack.c.bf16 %v2231, %v2229
        %v2750 = vpack.c.bf16 %v2234, %v2232
        %v2751 = vpack.c.bf16 %v2235, %v2233
        %v2752 = vpack.c.bf16 %v2238, %v2236
        %v2753 = vpack.c.bf16 %v2239, %v2237
        %v2754 = vpack.c.bf16 %v2242, %v2240
        %v2755 = vpack.c.bf16 %v2243, %v2241
        %v2756 = vpack.c.bf16 %v2246, %v2244
        %v2757 = vpack.c.bf16 %v2247, %v2245
        %v2758 = vpack.c.bf16 %v2250, %v2248
        %v2759 = vpack.c.bf16 %v2251, %v2249
        %v2760 = vpack.c.bf16 %v2254, %v2252
        %v2761 = vpack.c.bf16 %v2255, %v2253
        %v2762 = vpack.c.bf16 %v2258, %v2256
        %v2763 = vpack.c.bf16 %v2259, %v2257
        %v2764 = vpack.c.bf16 %v2262, %v2260
        %v2765 = vpack.c.bf16 %v2263, %v2261
        %v2766 = vpack.c.bf16 %v2266, %v2264
        %v2767 = vpack.c.bf16 %v2267, %v2265
        %v2768 = vpack.c.bf16 %v2270, %v2268
        %v2769 = vpack.c.bf16 %v2271, %v2269
        %v2770 = vpack.c.bf16 %v2274, %v2272
        %v2771 = vpack.c.bf16 %v2275, %v2273
        %v2772 = vpack.c.bf16 %v2278, %v2276
        %v2773 = vpack.c.bf16 %v2279, %v2277
        %v2774 = vpack.c.bf16 %v2282, %v2280
        %v2775 = vpack.c.bf16 %v2283, %v2281
        %v2776 = vpack.c.bf16 %v2286, %v2284
        %v2777 = vpack.c.bf16 %v2287, %v2285
        %v2778 = vpack.c.bf16 %v2290, %v2288
        %v2779 = vpack.c.bf16 %v2291, %v2289
        %v2780 = vpack.c.bf16 %v2294, %v2292
        %v2781 = vpack.c.bf16 %v2295, %v2293
        %v2782 = vpack.c.bf16 %v2298, %v2296
        %v2783 = vpack.c.bf16 %v2299, %v2297
        %v2784 = vpack.c.bf16 %v2302, %v2300
        %v2785 = vpack.c.bf16 %v2303, %v2301
        %v2786 = vpack.c.bf16 %v2306, %v2304
        %v2787 = vpack.c.bf16 %v2307, %v2305
        %v2788 = vpack.c.bf16 %v2310, %v2308
        %v2789 = vpack.c.bf16 %v2311, %v2309
        %v2790 = vpack.c.bf16 %v2314, %v2312
        %v2791 = vpack.c.bf16 %v2315, %v2313
        %v2792 = vpack.c.bf16 %v2318, %v2316
        %v2793 = vpack.c.bf16 %v2319, %v2317
        %v2794 = vpack.c.bf16 %v2322, %v2320
        %v2795 = vpack.c.bf16 %v2323, %v2321
        %v2796 = vpack.c.bf16 %v2326, %v2324
        %v2797 = vpack.c.bf16 %v2327, %v2325
        %v2798 = vpack.c.bf16 %v2330, %v2328
        %v2799 = vpack.c.bf16 %v2331, %v2329
        %v2800 = vpack.c.bf16 %v2334, %v2332
        %v2801 = vpack.c.bf16 %v2335, %v2333
        %v2802 = vpack.c.bf16 %v2338, %v2336
        %v2803 = vpack.c.bf16 %v2339, %v2337
        %v2804 = vpack.c.bf16 %v2342, %v2340
        %v2805 = vpack.c.bf16 %v2343, %v2341
        %v2806 = vpack.c.bf16 %v2346, %v2344
        %v2807 = vpack.c.bf16 %v2347, %v2345
        %v2808 = vpack.c.bf16 %v2350, %v2348
        %v2809 = vpack.c.bf16 %v2351, %v2349
        %v2810 = vpack.c.bf16 %v2354, %v2352
        %v2811 = vpack.c.bf16 %v2355, %v2353
        %v2812 = vpack.c.bf16 %v2358, %v2356
        %v2813 = vpack.c.bf16 %v2359, %v2357
        %v2814 = vpack.c.bf16 %v2362, %v2360
        %v2815 = vpack.c.bf16 %v2363, %v2361
        %v2816 = vpack.c.bf16 %v2366, %v2364
        %v2817 = vpack.c.bf16 %v2367, %v2365
        %v2818 = vpack.c.bf16 %v2370, %v2368
        %v2819 = vpack.c.bf16 %v2371, %v2369
        %v2820 = vpack.c.bf16 %v2374, %v2372
        %v2821 = vpack.c.bf16 %v2375, %v2373
        %v2822 = vpack.c.bf16 %v2378, %v2376
        %v2823 = vpack.c.bf16 %v2379, %v2377
        %v2824 = vpack.c.bf16 %v2382, %v2380
        %v2825 = vpack.c.bf16 %v2383, %v2381
        %v2826 = vpack.c.bf16 %v2386, %v2384
        %v2827 = vpack.c.bf16 %v2387, %v2385
        %v2828 = vpack.c.bf16 %v2390, %v2388
        %v2829 = vpack.c.bf16 %v2391, %v2389
        %v2830 = vpack.c.bf16 %v2394, %v2392
        %v2831 = vpack.c.bf16 %v2395, %v2393
        %v2832 = vpack.c.bf16 %v2398, %v2396
        %v2833 = vpack.c.bf16 %v2399, %v2397
        %v2834 = vpack.c.bf16 %v2402, %v2400
        %v2835 = vpack.c.bf16 %v2403, %v2401
        %v2836 = vpack.c.bf16 %v2406, %v2404
        %v2837 = vpack.c.bf16 %v2407, %v2405
        %v2838 = vpack.c.bf16 %v2410, %v2408
        %v2839 = vpack.c.bf16 %v2411, %v2409
        %v2840 = vpack.c.bf16 %v2414, %v2412
        %v2841 = vpack.c.bf16 %v2415, %v2413
        %v2842 = vpack.c.bf16 %v2418, %v2416
        %v2843 = vpack.c.bf16 %v2419, %v2417
        %v2844 = vpack.c.bf16 %v2422, %v2420
        %v2845 = vpack.c.bf16 %v2423, %v2421
        %v2846 = vpack.c.bf16 %v2426, %v2424
        %v2847 = vpack.c.bf16 %v2427, %v2425
        %v2848 = vpack.c.bf16 %v2430, %v2428
        %v2849 = vpack.c.bf16 %v2431, %v2429
        %v2850 = vpack.c.bf16 %v2434, %v2432
        %v2851 = vpack.c.bf16 %v2435, %v2433
        %v2852 = vpack.c.bf16 %v2438, %v2436
        %v2853 = vpack.c.bf16 %v2439, %v2437
        %v2854 = vpack.c.bf16 %v2442, %v2440
        %v2855 = vpack.c.bf16 %v2443, %v2441
        %v2856 = vpack.c.bf16 %v2446, %v2444
        %v2857 = vpack.c.bf16 %v2447, %v2445
        %v2858 = vpack.c.bf16 %v2450, %v2448
        %v2859 = vpack.c.bf16 %v2451, %v2449
        %v2860 = vpack.c.bf16 %v2454, %v2452
        %v2861 = vpack.c.bf16 %v2455, %v2453
        %v2862 = vpack.c.bf16 %v2458, %v2456
        %v2863 = vpack.c.bf16 %v2459, %v2457
        %v2864 = vpack.c.bf16 %v2462, %v2460
        %v2865 = vpack.c.bf16 %v2463, %v2461
        %v2866 = vpack.c.bf16 %v2466, %v2464
        %v2867 = vpack.c.bf16 %v2467, %v2465
        %v2868 = vpack.c.bf16 %v2470, %v2468
        %v2869 = vpack.c.bf16 %v2471, %v2469
        %v2870 = vpack.c.bf16 %v2474, %v2472
        %v2871 = vpack.c.bf16 %v2475, %v2473
        %v2872 = vpack.c.bf16 %v2478, %v2476
        %v2873 = vpack.c.bf16 %v2479, %v2477
        %v2874 = vpack.c.bf16 %v2482, %v2480
        %v2875 = vpack.c.bf16 %v2483, %v2481
        %2877 = vst [vmem:[#allocation1] ss:$9 sm:$0xff] %v716
        %v2878 = vld [vmem:[#allocation1] sm:$0xff]
        %v2879 = vld [vmem:[#allocation1 + $0x9] sm:$0xff]
        %v2880 = vld [vmem:[#allocation1 + $0x12] sm:$0xff]
        %v2881 = vld [vmem:[#allocation1 + $0x1b] sm:$0xff]
        %v2882 = vld [vmem:[#allocation1 + $0x24] sm:$0xff]
        %v2883 = vld [vmem:[#allocation1 + $0x2d] sm:$0xff]
        %v2884 = vld [vmem:[#allocation1 + $0x36] sm:$0xff]
        %v2885 = vld [vmem:[#allocation1 + $0x3f] sm:$0xff]
        %2887 = vst [vmem:[#allocation1] ss:$9 sm:$0xff] %v717
        %v2888 = vld [vmem:[#allocation1] sm:$0xff]
        %v2889 = vld [vmem:[#allocation1 + $0x9] sm:$0xff]
        %v2890 = vld [vmem:[#allocation1 + $0x12] sm:$0xff]
        %v2891 = vld [vmem:[#allocation1 + $0x1b] sm:$0xff]
        %v2892 = vld [vmem:[#allocation1 + $0x24] sm:$0xff]
        %v2893 = vld [vmem:[#allocation1 + $0x2d] sm:$0xff]
        %v2894 = vld [vmem:[#allocation1 + $0x36] sm:$0xff]
        %v2895 = vld [vmem:[#allocation1 + $0x3f] sm:$0xff]
        %2897 = vst [vmem:[#allocation1] ss:$9 sm:$0xff] %v718
        %v2898 = vld [vmem:[#allocation1] sm:$0xff]
        %v2899 = vld [vmem:[#allocation1 + $0x9] sm:$0xff]
        %v2900 = vld [vmem:[#allocation1 + $0x12] sm:$0xff]
        %v2901 = vld [vmem:[#allocation1 + $0x1b] sm:$0xff]
        %v2902 = vld [vmem:[#allocation1 + $0x24] sm:$0xff]
        %v2903 = vld [vmem:[#allocation1 + $0x2d] sm:$0xff]
        %v2904 = vld [vmem:[#allocation1 + $0x36] sm:$0xff]
        %v2905 = vld [vmem:[#allocation1 + $0x3f] sm:$0xff]
        %2907 = vst [vmem:[#allocation1] ss:$9 sm:$0xff] %v719
        %v2908 = vld [vmem:[#allocation1] sm:$0xff]
        %vm2933 = vcmask 523264
        %v2934 = vsel %vm2933, %v2908, 0
        %2936 = vmatpush.bf16.msra.mxu0 %v2498
        %2937 = vmatpush.bf16.msra.mxu0 %v2496
        %2938 = vmatpush.bf16.msra.mxu0 %v2494
        %2939 = vmatpush.bf16.msra.mxu0 %v2492
        %2940 = vmatpush.bf16.msra.mxu0 %v2490
        %2941 = vmatpush.bf16.msra.mxu0 %v2488
        %2942 = vmatpush.bf16.msra.mxu0 %v2486
        %2943 = vmatpush.bf16.msra.mxu0 %v2484
        %2944 = vmatmul.bf16.gmra.mxu0 %v2878
        %v2945 = vpop.f32.mrf.mxu0
        %v2946 = vadd.f32 0.0, %v2945
        %v2947 = vpop.f32.mrf.mxu0
        %2948 = vdwg.mxu0
        %2949 = vmatpush.bf16.msra.mxu0 %v2514
        %2950 = vmatpush.bf16.msra.mxu0 %v2512
        %2951 = vmatpush.bf16.msra.mxu0 %v2510
        %2952 = vmatpush.bf16.msra.mxu0 %v2508
        %2953 = vmatpush.bf16.msra.mxu0 %v2506
        %2954 = vmatpush.bf16.msra.mxu0 %v2504
        %2955 = vmatpush.bf16.msra.mxu0 %v2502
        %2956 = vmatpush.bf16.msra.mxu0 %v2500
        %2957 = vmatmul.bf16.gmra.mxu0 %v2879
        %v2958 = vpop.f32.mrf.mxu0
        %v2959 = vadd.f32 %v2946, %v2958
        %v2960 = vpop.f32.mrf.mxu0
        %2961 = vdwg.mxu0
        %2962 = vmatpush.bf16.msra.mxu0 %v2530
        %2963 = vmatpush.bf16.msra.mxu0 %v2528
        %2964 = vmatpush.bf16.msra.mxu0 %v2526
        %2965 = vmatpush.bf16.msra.mxu0 %v2524
        %2966 = vmatpush.bf16.msra.mxu0 %v2522
        %2967 = vmatpush.bf16.msra.mxu0 %v2520
        %2968 = vmatpush.bf16.msra.mxu0 %v2518
        %2969 = vmatpush.bf16.msra.mxu0 %v2516
        %2970 = vmatmul.bf16.gmra.mxu0 %v2880
        %v2971 = vpop.f32.mrf.mxu0
        %v2972 = vadd.f32 %v2959, %v2971
        %v2973 = vpop.f32.mrf.mxu0
        %2974 = vdwg.mxu0
        %2975 = vmatpush.bf16.msra.mxu0 %v2546
        %2976 = vmatpush.bf16.msra.mxu0 %v2544
        %2977 = vmatpush.bf16.msra.mxu0 %v2542
        %2978 = vmatpush.bf16.msra.mxu0 %v2540
        %2979 = vmatpush.bf16.msra.mxu0 %v2538
        %2980 = vmatpush.bf16.msra.mxu0 %v2536
        %2981 = vmatpush.bf16.msra.mxu0 %v2534
        %2982 = vmatpush.bf16.msra.mxu0 %v2532
        %2983 = vmatmul.bf16.gmra.mxu0 %v2881
        %v2984 = vpop.f32.mrf.mxu0
        %v2985 = vadd.f32 %v2972, %v2984
        %v2986 = vpop.f32.mrf.mxu0
        %2987 = vdwg.mxu0
        %2988 = vmatpush.bf16.msra.mxu0 %v2562
        %2989 = vmatpush.bf16.msra.mxu0 %v2560
        %2990 = vmatpush.bf16.msra.mxu0 %v2558
        %2991 = vmatpush.bf16.msra.mxu0 %v2556
        %2992 = vmatpush.bf16.msra.mxu0 %v2554
        %2993 = vmatpush.bf16.msra.mxu0 %v2552
        %2994 = vmatpush.bf16.msra.mxu0 %v2550
        %2995 = vmatpush.bf16.msra.mxu0 %v2548
        %2996 = vmatmul.bf16.gmra.mxu0 %v2882
        %v2997 = vpop.f32.mrf.mxu0
        %v2998 = vadd.f32 %v2985, %v2997
        %v2999 = vpop.f32.mrf.mxu0
        %3000 = vdwg.mxu0
        %3001 = vmatpush.bf16.msra.mxu0 %v2578
        %3002 = vmatpush.bf16.msra.mxu0 %v2576
        %3003 = vmatpush.bf16.msra.mxu0 %v2574
        %3004 = vmatpush.bf16.msra.mxu0 %v2572
        %3005 = vmatpush.bf16.msra.mxu0 %v2570
        %3006 = vmatpush.bf16.msra.mxu0 %v2568
        %3007 = vmatpush.bf16.msra.mxu0 %v2566
        %3008 = vmatpush.bf16.msra.mxu0 %v2564
        %3009 = vmatmul.bf16.gmra.mxu0 %v2883
        %v3010 = vpop.f32.mrf.mxu0
        %v3011 = vadd.f32 %v2998, %v3010
        %v3012 = vpop.f32.mrf.mxu0
        %3013 = vdwg.mxu0
        %3014 = vmatpush.bf16.msra.mxu0 %v2594
        %3015 = vmatpush.bf16.msra.mxu0 %v2592
        %3016 = vmatpush.bf16.msra.mxu0 %v2590
        %3017 = vmatpush.bf16.msra.mxu0 %v2588
        %3018 = vmatpush.bf16.msra.mxu0 %v2586
        %3019 = vmatpush.bf16.msra.mxu0 %v2584
        %3020 = vmatpush.bf16.msra.mxu0 %v2582
        %3021 = vmatpush.bf16.msra.mxu0 %v2580
        %3022 = vmatmul.bf16.gmra.mxu0 %v2884
        %v3023 = vpop.f32.mrf.mxu0
        %v3024 = vadd.f32 %v3011, %v3023
        %v3025 = vpop.f32.mrf.mxu0
        %3026 = vdwg.mxu0
        %3027 = vmatpush.bf16.msra.mxu0 %v2610
        %3028 = vmatpush.bf16.msra.mxu0 %v2608
        %3029 = vmatpush.bf16.msra.mxu0 %v2606
        %3030 = vmatpush.bf16.msra.mxu0 %v2604
        %3031 = vmatpush.bf16.msra.mxu0 %v2602
        %3032 = vmatpush.bf16.msra.mxu0 %v2600
        %3033 = vmatpush.bf16.msra.mxu0 %v2598
        %3034 = vmatpush.bf16.msra.mxu0 %v2596
        %3035 = vmatmul.bf16.gmra.mxu0 %v2885
        %v3036 = vpop.f32.mrf.mxu0
        %v3037 = vadd.f32 %v3024, %v3036
        %v3038 = vpop.f32.mrf.mxu0
        %3039 = vdwg.mxu0
        %3040 = vmatpush.bf16.msra.mxu0 %v2626
        %3041 = vmatpush.bf16.msra.mxu0 %v2624
        %3042 = vmatpush.bf16.msra.mxu0 %v2622
        %3043 = vmatpush.bf16.msra.mxu0 %v2620
        %3044 = vmatpush.bf16.msra.mxu0 %v2618
        %3045 = vmatpush.bf16.msra.mxu0 %v2616
        %3046 = vmatpush.bf16.msra.mxu0 %v2614
        %3047 = vmatpush.bf16.msra.mxu0 %v2612
        %3048 = vmatmul.bf16.gmra.mxu0 %v2888
        %v3049 = vpop.f32.mrf.mxu0
        %v3050 = vadd.f32 %v3037, %v3049
        %v3051 = vpop.f32.mrf.mxu0
        %3052 = vdwg.mxu0
        %3053 = vmatpush.bf16.msra.mxu0 %v2642
        %3054 = vmatpush.bf16.msra.mxu0 %v2640
        %3055 = vmatpush.bf16.msra.mxu0 %v2638
        %3056 = vmatpush.bf16.msra.mxu0 %v2636
        %3057 = vmatpush.bf16.msra.mxu0 %v2634
        %3058 = vmatpush.bf16.msra.mxu0 %v2632
        %3059 = vmatpush.bf16.msra.mxu0 %v2630
        %3060 = vmatpush.bf16.msra.mxu0 %v2628
        %3061 = vmatmul.bf16.gmra.mxu0 %v2889
        %v3062 = vpop.f32.mrf.mxu0
        %v3063 = vadd.f32 %v3050, %v3062
        %v3064 = vpop.f32.mrf.mxu0
        %3065 = vdwg.mxu0
        %3066 = vmatpush.bf16.msra.mxu0 %v2658
        %3067 = vmatpush.bf16.msra.mxu0 %v2656
        %3068 = vmatpush.bf16.msra.mxu0 %v2654
        %3069 = vmatpush.bf16.msra.mxu0 %v2652
        %3070 = vmatpush.bf16.msra.mxu0 %v2650
        %3071 = vmatpush.bf16.msra.mxu0 %v2648
        %3072 = vmatpush.bf16.msra.mxu0 %v2646
        %3073 = vmatpush.bf16.msra.mxu0 %v2644
        %3074 = vmatmul.bf16.gmra.mxu0 %v2890
        %v3075 = vpop.f32.mrf.mxu0
        %v3076 = vadd.f32 %v3063, %v3075
        %v3077 = vpop.f32.mrf.mxu0
        %3078 = vdwg.mxu0
        %3079 = vmatpush.bf16.msra.mxu0 %v2674
        %3080 = vmatpush.bf16.msra.mxu0 %v2672
        %3081 = vmatpush.bf16.msra.mxu0 %v2670
        %3082 = vmatpush.bf16.msra.mxu0 %v2668
        %3083 = vmatpush.bf16.msra.mxu0 %v2666
        %3084 = vmatpush.bf16.msra.mxu0 %v2664
        %3085 = vmatpush.bf16.msra.mxu0 %v2662
        %3086 = vmatpush.bf16.msra.mxu0 %v2660
        %3087 = vmatmul.bf16.gmra.mxu0 %v2891
        %v3088 = vpop.f32.mrf.mxu0
        %v3089 = vadd.f32 %v3076, %v3088
        %v3090 = vpop.f32.mrf.mxu0
        %3091 = vdwg.mxu0
        %3092 = vmatpush.bf16.msra.mxu0 %v2690
        %3093 = vmatpush.bf16.msra.mxu0 %v2688
        %3094 = vmatpush.bf16.msra.mxu0 %v2686
        %3095 = vmatpush.bf16.msra.mxu0 %v2684
        %3096 = vmatpush.bf16.msra.mxu0 %v2682
        %3097 = vmatpush.bf16.msra.mxu0 %v2680
        %3098 = vmatpush.bf16.msra.mxu0 %v2678
        %3099 = vmatpush.bf16.msra.mxu0 %v2676
        %3100 = vmatmul.bf16.gmra.mxu0 %v2892
        %v3101 = vpop.f32.mrf.mxu0
        %v3102 = vadd.f32 %v3089, %v3101
        %v3103 = vpop.f32.mrf.mxu0
        %3104 = vdwg.mxu0
        %3105 = vmatpush.bf16.msra.mxu0 %v2706
        %3106 = vmatpush.bf16.msra.mxu0 %v2704
        %3107 = vmatpush.bf16.msra.mxu0 %v2702
        %3108 = vmatpush.bf16.msra.mxu0 %v2700
        %3109 = vmatpush.bf16.msra.mxu0 %v2698
        %3110 = vmatpush.bf16.msra.mxu0 %v2696
        %3111 = vmatpush.bf16.msra.mxu0 %v2694
        %3112 = vmatpush.bf16.msra.mxu0 %v2692
        %3113 = vmatmul.bf16.gmra.mxu0 %v2893
        %v3114 = vpop.f32.mrf.mxu0
        %v3115 = vadd.f32 %v3102, %v3114
        %v3116 = vpop.f32.mrf.mxu0
        %3117 = vdwg.mxu0
        %3118 = vmatpush.bf16.msra.mxu0 %v2722
        %3119 = vmatpush.bf16.msra.mxu0 %v2720
        %3120 = vmatpush.bf16.msra.mxu0 %v2718
        %3121 = vmatpush.bf16.msra.mxu0 %v2716
        %3122 = vmatpush.bf16.msra.mxu0 %v2714
        %3123 = vmatpush.bf16.msra.mxu0 %v2712
        %3124 = vmatpush.bf16.msra.mxu0 %v2710
        %3125 = vmatpush.bf16.msra.mxu0 %v2708
        %3126 = vmatmul.bf16.gmra.mxu0 %v2894
        %v3127 = vpop.f32.mrf.mxu0
        %v3128 = vadd.f32 %v3115, %v3127
        %v3129 = vpop.f32.mrf.mxu0
        %3130 = vdwg.mxu0
        %3131 = vmatpush.bf16.msra.mxu0 %v2738
        %3132 = vmatpush.bf16.msra.mxu0 %v2736
        %3133 = vmatpush.bf16.msra.mxu0 %v2734
        %3134 = vmatpush.bf16.msra.mxu0 %v2732
        %3135 = vmatpush.bf16.msra.mxu0 %v2730
        %3136 = vmatpush.bf16.msra.mxu0 %v2728
        %3137 = vmatpush.bf16.msra.mxu0 %v2726
        %3138 = vmatpush.bf16.msra.mxu0 %v2724
        %3139 = vmatmul.bf16.gmra.mxu0 %v2895
        %v3140 = vpop.f32.mrf.mxu0
        %v3141 = vadd.f32 %v3128, %v3140
        %v3142 = vpop.f32.mrf.mxu0
        %3143 = vdwg.mxu0
        %3144 = vmatpush.bf16.msra.mxu0 %v2754
        %3145 = vmatpush.bf16.msra.mxu0 %v2752
        %3146 = vmatpush.bf16.msra.mxu0 %v2750
        %3147 = vmatpush.bf16.msra.mxu0 %v2748
        %3148 = vmatpush.bf16.msra.mxu0 %v2746
        %3149 = vmatpush.bf16.msra.mxu0 %v2744
        %3150 = vmatpush.bf16.msra.mxu0 %v2742
        %3151 = vmatpush.bf16.msra.mxu0 %v2740
        %3152 = vmatmul.bf16.gmra.mxu0 %v2898
        %v3153 = vpop.f32.mrf.mxu0
        %v3154 = vadd.f32 %v3141, %v3153
        %v3155 = vpop.f32.mrf.mxu0
        %3156 = vdwg.mxu0
        %3157 = vmatpush.bf16.msra.mxu0 %v2770
        %3158 = vmatpush.bf16.msra.mxu0 %v2768
        %3159 = vmatpush.bf16.msra.mxu0 %v2766
        %3160 = vmatpush.bf16.msra.mxu0 %v2764
        %3161 = vmatpush.bf16.msra.mxu0 %v2762
        %3162 = vmatpush.bf16.msra.mxu0 %v2760
        %3163 = vmatpush.bf16.msra.mxu0 %v2758
        %3164 = vmatpush.bf16.msra.mxu0 %v2756
        %3165 = vmatmul.bf16.gmra.mxu0 %v2899
        %v3166 = vpop.f32.mrf.mxu0
        %v3167 = vadd.f32 %v3154, %v3166
        %v3168 = vpop.f32.mrf.mxu0
        %3169 = vdwg.mxu0
        %3170 = vmatpush.bf16.msra.mxu0 %v2786
        %3171 = vmatpush.bf16.msra.mxu0 %v2784
        %3172 = vmatpush.bf16.msra.mxu0 %v2782
        %3173 = vmatpush.bf16.msra.mxu0 %v2780
        %3174 = vmatpush.bf16.msra.mxu0 %v2778
        %3175 = vmatpush.bf16.msra.mxu0 %v2776
        %3176 = vmatpush.bf16.msra.mxu0 %v2774
        %3177 = vmatpush.bf16.msra.mxu0 %v2772
        %3178 = vmatmul.bf16.gmra.mxu0 %v2900
        %v3179 = vpop.f32.mrf.mxu0
        %v3180 = vadd.f32 %v3167, %v3179
        %v3181 = vpop.f32.mrf.mxu0
        %3182 = vdwg.mxu0
        %3183 = vmatpush.bf16.msra.mxu0 %v2802
        %3184 = vmatpush.bf16.msra.mxu0 %v2800
        %3185 = vmatpush.bf16.msra.mxu0 %v2798
        %3186 = vmatpush.bf16.msra.mxu0 %v2796
        %3187 = vmatpush.bf16.msra.mxu0 %v2794
        %3188 = vmatpush.bf16.msra.mxu0 %v2792
        %3189 = vmatpush.bf16.msra.mxu0 %v2790
        %3190 = vmatpush.bf16.msra.mxu0 %v2788
        %3191 = vmatmul.bf16.gmra.mxu0 %v2901
        %v3192 = vpop.f32.mrf.mxu0
        %v3193 = vadd.f32 %v3180, %v3192
        %v3194 = vpop.f32.mrf.mxu0
        %3195 = vdwg.mxu0
        %3196 = vmatpush.bf16.msra.mxu0 %v2818
        %3197 = vmatpush.bf16.msra.mxu0 %v2816
        %3198 = vmatpush.bf16.msra.mxu0 %v2814
        %3199 = vmatpush.bf16.msra.mxu0 %v2812
        %3200 = vmatpush.bf16.msra.mxu0 %v2810
        %3201 = vmatpush.bf16.msra.mxu0 %v2808
        %3202 = vmatpush.bf16.msra.mxu0 %v2806
        %3203 = vmatpush.bf16.msra.mxu0 %v2804
        %3204 = vmatmul.bf16.gmra.mxu0 %v2902
        %v3205 = vpop.f32.mrf.mxu0
        %v3206 = vadd.f32 %v3193, %v3205
        %v3207 = vpop.f32.mrf.mxu0
        %3208 = vdwg.mxu0
        %3209 = vmatpush.bf16.msra.mxu0 %v2834
        %3210 = vmatpush.bf16.msra.mxu0 %v2832
        %3211 = vmatpush.bf16.msra.mxu0 %v2830
        %3212 = vmatpush.bf16.msra.mxu0 %v2828
        %3213 = vmatpush.bf16.msra.mxu0 %v2826
        %3214 = vmatpush.bf16.msra.mxu0 %v2824
        %3215 = vmatpush.bf16.msra.mxu0 %v2822
        %3216 = vmatpush.bf16.msra.mxu0 %v2820
        %3217 = vmatmul.bf16.gmra.mxu0 %v2903
        %v3218 = vpop.f32.mrf.mxu0
        %v3219 = vadd.f32 %v3206, %v3218
        %v3220 = vpop.f32.mrf.mxu0
        %3221 = vdwg.mxu0
        %3222 = vmatpush.bf16.msra.mxu0 %v2850
        %3223 = vmatpush.bf16.msra.mxu0 %v2848
        %3224 = vmatpush.bf16.msra.mxu0 %v2846
        %3225 = vmatpush.bf16.msra.mxu0 %v2844
        %3226 = vmatpush.bf16.msra.mxu0 %v2842
        %3227 = vmatpush.bf16.msra.mxu0 %v2840
        %3228 = vmatpush.bf16.msra.mxu0 %v2838
        %3229 = vmatpush.bf16.msra.mxu0 %v2836
        %3230 = vmatmul.bf16.gmra.mxu0 %v2904
        %v3231 = vpop.f32.mrf.mxu0
        %v3232 = vadd.f32 %v3219, %v3231
        %v3233 = vpop.f32.mrf.mxu0
        %3234 = vdwg.mxu0
        %3235 = vmatpush.bf16.msra.mxu0 %v2866
        %3236 = vmatpush.bf16.msra.mxu0 %v2864
        %3237 = vmatpush.bf16.msra.mxu0 %v2862
        %3238 = vmatpush.bf16.msra.mxu0 %v2860
        %3239 = vmatpush.bf16.msra.mxu0 %v2858
        %3240 = vmatpush.bf16.msra.mxu0 %v2856
        %3241 = vmatpush.bf16.msra.mxu0 %v2854
        %3242 = vmatpush.bf16.msra.mxu0 %v2852
        %3243 = vmatmul.bf16.gmra.mxu0 %v2905
        %v3244 = vpop.f32.mrf.mxu0
        %v3245 = vadd.f32 %v3232, %v3244
        %v3246 = vpop.f32.mrf.mxu0
        %3247 = vdwg.mxu0
        %3248 = vmatpush.bf16.msra.mxu0 0
        %3249 = vmatpush.bf16.msra.mxu0 0
        %3250 = vmatpush.bf16.msra.mxu0 0
        %3251 = vmatpush.bf16.msra.mxu0 0
        %3252 = vmatpush.bf16.msra.mxu0 %v2874
        %3253 = vmatpush.bf16.msra.mxu0 %v2872
        %3254 = vmatpush.bf16.msra.mxu0 %v2870
        %3255 = vmatpush.bf16.msra.mxu0 %v2868
        %3256 = vmatmul.bf16.gmra.mxu0 %v2934
        %v3257 = vpop.f32.mrf.mxu0
        %v3258 = vadd.f32 %v3245, %v3257
        %v3259 = vpop.f32.mrf.mxu0
        %3260 = vdwg.mxu0
        %3261 = vmatpush.bf16.msra.mxu0 %v2499
        %3262 = vmatpush.bf16.msra.mxu0 %v2497
        %3263 = vmatpush.bf16.msra.mxu0 %v2495
        %3264 = vmatpush.bf16.msra.mxu0 %v2493
        %3265 = vmatpush.bf16.msra.mxu0 %v2491
        %3266 = vmatpush.bf16.msra.mxu0 %v2489
        %3267 = vmatpush.bf16.msra.mxu0 %v2487
        %3268 = vmatpush.bf16.msra.mxu0 %v2485
        %3269 = vmatmul.bf16.gmra.mxu0 %v2878
        %v3270 = vpop.f32.mrf.mxu0
        %v3271 = vadd.f32 0.0, %v3270
        %v3272 = vpop.f32.mrf.mxu0
        %3273 = vdwg.mxu0
        %3274 = vmatpush.bf16.msra.mxu0 %v2515
        %3275 = vmatpush.bf16.msra.mxu0 %v2513
        %3276 = vmatpush.bf16.msra.mxu0 %v2511
        %3277 = vmatpush.bf16.msra.mxu0 %v2509
        %3278 = vmatpush.bf16.msra.mxu0 %v2507
        %3279 = vmatpush.bf16.msra.mxu0 %v2505
        %3280 = vmatpush.bf16.msra.mxu0 %v2503
        %3281 = vmatpush.bf16.msra.mxu0 %v2501
        %3282 = vmatmul.bf16.gmra.mxu0 %v2879
        %v3283 = vpop.f32.mrf.mxu0
        %v3284 = vadd.f32 %v3271, %v3283
        %v3285 = vpop.f32.mrf.mxu0
        %3286 = vdwg.mxu0
        %3287 = vmatpush.bf16.msra.mxu0 %v2531
        %3288 = vmatpush.bf16.msra.mxu0 %v2529
        %3289 = vmatpush.bf16.msra.mxu0 %v2527
        %3290 = vmatpush.bf16.msra.mxu0 %v2525
        %3291 = vmatpush.bf16.msra.mxu0 %v2523
        %3292 = vmatpush.bf16.msra.mxu0 %v2521
        %3293 = vmatpush.bf16.msra.mxu0 %v2519
        %3294 = vmatpush.bf16.msra.mxu0 %v2517
        %3295 = vmatmul.bf16.gmra.mxu0 %v2880
        %v3296 = vpop.f32.mrf.mxu0
        %v3297 = vadd.f32 %v3284, %v3296
        %v3298 = vpop.f32.mrf.mxu0
        %3299 = vdwg.mxu0
        %3300 = vmatpush.bf16.msra.mxu0 %v2547
        %3301 = vmatpush.bf16.msra.mxu0 %v2545
        %3302 = vmatpush.bf16.msra.mxu0 %v2543
        %3303 = vmatpush.bf16.msra.mxu0 %v2541
        %3304 = vmatpush.bf16.msra.mxu0 %v2539
        %3305 = vmatpush.bf16.msra.mxu0 %v2537
        %3306 = vmatpush.bf16.msra.mxu0 %v2535
        %3307 = vmatpush.bf16.msra.mxu0 %v2533
        %3308 = vmatmul.bf16.gmra.mxu0 %v2881
        %v3309 = vpop.f32.mrf.mxu0
        %v3310 = vadd.f32 %v3297, %v3309
        %v3311 = vpop.f32.mrf.mxu0
        %3312 = vdwg.mxu0
        %3313 = vmatpush.bf16.msra.mxu0 %v2563
        %3314 = vmatpush.bf16.msra.mxu0 %v2561
        %3315 = vmatpush.bf16.msra.mxu0 %v2559
        %3316 = vmatpush.bf16.msra.mxu0 %v2557
        %3317 = vmatpush.bf16.msra.mxu0 %v2555
        %3318 = vmatpush.bf16.msra.mxu0 %v2553
        %3319 = vmatpush.bf16.msra.mxu0 %v2551
        %3320 = vmatpush.bf16.msra.mxu0 %v2549
        %3321 = vmatmul.bf16.gmra.mxu0 %v2882
        %v3322 = vpop.f32.mrf.mxu0
        %v3323 = vadd.f32 %v3310, %v3322
        %v3324 = vpop.f32.mrf.mxu0
        %3325 = vdwg.mxu0
        %3326 = vmatpush.bf16.msra.mxu0 %v2579
        %3327 = vmatpush.bf16.msra.mxu0 %v2577
        %3328 = vmatpush.bf16.msra.mxu0 %v2575
        %3329 = vmatpush.bf16.msra.mxu0 %v2573
        %3330 = vmatpush.bf16.msra.mxu0 %v2571
        %3331 = vmatpush.bf16.msra.mxu0 %v2569
        %3332 = vmatpush.bf16.msra.mxu0 %v2567
        %3333 = vmatpush.bf16.msra.mxu0 %v2565
        %3334 = vmatmul.bf16.gmra.mxu0 %v2883
        %v3335 = vpop.f32.mrf.mxu0
        %v3336 = vadd.f32 %v3323, %v3335
        %v3337 = vpop.f32.mrf.mxu0
        %3338 = vdwg.mxu0
        %3339 = vmatpush.bf16.msra.mxu0 %v2595
        %3340 = vmatpush.bf16.msra.mxu0 %v2593
        %3341 = vmatpush.bf16.msra.mxu0 %v2591
        %3342 = vmatpush.bf16.msra.mxu0 %v2589
        %3343 = vmatpush.bf16.msra.mxu0 %v2587
        %3344 = vmatpush.bf16.msra.mxu0 %v2585
        %3345 = vmatpush.bf16.msra.mxu0 %v2583
        %3346 = vmatpush.bf16.msra.mxu0 %v2581
        %3347 = vmatmul.bf16.gmra.mxu0 %v2884
        %v3348 = vpop.f32.mrf.mxu0
        %v3349 = vadd.f32 %v3336, %v3348
        %v3350 = vpop.f32.mrf.mxu0
        %3351 = vdwg.mxu0
        %3352 = vmatpush.bf16.msra.mxu0 %v2611
        %3353 = vmatpush.bf16.msra.mxu0 %v2609
        %3354 = vmatpush.bf16.msra.mxu0 %v2607
        %3355 = vmatpush.bf16.msra.mxu0 %v2605
        %3356 = vmatpush.bf16.msra.mxu0 %v2603
        %3357 = vmatpush.bf16.msra.mxu0 %v2601
        %3358 = vmatpush.bf16.msra.mxu0 %v2599
        %3359 = vmatpush.bf16.msra.mxu0 %v2597
        %3360 = vmatmul.bf16.gmra.mxu0 %v2885
        %v3361 = vpop.f32.mrf.mxu0
        %v3362 = vadd.f32 %v3349, %v3361
        %v3363 = vpop.f32.mrf.mxu0
        %3364 = vdwg.mxu0
        %3365 = vmatpush.bf16.msra.mxu0 %v2627
        %3366 = vmatpush.bf16.msra.mxu0 %v2625
        %3367 = vmatpush.bf16.msra.mxu0 %v2623
        %3368 = vmatpush.bf16.msra.mxu0 %v2621
        %3369 = vmatpush.bf16.msra.mxu0 %v2619
        %3370 = vmatpush.bf16.msra.mxu0 %v2617
        %3371 = vmatpush.bf16.msra.mxu0 %v2615
        %3372 = vmatpush.bf16.msra.mxu0 %v2613
        %3373 = vmatmul.bf16.gmra.mxu0 %v2888
        %v3374 = vpop.f32.mrf.mxu0
        %v3375 = vadd.f32 %v3362, %v3374
        %v3376 = vpop.f32.mrf.mxu0
        %3377 = vdwg.mxu0
        %3378 = vmatpush.bf16.msra.mxu0 %v2643
        %3379 = vmatpush.bf16.msra.mxu0 %v2641
        %3380 = vmatpush.bf16.msra.mxu0 %v2639
        %3381 = vmatpush.bf16.msra.mxu0 %v2637
        %3382 = vmatpush.bf16.msra.mxu0 %v2635
        %3383 = vmatpush.bf16.msra.mxu0 %v2633
        %3384 = vmatpush.bf16.msra.mxu0 %v2631
        %3385 = vmatpush.bf16.msra.mxu0 %v2629
        %3386 = vmatmul.bf16.gmra.mxu0 %v2889
        %v3387 = vpop.f32.mrf.mxu0
        %v3388 = vadd.f32 %v3375, %v3387
        %v3389 = vpop.f32.mrf.mxu0
        %3390 = vdwg.mxu0
        %3391 = vmatpush.bf16.msra.mxu0 %v2659
        %3392 = vmatpush.bf16.msra.mxu0 %v2657
        %3393 = vmatpush.bf16.msra.mxu0 %v2655
        %3394 = vmatpush.bf16.msra.mxu0 %v2653
        %3395 = vmatpush.bf16.msra.mxu0 %v2651
        %3396 = vmatpush.bf16.msra.mxu0 %v2649
        %3397 = vmatpush.bf16.msra.mxu0 %v2647
        %3398 = vmatpush.bf16.msra.mxu0 %v2645
        %3399 = vmatmul.bf16.gmra.mxu0 %v2890
        %v3400 = vpop.f32.mrf.mxu0
        %v3401 = vadd.f32 %v3388, %v3400
        %v3402 = vpop.f32.mrf.mxu0
        %3403 = vdwg.mxu0
        %3404 = vmatpush.bf16.msra.mxu0 %v2675
        %3405 = vmatpush.bf16.msra.mxu0 %v2673
        %3406 = vmatpush.bf16.msra.mxu0 %v2671
        %3407 = vmatpush.bf16.msra.mxu0 %v2669
        %3408 = vmatpush.bf16.msra.mxu0 %v2667
        %3409 = vmatpush.bf16.msra.mxu0 %v2665
        %3410 = vmatpush.bf16.msra.mxu0 %v2663
        %3411 = vmatpush.bf16.msra.mxu0 %v2661
        %3412 = vmatmul.bf16.gmra.mxu0 %v2891
        %v3413 = vpop.f32.mrf.mxu0
        %v3414 = vadd.f32 %v3401, %v3413
        %v3415 = vpop.f32.mrf.mxu0
        %3416 = vdwg.mxu0
        %3417 = vmatpush.bf16.msra.mxu0 %v2691
        %3418 = vmatpush.bf16.msra.mxu0 %v2689
        %3419 = vmatpush.bf16.msra.mxu0 %v2687
        %3420 = vmatpush.bf16.msra.mxu0 %v2685
        %3421 = vmatpush.bf16.msra.mxu0 %v2683
        %3422 = vmatpush.bf16.msra.mxu0 %v2681
        %3423 = vmatpush.bf16.msra.mxu0 %v2679
        %3424 = vmatpush.bf16.msra.mxu0 %v2677
        %3425 = vmatmul.bf16.gmra.mxu0 %v2892
        %v3426 = vpop.f32.mrf.mxu0
        %v3427 = vadd.f32 %v3414, %v3426
        %v3428 = vpop.f32.mrf.mxu0
        %3429 = vdwg.mxu0
        %3430 = vmatpush.bf16.msra.mxu0 %v2707
        %3431 = vmatpush.bf16.msra.mxu0 %v2705
        %3432 = vmatpush.bf16.msra.mxu0 %v2703
        %3433 = vmatpush.bf16.msra.mxu0 %v2701
        %3434 = vmatpush.bf16.msra.mxu0 %v2699
        %3435 = vmatpush.bf16.msra.mxu0 %v2697
        %3436 = vmatpush.bf16.msra.mxu0 %v2695
        %3437 = vmatpush.bf16.msra.mxu0 %v2693
        %3438 = vmatmul.bf16.gmra.mxu0 %v2893
        %v3439 = vpop.f32.mrf.mxu0
        %v3440 = vadd.f32 %v3427, %v3439
        %v3441 = vpop.f32.mrf.mxu0
        %3442 = vdwg.mxu0
        %3443 = vmatpush.bf16.msra.mxu0 %v2723
        %3444 = vmatpush.bf16.msra.mxu0 %v2721
        %3445 = vmatpush.bf16.msra.mxu0 %v2719
        %3446 = vmatpush.bf16.msra.mxu0 %v2717
        %3447 = vmatpush.bf16.msra.mxu0 %v2715
        %3448 = vmatpush.bf16.msra.mxu0 %v2713
        %3449 = vmatpush.bf16.msra.mxu0 %v2711
        %3450 = vmatpush.bf16.msra.mxu0 %v2709
        %3451 = vmatmul.bf16.gmra.mxu0 %v2894
        %v3452 = vpop.f32.mrf.mxu0
        %v3453 = vadd.f32 %v3440, %v3452
        %v3454 = vpop.f32.mrf.mxu0
        %3455 = vdwg.mxu0
        %3456 = vmatpush.bf16.msra.mxu0 %v2739
        %3457 = vmatpush.bf16.msra.mxu0 %v2737
        %3458 = vmatpush.bf16.msra.mxu0 %v2735
        %3459 = vmatpush.bf16.msra.mxu0 %v2733
        %3460 = vmatpush.bf16.msra.mxu0 %v2731
        %3461 = vmatpush.bf16.msra.mxu0 %v2729
        %3462 = vmatpush.bf16.msra.mxu0 %v2727
        %3463 = vmatpush.bf16.msra.mxu0 %v2725
        %3464 = vmatmul.bf16.gmra.mxu0 %v2895
        %v3465 = vpop.f32.mrf.mxu0
        %v3466 = vadd.f32 %v3453, %v3465
        %v3467 = vpop.f32.mrf.mxu0
        %3468 = vdwg.mxu0
        %3469 = vmatpush.bf16.msra.mxu0 %v2755
        %3470 = vmatpush.bf16.msra.mxu0 %v2753
        %3471 = vmatpush.bf16.msra.mxu0 %v2751
        %3472 = vmatpush.bf16.msra.mxu0 %v2749
        %3473 = vmatpush.bf16.msra.mxu0 %v2747
        %3474 = vmatpush.bf16.msra.mxu0 %v2745
        %3475 = vmatpush.bf16.msra.mxu0 %v2743
        %3476 = vmatpush.bf16.msra.mxu0 %v2741
        %3477 = vmatmul.bf16.gmra.mxu0 %v2898
        %v3478 = vpop.f32.mrf.mxu0
        %v3479 = vadd.f32 %v3466, %v3478
        %v3480 = vpop.f32.mrf.mxu0
        %3481 = vdwg.mxu0
        %3482 = vmatpush.bf16.msra.mxu0 %v2771
        %3483 = vmatpush.bf16.msra.mxu0 %v2769
        %3484 = vmatpush.bf16.msra.mxu0 %v2767
        %3485 = vmatpush.bf16.msra.mxu0 %v2765
        %3486 = vmatpush.bf16.msra.mxu0 %v2763
        %3487 = vmatpush.bf16.msra.mxu0 %v2761
        %3488 = vmatpush.bf16.msra.mxu0 %v2759
        %3489 = vmatpush.bf16.msra.mxu0 %v2757
        %3490 = vmatmul.bf16.gmra.mxu0 %v2899
        %v3491 = vpop.f32.mrf.mxu0
        %v3492 = vadd.f32 %v3479, %v3491
        %v3493 = vpop.f32.mrf.mxu0
        %3494 = vdwg.mxu0
        %3495 = vmatpush.bf16.msra.mxu0 %v2787
        %3496 = vmatpush.bf16.msra.mxu0 %v2785
        %3497 = vmatpush.bf16.msra.mxu0 %v2783
        %3498 = vmatpush.bf16.msra.mxu0 %v2781
        %3499 = vmatpush.bf16.msra.mxu0 %v2779
        %3500 = vmatpush.bf16.msra.mxu0 %v2777
        %3501 = vmatpush.bf16.msra.mxu0 %v2775
        %3502 = vmatpush.bf16.msra.mxu0 %v2773
        %3503 = vmatmul.bf16.gmra.mxu0 %v2900
        %v3504 = vpop.f32.mrf.mxu0
        %v3505 = vadd.f32 %v3492, %v3504
        %v3506 = vpop.f32.mrf.mxu0
        %3507 = vdwg.mxu0
        %3508 = vmatpush.bf16.msra.mxu0 %v2803
        %3509 = vmatpush.bf16.msra.mxu0 %v2801
        %3510 = vmatpush.bf16.msra.mxu0 %v2799
        %3511 = vmatpush.bf16.msra.mxu0 %v2797
        %3512 = vmatpush.bf16.msra.mxu0 %v2795
        %3513 = vmatpush.bf16.msra.mxu0 %v2793
        %3514 = vmatpush.bf16.msra.mxu0 %v2791
        %3515 = vmatpush.bf16.msra.mxu0 %v2789
        %3516 = vmatmul.bf16.gmra.mxu0 %v2901
        %v3517 = vpop.f32.mrf.mxu0
        %v3518 = vadd.f32 %v3505, %v3517
        %v3519 = vpop.f32.mrf.mxu0
        %3520 = vdwg.mxu0
        %3521 = vmatpush.bf16.msra.mxu0 %v2819
        %3522 = vmatpush.bf16.msra.mxu0 %v2817
        %3523 = vmatpush.bf16.msra.mxu0 %v2815
        %3524 = vmatpush.bf16.msra.mxu0 %v2813
        %3525 = vmatpush.bf16.msra.mxu0 %v2811
        %3526 = vmatpush.bf16.msra.mxu0 %v2809
        %3527 = vmatpush.bf16.msra.mxu0 %v2807
        %3528 = vmatpush.bf16.msra.mxu0 %v2805
        %3529 = vmatmul.bf16.gmra.mxu0 %v2902
        %v3530 = vpop.f32.mrf.mxu0
        %v3531 = vadd.f32 %v3518, %v3530
        %v3532 = vpop.f32.mrf.mxu0
        %3533 = vdwg.mxu0
        %3534 = vmatpush.bf16.msra.mxu0 %v2835
        %3535 = vmatpush.bf16.msra.mxu0 %v2833
        %3536 = vmatpush.bf16.msra.mxu0 %v2831
        %3537 = vmatpush.bf16.msra.mxu0 %v2829
        %3538 = vmatpush.bf16.msra.mxu0 %v2827
        %3539 = vmatpush.bf16.msra.mxu0 %v2825
        %3540 = vmatpush.bf16.msra.mxu0 %v2823
        %3541 = vmatpush.bf16.msra.mxu0 %v2821
        %3542 = vmatmul.bf16.gmra.mxu0 %v2903
        %v3543 = vpop.f32.mrf.mxu0
        %v3544 = vadd.f32 %v3531, %v3543
        %v3545 = vpop.f32.mrf.mxu0
        %3546 = vdwg.mxu0
        %3547 = vmatpush.bf16.msra.mxu0 %v2851
        %3548 = vmatpush.bf16.msra.mxu0 %v2849
        %3549 = vmatpush.bf16.msra.mxu0 %v2847
        %3550 = vmatpush.bf16.msra.mxu0 %v2845
        %3551 = vmatpush.bf16.msra.mxu0 %v2843
        %3552 = vmatpush.bf16.msra.mxu0 %v2841
        %3553 = vmatpush.bf16.msra.mxu0 %v2839
        %3554 = vmatpush.bf16.msra.mxu0 %v2837
        %3555 = vmatmul.bf16.gmra.mxu0 %v2904
        %v3556 = vpop.f32.mrf.mxu0
        %v3557 = vadd.f32 %v3544, %v3556
        %v3558 = vpop.f32.mrf.mxu0
        %3559 = vdwg.mxu0
        %3560 = vmatpush.bf16.msra.mxu0 %v2867
        %3561 = vmatpush.bf16.msra.mxu0 %v2865
        %3562 = vmatpush.bf16.msra.mxu0 %v2863
        %3563 = vmatpush.bf16.msra.mxu0 %v2861
        %3564 = vmatpush.bf16.msra.mxu0 %v2859
        %3565 = vmatpush.bf16.msra.mxu0 %v2857
        %3566 = vmatpush.bf16.msra.mxu0 %v2855
        %3567 = vmatpush.bf16.msra.mxu0 %v2853
        %3568 = vmatmul.bf16.gmra.mxu0 %v2905
        %v3569 = vpop.f32.mrf.mxu0
        %v3570 = vadd.f32 %v3557, %v3569
        %v3571 = vpop.f32.mrf.mxu0
        %3572 = vdwg.mxu0
        %3573 = vmatpush.bf16.msra.mxu0 0
        %3574 = vmatpush.bf16.msra.mxu0 0
        %3575 = vmatpush.bf16.msra.mxu0 0
        %3576 = vmatpush.bf16.msra.mxu0 0
        %3577 = vmatpush.bf16.msra.mxu0 %v2875
        %3578 = vmatpush.bf16.msra.mxu0 %v2873
        %3579 = vmatpush.bf16.msra.mxu0 %v2871
        %3580 = vmatpush.bf16.msra.mxu0 %v2869
        %3581 = vmatmul.bf16.gmra.mxu0 %v2934
        %v3582 = vpop.f32.mrf.mxu0
        %v3583 = vadd.f32 %v3570, %v3582
        %v3584 = vpop.f32.mrf.mxu0
        %3585 = vdwg.mxu0
        %v3586 = vld [vmem:[%s696] sm:$0x3]
        %v3588 = vperm.slane %v3586, 0
        %v3589 = vperm.slane %v3586, 1
        %v3592 = vmul.f32 %v3258, %v3588
        %v3593 = vmul.f32 %v3583, %v3589
        %v3594 = vld [vmem:[%s701] sm:$0x3]
        %v3596 = vperm.slane %v3594, 0
        %v3597 = vperm.slane %v3594, 1
        %v3600 = vadd.f32 %v3592, %v3596
        %v3601 = vadd.f32 %v3593, %v3597
        %v3602 = vmax.f32 %v3600, 0.0
        %v3603 = vmax.f32 %v3601, 0.0
        %v3604 = vpack.c.bf16 %v3602, %v3602
        %v3605 = vpack.c.bf16 %v3603, %v3603
        %v3606 = vld [vmem:[#allocation2] sm:$0x3]
        %v3607 = vld [vmem:[%s707] sm:$0xf]
        %v3608 = vld [vmem:[%s707 + $0x4] sm:$0xf]
        %v3609 = vld [vmem:[%s707 + $0x8] sm:$0xf]
        %v3610 = vld [vmem:[%s707 + $0xc] sm:$0xf]
        %v3611 = vld [vmem:[%s707 + $0x10] sm:$0xf]
        %v3612 = vld [vmem:[%s707 + $0x14] sm:$0xf]
        %v3613 = vld [vmem:[%s707 + $0x18] sm:$0xf]
        %v3614 = vld [vmem:[%s707 + $0x1c] sm:$0xf]
        %v3615 = vld [vmem:[%s707 + $0x20] sm:$0xf]
        %v3616 = vld [vmem:[%s707 + $0x24] sm:$0xf]
        %v3617 = vld [vmem:[%s707 + $0x28] sm:$0xf]
        %v3618 = vld [vmem:[%s707 + $0x2c] sm:$0xf]
        %v3619 = vld [vmem:[%s707 + $0x30] sm:$0xf]
        %v3620 = vld [vmem:[%s707 + $0x34] sm:$0xf]
        %v3621 = vld [vmem:[%s707 + $0x38] sm:$0xf]
        %v3622 = vld [vmem:[%s707 + $0x3c] sm:$0xf]
        %v3623 = vld [vmem:[%s707 + $0x40] sm:$0xf]
        %v3624 = vld [vmem:[%s707 + $0x44] sm:$0xf]
        %v3625 = vld [vmem:[%s707 + $0x48] sm:$0xf]
        %v3626 = vld [vmem:[%s707 + $0x4c] sm:$0xf]
        %v3627 = vld [vmem:[%s707 + $0x50] sm:$0xf]
        %v3628 = vld [vmem:[%s707 + $0x54] sm:$0xf]
        %v3629 = vld [vmem:[%s707 + $0x58] sm:$0xf]
        %v3630 = vld [vmem:[%s707 + $0x5c] sm:$0xf]
        %v3631 = vld [vmem:[%s707 + $0x60] sm:$0xf]
        %v3632 = vld [vmem:[%s707 + $0x64] sm:$0xf]
        %v3633 = vld [vmem:[%s707 + $0x68] sm:$0xf]
        %v3634 = vld [vmem:[%s707 + $0x6c] sm:$0xf]
        %v3635 = vld [vmem:[%s707 + $0x70] sm:$0xf]
        %v3636 = vld [vmem:[%s707 + $0x74] sm:$0xf]
        %v3637 = vld [vmem:[%s707 + $0x78] sm:$0xf]
        %v3638 = vld [vmem:[%s707 + $0x7c] sm:$0xf]
        %v3671 = vunpack.c.l.b16 %v3607
        %v3672 = vunpack.c.l.b16 %v3608
        %v3673 = vunpack.c.l.b16 %v3609
        %v3674 = vunpack.c.l.b16 %v3610
        %v3675 = vunpack.c.l.b16 %v3611
        %v3676 = vunpack.c.l.b16 %v3612
        %v3677 = vunpack.c.l.b16 %v3613
        %v3678 = vunpack.c.l.b16 %v3614
        %v3679 = vunpack.c.l.b16 %v3615
        %v3680 = vunpack.c.l.b16 %v3616
        %v3681 = vunpack.c.l.b16 %v3617
        %v3682 = vunpack.c.l.b16 %v3618
        %v3683 = vunpack.c.l.b16 %v3619
        %v3684 = vunpack.c.l.b16 %v3620
        %v3685 = vunpack.c.l.b16 %v3621
        %v3686 = vunpack.c.l.b16 %v3622
        %v3687 = vunpack.c.l.b16 %v3623
        %v3688 = vunpack.c.l.b16 %v3624
        %v3689 = vunpack.c.l.b16 %v3625
        %v3690 = vunpack.c.l.b16 %v3626
        %v3691 = vunpack.c.l.b16 %v3627
        %v3692 = vunpack.c.l.b16 %v3628
        %v3693 = vunpack.c.l.b16 %v3629
        %v3694 = vunpack.c.l.b16 %v3630
        %v3695 = vunpack.c.l.b16 %v3631
        %v3696 = vunpack.c.l.b16 %v3632
        %v3697 = vunpack.c.l.b16 %v3633
        %v3698 = vunpack.c.l.b16 %v3634
        %v3699 = vunpack.c.l.b16 %v3635
        %v3700 = vunpack.c.l.b16 %v3636
        %v3701 = vunpack.c.l.b16 %v3637
        %v3702 = vunpack.c.l.b16 %v3638
        %v3703 = vpack.c.b16 %v3672, %v3671
        %v3704 = vpack.c.b16 %v3674, %v3673
        %v3705 = vpack.c.b16 %v3676, %v3675
        %v3706 = vpack.c.b16 %v3678, %v3677
        %v3707 = vpack.c.b16 %v3680, %v3679
        %v3708 = vpack.c.b16 %v3682, %v3681
        %v3709 = vpack.c.b16 %v3684, %v3683
        %v3710 = vpack.c.b16 %v3686, %v3685
        %v3711 = vpack.c.b16 %v3688, %v3687
        %v3712 = vpack.c.b16 %v3690, %v3689
        %v3713 = vpack.c.b16 %v3692, %v3691
        %v3714 = vpack.c.b16 %v3694, %v3693
        %v3715 = vpack.c.b16 %v3696, %v3695
        %v3716 = vpack.c.b16 %v3698, %v3697
        %v3717 = vpack.c.b16 %v3700, %v3699
        %v3718 = vpack.c.b16 %v3702, %v3701
        %3735 = vmatpush.bf16.msra.mxu0 %v3710
        %3736 = vmatpush.bf16.msra.mxu0 %v3709
        %3737 = vmatpush.bf16.msra.mxu0 %v3708
        %3738 = vmatpush.bf16.msra.mxu0 %v3707
        %3739 = vmatpush.bf16.msra.mxu0 %v3706
        %3740 = vmatpush.bf16.msra.mxu0 %v3705
        %3741 = vmatpush.bf16.msra.mxu0 %v3704
        %3742 = vmatpush.bf16.msra.mxu0 %v3703
        %3743 = vmatmul.bf16.gmra.mxu0 %v3604
        %v3744 = vpop.f32.mrf.mxu0
        %v3745 = vadd.f32 0.0, %v3744
        %v3746 = vpop.f32.mrf.mxu0
        %3747 = vdwg.mxu0
        %3748 = vmatpush.bf16.msra.mxu0 %v3718
        %3749 = vmatpush.bf16.msra.mxu0 %v3717
        %3750 = vmatpush.bf16.msra.mxu0 %v3716
        %3751 = vmatpush.bf16.msra.mxu0 %v3715
        %3752 = vmatpush.bf16.msra.mxu0 %v3714
        %3753 = vmatpush.bf16.msra.mxu0 %v3713
        %3754 = vmatpush.bf16.msra.mxu0 %v3712
        %3755 = vmatpush.bf16.msra.mxu0 %v3711
        %3756 = vmatmul.bf16.gmra.mxu0 %v3605
        %v3757 = vpop.f32.mrf.mxu0
        %v3758 = vadd.f32 %v3745, %v3757
        %v3759 = vpop.f32.mrf.mxu0
        %3760 = vdwg.mxu0
        %v3761 = vadd.f32 %v3606, %v3758
        %vm3762 = vcmask 33792
        %3763 = vst.msk [vmem:[#allocation2] sm:$0x3] %vm3762, %v3761
        %p3764 = scmp.eq.s32.totalorder %s18, 3
        // Predicated region
        $region72: #{net_forward.3} parent=62 // pred_check
          %p3765 = pneg %p3764
        $region73: #{net_forward.3} parent=62 // pred_check_branch
          %3767 = sbr.rel (%p3765) target = $region75
        $region74: #{net_forward.3} parent=62 // pred_region
          %v3768 = vld [vmem:[#allocation2] sm:$0x3]
          %v3769 = vld [vmem:[%s5] sm:$0x1]
          %v3771 = vperm.slane %v3769, 0
          %v3773 = vadd.f32 %v3768, %v3771
          %3775 = vset.pattern.permute.xlu0 4
          %3776 = vperm.xlu0 %3775, %v3773
          %v3777 = vpop.permute.xlu0 %3776
          %v3779 = vadd.f32 %v3777, %v3773
          %vm3780 = vcmask 25600
          %v3781 = vsel %vm3780, %v3773, 0.0
          %3782 = vadd.xlane.f32.xlu0 %v3781
          %v3783 = vpop.xlane.xlu0 %3782
          %v3784 = vrcp.pop 4.0
          %v3785 = vmul.f32 4.0, %v3784
          %v3786 = vsub.f32 1.0, %v3785
          %v3787 = vmul.f32 %v3784, %v3786
          %v3788 = vadd.f32 %v3784, %v3787
          %vm3789 = vweird.f32 %v3784
          %v3790 = vsel %vm3789, %v3784, %v3788
          %v3791 = vmul.f32 %v3783, %v3790
          %v3792 = vsub.f32 %v3779, %v3791
          %3793 = vst.msk [vmem:[#allocation4] sm:$0x3] %vm3780, %v3792
        $region75: #{net_forward.3} parent=62 // pred_fallthru
          _
        // Predicated region
        $region76: #{net_forward.3} parent=62 // pred_check
          %p3794 = pneg %p177
        $region77: #{net_forward.3} parent=62 // pred_check_branch
          %3796 = sbr.rel (%p3794) target = $region79
        $region78: #{net_forward.3} parent=62 // pred_region
          %3798 = vsyncadd [#allocation5], 0
          %s3800 = sshll.u32 [#allocation4], 4
          %s3801 = int_to_ptr.vmem [resolvable:$true] %s3800
          %s3802 = sshll.u32 %s6, 4
          %s3803 = int_to_ptr.hbm [resolvable:$true] %s3802
          %3805 = dma.vmem_to_hbm [thread:$0]  %s3801, 32, %s3803, [#allocation5]
        $region79: #{net_forward.3} parent=62 // pred_fallthru
          _
        // Predicated region
        $region80: #{net_forward.3} parent=62 // pred_check
          %p3806 = pneg %p177
        $region81: #{net_forward.3} parent=62 // pred_check_branch
          %3808 = sbr.rel (%p3806) target = $region83
        $region82: #{net_forward.3} parent=62 // pred_region
          %3810 = dma.done [#allocation5], 32
        $region83: #{net_forward.3} parent=62 // pred_fallthru
          _
      $region63: #{net_forward.3} parent=5 // pred_fallthru
        _
      %p3811 = scmp.le.s32.totalorder 2, %s13
      // Predicated region
      $region84: #{net_forward.3} parent=5 // pred_check
        %p3812 = pneg %p3811
      $region85: #{net_forward.3} parent=5 // pred_check_branch
        %3814 = sbr.rel (%p3812) target = $region87
      $region86: #{net_forward.3} parent=5 // pred_region
        %s3815 = ssub.s32 %s13, 2
      $region87: #{net_forward.3} parent=5 // pred_fallthru
        _
    $region6: #{net_forward.3} parent=1 // loop_footer
      %s17 = sadd.s32 1, %s13
    $region7: #{net_forward.3} parent=1 // loop_footer_branch
      %12 = sbr.rel target = $region3
    $region8: #{net_forward.3} parent=1 // loop_exit
      _
    %3816 = vsyncpa [#allocation5], 1
    %s3817 = scalar_lea.sflag [#allocation5], 1
    %3818 = vsyncpa %s3817, 1

// kernel: net_forward.2
$region0: #{net_forward.2}
  #allocation0 [shape = 'u32[]', space=smem, size = 0x4, offset = 0x4, fixed_abs, tag = 'smem constant byte address 0x4 - core index']
  #allocation1 [shape = 'u32[72,128]{1,0:T(1,128)}', space=vmem, size = 0x9000, scoped, tag = 'internal scratch']
  %s0 = inlined_call_operand.vmem [shape: bf16[2,11,11,256], index: 0, kind: input, shape index: {}]
  %s1 = inlined_call_operand.vmem [shape: bf16[4,256,128], index: 1, kind: input, shape index: {}]
  %s2 = inlined_call_operand.vmem [shape: f32[1,128], index: 2, kind: input, shape index: {}]
  %s3 = inlined_call_operand.vmem [shape: bf16[4,128,64], index: 3, kind: input, shape index: {}]
  %s4 = inlined_call_operand.vmem [shape: f32[1,64], index: 4, kind: input, shape index: {}]
  %s5 = inlined_call_operand.vmem [shape: bf16[9,64,64], index: 5, kind: input, shape index: {}]
  %s6 = inlined_call_operand.vmem [shape: f32[1,64], index: 6, kind: input, shape index: {}]
  %s7 = inlined_call_operand.vmem [shape: bf16[2,49,64], index: 7, kind: output, shape index: {}]
  %s8 = sld [smem:[#allocation0]]
  $region61: #{net_forward.2} parent=0
    _
  %s10 = ssub.s32 1, %s8
  %s11 = scalar_select 0, %s10, %s8
  loop: start=0, step=1, limit=4
  $region2: #{net_forward.2} parent=0 // loop_pre_header
    _
  $region3: #{net_forward.2} parent=0 // loop_header
    %s13 = sphi 0, %s17
    %p14 = scmp.ge.s32.totalorder %s13, 4
    %s23 = sphi 0, %s25
    %s26 = sphi 0, %s23
    %s27 = sphi 0, %s26
    %s43 = sphi 0, %s27
    %s47 = sphi 0, %s47
    %s49 = sphi 0, %s47
    %s50 = sphi 0, %s49
    %s64 = sphi 0, %s50
    %s68 = sphi 0, %s68
    %s70 = sphi 0, %s68
    %s71 = sphi 0, %s70
    %s85 = sphi 0, %s71
    %s89 = sphi 0, %s89
    %s91 = sphi 0, %s89
    %s92 = sphi 0, %s91
    %s106 = sphi 0, %s92
    %s110 = sphi 0, %s110
    %s112 = sphi 0, %s110
    %s113 = sphi 0, %s112
    %s127 = sphi 0, %s113
    %s131 = sphi 0, %s131
    %s133 = sphi 0, %s131
    %s134 = sphi 0, %s133
    %s148 = sphi 0, %s134
    %s152 = sphi 0, %s152
    %s154 = sphi 0, %s152
    %s155 = sphi 0, %s154
    %s169 = sphi 0, %s155
    %s175 = sphi 0, %s177
    %s178 = sphi 0, %s175
    %s179 = sphi 0, %s178
    %s195 = sphi 0, %s179
  $region4: #{net_forward.2} parent=0 // loop_header_branch
    %16 = sbr.rel (%p14) target = $region8
  $region5: #{net_forward.2} parent=0 // loop_body
    %s18 = ssub.s32 %s13, 1
    %s19 = ssub.s32 %s13, 2
    %s20 = sadd.s32 %s13, 1
    %s21 = ssub.s32 %s13, %s20
    %p22 = scmp.eq.s32.totalorder %s21, 0
    %s24 = sadd.s32 %s23, 1
    %s25 = scalar_select %p22, %s23, %s24
    %p28 = pneg %p22
    %p29 = scmp.eq.s32.totalorder %s13, 1
    %p30 = por %p28, %p29
    %p31 = scmp.ne.s32.totalorder %s23, %s26
    %p32 = scmp.eq.s32.totalorder %s13, 0
    %p33 = por %p31, %p32
    %p34 = scmp.ne.s32.totalorder %s23, %s26
    %p35 = scmp.eq.s32.totalorder %s18, 1
    %p36 = por %p34, %p35
    %p37 = scmp.ne.s32.totalorder %s26, %s27
    %p38 = scmp.eq.s32.totalorder %s18, 0
    %p39 = por %p37, %p38
    %p40 = scmp.ne.s32.totalorder %s26, %s27
    %p41 = scmp.eq.s32.totalorder %s19, 1
    %p42 = por %p40, %p41
    %p44 = scmp.ne.s32.totalorder %s27, %s43
    %p45 = scmp.eq.s32.totalorder %s19, 0
    %p46 = por %p44, %p45
    %s48 = sadd.s32 %s47, 1
    %p51 = scmp.eq.s32.totalorder %s13, 1
    %p52 = scmp.ne.s32.totalorder %s47, %s49
    %p53 = scmp.eq.s32.totalorder %s13, 0
    %p54 = por %p52, %p53
    %p55 = scmp.ne.s32.totalorder %s47, %s49
    %p56 = scmp.eq.s32.totalorder %s18, 1
    %p57 = por %p55, %p56
    %p58 = scmp.ne.s32.totalorder %s49, %s50
    %p59 = scmp.eq.s32.totalorder %s18, 0
    %p60 = por %p58, %p59
    %p61 = scmp.ne.s32.totalorder %s49, %s50
    %p62 = scmp.eq.s32.totalorder %s19, 1
    %p63 = por %p61, %p62
    %p65 = scmp.ne.s32.totalorder %s50, %s64
    %p66 = scmp.eq.s32.totalorder %s19, 0
    %p67 = por %p65, %p66
    %s69 = sadd.s32 %s68, 1
    %p72 = scmp.eq.s32.totalorder %s13, 1
    %p73 = scmp.ne.s32.totalorder %s68, %s70
    %p74 = scmp.eq.s32.totalorder %s13, 0
    %p75 = por %p73, %p74
    %p76 = scmp.ne.s32.totalorder %s68, %s70
    %p77 = scmp.eq.s32.totalorder %s18, 1
    %p78 = por %p76, %p77
    %p79 = scmp.ne.s32.totalorder %s70, %s71
    %p80 = scmp.eq.s32.totalorder %s18, 0
    %p81 = por %p79, %p80
    %p82 = scmp.ne.s32.totalorder %s70, %s71
    %p83 = scmp.eq.s32.totalorder %s19, 1
    %p84 = por %p82, %p83
    %p86 = scmp.ne.s32.totalorder %s71, %s85
    %p87 = scmp.eq.s32.totalorder %s19, 0
    %p88 = por %p86, %p87
    %s90 = sadd.s32 %s89, 1
    %p93 = scmp.eq.s32.totalorder %s13, 1
    %p94 = scmp.ne.s32.totalorder %s89, %s91
    %p95 = scmp.eq.s32.totalorder %s13, 0
    %p96 = por %p94, %p95
    %p97 = scmp.ne.s32.totalorder %s89, %s91
    %p98 = scmp.eq.s32.totalorder %s18, 1
    %p99 = por %p97, %p98
    %p100 = scmp.ne.s32.totalorder %s91, %s92
    %p101 = scmp.eq.s32.totalorder %s18, 0
    %p102 = por %p100, %p101
    %p103 = scmp.ne.s32.totalorder %s91, %s92
    %p104 = scmp.eq.s32.totalorder %s19, 1
    %p105 = por %p103, %p104
    %p107 = scmp.ne.s32.totalorder %s92, %s106
    %p108 = scmp.eq.s32.totalorder %s19, 0
    %p109 = por %p107, %p108
    %s111 = sadd.s32 %s110, 1
    %p114 = scmp.eq.s32.totalorder %s13, 1
    %p115 = scmp.ne.s32.totalorder %s110, %s112
    %p116 = scmp.eq.s32.totalorder %s13, 0
    %p117 = por %p115, %p116
    %p118 = scmp.ne.s32.totalorder %s110, %s112
    %p119 = scmp.eq.s32.totalorder %s18, 1
    %p120 = por %p118, %p119
    %p121 = scmp.ne.s32.totalorder %s112, %s113
    %p122 = scmp.eq.s32.totalorder %s18, 0
    %p123 = por %p121, %p122
    %p124 = scmp.ne.s32.totalorder %s112, %s113
    %p125 = scmp.eq.s32.totalorder %s19, 1
    %p126 = por %p124, %p125
    %p128 = scmp.ne.s32.totalorder %s113, %s127
    %p129 = scmp.eq.s32.totalorder %s19, 0
    %p130 = por %p128, %p129
    %s132 = sadd.s32 %s131, 1
    %p135 = scmp.eq.s32.totalorder %s13, 1
    %p136 = scmp.ne.s32.totalorder %s131, %s133
    %p137 = scmp.eq.s32.totalorder %s13, 0
    %p138 = por %p136, %p137
    %p139 = scmp.ne.s32.totalorder %s131, %s133
    %p140 = scmp.eq.s32.totalorder %s18, 1
    %p141 = por %p139, %p140
    %p142 = scmp.ne.s32.totalorder %s133, %s134
    %p143 = scmp.eq.s32.totalorder %s18, 0
    %p144 = por %p142, %p143
    %p145 = scmp.ne.s32.totalorder %s133, %s134
    %p146 = scmp.eq.s32.totalorder %s19, 1
    %p147 = por %p145, %p146
    %p149 = scmp.ne.s32.totalorder %s134, %s148
    %p150 = scmp.eq.s32.totalorder %s19, 0
    %p151 = por %p149, %p150
    %s153 = sadd.s32 %s152, 1
    %p156 = scmp.eq.s32.totalorder %s13, 1
    %p157 = scmp.ne.s32.totalorder %s152, %s154
    %p158 = scmp.eq.s32.totalorder %s13, 0
    %p159 = por %p157, %p158
    %p160 = scmp.ne.s32.totalorder %s152, %s154
    %p161 = scmp.eq.s32.totalorder %s18, 1
    %p162 = por %p160, %p161
    %p163 = scmp.ne.s32.totalorder %s154, %s155
    %p164 = scmp.eq.s32.totalorder %s18, 0
    %p165 = por %p163, %p164
    %p166 = scmp.ne.s32.totalorder %s154, %s155
    %p167 = scmp.eq.s32.totalorder %s19, 1
    %p168 = por %p166, %p167
    %p170 = scmp.ne.s32.totalorder %s155, %s169
    %p171 = scmp.eq.s32.totalorder %s19, 0
    %p172 = por %p170, %p171
    %s173 = ssub.s32 %s13, %s20
    %p174 = scmp.eq.s32.totalorder %s173, 0
    %s176 = sadd.s32 %s175, 1
    %s177 = scalar_select %p174, %s175, %s176
    %p180 = pneg %p174
    %p181 = scmp.eq.s32.totalorder %s13, 1
    %p182 = por %p180, %p181
    %p183 = scmp.ne.s32.totalorder %s175, %s178
    %p184 = scmp.eq.s32.totalorder %s13, 0
    %p185 = por %p183, %p184
    %p186 = scmp.ne.s32.totalorder %s175, %s178
    %p187 = scmp.eq.s32.totalorder %s18, 1
    %p188 = por %p186, %p187
    %p189 = scmp.ne.s32.totalorder %s178, %s179
    %p190 = scmp.eq.s32.totalorder %s18, 0
    %p191 = por %p189, %p190
    %p192 = scmp.ne.s32.totalorder %s178, %s179
    %p193 = scmp.eq.s32.totalorder %s19, 1
    %p194 = por %p192, %p193
    %p196 = scmp.ne.s32.totalorder %s179, %s195
    %p197 = scmp.eq.s32.totalorder %s19, 0
    %p198 = por %p196, %p197
    %p199 = scmp.le.s32.totalorder 1, %s13
    %p200 = scmp.lt.s32.totalorder %s13, 3
    %p201 = pnand %p199, %p200
    %p202 = pneg %p201
    // Predicated region
    $region9: #{net_forward.2} parent=5 // pred_check
      _
    $region10: #{net_forward.2} parent=5 // pred_check_branch
      %204 = sbr.rel (%p201) target = $region12
    $region11: #{net_forward.2} parent=5 // pred_region
      %s205 = ssub.s32 %s13, 1
      // Predicated region
      $region13: #{net_forward.2} parent=11 // pred_check
        %p206 = pneg %p60
      $region14: #{net_forward.2} parent=11 // pred_check_branch
        %208 = sbr.rel (%p206) target = $region16
      $region15: #{net_forward.2} parent=11 // pred_region
        _
      $region16: #{net_forward.2} parent=11 // pred_fallthru
        _
      // Predicated region
      $region17: #{net_forward.2} parent=11 // pred_check
        %p209 = pneg %p81
      $region18: #{net_forward.2} parent=11 // pred_check_branch
        %211 = sbr.rel (%p209) target = $region20
      $region19: #{net_forward.2} parent=11 // pred_region
        _
      $region20: #{net_forward.2} parent=11 // pred_fallthru
        _
      // Predicated region
      $region21: #{net_forward.2} parent=11 // pred_check
        %p212 = pneg %p102
      $region22: #{net_forward.2} parent=11 // pred_check_branch
        %214 = sbr.rel (%p212) target = $region24
      $region23: #{net_forward.2} parent=11 // pred_region
        _
      $region24: #{net_forward.2} parent=11 // pred_fallthru
        _
      // Predicated region
      $region25: #{net_forward.2} parent=11 // pred_check
        %p215 = pneg %p123
      $region26: #{net_forward.2} parent=11 // pred_check_branch
        %217 = sbr.rel (%p215) target = $region28
      $region27: #{net_forward.2} parent=11 // pred_region
        _
      $region28: #{net_forward.2} parent=11 // pred_fallthru
        _
      // Predicated region
      $region29: #{net_forward.2} parent=11 // pred_check
        %p218 = pneg %p144
      $region30: #{net_forward.2} parent=11 // pred_check_branch
        %220 = sbr.rel (%p218) target = $region32
      $region31: #{net_forward.2} parent=11 // pred_region
        _
      $region32: #{net_forward.2} parent=11 // pred_fallthru
        _
      // Predicated region
      $region33: #{net_forward.2} parent=11 // pred_check
        %p221 = pneg %p165
      $region34: #{net_forward.2} parent=11 // pred_check_branch
        %223 = sbr.rel (%p221) target = $region36
      $region35: #{net_forward.2} parent=11 // pred_region
        _
      $region36: #{net_forward.2} parent=11 // pred_fallthru
        _
    $region12: #{net_forward.2} parent=5 // pred_fallthru
      _
    %p224 = scmp.lt.s32.totalorder %s13, 2
    // Predicated region
    $region37: #{net_forward.2} parent=5 // pred_check
      %p225 = pneg %p224
    $region38: #{net_forward.2} parent=5 // pred_check_branch
      %227 = sbr.rel (%p225) target = $region40
    $region39: #{net_forward.2} parent=5 // pred_region
      // Predicated region
      $region41: #{net_forward.2} parent=39 // pred_check
        %p228 = pneg %p33
      $region42: #{net_forward.2} parent=39 // pred_check_branch
        %230 = sbr.rel (%p228) target = $region44
      $region43: #{net_forward.2} parent=39 // pred_region
        %p231 = scmp.lt.s32.totalorder %s13, 1
        %s232 = scalar_select %p231, %s13, 1
        %s233 = smul.addr %s232, 44
        %s234 = smul.addr %s233, 4
        %s235 = scalar_lea.vmem %s0, %s234
      $region44: #{net_forward.2} parent=39 // pred_fallthru
        _
    $region40: #{net_forward.2} parent=5 // pred_fallthru
      _
    %p236 = scmp.le.s32.totalorder 1, %s13
    %p237 = scmp.lt.s32.totalorder %s13, 3
    %p238 = pnand %p236, %p237
    %p239 = pneg %p238
    // Predicated region
    $region45: #{net_forward.2} parent=5 // pred_check
      _
    $region46: #{net_forward.2} parent=5 // pred_check_branch
      %241 = sbr.rel (%p238) target = $region48
    $region47: #{net_forward.2} parent=5 // pred_region
      %s242 = ssub.s32 %s13, 1
      %p243 = scmp.lt.s32.totalorder %s18, 1
      %s244 = scalar_select %p243, %s18, 1
      %s245 = smul.addr %s244, 44
      %s246 = smul.addr %s245, 4
      %s247 = scalar_lea.vmem %s0, %s246
      %p248 = pneg %p39
      %p249 = pneg %p36
      %p250 = pneg %p60
      %p251 = pneg %p57
      %p252 = pneg %p81
      %p253 = pneg %p78
      %p254 = pneg %p102
      %p255 = pneg %p99
      %p256 = pneg %p123
      %p257 = pneg %p120
      %p258 = pneg %p144
      %p259 = pneg %p141
      %p260 = pneg %p165
      %p261 = pneg %p162
      %p262 = pneg %p191
      %p263 = pneg %p188
      %p264 = scmp.lt.s32.totalorder %s18, 1
      %s265 = scalar_select %p264, %s18, 1
      %s266 = smul.addr %s265, 7
      %s267 = smul.addr %s266, 4
      %s268 = scalar_lea.vmem %s7, %s267
      %p269 = scmp.lt.s32.totalorder %s18, 1
      %s270 = scalar_select %p269, %s18, 1
      %s271 = smul.addr %s270, 44
      %s272 = smul.addr %s271, 4
      %s273 = scalar_lea.vmem %s0, %s272
      %p274 = scmp.lt.s32.totalorder %s18, 1
      %s275 = scalar_select %p274, %s18, 1
      %s276 = smul.addr %s275, 7
      %s277 = smul.addr %s276, 4
      %s278 = scalar_lea.vmem %s7, %s277
      %v280 = vld [vmem:[%s273] sm:$0xff]
      %v281 = vld [vmem:[%s273 + $0x8] sm:$0x33]
      %v282 = vld [vmem:[%s273 + $0x10] sm:$0xff]
      %v283 = vld [vmem:[%s273 + $0x18] sm:$0x33]
      %v284 = vld [vmem:[%s273 + $0x20] sm:$0xff]
      %v285 = vld [vmem:[%s273 + $0x28] sm:$0x33]
      %v286 = vld [vmem:[%s273 + $0x30] sm:$0xff]
      %v287 = vld [vmem:[%s273 + $0x38] sm:$0x33]
      %v288 = vld [vmem:[%s273 + $0x40] sm:$0xff]
      %v289 = vld [vmem:[%s273 + $0x48] sm:$0x33]
      %v290 = vld [vmem:[%s273 + $0x50] sm:$0xff]
      %v291 = vld [vmem:[%s273 + $0x58] sm:$0x33]
      %v292 = vld [vmem:[%s273 + $0x60] sm:$0xff]
      %v293 = vld [vmem:[%s273 + $0x68] sm:$0x33]
      %v294 = vld [vmem:[%s273 + $0x70] sm:$0xff]
      %v295 = vld [vmem:[%s273 + $0x78] sm:$0x33]
      %v296 = vld [vmem:[%s273 + $0x80] sm:$0xff]
      %v297 = vld [vmem:[%s273 + $0x88] sm:$0x33]
      %v298 = vld [vmem:[%s273 + $0x90] sm:$0xff]
      %v299 = vld [vmem:[%s273 + $0x98] sm:$0x33]
      %v300 = vld [vmem:[%s273 + $0xa0] sm:$0xff]
      %v301 = vld [vmem:[%s273 + $0xa8] sm:$0x33]
      %v322 = vrot.slane %v280, 3
      %v323 = vrot.slane %v281, 3
      %v324 = vrot.slane %v282, 3
      %v325 = vrot.slane %v283, 3
      %v326 = vrot.slane %v284, 3
      %v327 = vrot.slane %v285, 3
      %v328 = vrot.slane %v286, 3
      %v329 = vrot.slane %v287, 3
      %v330 = vrot.slane %v288, 3
      %v331 = vrot.slane %v289, 3
      %v332 = vrot.slane %v290, 3
      %v333 = vrot.slane %v291, 3
      %v334 = vrot.slane %v292, 3
      %v335 = vrot.slane %v293, 3
      %v336 = vrot.slane %v294, 3
      %v337 = vrot.slane %v295, 3
      %v338 = vrot.slane %v296, 3
      %v339 = vrot.slane %v297, 3
      %v340 = vrot.slane %v298, 3
      %v341 = vrot.slane %v299, 3
      %vm342 = vcmask 1040384
      %v345 = vsel %vm342, %v280, %v322
      %vm346 = vcmask 1041409
      %v347 = vsel %vm346, %v280, %v322
      %v349 = vrot.slane %v347, 1
      %vm350 = vcmask 1042434
      %v351 = vsel %vm350, %v280, %v322
      %v353 = vrot.slane %v351, 2
      %vm354 = vcmask 1043459
      %v355 = vsel %vm354, %v280, %v322
      %v357 = vrot.slane %v355, 3
      %v360 = vsel %vm342, %v281, %v323
      %v363 = vsel %vm342, %v282, %v324
      %v364 = vsel %vm346, %v282, %v324
      %v366 = vrot.slane %v364, 1
      %v367 = vsel %vm350, %v282, %v324
      %v369 = vrot.slane %v367, 2
      %v370 = vsel %vm354, %v282, %v324
      %v372 = vrot.slane %v370, 3
      %v375 = vsel %vm342, %v283, %v325
      %v378 = vsel %vm342, %v284, %v326
      %v379 = vsel %vm346, %v284, %v326
      %v381 = vrot.slane %v379, 1
      %v382 = vsel %vm350, %v284, %v326
      %v384 = vrot.slane %v382, 2
      %v385 = vsel %vm354, %v284, %v326
      %v387 = vrot.slane %v385, 3
      %v390 = vsel %vm342, %v285, %v327
      %v393 = vsel %vm342, %v286, %v328
      %v394 = vsel %vm346, %v286, %v328
      %v396 = vrot.slane %v394, 1
      %v397 = vsel %vm350, %v286, %v328
      %v399 = vrot.slane %v397, 2
      %v400 = vsel %vm354, %v286, %v328
      %v402 = vrot.slane %v400, 3
      %v405 = vsel %vm342, %v287, %v329
      %v408 = vsel %vm342, %v288, %v330
      %v409 = vsel %vm346, %v288, %v330
      %v411 = vrot.slane %v409, 1
      %v412 = vsel %vm350, %v288, %v330
      %v414 = vrot.slane %v412, 2
      %v415 = vsel %vm354, %v288, %v330
      %v417 = vrot.slane %v415, 3
      %v420 = vsel %vm342, %v289, %v331
      %v423 = vsel %vm342, %v290, %v332
      %v424 = vsel %vm346, %v290, %v332
      %v426 = vrot.slane %v424, 1
      %v427 = vsel %vm350, %v290, %v332
      %v429 = vrot.slane %v427, 2
      %v430 = vsel %vm354, %v290, %v332
      %v432 = vrot.slane %v430, 3
      %v435 = vsel %vm342, %v291, %v333
      %v438 = vsel %vm342, %v292, %v334
      %v439 = vsel %vm346, %v292, %v334
      %v441 = vrot.slane %v439, 1
      %v442 = vsel %vm350, %v292, %v334
      %v444 = vrot.slane %v442, 2
      %v445 = vsel %vm354, %v292, %v334
      %v447 = vrot.slane %v445, 3
      %v450 = vsel %vm342, %v293, %v335
      %v453 = vsel %vm342, %v294, %v336
      %v454 = vsel %vm346, %v294, %v336
      %v456 = vrot.slane %v454, 1
      %v457 = vsel %vm350, %v294, %v336
      %v459 = vrot.slane %v457, 2
      %v460 = vsel %vm354, %v294, %v336
      %v462 = vrot.slane %v460, 3
      %v465 = vsel %vm342, %v295, %v337
      %v468 = vsel %vm342, %v296, %v338
      %v469 = vsel %vm346, %v296, %v338
      %v471 = vrot.slane %v469, 1
      %v472 = vsel %vm350, %v296, %v338
      %v474 = vrot.slane %v472, 2
      %v475 = vsel %vm354, %v296, %v338
      %v477 = vrot.slane %v475, 3
      %v480 = vsel %vm342, %v297, %v339
      %v483 = vsel %vm342, %v298, %v340
      %v484 = vsel %vm346, %v298, %v340
      %v486 = vrot.slane %v484, 1
      %v487 = vsel %vm350, %v298, %v340
      %v489 = vrot.slane %v487, 2
      %v490 = vsel %vm354, %v298, %v340
      %v492 = vrot.slane %v490, 3
      %v495 = vsel %vm342, %v299, %v341
      %v496 = vld [vmem:[%s1] sm:$0xf]
      %v497 = vld [vmem:[%s1 + $0x4] sm:$0xf]
      %v498 = vld [vmem:[%s1 + $0x8] sm:$0xf]
      %v499 = vld [vmem:[%s1 + $0xc] sm:$0xf]
      %v500 = vld [vmem:[%s1 + $0x10] sm:$0xf]
      %v501 = vld [vmem:[%s1 + $0x14] sm:$0xf]
      %v502 = vld [vmem:[%s1 + $0x18] sm:$0xf]
      %v503 = vld [vmem:[%s1 + $0x1c] sm:$0xf]
      %v504 = vld [vmem:[%s1 + $0x20] sm:$0xf]
      %v505 = vld [vmem:[%s1 + $0x24] sm:$0xf]
      %v506 = vld [vmem:[%s1 + $0x28] sm:$0xf]
      %v507 = vld [vmem:[%s1 + $0x2c] sm:$0xf]
      %v508 = vld [vmem:[%s1 + $0x30] sm:$0xf]
      %v509 = vld [vmem:[%s1 + $0x34] sm:$0xf]
      %v510 = vld [vmem:[%s1 + $0x38] sm:$0xf]
      %v511 = vld [vmem:[%s1 + $0x3c] sm:$0xf]
      %v512 = vld [vmem:[%s1 + $0x40] sm:$0xf]
      %v513 = vld [vmem:[%s1 + $0x44] sm:$0xf]
      %v514 = vld [vmem:[%s1 + $0x48] sm:$0xf]
      %v515 = vld [vmem:[%s1 + $0x4c] sm:$0xf]
      %v516 = vld [vmem:[%s1 + $0x50] sm:$0xf]
      %v517 = vld [vmem:[%s1 + $0x54] sm:$0xf]
      %v518 = vld [vmem:[%s1 + $0x58] sm:$0xf]
      %v519 = vld [vmem:[%s1 + $0x5c] sm:$0xf]
      %v520 = vld [vmem:[%s1 + $0x60] sm:$0xf]
      %v521 = vld [vmem:[%s1 + $0x64] sm:$0xf]
      %v522 = vld [vmem:[%s1 + $0x68] sm:$0xf]
      %v523 = vld [vmem:[%s1 + $0x6c] sm:$0xf]
      %v524 = vld [vmem:[%s1 + $0x70] sm:$0xf]
      %v525 = vld [vmem:[%s1 + $0x74] sm:$0xf]
      %v526 = vld [vmem:[%s1 + $0x78] sm:$0xf]
      %v527 = vld [vmem:[%s1 + $0x7c] sm:$0xf]
      %v528 = vsel %vm346, %v281, %v323
      %v530 = vrot.slane %v528, 1
      %v531 = vsel %vm346, %v283, %v325
      %v533 = vrot.slane %v531, 1
      %v534 = vsel %vm346, %v285, %v327
      %v536 = vrot.slane %v534, 1
      %v537 = vsel %vm346, %v287, %v329
      %v539 = vrot.slane %v537, 1
      %v540 = vsel %vm346, %v289, %v331
      %v542 = vrot.slane %v540, 1
      %v543 = vsel %vm346, %v291, %v333
      %v545 = vrot.slane %v543, 1
      %v546 = vsel %vm346, %v293, %v335
      %v548 = vrot.slane %v546, 1
      %v549 = vsel %vm346, %v295, %v337
      %v551 = vrot.slane %v549, 1
      %v552 = vsel %vm346, %v297, %v339
      %v554 = vrot.slane %v552, 1
      %v555 = vsel %vm346, %v299, %v341
      %v557 = vrot.slane %v555, 1
      %vm558 = vsmask.f32 256
      %vm559 = vsmask.f32 1284
      %vm560 = vmor %vm558, %vm559
      %vm561 = vsmask.f32 2312
      %vm562 = vmor %vm560, %vm561
      %vm563 = vsmask.f32 3340
      %vm564 = vmor %vm562, %vm563
      %vm565 = vsmask.f32 4368
      %vm566 = vmor %vm564, %vm565
      %vm567 = vsmask.f32 5396
      %vm568 = vmor %vm566, %vm567
      %vm569 = vsmask.f32 6424
      %vm570 = vmor %vm568, %vm569
      %vm571 = vsmask.f32 7452
      %vm572 = vmor %vm570, %vm571
      %v573 = vshrl.u32 %v345, 16
      %v575 = vrot.slane %v573, 7
      %v576 = vrot.slane %v575, 1
      %v578 = vshll.u32 %v349, 16
      %v580 = vsel %vm572, %v576, %v578
      %v581 = vshrl.u32 %v349, 16
      %v583 = vrot.slane %v581, 7
      %v584 = vrot.slane %v583, 1
      %v586 = vshll.u32 %v353, 16
      %v588 = vsel %vm572, %v584, %v586
      %v589 = vshrl.u32 %v353, 16
      %v591 = vrot.slane %v589, 7
      %v592 = vrot.slane %v591, 1
      %v594 = vshll.u32 %v357, 16
      %v596 = vsel %vm572, %v592, %v594
      %v597 = vshrl.u32 %v357, 16
      %v599 = vrot.slane %v597, 7
      %v600 = vrot.slane %v599, 1
      %v601 = vshll.u32 %v360, 16
      %v603 = vsel %vm572, %v600, %v601
      %v604 = vshrl.u32 %v360, 16
      %v606 = vrot.slane %v604, 7
      %v607 = vrot.slane %v606, 1
      %v609 = vshll.u32 %v530, 16
      %v611 = vsel %vm572, %v607, %v609
      %v612 = vshrl.u32 %v363, 16
      %v614 = vrot.slane %v612, 7
      %v615 = vrot.slane %v614, 1
      %v617 = vshll.u32 %v366, 16
      %v619 = vsel %vm572, %v615, %v617
      %v620 = vshrl.u32 %v366, 16
      %v622 = vrot.slane %v620, 7
      %v623 = vrot.slane %v622, 1
      %v625 = vshll.u32 %v369, 16
      %v627 = vsel %vm572, %v623, %v625
      %v628 = vshrl.u32 %v369, 16
      %v630 = vrot.slane %v628, 7
      %v631 = vrot.slane %v630, 1
      %v633 = vshll.u32 %v372, 16
      %v635 = vsel %vm572, %v631, %v633
      %v636 = vshrl.u32 %v372, 16
      %v638 = vrot.slane %v636, 7
      %v639 = vrot.slane %v638, 1
      %v640 = vshll.u32 %v375, 16
      %v642 = vsel %vm572, %v639, %v640
      %v643 = vshrl.u32 %v375, 16
      %v645 = vrot.slane %v643, 7
      %v646 = vrot.slane %v645, 1
      %v648 = vshll.u32 %v533, 16
      %v650 = vsel %vm572, %v646, %v648
      %v651 = vshrl.u32 %v378, 16
      %v653 = vrot.slane %v651, 7
      %v654 = vrot.slane %v653, 1
      %v656 = vshll.u32 %v381, 16
      %v658 = vsel %vm572, %v654, %v656
      %v659 = vshrl.u32 %v381, 16
      %v661 = vrot.slane %v659, 7
      %v662 = vrot.slane %v661, 1
      %v664 = vshll.u32 %v384, 16
      %v666 = vsel %vm572, %v662, %v664
      %v667 = vshrl.u32 %v384, 16
      %v669 = vrot.slane %v667, 7
      %v670 = vrot.slane %v669, 1
      %v672 = vshll.u32 %v387, 16
      %v674 = vsel %vm572, %v670, %v672
      %v675 = vshrl.u32 %v387, 16
      %v677 = vrot.slane %v675, 7
      %v678 = vrot.slane %v677, 1
      %v679 = vshll.u32 %v390, 16
      %v681 = vsel %vm572, %v678, %v679
      %v682 = vshrl.u32 %v390, 16
      %v684 = vrot.slane %v682, 7
      %v685 = vrot.slane %v684, 1
      %v687 = vshll.u32 %v536, 16
      %v689 = vsel %vm572, %v685, %v687
      %v690 = vshrl.u32 %v393, 16
      %v692 = vrot.slane %v690, 7
      %v693 = vrot.slane %v692, 1
      %v695 = vshll.u32 %v396, 16
      %v697 = vsel %vm572, %v693, %v695
      %v698 = vshrl.u32 %v396, 16
      %v700 = vrot.slane %v698, 7
      %v701 = vrot.slane %v700, 1
      %v703 = vshll.u32 %v399, 16
      %v705 = vsel %vm572, %v701, %v703
      %v706 = vshrl.u32 %v399, 16
      %v708 = vrot.slane %v706, 7
      %v709 = vrot.slane %v708, 1
      %v711 = vshll.u32 %v402, 16
      %v713 = vsel %vm572, %v709, %v711
      %v714 = vshrl.u32 %v402, 16
      %v716 = vrot.slane %v714, 7
      %v717 = vrot.slane %v716, 1
      %v718 = vshll.u32 %v405, 16
      %v720 = vsel %vm572, %v717, %v718
      %v721 = vshrl.u32 %v405, 16
      %v723 = vrot.slane %v721, 7
      %v724 = vrot.slane %v723, 1
      %v726 = vshll.u32 %v539, 16
      %v728 = vsel %vm572, %v724, %v726
      %v729 = vshrl.u32 %v408, 16
      %v731 = vrot.slane %v729, 7
      %v732 = vrot.slane %v731, 1
      %v734 = vshll.u32 %v411, 16
      %v736 = vsel %vm572, %v732, %v734
      %v737 = vshrl.u32 %v411, 16
      %v739 = vrot.slane %v737, 7
      %v740 = vrot.slane %v739, 1
      %v742 = vshll.u32 %v414, 16
      %v744 = vsel %vm572, %v740, %v742
      %v745 = vshrl.u32 %v414, 16
      %v747 = vrot.slane %v745, 7
      %v748 = vrot.slane %v747, 1
      %v750 = vshll.u32 %v417, 16
      %v752 = vsel %vm572, %v748, %v750
      %v753 = vshrl.u32 %v417, 16
      %v755 = vrot.slane %v753, 7
      %v756 = vrot.slane %v755, 1
      %v757 = vshll.u32 %v420, 16
      %v759 = vsel %vm572, %v756, %v757
      %v760 = vshrl.u32 %v420, 16
      %v762 = vrot.slane %v760, 7
      %v763 = vrot.slane %v762, 1
      %v765 = vshll.u32 %v542, 16
      %v767 = vsel %vm572, %v763, %v765
      %v768 = vshrl.u32 %v423, 16
      %v770 = vrot.slane %v768, 7
      %v771 = vrot.slane %v770, 1
      %v773 = vshll.u32 %v426, 16
      %v775 = vsel %vm572, %v771, %v773
      %v776 = vshrl.u32 %v426, 16
      %v778 = vrot.slane %v776, 7
      %v779 = vrot.slane %v778, 1
      %v781 = vshll.u32 %v429, 16
      %v783 = vsel %vm572, %v779, %v781
      %v784 = vshrl.u32 %v429, 16
      %v786 = vrot.slane %v784, 7
      %v787 = vrot.slane %v786, 1
      %v789 = vshll.u32 %v432, 16
      %v791 = vsel %vm572, %v787, %v789
      %v792 = vshrl.u32 %v432, 16
      %v794 = vrot.slane %v792, 7
      %v795 = vrot.slane %v794, 1
      %v796 = vshll.u32 %v435, 16
      %v798 = vsel %vm572, %v795, %v796
      %v799 = vshrl.u32 %v435, 16
      %v801 = vrot.slane %v799, 7
      %v802 = vrot.slane %v801, 1
      %v804 = vshll.u32 %v545, 16
      %v806 = vsel %vm572, %v802, %v804
      %v807 = vshrl.u32 %v438, 16
      %v809 = vrot.slane %v807, 7
      %v810 = vrot.slane %v809, 1
      %v812 = vshll.u32 %v441, 16
      %v814 = vsel %vm572, %v810, %v812
      %v815 = vshrl.u32 %v441, 16
      %v817 = vrot.slane %v815, 7
      %v818 = vrot.slane %v817, 1
      %v820 = vshll.u32 %v444, 16
      %v822 = vsel %vm572, %v818, %v820
      %v823 = vshrl.u32 %v444, 16
      %v825 = vrot.slane %v823, 7
      %v826 = vrot.slane %v825, 1
      %v828 = vshll.u32 %v447, 16
      %v830 = vsel %vm572, %v826, %v828
      %v831 = vshrl.u32 %v447, 16
      %v833 = vrot.slane %v831, 7
      %v834 = vrot.slane %v833, 1
      %v835 = vshll.u32 %v450, 16
      %v837 = vsel %vm572, %v834, %v835
      %v838 = vshrl.u32 %v450, 16
      %v840 = vrot.slane %v838, 7
      %v841 = vrot.slane %v840, 1
      %v843 = vshll.u32 %v548, 16
      %v845 = vsel %vm572, %v841, %v843
      %v846 = vshrl.u32 %v453, 16
      %v848 = vrot.slane %v846, 7
      %v849 = vrot.slane %v848, 1
      %v851 = vshll.u32 %v456, 16
      %v853 = vsel %vm572, %v849, %v851
      %v854 = vshrl.u32 %v456, 16
      %v856 = vrot.slane %v854, 7
      %v857 = vrot.slane %v856, 1
      %v859 = vshll.u32 %v459, 16
      %v861 = vsel %vm572, %v857, %v859
      %v862 = vshrl.u32 %v459, 16
      %v864 = vrot.slane %v862, 7
      %v865 = vrot.slane %v864, 1
      %v867 = vshll.u32 %v462, 16
      %v869 = vsel %vm572, %v865, %v867
      %v870 = vshrl.u32 %v462, 16
      %v872 = vrot.slane %v870, 7
      %v873 = vrot.slane %v872, 1
      %v874 = vshll.u32 %v465, 16
      %v876 = vsel %vm572, %v873, %v874
      %v877 = vshrl.u32 %v465, 16
      %v879 = vrot.slane %v877, 7
      %v880 = vrot.slane %v879, 1
      %v882 = vshll.u32 %v551, 16
      %v884 = vsel %vm572, %v880, %v882
      %v885 = vshrl.u32 %v468, 16
      %v887 = vrot.slane %v885, 7
      %v888 = vrot.slane %v887, 1
      %v890 = vshll.u32 %v471, 16
      %v892 = vsel %vm572, %v888, %v890
      %v893 = vshrl.u32 %v471, 16
      %v895 = vrot.slane %v893, 7
      %v896 = vrot.slane %v895, 1
      %v898 = vshll.u32 %v474, 16
      %v900 = vsel %vm572, %v896, %v898
      %v901 = vshrl.u32 %v474, 16
      %v903 = vrot.slane %v901, 7
      %v904 = vrot.slane %v903, 1
      %v906 = vshll.u32 %v477, 16
      %v908 = vsel %vm572, %v904, %v906
      %v909 = vshrl.u32 %v477, 16
      %v911 = vrot.slane %v909, 7
      %v912 = vrot.slane %v911, 1
      %v913 = vshll.u32 %v480, 16
      %v915 = vsel %vm572, %v912, %v913
      %v916 = vshrl.u32 %v480, 16
      %v918 = vrot.slane %v916, 7
      %v919 = vrot.slane %v918, 1
      %v921 = vshll.u32 %v554, 16
      %v923 = vsel %vm572, %v919, %v921
      %v924 = vshrl.u32 %v483, 16
      %v926 = vrot.slane %v924, 7
      %v927 = vrot.slane %v926, 1
      %v929 = vshll.u32 %v486, 16
      %v931 = vsel %vm572, %v927, %v929
      %v932 = vshrl.u32 %v486, 16
      %v934 = vrot.slane %v932, 7
      %v935 = vrot.slane %v934, 1
      %v937 = vshll.u32 %v489, 16
      %v939 = vsel %vm572, %v935, %v937
      %v940 = vshrl.u32 %v489, 16
      %v942 = vrot.slane %v940, 7
      %v943 = vrot.slane %v942, 1
      %v945 = vshll.u32 %v492, 16
      %v947 = vsel %vm572, %v943, %v945
      %v948 = vshrl.u32 %v492, 16
      %v950 = vrot.slane %v948, 7
      %v951 = vrot.slane %v950, 1
      %v952 = vshll.u32 %v495, 16
      %v954 = vsel %vm572, %v951, %v952
      %v955 = vshrl.u32 %v495, 16
      %v957 = vrot.slane %v955, 7
      %v958 = vrot.slane %v957, 1
      %v960 = vshll.u32 %v557, 16
      %v962 = vsel %vm572, %v958, %v960
      %s963 = scalar_lea.vmem %s1, 128
      %v964 = vld [vmem:[%s963] sm:$0xf]
      %v965 = vld [vmem:[%s963 + $0x4] sm:$0xf]
      %v966 = vld [vmem:[%s963 + $0x8] sm:$0xf]
      %v967 = vld [vmem:[%s963 + $0xc] sm:$0xf]
      %v968 = vld [vmem:[%s963 + $0x10] sm:$0xf]
      %v969 = vld [vmem:[%s963 + $0x14] sm:$0xf]
      %v970 = vld [vmem:[%s963 + $0x18] sm:$0xf]
      %v971 = vld [vmem:[%s963 + $0x1c] sm:$0xf]
      %v972 = vld [vmem:[%s963 + $0x20] sm:$0xf]
      %v973 = vld [vmem:[%s963 + $0x24] sm:$0xf]
      %v974 = vld [vmem:[%s963 + $0x28] sm:$0xf]
      %v975 = vld [vmem:[%s963 + $0x2c] sm:$0xf]
      %v976 = vld [vmem:[%s963 + $0x30] sm:$0xf]
      %v977 = vld [vmem:[%s963 + $0x34] sm:$0xf]
      %v978 = vld [vmem:[%s963 + $0x38] sm:$0xf]
      %v979 = vld [vmem:[%s963 + $0x3c] sm:$0xf]
      %v980 = vld [vmem:[%s963 + $0x40] sm:$0xf]
      %v981 = vld [vmem:[%s963 + $0x44] sm:$0xf]
      %v982 = vld [vmem:[%s963 + $0x48] sm:$0xf]
      %v983 = vld [vmem:[%s963 + $0x4c] sm:$0xf]
      %v984 = vld [vmem:[%s963 + $0x50] sm:$0xf]
      %v985 = vld [vmem:[%s963 + $0x54] sm:$0xf]
      %v986 = vld [vmem:[%s963 + $0x58] sm:$0xf]
      %v987 = vld [vmem:[%s963 + $0x5c] sm:$0xf]
      %v988 = vld [vmem:[%s963 + $0x60] sm:$0xf]
      %v989 = vld [vmem:[%s963 + $0x64] sm:$0xf]
      %v990 = vld [vmem:[%s963 + $0x68] sm:$0xf]
      %v991 = vld [vmem:[%s963 + $0x6c] sm:$0xf]
      %v992 = vld [vmem:[%s963 + $0x70] sm:$0xf]
      %v993 = vld [vmem:[%s963 + $0x74] sm:$0xf]
      %v994 = vld [vmem:[%s963 + $0x78] sm:$0xf]
      %v995 = vld [vmem:[%s963 + $0x7c] sm:$0xf]
      %997 = vst [vmem:[#allocation1] ss:$9 sm:$0xff] %v580
      %s999 = scalar_lea.vmem [#allocation1], 1
      %1000 = vst [vmem:[%s999] ss:$9 sm:$0xff] %v588
      %s1002 = scalar_lea.vmem [#allocation1], 2
      %1003 = vst [vmem:[%s1002] ss:$9 sm:$0xff] %v596
      %s1005 = scalar_lea.vmem [#allocation1], 3
      %1006 = vst [vmem:[%s1005] ss:$9 sm:$0xff] %v603
      %s1008 = scalar_lea.vmem [#allocation1], 4
      %1009 = vst [vmem:[%s1008] ss:$9 sm:$0xff] %v611
      %s1011 = scalar_lea.vmem [#allocation1], 5
      %1012 = vst [vmem:[%s1011] ss:$9 sm:$0xff] %v619
      %s1014 = scalar_lea.vmem [#allocation1], 6
      %1015 = vst [vmem:[%s1014] ss:$9 sm:$0xff] %v627
      %s1017 = scalar_lea.vmem [#allocation1], 7
      %1018 = vst [vmem:[%s1017] ss:$9 sm:$0xff] %v635
      %v1019 = vld [vmem:[#allocation1] sm:$0xff]
      %v1020 = vld [vmem:[#allocation1 + $0x9] sm:$0xff]
      %1022 = vst [vmem:[#allocation1] ss:$9 sm:$0xff] %v642
      %1024 = vst [vmem:[%s999] ss:$9 sm:$0xff] %v650
      %1026 = vst [vmem:[%s1002] ss:$9 sm:$0xff] %v658
      %1028 = vst [vmem:[%s1005] ss:$9 sm:$0xff] %v666
      %1030 = vst [vmem:[%s1008] ss:$9 sm:$0xff] %v674
      %1032 = vst [vmem:[%s1011] ss:$9 sm:$0xff] %v681
      %1034 = vst [vmem:[%s1014] ss:$9 sm:$0xff] %v689
      %1036 = vst [vmem:[%s1017] ss:$9 sm:$0xff] %v697
      %v1037 = vld [vmem:[#allocation1] sm:$0xff]
      %v1038 = vld [vmem:[#allocation1 + $0x9] sm:$0xff]
      %1040 = vst [vmem:[#allocation1] ss:$9 sm:$0xff] %v705
      %1042 = vst [vmem:[%s999] ss:$9 sm:$0xff] %v713
      %1044 = vst [vmem:[%s1002] ss:$9 sm:$0xff] %v720
      %1046 = vst [vmem:[%s1005] ss:$9 sm:$0xff] %v728
      %1048 = vst [vmem:[%s1008] ss:$9 sm:$0xff] %v736
      %1050 = vst [vmem:[%s1011] ss:$9 sm:$0xff] %v744
      %1052 = vst [vmem:[%s1014] ss:$9 sm:$0xff] %v752
      %1054 = vst [vmem:[%s1017] ss:$9 sm:$0xff] %v759
      %v1055 = vld [vmem:[#allocation1] sm:$0xff]
      %v1056 = vld [vmem:[#allocation1 + $0x9] sm:$0xff]
      %1058 = vst [vmem:[#allocation1] ss:$9 sm:$0xff] %v767
      %1060 = vst [vmem:[%s999] ss:$9 sm:$0xff] %v775
      %1062 = vst [vmem:[%s1002] ss:$9 sm:$0xff] %v783
      %1064 = vst [vmem:[%s1005] ss:$9 sm:$0xff] %v791
      %1066 = vst [vmem:[%s1008] ss:$9 sm:$0xff] %v798
      %1068 = vst [vmem:[%s1011] ss:$9 sm:$0xff] %v806
      %1070 = vst [vmem:[%s1014] ss:$9 sm:$0xff] %v814
      %1072 = vst [vmem:[%s1017] ss:$9 sm:$0xff] %v822
      %v1073 = vld [vmem:[#allocation1] sm:$0xff]
      %v1074 = vld [vmem:[#allocation1 + $0x9] sm:$0xff]
      %1076 = vst [vmem:[#allocation1] ss:$9 sm:$0xff] %v830
      %1078 = vst [vmem:[%s999] ss:$9 sm:$0xff] %v837
      %1080 = vst [vmem:[%s1002] ss:$9 sm:$0xff] %v845
      %1082 = vst [vmem:[%s1005] ss:$9 sm:$0xff] %v853
      %1084 = vst [vmem:[%s1008] ss:$9 sm:$0xff] %v861
      %1086 = vst [vmem:[%s1011] ss:$9 sm:$0xff] %v869
      %1088 = vst [vmem:[%s1014] ss:$9 sm:$0xff] %v876
      %1090 = vst [vmem:[%s1017] ss:$9 sm:$0xff] %v884
      %v1091 = vld [vmem:[#allocation1] sm:$0xff]
      %v1092 = vld [vmem:[#allocation1 + $0x9] sm:$0xff]
      %1094 = vst [vmem:[#allocation1] ss:$9 sm:$0xff] %v892
      %1096 = vst [vmem:[%s999] ss:$9 sm:$0xff] %v900
      %1098 = vst [vmem:[%s1002] ss:$9 sm:$0xff] %v908
      %1100 = vst [vmem:[%s1005] ss:$9 sm:$0xff] %v915
      %1102 = vst [vmem:[%s1008] ss:$9 sm:$0xff] %v923
      %1104 = vst [vmem:[%s1011] ss:$9 sm:$0xff] %v931
      %1106 = vst [vmem:[%s1014] ss:$9 sm:$0xff] %v939
      %1108 = vst [vmem:[%s1017] ss:$9 sm:$0xff] %v947
      %v1109 = vld [vmem:[#allocation1] sm:$0xff]
      %v1110 = vld [vmem:[#allocation1 + $0x9] sm:$0xff]
      %1112 = vst [vmem:[#allocation1] ss:$9 sm:$0xff] %v954
      %1114 = vst [vmem:[%s999] ss:$9 sm:$0xff] %v962
      %v1115 = vld [vmem:[#allocation1] sm:$0xff]
      %v1116 = vld [vmem:[#allocation1 + $0x9] sm:$0xff]
      %v1163 = vunpack.c.l.b16 %v964
      %v1164 = vunpack.c.l.b16 %v965
      %v1165 = vunpack.c.l.b16 %v966
      %v1166 = vunpack.c.l.b16 %v967
      %v1167 = vunpack.c.l.b16 %v968
      %v1168 = vunpack.c.l.b16 %v969
      %v1169 = vunpack.c.l.b16 %v970
      %v1170 = vunpack.c.l.b16 %v971
      %v1171 = vunpack.c.l.b16 %v972
      %v1172 = vunpack.c.l.b16 %v973
      %v1173 = vunpack.c.l.b16 %v974
      %v1174 = vunpack.c.l.b16 %v975
      %v1175 = vunpack.c.l.b16 %v976
      %v1176 = vunpack.c.l.b16 %v977
      %v1177 = vunpack.c.l.b16 %v978
      %v1178 = vunpack.c.l.b16 %v979
      %v1179 = vunpack.c.l.b16 %v980
      %v1180 = vunpack.c.l.b16 %v981
      %v1181 = vunpack.c.l.b16 %v982
      %v1182 = vunpack.c.l.b16 %v983
      %v1183 = vunpack.c.l.b16 %v984
      %v1184 = vunpack.c.l.b16 %v985
      %v1185 = vunpack.c.l.b16 %v986
      %v1186 = vunpack.c.l.b16 %v987
      %v1187 = vunpack.c.l.b16 %v988
      %v1188 = vunpack.c.l.b16 %v989
      %v1189 = vunpack.c.l.b16 %v990
      %v1190 = vunpack.c.l.b16 %v991
      %v1191 = vunpack.c.l.b16 %v992
      %v1192 = vunpack.c.l.b16 %v993
      %v1193 = vunpack.c.l.b16 %v994
      %v1194 = vunpack.c.l.b16 %v995
      %v1195 = vpack.c.b16 %v1164, %v1163
      %v1196 = vpack.c.b16 %v1166, %v1165
      %v1197 = vpack.c.b16 %v1168, %v1167
      %v1198 = vpack.c.b16 %v1170, %v1169
      %v1199 = vpack.c.b16 %v1172, %v1171
      %v1200 = vpack.c.b16 %v1174, %v1173
      %v1201 = vpack.c.b16 %v1176, %v1175
      %v1202 = vpack.c.b16 %v1178, %v1177
      %v1203 = vpack.c.b16 %v1180, %v1179
      %v1204 = vpack.c.b16 %v1182, %v1181
      %v1205 = vpack.c.b16 %v1184, %v1183
      %v1206 = vpack.c.b16 %v1186, %v1185
      %v1207 = vpack.c.b16 %v1188, %v1187
      %v1208 = vpack.c.b16 %v1190, %v1189
      %v1209 = vpack.c.b16 %v1192, %v1191
      %v1210 = vpack.c.b16 %v1194, %v1193
      %1227 = vmatpush.bf16.msra.mxu0 %v1202
      %1228 = vmatpush.bf16.msra.mxu0 %v1201
      %1229 = vmatpush.bf16.msra.mxu0 %v1200
      %1230 = vmatpush.bf16.msra.mxu0 %v1199
      %1231 = vmatpush.bf16.msra.mxu0 %v1198
      %1232 = vmatpush.bf16.msra.mxu0 %v1197
      %1233 = vmatpush.bf16.msra.mxu0 %v1196
      %1234 = vmatpush.bf16.msra.mxu0 %v1195
      %1235 = vmatmul.bf16.gmra.mxu0 %v1019
      %v1236 = vpop.f32.mrf.mxu0
      %v1237 = vadd.f32 0.0, %v1236
      %v1238 = vpop.f32.mrf.mxu0
      %v1239 = vadd.f32 0.0, %v1238
      %1240 = vmatmul.bf16.gmra.mxu0 %v1037
      %v1241 = vpop.f32.mrf.mxu0
      %v1242 = vadd.f32 0.0, %v1241
      %v1243 = vpop.f32.mrf.mxu0
      %v1244 = vadd.f32 0.0, %v1243
      %1245 = vmatmul.bf16.gmra.mxu0 %v1055
      %v1246 = vpop.f32.mrf.mxu0
      %v1247 = vadd.f32 0.0, %v1246
      %v1248 = vpop.f32.mrf.mxu0
      %v1249 = vadd.f32 0.0, %v1248
      %1250 = vmatmul.bf16.gmra.mxu0 %v1073
      %v1251 = vpop.f32.mrf.mxu0
      %v1252 = vadd.f32 0.0, %v1251
      %v1253 = vpop.f32.mrf.mxu0
      %v1254 = vadd.f32 0.0, %v1253
      %1255 = vmatmul.bf16.gmra.mxu0 %v1091
      %v1256 = vpop.f32.mrf.mxu0
      %v1257 = vadd.f32 0.0, %v1256
      %v1258 = vpop.f32.mrf.mxu0
      %v1259 = vadd.f32 0.0, %v1258
      %1260 = vmatmul.bf16.gmra.mxu0 %v1109
      %v1261 = vpop.f32.mrf.mxu0
      %v1262 = vadd.f32 0.0, %v1261
      %v1263 = vpop.f32.mrf.mxu0
      %v1264 = vadd.f32 0.0, %v1263
      %1265 = vmatmul.bf16.gmra.mxu0 %v1115
      %v1266 = vpop.f32.mrf.mxu0
      %v1267 = vadd.f32 0.0, %v1266
      %v1268 = vpop.f32.mrf.mxu0
      %1269 = vdwg.mxu0
      %1270 = vmatpush.bf16.msra.mxu0 %v1210
      %1271 = vmatpush.bf16.msra.mxu0 %v1209
      %1272 = vmatpush.bf16.msra.mxu0 %v1208
      %1273 = vmatpush.bf16.msra.mxu0 %v1207
      %1274 = vmatpush.bf16.msra.mxu0 %v1206
      %1275 = vmatpush.bf16.msra.mxu0 %v1205
      %1276 = vmatpush.bf16.msra.mxu0 %v1204
      %1277 = vmatpush.bf16.msra.mxu0 %v1203
      %1278 = vmatmul.bf16.gmra.mxu0 %v1020
      %v1279 = vpop.f32.mrf.mxu0
      %v1280 = vadd.f32 %v1237, %v1279
      %v1281 = vpop.f32.mrf.mxu0
      %v1282 = vadd.f32 %v1239, %v1281
      %1283 = vmatmul.bf16.gmra.mxu0 %v1038
      %v1284 = vpop.f32.mrf.mxu0
      %v1285 = vadd.f32 %v1242, %v1284
      %v1286 = vpop.f32.mrf.mxu0
      %v1287 = vadd.f32 %v1244, %v1286
      %1288 = vmatmul.bf16.gmra.mxu0 %v1056
      %v1289 = vpop.f32.mrf.mxu0
      %v1290 = vadd.f32 %v1247, %v1289
      %v1291 = vpop.f32.mrf.mxu0
      %v1292 = vadd.f32 %v1249, %v1291
      %1293 = vmatmul.bf16.gmra.mxu0 %v1074
      %v1294 = vpop.f32.mrf.mxu0
      %v1295 = vadd.f32 %v1252, %v1294
      %v1296 = vpop.f32.mrf.mxu0
      %v1297 = vadd.f32 %v1254, %v1296
      %1298 = vmatmul.bf16.gmra.mxu0 %v1092
      %v1299 = vpop.f32.mrf.mxu0
      %v1300 = vadd.f32 %v1257, %v1299
      %v1301 = vpop.f32.mrf.mxu0
      %v1302 = vadd.f32 %v1259, %v1301
      %1303 = vmatmul.bf16.gmra.mxu0 %v1110
      %v1304 = vpop.f32.mrf.mxu0
      %v1305 = vadd.f32 %v1262, %v1304
      %v1306 = vpop.f32.mrf.mxu0
      %v1307 = vadd.f32 %v1264, %v1306
      %1308 = vmatmul.bf16.gmra.mxu0 %v1116
      %v1309 = vpop.f32.mrf.mxu0
      %v1310 = vadd.f32 %v1267, %v1309
      %v1311 = vpop.f32.mrf.mxu0
      %1312 = vdwg.mxu0
      %1313 = vst [vmem:[#allocation1] ss:$9 sm:$0xff] %v345
      %s1314 = scalar_lea.vmem [#allocation1], 1
      %1315 = vst [vmem:[%s1314] ss:$9 sm:$0xff] %v349
      %s1316 = scalar_lea.vmem [#allocation1], 2
      %1317 = vst [vmem:[%s1316] ss:$9 sm:$0xff] %v353
      %s1318 = scalar_lea.vmem [#allocation1], 3
      %1319 = vst [vmem:[%s1318] ss:$9 sm:$0xff] %v357
      %s1320 = scalar_lea.vmem [#allocation1], 4
      %1321 = vst [vmem:[%s1320] ss:$9 sm:$0xff] %v360
      %s1322 = scalar_lea.vmem [#allocation1], 5
      %1323 = vst [vmem:[%s1322] ss:$9 sm:$0xff] %v363
      %s1324 = scalar_lea.vmem [#allocation1], 6
      %1325 = vst [vmem:[%s1324] ss:$9 sm:$0xff] %v366
      %s1326 = scalar_lea.vmem [#allocation1], 7
      %1327 = vst [vmem:[%s1326] ss:$9 sm:$0xff] %v369
      %v1328 = vld [vmem:[#allocation1] sm:$0xff]
      %v1329 = vld [vmem:[#allocation1 + $0x9] sm:$0xff]
      %1330 = vst [vmem:[#allocation1] ss:$9 sm:$0xff] %v372
      %1331 = vst [vmem:[%s1314] ss:$9 sm:$0xff] %v375
      %1332 = vst [vmem:[%s1316] ss:$9 sm:$0xff] %v378
      %1333 = vst [vmem:[%s1318] ss:$9 sm:$0xff] %v381
      %1334 = vst [vmem:[%s1320] ss:$9 sm:$0xff] %v384
      %1335 = vst [vmem:[%s1322] ss:$9 sm:$0xff] %v387
      %1336 = vst [vmem:[%s1324] ss:$9 sm:$0xff] %v390
      %1337 = vst [vmem:[%s1326] ss:$9 sm:$0xff] %v393
      %v1338 = vld [vmem:[#allocation1] sm:$0xff]
      %v1339 = vld [vmem:[#allocation1 + $0x9] sm:$0xff]
      %1340 = vst [vmem:[#allocation1] ss:$9 sm:$0xff] %v396
      %1341 = vst [vmem:[%s1314] ss:$9 sm:$0xff] %v399
      %1342 = vst [vmem:[%s1316] ss:$9 sm:$0xff] %v402
      %1343 = vst [vmem:[%s1318] ss:$9 sm:$0xff] %v405
      %1344 = vst [vmem:[%s1320] ss:$9 sm:$0xff] %v408
      %1345 = vst [vmem:[%s1322] ss:$9 sm:$0xff] %v411
      %1346 = vst [vmem:[%s1324] ss:$9 sm:$0xff] %v414
      %1347 = vst [vmem:[%s1326] ss:$9 sm:$0xff] %v417
      %v1348 = vld [vmem:[#allocation1] sm:$0xff]
      %v1349 = vld [vmem:[#allocation1 + $0x9] sm:$0xff]
      %1350 = vst [vmem:[#allocation1] ss:$9 sm:$0xff] %v420
      %1351 = vst [vmem:[%s1314] ss:$9 sm:$0xff] %v423
      %1352 = vst [vmem:[%s1316] ss:$9 sm:$0xff] %v426
      %1353 = vst [vmem:[%s1318] ss:$9 sm:$0xff] %v429
      %1354 = vst [vmem:[%s1320] ss:$9 sm:$0xff] %v432
      %1355 = vst [vmem:[%s1322] ss:$9 sm:$0xff] %v435
      %1356 = vst [vmem:[%s1324] ss:$9 sm:$0xff] %v438
      %1357 = vst [vmem:[%s1326] ss:$9 sm:$0xff] %v441
      %v1358 = vld [vmem:[#allocation1] sm:$0xff]
      %v1359 = vld [vmem:[#allocation1 + $0x9] sm:$0xff]
      %1360 = vst [vmem:[#allocation1] ss:$9 sm:$0xff] %v444
      %1361 = vst [vmem:[%s1314] ss:$9 sm:$0xff] %v447
      %1362 = vst [vmem:[%s1316] ss:$9 sm:$0xff] %v450
      %1363 = vst [vmem:[%s1318] ss:$9 sm:$0xff] %v453
      %1364 = vst [vmem:[%s1320] ss:$9 sm:$0xff] %v456
      %1365 = vst [vmem:[%s1322] ss:$9 sm:$0xff] %v459
      %1366 = vst [vmem:[%s1324] ss:$9 sm:$0xff] %v462
      %1367 = vst [vmem:[%s1326] ss:$9 sm:$0xff] %v465
      %v1368 = vld [vmem:[#allocation1] sm:$0xff]
      %v1369 = vld [vmem:[#allocation1 + $0x9] sm:$0xff]
      %1370 = vst [vmem:[#allocation1] ss:$9 sm:$0xff] %v468
      %1371 = vst [vmem:[%s1314] ss:$9 sm:$0xff] %v471
      %1372 = vst [vmem:[%s1316] ss:$9 sm:$0xff] %v474
      %1373 = vst [vmem:[%s1318] ss:$9 sm:$0xff] %v477
      %1374 = vst [vmem:[%s1320] ss:$9 sm:$0xff] %v480
      %1375 = vst [vmem:[%s1322] ss:$9 sm:$0xff] %v483
      %1376 = vst [vmem:[%s1324] ss:$9 sm:$0xff] %v486
      %1377 = vst [vmem:[%s1326] ss:$9 sm:$0xff] %v489
      %v1378 = vld [vmem:[#allocation1] sm:$0xff]
      %v1379 = vld [vmem:[#allocation1 + $0x9] sm:$0xff]
      %1380 = vst [vmem:[#allocation1] ss:$9 sm:$0xff] %v492
      %1381 = vst [vmem:[%s1314] ss:$9 sm:$0xff] %v495
      %v1382 = vld [vmem:[#allocation1] sm:$0xff]
      %v1383 = vld [vmem:[#allocation1 + $0x9] sm:$0xff]
      %v1430 = vunpack.c.l.b16 %v496
      %v1431 = vunpack.c.l.b16 %v497
      %v1432 = vunpack.c.l.b16 %v498
      %v1433 = vunpack.c.l.b16 %v499
      %v1434 = vunpack.c.l.b16 %v500
      %v1435 = vunpack.c.l.b16 %v501
      %v1436 = vunpack.c.l.b16 %v502
      %v1437 = vunpack.c.l.b16 %v503
      %v1438 = vunpack.c.l.b16 %v504
      %v1439 = vunpack.c.l.b16 %v505
      %v1440 = vunpack.c.l.b16 %v506
      %v1441 = vunpack.c.l.b16 %v507
      %v1442 = vunpack.c.l.b16 %v508
      %v1443 = vunpack.c.l.b16 %v509
      %v1444 = vunpack.c.l.b16 %v510
      %v1445 = vunpack.c.l.b16 %v511
      %v1446 = vunpack.c.l.b16 %v512
      %v1447 = vunpack.c.l.b16 %v513
      %v1448 = vunpack.c.l.b16 %v514
      %v1449 = vunpack.c.l.b16 %v515
      %v1450 = vunpack.c.l.b16 %v516
      %v1451 = vunpack.c.l.b16 %v517
      %v1452 = vunpack.c.l.b16 %v518
      %v1453 = vunpack.c.l.b16 %v519
      %v1454 = vunpack.c.l.b16 %v520
      %v1455 = vunpack.c.l.b16 %v521
      %v1456 = vunpack.c.l.b16 %v522
      %v1457 = vunpack.c.l.b16 %v523
      %v1458 = vunpack.c.l.b16 %v524
      %v1459 = vunpack.c.l.b16 %v525
      %v1460 = vunpack.c.l.b16 %v526
      %v1461 = vunpack.c.l.b16 %v527
      %v1462 = vpack.c.b16 %v1431, %v1430
      %v1463 = vpack.c.b16 %v1433, %v1432
      %v1464 = vpack.c.b16 %v1435, %v1434
      %v1465 = vpack.c.b16 %v1437, %v1436
      %v1466 = vpack.c.b16 %v1439, %v1438
      %v1467 = vpack.c.b16 %v1441, %v1440
      %v1468 = vpack.c.b16 %v1443, %v1442
      %v1469 = vpack.c.b16 %v1445, %v1444
      %v1470 = vpack.c.b16 %v1447, %v1446
      %v1471 = vpack.c.b16 %v1449, %v1448
      %v1472 = vpack.c.b16 %v1451, %v1450
      %v1473 = vpack.c.b16 %v1453, %v1452
      %v1474 = vpack.c.b16 %v1455, %v1454
      %v1475 = vpack.c.b16 %v1457, %v1456
      %v1476 = vpack.c.b16 %v1459, %v1458
      %v1477 = vpack.c.b16 %v1461, %v1460
      %1494 = vmatpush.bf16.msra.mxu0 %v1469
      %1495 = vmatpush.bf16.msra.mxu0 %v1468
      %1496 = vmatpush.bf16.msra.mxu0 %v1467
      %1497 = vmatpush.bf16.msra.mxu0 %v1466
      %1498 = vmatpush.bf16.msra.mxu0 %v1465
      %1499 = vmatpush.bf16.msra.mxu0 %v1464
      %1500 = vmatpush.bf16.msra.mxu0 %v1463
      %1501 = vmatpush.bf16.msra.mxu0 %v1462
      %1502 = vmatmul.bf16.gmra.mxu0 %v1328
      %v1503 = vpop.f32.mrf.mxu0
      %v1504 = vadd.f32 %v1280, %v1503
      %v1505 = vpop.f32.mrf.mxu0
      %v1506 = vadd.f32 %v1282, %v1505
      %1507 = vmatmul.bf16.gmra.mxu0 %v1338
      %v1508 = vpop.f32.mrf.mxu0
      %v1509 = vadd.f32 %v1285, %v1508
      %v1510 = vpop.f32.mrf.mxu0
      %v1511 = vadd.f32 %v1287, %v1510
      %1512 = vmatmul.bf16.gmra.mxu0 %v1348
      %v1513 = vpop.f32.mrf.mxu0
      %v1514 = vadd.f32 %v1290, %v1513
      %v1515 = vpop.f32.mrf.mxu0
      %v1516 = vadd.f32 %v1292, %v1515
      %1517 = vmatmul.bf16.gmra.mxu0 %v1358
      %v1518 = vpop.f32.mrf.mxu0
      %v1519 = vadd.f32 %v1295, %v1518
      %v1520 = vpop.f32.mrf.mxu0
      %v1521 = vadd.f32 %v1297, %v1520
      %1522 = vmatmul.bf16.gmra.mxu0 %v1368
      %v1523 = vpop.f32.mrf.mxu0
      %v1524 = vadd.f32 %v1300, %v1523
      %v1525 = vpop.f32.mrf.mxu0
      %v1526 = vadd.f32 %v1302, %v1525
      %1527 = vmatmul.bf16.gmra.mxu0 %v1378
      %v1528 = vpop.f32.mrf.mxu0
      %v1529 = vadd.f32 %v1305, %v1528
      %v1530 = vpop.f32.mrf.mxu0
      %v1531 = vadd.f32 %v1307, %v1530
      %1532 = vmatmul.bf16.gmra.mxu0 %v1382
      %v1533 = vpop.f32.mrf.mxu0
      %v1534 = vadd.f32 %v1310, %v1533
      %v1535 = vpop.f32.mrf.mxu0
      %1536 = vdwg.mxu0
      %1537 = vmatpush.bf16.msra.mxu0 %v1477
      %1538 = vmatpush.bf16.msra.mxu0 %v1476
      %1539 = vmatpush.bf16.msra.mxu0 %v1475
      %1540 = vmatpush.bf16.msra.mxu0 %v1474
      %1541 = vmatpush.bf16.msra.mxu0 %v1473
      %1542 = vmatpush.bf16.msra.mxu0 %v1472
      %1543 = vmatpush.bf16.msra.mxu0 %v1471
      %1544 = vmatpush.bf16.msra.mxu0 %v1470
      %1545 = vmatmul.bf16.gmra.mxu0 %v1329
      %v1546 = vpop.f32.mrf.mxu0
      %v1547 = vadd.f32 %v1504, %v1546
      %v1548 = vpop.f32.mrf.mxu0
      %v1549 = vadd.f32 %v1506, %v1548
      %1550 = vmatmul.bf16.gmra.mxu0 %v1339
      %v1551 = vpop.f32.mrf.mxu0
      %v1552 = vadd.f32 %v1509, %v1551
      %v1553 = vpop.f32.mrf.mxu0
      %v1554 = vadd.f32 %v1511, %v1553
      %1555 = vmatmul.bf16.gmra.mxu0 %v1349
      %v1556 = vpop.f32.mrf.mxu0
      %v1557 = vadd.f32 %v1514, %v1556
      %v1558 = vpop.f32.mrf.mxu0
      %v1559 = vadd.f32 %v1516, %v1558
      %1560 = vmatmul.bf16.gmra.mxu0 %v1359
      %v1561 = vpop.f32.mrf.mxu0
      %v1562 = vadd.f32 %v1519, %v1561
      %v1563 = vpop.f32.mrf.mxu0
      %v1564 = vadd.f32 %v1521, %v1563
      %1565 = vmatmul.bf16.gmra.mxu0 %v1369
      %v1566 = vpop.f32.mrf.mxu0
      %v1567 = vadd.f32 %v1524, %v1566
      %v1568 = vpop.f32.mrf.mxu0
      %v1569 = vadd.f32 %v1526, %v1568
      %1570 = vmatmul.bf16.gmra.mxu0 %v1379
      %v1571 = vpop.f32.mrf.mxu0
      %v1572 = vadd.f32 %v1529, %v1571
      %v1573 = vpop.f32.mrf.mxu0
      %v1574 = vadd.f32 %v1531, %v1573
      %1575 = vmatmul.bf16.gmra.mxu0 %v1383
      %v1576 = vpop.f32.mrf.mxu0
      %v1577 = vadd.f32 %v1534, %v1576
      %v1578 = vpop.f32.mrf.mxu0
      %1579 = vdwg.mxu0
      %v1582 = vrot.slane %v300, 3
      %v1583 = vrot.slane %v301, 3
      %v1586 = vsel %vm342, %v300, %v1582
      %v1587 = vsel %vm346, %v300, %v1582
      %v1589 = vrot.slane %v1587, 1
      %v1590 = vsel %vm350, %v300, %v1582
      %v1592 = vrot.slane %v1590, 2
      %v1593 = vsel %vm354, %v300, %v1582
      %v1595 = vrot.slane %v1593, 3
      %v1598 = vsel %vm342, %v301, %v1583
      %s1599 = scalar_lea.vmem %s1, 256
      %v1600 = vld [vmem:[%s1599] sm:$0xf]
      %v1601 = vld [vmem:[%s1599 + $0x4] sm:$0xf]
      %v1602 = vld [vmem:[%s1599 + $0x8] sm:$0xf]
      %v1603 = vld [vmem:[%s1599 + $0xc] sm:$0xf]
      %v1604 = vld [vmem:[%s1599 + $0x10] sm:$0xf]
      %v1605 = vld [vmem:[%s1599 + $0x14] sm:$0xf]
      %v1606 = vld [vmem:[%s1599 + $0x18] sm:$0xf]
      %v1607 = vld [vmem:[%s1599 + $0x1c] sm:$0xf]
      %v1608 = vld [vmem:[%s1599 + $0x20] sm:$0xf]
      %v1609 = vld [vmem:[%s1599 + $0x24] sm:$0xf]
      %v1610 = vld [vmem:[%s1599 + $0x28] sm:$0xf]
      %v1611 = vld [vmem:[%s1599 + $0x2c] sm:$0xf]
      %v1612 = vld [vmem:[%s1599 + $0x30] sm:$0xf]
      %v1613 = vld [vmem:[%s1599 + $0x34] sm:$0xf]
      %v1614 = vld [vmem:[%s1599 + $0x38] sm:$0xf]
      %v1615 = vld [vmem:[%s1599 + $0x3c] sm:$0xf]
      %v1616 = vld [vmem:[%s1599 + $0x40] sm:$0xf]
      %v1617 = vld [vmem:[%s1599 + $0x44] sm:$0xf]
      %v1618 = vld [vmem:[%s1599 + $0x48] sm:$0xf]
      %v1619 = vld [vmem:[%s1599 + $0x4c] sm:$0xf]
      %v1620 = vld [vmem:[%s1599 + $0x50] sm:$0xf]
      %v1621 = vld [vmem:[%s1599 + $0x54] sm:$0xf]
      %v1622 = vld [vmem:[%s1599 + $0x58] sm:$0xf]
      %v1623 = vld [vmem:[%s1599 + $0x5c] sm:$0xf]
      %v1624 = vld [vmem:[%s1599 + $0x60] sm:$0xf]
      %v1625 = vld [vmem:[%s1599 + $0x64] sm:$0xf]
      %v1626 = vld [vmem:[%s1599 + $0x68] sm:$0xf]
      %v1627 = vld [vmem:[%s1599 + $0x6c] sm:$0xf]
      %v1628 = vld [vmem:[%s1599 + $0x70] sm:$0xf]
      %v1629 = vld [vmem:[%s1599 + $0x74] sm:$0xf]
      %v1630 = vld [vmem:[%s1599 + $0x78] sm:$0xf]
      %v1631 = vld [vmem:[%s1599 + $0x7c] sm:$0xf]
      %1632 = vst [vmem:[#allocation1] ss:$9 sm:$0xff] %v363
      %s1633 = scalar_lea.vmem [#allocation1], 1
      %1634 = vst [vmem:[%s1633] ss:$9 sm:$0xff] %v366
      %s1635 = scalar_lea.vmem [#allocation1], 2
      %1636 = vst [vmem:[%s1635] ss:$9 sm:$0xff] %v369
      %s1637 = scalar_lea.vmem [#allocation1], 3
      %1638 = vst [vmem:[%s1637] ss:$9 sm:$0xff] %v372
      %s1639 = scalar_lea.vmem [#allocation1], 4
      %1640 = vst [vmem:[%s1639] ss:$9 sm:$0xff] %v375
      %s1641 = scalar_lea.vmem [#allocation1], 5
      %1642 = vst [vmem:[%s1641] ss:$9 sm:$0xff] %v378
      %s1643 = scalar_lea.vmem [#allocation1], 6
      %1644 = vst [vmem:[%s1643] ss:$9 sm:$0xff] %v381
      %s1645 = scalar_lea.vmem [#allocation1], 7
      %1646 = vst [vmem:[%s1645] ss:$9 sm:$0xff] %v384
      %v1647 = vld [vmem:[#allocation1] sm:$0xff]
      %v1648 = vld [vmem:[#allocation1 + $0x9] sm:$0xff]
      %1649 = vst [vmem:[#allocation1] ss:$9 sm:$0xff] %v387
      %1650 = vst [vmem:[%s1633] ss:$9 sm:$0xff] %v390
      %1651 = vst [vmem:[%s1635] ss:$9 sm:$0xff] %v393
      %1652 = vst [vmem:[%s1637] ss:$9 sm:$0xff] %v396
      %1653 = vst [vmem:[%s1639] ss:$9 sm:$0xff] %v399
      %1654 = vst [vmem:[%s1641] ss:$9 sm:$0xff] %v402
      %1655 = vst [vmem:[%s1643] ss:$9 sm:$0xff] %v405
      %1656 = vst [vmem:[%s1645] ss:$9 sm:$0xff] %v408
      %v1657 = vld [vmem:[#allocation1] sm:$0xff]
      %v1658 = vld [vmem:[#allocation1 + $0x9] sm:$0xff]
      %1659 = vst [vmem:[#allocation1] ss:$9 sm:$0xff] %v411
      %1660 = vst [vmem:[%s1633] ss:$9 sm:$0xff] %v414
      %1661 = vst [vmem:[%s1635] ss:$9 sm:$0xff] %v417
      %1662 = vst [vmem:[%s1637] ss:$9 sm:$0xff] %v420
      %1663 = vst [vmem:[%s1639] ss:$9 sm:$0xff] %v423
      %1664 = vst [vmem:[%s1641] ss:$9 sm:$0xff] %v426
      %1665 = vst [vmem:[%s1643] ss:$9 sm:$0xff] %v429
      %1666 = vst [vmem:[%s1645] ss:$9 sm:$0xff] %v432
      %v1667 = vld [vmem:[#allocation1] sm:$0xff]
      %v1668 = vld [vmem:[#allocation1 + $0x9] sm:$0xff]
      %1669 = vst [vmem:[#allocation1] ss:$9 sm:$0xff] %v435
      %1670 = vst [vmem:[%s1633] ss:$9 sm:$0xff] %v438
      %1671 = vst [vmem:[%s1635] ss:$9 sm:$0xff] %v441
      %1672 = vst [vmem:[%s1637] ss:$9 sm:$0xff] %v444
      %1673 = vst [vmem:[%s1639] ss:$9 sm:$0xff] %v447
      %1674 = vst [vmem:[%s1641] ss:$9 sm:$0xff] %v450
      %1675 = vst [vmem:[%s1643] ss:$9 sm:$0xff] %v453
      %1676 = vst [vmem:[%s1645] ss:$9 sm:$0xff] %v456
      %v1677 = vld [vmem:[#allocation1] sm:$0xff]
      %v1678 = vld [vmem:[#allocation1 + $0x9] sm:$0xff]
      %1679 = vst [vmem:[#allocation1] ss:$9 sm:$0xff] %v459
      %1680 = vst [vmem:[%s1633] ss:$9 sm:$0xff] %v462
      %1681 = vst [vmem:[%s1635] ss:$9 sm:$0xff] %v465
      %1682 = vst [vmem:[%s1637] ss:$9 sm:$0xff] %v468
      %1683 = vst [vmem:[%s1639] ss:$9 sm:$0xff] %v471
      %1684 = vst [vmem:[%s1641] ss:$9 sm:$0xff] %v474
      %1685 = vst [vmem:[%s1643] ss:$9 sm:$0xff] %v477
      %1686 = vst [vmem:[%s1645] ss:$9 sm:$0xff] %v480
      %v1687 = vld [vmem:[#allocation1] sm:$0xff]
      %v1688 = vld [vmem:[#allocation1 + $0x9] sm:$0xff]
      %1689 = vst [vmem:[#allocation1] ss:$9 sm:$0xff] %v483
      %1690 = vst [vmem:[%s1633] ss:$9 sm:$0xff] %v486
      %1691 = vst [vmem:[%s1635] ss:$9 sm:$0xff] %v489
      %1692 = vst [vmem:[%s1637] ss:$9 sm:$0xff] %v492
      %1693 = vst [vmem:[%s1639] ss:$9 sm:$0xff] %v495
      %1694 = vst [vmem:[%s1641] ss:$9 sm:$0xff] %v1586
      %1696 = vst [vmem:[%s1643] ss:$9 sm:$0xff] %v1589
      %1698 = vst [vmem:[%s1645] ss:$9 sm:$0xff] %v1592
      %v1699 = vld [vmem:[#allocation1] sm:$0xff]
      %v1700 = vld [vmem:[#allocation1 + $0x9] sm:$0xff]
      %1702 = vst [vmem:[#allocation1] ss:$9 sm:$0xff] %v1595
      %1703 = vst [vmem:[%s1633] ss:$9 sm:$0xff] %v1598
      %v1704 = vld [vmem:[#allocation1] sm:$0xff]
      %v1705 = vld [vmem:[#allocation1 + $0x9] sm:$0xff]
      %v1752 = vunpack.c.l.b16 %v1600
      %v1753 = vunpack.c.l.b16 %v1601
      %v1754 = vunpack.c.l.b16 %v1602
      %v1755 = vunpack.c.l.b16 %v1603
      %v1756 = vunpack.c.l.b16 %v1604
      %v1757 = vunpack.c.l.b16 %v1605
      %v1758 = vunpack.c.l.b16 %v1606
      %v1759 = vunpack.c.l.b16 %v1607
      %v1760 = vunpack.c.l.b16 %v1608
      %v1761 = vunpack.c.l.b16 %v1609
      %v1762 = vunpack.c.l.b16 %v1610
      %v1763 = vunpack.c.l.b16 %v1611
      %v1764 = vunpack.c.l.b16 %v1612
      %v1765 = vunpack.c.l.b16 %v1613
      %v1766 = vunpack.c.l.b16 %v1614
      %v1767 = vunpack.c.l.b16 %v1615
      %v1768 = vunpack.c.l.b16 %v1616
      %v1769 = vunpack.c.l.b16 %v1617
      %v1770 = vunpack.c.l.b16 %v1618
      %v1771 = vunpack.c.l.b16 %v1619
      %v1772 = vunpack.c.l.b16 %v1620
      %v1773 = vunpack.c.l.b16 %v1621
      %v1774 = vunpack.c.l.b16 %v1622
      %v1775 = vunpack.c.l.b16 %v1623
      %v1776 = vunpack.c.l.b16 %v1624
      %v1777 = vunpack.c.l.b16 %v1625
      %v1778 = vunpack.c.l.b16 %v1626
      %v1779 = vunpack.c.l.b16 %v1627
      %v1780 = vunpack.c.l.b16 %v1628
      %v1781 = vunpack.c.l.b16 %v1629
      %v1782 = vunpack.c.l.b16 %v1630
      %v1783 = vunpack.c.l.b16 %v1631
      %v1784 = vpack.c.b16 %v1753, %v1752
      %v1785 = vpack.c.b16 %v1755, %v1754
      %v1786 = vpack.c.b16 %v1757, %v1756
      %v1787 = vpack.c.b16 %v1759, %v1758
      %v1788 = vpack.c.b16 %v1761, %v1760
      %v1789 = vpack.c.b16 %v1763, %v1762
      %v1790 = vpack.c.b16 %v1765, %v1764
      %v1791 = vpack.c.b16 %v1767, %v1766
      %v1792 = vpack.c.b16 %v1769, %v1768
      %v1793 = vpack.c.b16 %v1771, %v1770
      %v1794 = vpack.c.b16 %v1773, %v1772
      %v1795 = vpack.c.b16 %v1775, %v1774
      %v1796 = vpack.c.b16 %v1777, %v1776
      %v1797 = vpack.c.b16 %v1779, %v1778
      %v1798 = vpack.c.b16 %v1781, %v1780
      %v1799 = vpack.c.b16 %v1783, %v1782
      %1816 = vmatpush.bf16.msra.mxu0 %v1791
      %1817 = vmatpush.bf16.msra.mxu0 %v1790
      %1818 = vmatpush.bf16.msra.mxu0 %v1789
      %1819 = vmatpush.bf16.msra.mxu0 %v1788
      %1820 = vmatpush.bf16.msra.mxu0 %v1787
      %1821 = vmatpush.bf16.msra.mxu0 %v1786
      %1822 = vmatpush.bf16.msra.mxu0 %v1785
      %1823 = vmatpush.bf16.msra.mxu0 %v1784
      %1824 = vmatmul.bf16.gmra.mxu0 %v1647
      %v1825 = vpop.f32.mrf.mxu0
      %v1826 = vadd.f32 0.0, %v1825
      %v1827 = vpop.f32.mrf.mxu0
      %v1828 = vadd.f32 0.0, %v1827
      %1829 = vmatmul.bf16.gmra.mxu0 %v1657
      %v1830 = vpop.f32.mrf.mxu0
      %v1831 = vadd.f32 0.0, %v1830
      %v1832 = vpop.f32.mrf.mxu0
      %v1833 = vadd.f32 0.0, %v1832
      %1834 = vmatmul.bf16.gmra.mxu0 %v1667
      %v1835 = vpop.f32.mrf.mxu0
      %v1836 = vadd.f32 0.0, %v1835
      %v1837 = vpop.f32.mrf.mxu0
      %v1838 = vadd.f32 0.0, %v1837
      %1839 = vmatmul.bf16.gmra.mxu0 %v1677
      %v1840 = vpop.f32.mrf.mxu0
      %v1841 = vadd.f32 0.0, %v1840
      %v1842 = vpop.f32.mrf.mxu0
      %v1843 = vadd.f32 0.0, %v1842
      %1844 = vmatmul.bf16.gmra.mxu0 %v1687
      %v1845 = vpop.f32.mrf.mxu0
      %v1846 = vadd.f32 0.0, %v1845
      %v1847 = vpop.f32.mrf.mxu0
      %v1848 = vadd.f32 0.0, %v1847
      %1849 = vmatmul.bf16.gmra.mxu0 %v1699
      %v1850 = vpop.f32.mrf.mxu0
      %v1851 = vadd.f32 0.0, %v1850
      %v1852 = vpop.f32.mrf.mxu0
      %v1853 = vadd.f32 0.0, %v1852
      %1854 = vmatmul.bf16.gmra.mxu0 %v1704
      %v1855 = vpop.f32.mrf.mxu0
      %v1856 = vadd.f32 0.0, %v1855
      %v1857 = vpop.f32.mrf.mxu0
      %1858 = vdwg.mxu0
      %1859 = vmatpush.bf16.msra.mxu0 %v1799
      %1860 = vmatpush.bf16.msra.mxu0 %v1798
      %1861 = vmatpush.bf16.msra.mxu0 %v1797
      %1862 = vmatpush.bf16.msra.mxu0 %v1796
      %1863 = vmatpush.bf16.msra.mxu0 %v1795
      %1864 = vmatpush.bf16.msra.mxu0 %v1794
      %1865 = vmatpush.bf16.msra.mxu0 %v1793
      %1866 = vmatpush.bf16.msra.mxu0 %v1792
      %1867 = vmatmul.bf16.gmra.mxu0 %v1648
      %v1868 = vpop.f32.mrf.mxu0
      %v1869 = vadd.f32 %v1826, %v1868
      %v1870 = vpop.f32.mrf.mxu0
      %v1871 = vadd.f32 %v1828, %v1870
      %1872 = vmatmul.bf16.gmra.mxu0 %v1658
      %v1873 = vpop.f32.mrf.mxu0
      %v1874 = vadd.f32 %v1831, %v1873
      %v1875 = vpop.f32.mrf.mxu0
      %v1876 = vadd.f32 %v1833, %v1875
      %1877 = vmatmul.bf16.gmra.mxu0 %v1668
      %v1878 = vpop.f32.mrf.mxu0
      %v1879 = vadd.f32 %v1836, %v1878
      %v1880 = vpop.f32.mrf.mxu0
      %v1881 = vadd.f32 %v1838, %v1880
      %1882 = vmatmul.bf16.gmra.mxu0 %v1678
      %v1883 = vpop.f32.mrf.mxu0
      %v1884 = vadd.f32 %v1841, %v1883
      %v1885 = vpop.f32.mrf.mxu0
      %v1886 = vadd.f32 %v1843, %v1885
      %1887 = vmatmul.bf16.gmra.mxu0 %v1688
      %v1888 = vpop.f32.mrf.mxu0
      %v1889 = vadd.f32 %v1846, %v1888
      %v1890 = vpop.f32.mrf.mxu0
      %v1891 = vadd.f32 %v1848, %v1890
      %1892 = vmatmul.bf16.gmra.mxu0 %v1700
      %v1893 = vpop.f32.mrf.mxu0
      %v1894 = vadd.f32 %v1851, %v1893
      %v1895 = vpop.f32.mrf.mxu0
      %v1896 = vadd.f32 %v1853, %v1895
      %1897 = vmatmul.bf16.gmra.mxu0 %v1705
      %v1898 = vpop.f32.mrf.mxu0
      %v1899 = vadd.f32 %v1856, %v1898
      %v1900 = vpop.f32.mrf.mxu0
      %1901 = vdwg.mxu0
      %v1902 = vadd.f32 %v1547, %v1869
      %v1903 = vadd.f32 %v1549, %v1871
      %v1904 = vadd.f32 %v1552, %v1874
      %v1905 = vadd.f32 %v1554, %v1876
      %v1906 = vadd.f32 %v1557, %v1879
      %v1907 = vadd.f32 %v1559, %v1881
      %v1908 = vadd.f32 %v1562, %v1884
      %v1909 = vadd.f32 %v1564, %v1886
      %v1910 = vadd.f32 %v1567, %v1889
      %v1911 = vadd.f32 %v1569, %v1891
      %v1912 = vadd.f32 %v1572, %v1894
      %v1913 = vadd.f32 %v1574, %v1896
      %v1914 = vadd.f32 %v1577, %v1899
      %v1915 = vsel %vm346, %v301, %v1583
      %v1917 = vrot.slane %v1915, 1
      %v1918 = vshrl.u32 %v1586, 16
      %v1920 = vrot.slane %v1918, 7
      %v1921 = vrot.slane %v1920, 1
      %v1922 = vshll.u32 %v1589, 16
      %v1924 = vsel %vm572, %v1921, %v1922
      %v1925 = vshrl.u32 %v1589, 16
      %v1927 = vrot.slane %v1925, 7
      %v1928 = vrot.slane %v1927, 1
      %v1929 = vshll.u32 %v1592, 16
      %v1931 = vsel %vm572, %v1928, %v1929
      %v1932 = vshrl.u32 %v1592, 16
      %v1934 = vrot.slane %v1932, 7
      %v1935 = vrot.slane %v1934, 1
      %v1936 = vshll.u32 %v1595, 16
      %v1938 = vsel %vm572, %v1935, %v1936
      %v1939 = vshrl.u32 %v1595, 16
      %v1941 = vrot.slane %v1939, 7
      %v1942 = vrot.slane %v1941, 1
      %v1943 = vshll.u32 %v1598, 16
      %v1945 = vsel %vm572, %v1942, %v1943
      %v1946 = vshrl.u32 %v1598, 16
      %v1948 = vrot.slane %v1946, 7
      %v1949 = vrot.slane %v1948, 1
      %v1951 = vshll.u32 %v1917, 16
      %v1953 = vsel %vm572, %v1949, %v1951
      %s1954 = scalar_lea.vmem %s1, 384
      %v1955 = vld [vmem:[%s1954] sm:$0xf]
      %v1956 = vld [vmem:[%s1954 + $0x4] sm:$0xf]
      %v1957 = vld [vmem:[%s1954 + $0x8] sm:$0xf]
      %v1958 = vld [vmem:[%s1954 + $0xc] sm:$0xf]
      %v1959 = vld [vmem:[%s1954 + $0x10] sm:$0xf]
      %v1960 = vld [vmem:[%s1954 + $0x14] sm:$0xf]
      %v1961 = vld [vmem:[%s1954 + $0x18] sm:$0xf]
      %v1962 = vld [vmem:[%s1954 + $0x1c] sm:$0xf]
      %v1963 = vld [vmem:[%s1954 + $0x20] sm:$0xf]
      %v1964 = vld [vmem:[%s1954 + $0x24] sm:$0xf]
      %v1965 = vld [vmem:[%s1954 + $0x28] sm:$0xf]
      %v1966 = vld [vmem:[%s1954 + $0x2c] sm:$0xf]
      %v1967 = vld [vmem:[%s1954 + $0x30] sm:$0xf]
      %v1968 = vld [vmem:[%s1954 + $0x34] sm:$0xf]
      %v1969 = vld [vmem:[%s1954 + $0x38] sm:$0xf]
      %v1970 = vld [vmem:[%s1954 + $0x3c] sm:$0xf]
      %v1971 = vld [vmem:[%s1954 + $0x40] sm:$0xf]
      %v1972 = vld [vmem:[%s1954 + $0x44] sm:$0xf]
      %v1973 = vld [vmem:[%s1954 + $0x48] sm:$0xf]
      %v1974 = vld [vmem:[%s1954 + $0x4c] sm:$0xf]
      %v1975 = vld [vmem:[%s1954 + $0x50] sm:$0xf]
      %v1976 = vld [vmem:[%s1954 + $0x54] sm:$0xf]
      %v1977 = vld [vmem:[%s1954 + $0x58] sm:$0xf]
      %v1978 = vld [vmem:[%s1954 + $0x5c] sm:$0xf]
      %v1979 = vld [vmem:[%s1954 + $0x60] sm:$0xf]
      %v1980 = vld [vmem:[%s1954 + $0x64] sm:$0xf]
      %v1981 = vld [vmem:[%s1954 + $0x68] sm:$0xf]
      %v1982 = vld [vmem:[%s1954 + $0x6c] sm:$0xf]
      %v1983 = vld [vmem:[%s1954 + $0x70] sm:$0xf]
      %v1984 = vld [vmem:[%s1954 + $0x74] sm:$0xf]
      %v1985 = vld [vmem:[%s1954 + $0x78] sm:$0xf]
      %v1986 = vld [vmem:[%s1954 + $0x7c] sm:$0xf]
      %1987 = vst [vmem:[#allocation1] ss:$9 sm:$0xff] %v619
      %s1988 = scalar_lea.vmem [#allocation1], 1
      %1989 = vst [vmem:[%s1988] ss:$9 sm:$0xff] %v627
      %s1990 = scalar_lea.vmem [#allocation1], 2
      %1991 = vst [vmem:[%s1990] ss:$9 sm:$0xff] %v635
      %s1992 = scalar_lea.vmem [#allocation1], 3
      %1993 = vst [vmem:[%s1992] ss:$9 sm:$0xff] %v642
      %s1994 = scalar_lea.vmem [#allocation1], 4
      %1995 = vst [vmem:[%s1994] ss:$9 sm:$0xff] %v650
      %s1996 = scalar_lea.vmem [#allocation1], 5
      %1997 = vst [vmem:[%s1996] ss:$9 sm:$0xff] %v658
      %s1998 = scalar_lea.vmem [#allocation1], 6
      %1999 = vst [vmem:[%s1998] ss:$9 sm:$0xff] %v666
      %s2000 = scalar_lea.vmem [#allocation1], 7
      %2001 = vst [vmem:[%s2000] ss:$9 sm:$0xff] %v674
      %v2002 = vld [vmem:[#allocation1] sm:$0xff]
      %v2003 = vld [vmem:[#allocation1 + $0x9] sm:$0xff]
      %2004 = vst [vmem:[#allocation1] ss:$9 sm:$0xff] %v681
      %2005 = vst [vmem:[%s1988] ss:$9 sm:$0xff] %v689
      %2006 = vst [vmem:[%s1990] ss:$9 sm:$0xff] %v697
      %2007 = vst [vmem:[%s1992] ss:$9 sm:$0xff] %v705
      %2008 = vst [vmem:[%s1994] ss:$9 sm:$0xff] %v713
      %2009 = vst [vmem:[%s1996] ss:$9 sm:$0xff] %v720
      %2010 = vst [vmem:[%s1998] ss:$9 sm:$0xff] %v728
      %2011 = vst [vmem:[%s2000] ss:$9 sm:$0xff] %v736
      %v2012 = vld [vmem:[#allocation1] sm:$0xff]
      %v2013 = vld [vmem:[#allocation1 + $0x9] sm:$0xff]
      %2014 = vst [vmem:[#allocation1] ss:$9 sm:$0xff] %v744
      %2015 = vst [vmem:[%s1988] ss:$9 sm:$0xff] %v752
      %2016 = vst [vmem:[%s1990] ss:$9 sm:$0xff] %v759
      %2017 = vst [vmem:[%s1992] ss:$9 sm:$0xff] %v767
      %2018 = vst [vmem:[%s1994] ss:$9 sm:$0xff] %v775
      %2019 = vst [vmem:[%s1996] ss:$9 sm:$0xff] %v783
      %2020 = vst [vmem:[%s1998] ss:$9 sm:$0xff] %v791
      %2021 = vst [vmem:[%s2000] ss:$9 sm:$0xff] %v798
      %v2022 = vld [vmem:[#allocation1] sm:$0xff]
      %v2023 = vld [vmem:[#allocation1 + $0x9] sm:$0xff]
      %2024 = vst [vmem:[#allocation1] ss:$9 sm:$0xff] %v806
      %2025 = vst [vmem:[%s1988] ss:$9 sm:$0xff] %v814
      %2026 = vst [vmem:[%s1990] ss:$9 sm:$0xff] %v822
      %2027 = vst [vmem:[%s1992] ss:$9 sm:$0xff] %v830
      %2028 = vst [vmem:[%s1994] ss:$9 sm:$0xff] %v837
      %2029 = vst [vmem:[%s1996] ss:$9 sm:$0xff] %v845
      %2030 = vst [vmem:[%s1998] ss:$9 sm:$0xff] %v853
      %2031 = vst [vmem:[%s2000] ss:$9 sm:$0xff] %v861
      %v2032 = vld [vmem:[#allocation1] sm:$0xff]
      %v2033 = vld [vmem:[#allocation1 + $0x9] sm:$0xff]
      %2034 = vst [vmem:[#allocation1] ss:$9 sm:$0xff] %v869
      %2035 = vst [vmem:[%s1988] ss:$9 sm:$0xff] %v876
      %2036 = vst [vmem:[%s1990] ss:$9 sm:$0xff] %v884
      %2037 = vst [vmem:[%s1992] ss:$9 sm:$0xff] %v892
      %2038 = vst [vmem:[%s1994] ss:$9 sm:$0xff] %v900
      %2039 = vst [vmem:[%s1996] ss:$9 sm:$0xff] %v908
      %2040 = vst [vmem:[%s1998] ss:$9 sm:$0xff] %v915
      %2041 = vst [vmem:[%s2000] ss:$9 sm:$0xff] %v923
      %v2042 = vld [vmem:[#allocation1] sm:$0xff]
      %v2043 = vld [vmem:[#allocation1 + $0x9] sm:$0xff]
      %2044 = vst [vmem:[#allocation1] ss:$9 sm:$0xff] %v931
      %2045 = vst [vmem:[%s1988] ss:$9 sm:$0xff] %v939
      %2046 = vst [vmem:[%s1990] ss:$9 sm:$0xff] %v947
      %2047 = vst [vmem:[%s1992] ss:$9 sm:$0xff] %v954
      %2048 = vst [vmem:[%s1994] ss:$9 sm:$0xff] %v962
      %2050 = vst [vmem:[%s1996] ss:$9 sm:$0xff] %v1924
      %2052 = vst [vmem:[%s1998] ss:$9 sm:$0xff] %v1931
      %2054 = vst [vmem:[%s2000] ss:$9 sm:$0xff] %v1938
      %v2055 = vld [vmem:[#allocation1] sm:$0xff]
      %v2056 = vld [vmem:[#allocation1 + $0x9] sm:$0xff]
      %2058 = vst [vmem:[#allocation1] ss:$9 sm:$0xff] %v1945
      %2060 = vst [vmem:[%s1988] ss:$9 sm:$0xff] %v1953
      %v2061 = vld [vmem:[#allocation1] sm:$0xff]
      %v2062 = vld [vmem:[#allocation1 + $0x9] sm:$0xff]
      %v2109 = vunpack.c.l.b16 %v1955
      %v2110 = vunpack.c.l.b16 %v1956
      %v2111 = vunpack.c.l.b16 %v1957
      %v2112 = vunpack.c.l.b16 %v1958
      %v2113 = vunpack.c.l.b16 %v1959
      %v2114 = vunpack.c.l.b16 %v1960
      %v2115 = vunpack.c.l.b16 %v1961
      %v2116 = vunpack.c.l.b16 %v1962
      %v2117 = vunpack.c.l.b16 %v1963
      %v2118 = vunpack.c.l.b16 %v1964
      %v2119 = vunpack.c.l.b16 %v1965
      %v2120 = vunpack.c.l.b16 %v1966
      %v2121 = vunpack.c.l.b16 %v1967
      %v2122 = vunpack.c.l.b16 %v1968
      %v2123 = vunpack.c.l.b16 %v1969
      %v2124 = vunpack.c.l.b16 %v1970
      %v2125 = vunpack.c.l.b16 %v1971
      %v2126 = vunpack.c.l.b16 %v1972
      %v2127 = vunpack.c.l.b16 %v1973
      %v2128 = vunpack.c.l.b16 %v1974
      %v2129 = vunpack.c.l.b16 %v1975
      %v2130 = vunpack.c.l.b16 %v1976
      %v2131 = vunpack.c.l.b16 %v1977
      %v2132 = vunpack.c.l.b16 %v1978
      %v2133 = vunpack.c.l.b16 %v1979
      %v2134 = vunpack.c.l.b16 %v1980
      %v2135 = vunpack.c.l.b16 %v1981
      %v2136 = vunpack.c.l.b16 %v1982
      %v2137 = vunpack.c.l.b16 %v1983
      %v2138 = vunpack.c.l.b16 %v1984
      %v2139 = vunpack.c.l.b16 %v1985
      %v2140 = vunpack.c.l.b16 %v1986
      %v2141 = vpack.c.b16 %v2110, %v2109
      %v2142 = vpack.c.b16 %v2112, %v2111
      %v2143 = vpack.c.b16 %v2114, %v2113
      %v2144 = vpack.c.b16 %v2116, %v2115
      %v2145 = vpack.c.b16 %v2118, %v2117
      %v2146 = vpack.c.b16 %v2120, %v2119
      %v2147 = vpack.c.b16 %v2122, %v2121
      %v2148 = vpack.c.b16 %v2124, %v2123
      %v2149 = vpack.c.b16 %v2126, %v2125
      %v2150 = vpack.c.b16 %v2128, %v2127
      %v2151 = vpack.c.b16 %v2130, %v2129
      %v2152 = vpack.c.b16 %v2132, %v2131
      %v2153 = vpack.c.b16 %v2134, %v2133
      %v2154 = vpack.c.b16 %v2136, %v2135
      %v2155 = vpack.c.b16 %v2138, %v2137
      %v2156 = vpack.c.b16 %v2140, %v2139
      %2173 = vmatpush.bf16.msra.mxu0 %v2148
      %2174 = vmatpush.bf16.msra.mxu0 %v2147
      %2175 = vmatpush.bf16.msra.mxu0 %v2146
      %2176 = vmatpush.bf16.msra.mxu0 %v2145
      %2177 = vmatpush.bf16.msra.mxu0 %v2144
      %2178 = vmatpush.bf16.msra.mxu0 %v2143
      %2179 = vmatpush.bf16.msra.mxu0 %v2142
      %2180 = vmatpush.bf16.msra.mxu0 %v2141
      %2181 = vmatmul.bf16.gmra.mxu0 %v2002
      %v2182 = vpop.f32.mrf.mxu0
      %v2183 = vadd.f32 0.0, %v2182
      %v2184 = vpop.f32.mrf.mxu0
      %v2185 = vadd.f32 0.0, %v2184
      %2186 = vmatmul.bf16.gmra.mxu0 %v2012
      %v2187 = vpop.f32.mrf.mxu0
      %v2188 = vadd.f32 0.0, %v2187
      %v2189 = vpop.f32.mrf.mxu0
      %v2190 = vadd.f32 0.0, %v2189
      %2191 = vmatmul.bf16.gmra.mxu0 %v2022
      %v2192 = vpop.f32.mrf.mxu0
      %v2193 = vadd.f32 0.0, %v2192
      %v2194 = vpop.f32.mrf.mxu0
      %v2195 = vadd.f32 0.0, %v2194
      %2196 = vmatmul.bf16.gmra.mxu0 %v2032
      %v2197 = vpop.f32.mrf.mxu0
      %v2198 = vadd.f32 0.0, %v2197
      %v2199 = vpop.f32.mrf.mxu0
      %v2200 = vadd.f32 0.0, %v2199
      %2201 = vmatmul.bf16.gmra.mxu0 %v2042
      %v2202 = vpop.f32.mrf.mxu0
      %v2203 = vadd.f32 0.0, %v2202
      %v2204 = vpop.f32.mrf.mxu0
      %v2205 = vadd.f32 0.0, %v2204
      %2206 = vmatmul.bf16.gmra.mxu0 %v2055
      %v2207 = vpop.f32.mrf.mxu0
      %v2208 = vadd.f32 0.0, %v2207
      %v2209 = vpop.f32.mrf.mxu0
      %v2210 = vadd.f32 0.0, %v2209
      %2211 = vmatmul.bf16.gmra.mxu0 %v2061
      %v2212 = vpop.f32.mrf.mxu0
      %v2213 = vadd.f32 0.0, %v2212
      %v2214 = vpop.f32.mrf.mxu0
      %2215 = vdwg.mxu0
      %2216 = vmatpush.bf16.msra.mxu0 %v2156
      %2217 = vmatpush.bf16.msra.mxu0 %v2155
      %2218 = vmatpush.bf16.msra.mxu0 %v2154
      %2219 = vmatpush.bf16.msra.mxu0 %v2153
      %2220 = vmatpush.bf16.msra.mxu0 %v2152
      %2221 = vmatpush.bf16.msra.mxu0 %v2151
      %2222 = vmatpush.bf16.msra.mxu0 %v2150
      %2223 = vmatpush.bf16.msra.mxu0 %v2149
      %2224 = vmatmul.bf16.gmra.mxu0 %v2003
      %v2225 = vpop.f32.mrf.mxu0
      %v2226 = vadd.f32 %v2183, %v2225
      %v2227 = vpop.f32.mrf.mxu0
      %v2228 = vadd.f32 %v2185, %v2227
      %2229 = vmatmul.bf16.gmra.mxu0 %v2013
      %v2230 = vpop.f32.mrf.mxu0
      %v2231 = vadd.f32 %v2188, %v2230
      %v2232 = vpop.f32.mrf.mxu0
      %v2233 = vadd.f32 %v2190, %v2232
      %2234 = vmatmul.bf16.gmra.mxu0 %v2023
      %v2235 = vpop.f32.mrf.mxu0
      %v2236 = vadd.f32 %v2193, %v2235
      %v2237 = vpop.f32.mrf.mxu0
      %v2238 = vadd.f32 %v2195, %v2237
      %2239 = vmatmul.bf16.gmra.mxu0 %v2033
      %v2240 = vpop.f32.mrf.mxu0
      %v2241 = vadd.f32 %v2198, %v2240
      %v2242 = vpop.f32.mrf.mxu0
      %v2243 = vadd.f32 %v2200, %v2242
      %2244 = vmatmul.bf16.gmra.mxu0 %v2043
      %v2245 = vpop.f32.mrf.mxu0
      %v2246 = vadd.f32 %v2203, %v2245
      %v2247 = vpop.f32.mrf.mxu0
      %v2248 = vadd.f32 %v2205, %v2247
      %2249 = vmatmul.bf16.gmra.mxu0 %v2056
      %v2250 = vpop.f32.mrf.mxu0
      %v2251 = vadd.f32 %v2208, %v2250
      %v2252 = vpop.f32.mrf.mxu0
      %v2253 = vadd.f32 %v2210, %v2252
      %2254 = vmatmul.bf16.gmra.mxu0 %v2062
      %v2255 = vpop.f32.mrf.mxu0
      %v2256 = vadd.f32 %v2213, %v2255
      %v2257 = vpop.f32.mrf.mxu0
      %2258 = vdwg.mxu0
      %v2259 = vadd.f32 %v1902, %v2226
      %v2260 = vadd.f32 %v1903, %v2228
      %v2261 = vadd.f32 %v1904, %v2231
      %v2262 = vadd.f32 %v1905, %v2233
      %v2263 = vadd.f32 %v1906, %v2236
      %v2264 = vadd.f32 %v1907, %v2238
      %v2265 = vadd.f32 %v1908, %v2241
      %v2266 = vadd.f32 %v1909, %v2243
      %v2267 = vadd.f32 %v1910, %v2246
      %v2268 = vadd.f32 %v1911, %v2248
      %v2269 = vadd.f32 %v1912, %v2251
      %v2270 = vadd.f32 %v1913, %v2253
      %v2271 = vadd.f32 %v1914, %v2256
      %v2272 = vld [vmem:[%s2] sm:$0x1]
      %v2274 = vperm.slane %v2272, 0
      %v2276 = vadd.f32 %v2259, %v2274
      %v2277 = vadd.f32 %v2260, %v2274
      %v2278 = vadd.f32 %v2261, %v2274
      %v2279 = vadd.f32 %v2262, %v2274
      %v2280 = vadd.f32 %v2263, %v2274
      %v2281 = vadd.f32 %v2264, %v2274
      %v2282 = vadd.f32 %v2265, %v2274
      %v2283 = vadd.f32 %v2266, %v2274
      %v2284 = vadd.f32 %v2267, %v2274
      %v2285 = vadd.f32 %v2268, %v2274
      %v2286 = vadd.f32 %v2269, %v2274
      %v2287 = vadd.f32 %v2270, %v2274
      %v2288 = vadd.f32 %v2271, %v2274
      %v2289 = vmax.f32 %v2276, 0.0
      %v2290 = vmax.f32 %v2277, 0.0
      %v2291 = vmax.f32 %v2278, 0.0
      %v2292 = vmax.f32 %v2279, 0.0
      %v2293 = vmax.f32 %v2280, 0.0
      %v2294 = vmax.f32 %v2281, 0.0
      %v2295 = vmax.f32 %v2282, 0.0
      %v2296 = vmax.f32 %v2283, 0.0
      %v2297 = vmax.f32 %v2284, 0.0
      %v2298 = vmax.f32 %v2285, 0.0
      %v2299 = vmax.f32 %v2286, 0.0
      %v2300 = vmax.f32 %v2287, 0.0
      %v2301 = vmax.f32 %v2288, 0.0
      %v2302 = vpack.c.bf16 %v2289, %v2289
      %v2303 = vpack.c.bf16 %v2290, %v2290
      %v2304 = vpack.c.bf16 %v2291, %v2291
      %v2305 = vpack.c.bf16 %v2292, %v2292
      %v2306 = vpack.c.bf16 %v2293, %v2293
      %v2307 = vpack.c.bf16 %v2294, %v2294
      %v2308 = vpack.c.bf16 %v2295, %v2295
      %v2309 = vpack.c.bf16 %v2296, %v2296
      %v2310 = vpack.c.bf16 %v2297, %v2297
      %v2311 = vpack.c.bf16 %v2298, %v2298
      %v2312 = vpack.c.bf16 %v2299, %v2299
      %v2313 = vpack.c.bf16 %v2300, %v2300
      %v2314 = vpack.c.bf16 %v2301, %v2301
      %v2328 = vrot.slane %v2302, 3
      %v2329 = vrot.slane %v2303, 3
      %v2330 = vrot.slane %v2304, 3
      %v2331 = vrot.slane %v2305, 3
      %v2332 = vrot.slane %v2306, 3
      %v2333 = vrot.slane %v2307, 3
      %v2334 = vrot.slane %v2308, 3
      %v2335 = vrot.slane %v2309, 3
      %v2336 = vrot.slane %v2310, 3
      %v2337 = vrot.slane %v2311, 3
      %v2338 = vrot.slane %v2312, 3
      %v2339 = vrot.slane %v2313, 3
      %v2340 = vrot.slane %v2314, 3
      %v2343 = vsel %vm342, %v2302, %v2328
      %v2345 = vsel %vm346, %v2302, %v2328
      %v2347 = vrot.slane %v2345, 1
      %v2348 = vsel %vm350, %v2302, %v2328
      %v2350 = vrot.slane %v2348, 2
      %v2351 = vsel %vm354, %v2302, %v2328
      %v2353 = vrot.slane %v2351, 3
      %v2356 = vsel %vm342, %v2303, %v2329
      %v2358 = vsel %vm346, %v2303, %v2329
      %v2360 = vrot.slane %v2358, 1
      %v2361 = vsel %vm350, %v2303, %v2329
      %v2363 = vrot.slane %v2361, 2
      %v2364 = vsel %vm354, %v2303, %v2329
      %v2366 = vrot.slane %v2364, 3
      %v2369 = vsel %vm342, %v2304, %v2330
      %v2371 = vsel %vm346, %v2304, %v2330
      %v2373 = vrot.slane %v2371, 1
      %v2374 = vsel %vm350, %v2304, %v2330
      %v2376 = vrot.slane %v2374, 2
      %v2377 = vsel %vm354, %v2304, %v2330
      %v2379 = vrot.slane %v2377, 3
      %v2382 = vsel %vm342, %v2305, %v2331
      %v2384 = vsel %vm346, %v2305, %v2331
      %v2386 = vrot.slane %v2384, 1
      %v2387 = vsel %vm350, %v2305, %v2331
      %v2389 = vrot.slane %v2387, 2
      %v2390 = vsel %vm354, %v2305, %v2331
      %v2392 = vrot.slane %v2390, 3
      %v2395 = vsel %vm342, %v2306, %v2332
      %v2397 = vsel %vm346, %v2306, %v2332
      %v2399 = vrot.slane %v2397, 1
      %v2400 = vsel %vm350, %v2306, %v2332
      %v2402 = vrot.slane %v2400, 2
      %v2403 = vsel %vm354, %v2306, %v2332
      %v2405 = vrot.slane %v2403, 3
      %v2408 = vsel %vm342, %v2307, %v2333
      %v2410 = vsel %vm346, %v2307, %v2333
      %v2412 = vrot.slane %v2410, 1
      %v2413 = vsel %vm350, %v2307, %v2333
      %v2415 = vrot.slane %v2413, 2
      %v2416 = vsel %vm354, %v2307, %v2333
      %v2418 = vrot.slane %v2416, 3
      %v2421 = vsel %vm342, %v2308, %v2334
      %v2423 = vsel %vm346, %v2308, %v2334
      %v2425 = vrot.slane %v2423, 1
      %v2426 = vsel %vm350, %v2308, %v2334
      %v2428 = vrot.slane %v2426, 2
      %v2429 = vsel %vm354, %v2308, %v2334
      %v2431 = vrot.slane %v2429, 3
      %v2434 = vsel %vm342, %v2309, %v2335
      %v2436 = vsel %vm346, %v2309, %v2335
      %v2438 = vrot.slane %v2436, 1
      %v2439 = vsel %vm350, %v2309, %v2335
      %v2441 = vrot.slane %v2439, 2
      %v2442 = vsel %vm354, %v2309, %v2335
      %v2444 = vrot.slane %v2442, 3
      %v2447 = vsel %vm342, %v2310, %v2336
      %v2449 = vsel %vm346, %v2310, %v2336
      %v2451 = vrot.slane %v2449, 1
      %v2452 = vsel %vm350, %v2310, %v2336
      %v2454 = vrot.slane %v2452, 2
      %v2455 = vsel %vm354, %v2310, %v2336
      %v2457 = vrot.slane %v2455, 3
      %v2460 = vsel %vm342, %v2311, %v2337
      %v2462 = vsel %vm346, %v2311, %v2337
      %v2464 = vrot.slane %v2462, 1
      %v2465 = vsel %vm350, %v2311, %v2337
      %v2467 = vrot.slane %v2465, 2
      %v2468 = vsel %vm354, %v2311, %v2337
      %v2470 = vrot.slane %v2468, 3
      %v2473 = vsel %vm342, %v2312, %v2338
      %v2475 = vsel %vm346, %v2312, %v2338
      %v2477 = vrot.slane %v2475, 1
      %v2478 = vsel %vm350, %v2312, %v2338
      %v2480 = vrot.slane %v2478, 2
      %v2481 = vsel %vm354, %v2312, %v2338
      %v2483 = vrot.slane %v2481, 3
      %v2486 = vsel %vm342, %v2313, %v2339
      %v2488 = vsel %vm346, %v2313, %v2339
      %v2490 = vrot.slane %v2488, 1
      %v2491 = vsel %vm350, %v2313, %v2339
      %v2493 = vrot.slane %v2491, 2
      %v2494 = vsel %vm354, %v2313, %v2339
      %v2496 = vrot.slane %v2494, 3
      %v2499 = vsel %vm342, %v2314, %v2340
      %v2501 = vsel %vm346, %v2314, %v2340
      %v2503 = vrot.slane %v2501, 1
      %v2504 = vunpack.i.l.s16 %v2343
      %v2505 = vunpack.i.h.s16 %v2343
      %v2506 = vunpack.i.l.s16 %v2347
      %v2507 = vunpack.i.h.s16 %v2347
      %v2508 = vunpack.i.l.s16 %v2350
      %v2509 = vunpack.i.h.s16 %v2350
      %v2510 = vunpack.i.l.s16 %v2353
      %v2511 = vunpack.i.h.s16 %v2353
      %v2512 = vunpack.i.l.s16 %v2356
      %v2513 = vunpack.i.l.s16 %v2360
      %v2514 = vunpack.i.h.s16 %v2360
      %v2515 = vunpack.i.l.s16 %v2363
      %v2516 = vunpack.i.h.s16 %v2363
      %v2517 = vunpack.i.l.s16 %v2366
      %v2518 = vunpack.i.h.s16 %v2366
      %v2519 = vunpack.i.l.s16 %v2369
      %v2520 = vunpack.i.h.s16 %v2369
      %v2521 = vunpack.i.l.s16 %v2373
      %v2522 = vunpack.i.l.s16 %v2376
      %v2523 = vunpack.i.h.s16 %v2376
      %v2524 = vunpack.i.l.s16 %v2379
      %v2525 = vunpack.i.h.s16 %v2379
      %v2526 = vunpack.i.l.s16 %v2382
      %v2527 = vunpack.i.h.s16 %v2382
      %v2528 = vunpack.i.l.s16 %v2386
      %v2529 = vunpack.i.h.s16 %v2386
      %v2530 = vunpack.i.l.s16 %v2389
      %v2531 = vunpack.i.l.s16 %v2392
      %v2532 = vunpack.i.h.s16 %v2392
      %v2533 = vunpack.i.l.s16 %v2395
      %v2534 = vunpack.i.h.s16 %v2395
      %v2535 = vunpack.i.l.s16 %v2399
      %v2536 = vunpack.i.h.s16 %v2399
      %v2537 = vunpack.i.l.s16 %v2402
      %v2538 = vunpack.i.h.s16 %v2402
      %v2539 = vunpack.i.l.s16 %v2405
      %v2540 = vunpack.i.l.s16 %v2408
      %v2541 = vunpack.i.h.s16 %v2408
      %v2542 = vunpack.i.l.s16 %v2412
      %v2543 = vunpack.i.h.s16 %v2412
      %v2544 = vunpack.i.l.s16 %v2415
      %v2545 = vunpack.i.h.s16 %v2415
      %v2546 = vunpack.i.l.s16 %v2418
      %v2547 = vunpack.i.h.s16 %v2418
      %v2548 = vunpack.i.l.s16 %v2421
      %v2549 = vunpack.i.l.s16 %v2425
      %v2550 = vunpack.i.h.s16 %v2425
      %v2551 = vunpack.i.l.s16 %v2428
      %v2552 = vunpack.i.h.s16 %v2428
      %v2553 = vunpack.i.l.s16 %v2431
      %v2554 = vunpack.i.h.s16 %v2431
      %v2555 = vunpack.i.l.s16 %v2434
      %v2556 = vunpack.i.h.s16 %v2434
      %v2557 = vunpack.i.l.s16 %v2438
      %v2558 = vunpack.i.l.s16 %v2441
      %v2559 = vunpack.i.h.s16 %v2441
      %v2560 = vunpack.i.l.s16 %v2444
      %v2561 = vunpack.i.h.s16 %v2444
      %v2562 = vunpack.i.l.s16 %v2447
      %v2563 = vunpack.i.h.s16 %v2447
      %v2564 = vunpack.i.l.s16 %v2451
      %v2565 = vunpack.i.h.s16 %v2451
      %v2566 = vunpack.i.l.s16 %v2454
      %v2567 = vunpack.i.l.s16 %v2457
      %v2568 = vunpack.i.h.s16 %v2457
      %v2569 = vunpack.i.l.s16 %v2460
      %v2570 = vunpack.i.h.s16 %v2460
      %v2571 = vunpack.i.l.s16 %v2464
      %v2572 = vunpack.i.h.s16 %v2464
      %v2573 = vunpack.i.l.s16 %v2467
      %v2574 = vunpack.i.h.s16 %v2467
      %v2575 = vunpack.i.l.s16 %v2470
      %v2576 = vunpack.i.l.s16 %v2473
      %v2577 = vunpack.i.h.s16 %v2473
      %v2578 = vunpack.i.l.s16 %v2477
      %v2579 = vunpack.i.h.s16 %v2477
      %v2580 = vunpack.i.l.s16 %v2480
      %v2581 = vunpack.i.h.s16 %v2480
      %v2582 = vunpack.i.l.s16 %v2483
      %v2583 = vunpack.i.h.s16 %v2483
      %v2584 = vunpack.i.l.s16 %v2486
      %v2585 = vld [vmem:[%s3] sm:$0xf]
      %v2586 = vld [vmem:[%s3 + $0x4] sm:$0xf]
      %v2587 = vld [vmem:[%s3 + $0x8] sm:$0xf]
      %v2588 = vld [vmem:[%s3 + $0xc] sm:$0xf]
      %v2589 = vld [vmem:[%s3 + $0x10] sm:$0xf]
      %v2590 = vld [vmem:[%s3 + $0x14] sm:$0xf]
      %v2591 = vld [vmem:[%s3 + $0x18] sm:$0xf]
      %v2592 = vld [vmem:[%s3 + $0x1c] sm:$0xf]
      %v2593 = vld [vmem:[%s3 + $0x20] sm:$0xf]
      %v2594 = vld [vmem:[%s3 + $0x24] sm:$0xf]
      %v2595 = vld [vmem:[%s3 + $0x28] sm:$0xf]
      %v2596 = vld [vmem:[%s3 + $0x2c] sm:$0xf]
      %v2597 = vld [vmem:[%s3 + $0x30] sm:$0xf]
      %v2598 = vld [vmem:[%s3 + $0x34] sm:$0xf]
      %v2599 = vld [vmem:[%s3 + $0x38] sm:$0xf]
      %v2600 = vld [vmem:[%s3 + $0x3c] sm:$0xf]
      %v2601 = vunpack.i.h.s16 %v2356
      %v2602 = vunpack.i.h.s16 %v2373
      %v2603 = vunpack.i.h.s16 %v2389
      %v2604 = vunpack.i.h.s16 %v2405
      %v2605 = vunpack.i.h.s16 %v2421
      %v2606 = vunpack.i.h.s16 %v2438
      %v2607 = vunpack.i.h.s16 %v2454
      %v2608 = vunpack.i.h.s16 %v2470
      %v2609 = vunpack.i.h.s16 %v2486
      %s2610 = scalar_lea.vmem %s3, 64
      %v2611 = vld [vmem:[%s2610] sm:$0xf]
      %v2612 = vld [vmem:[%s2610 + $0x4] sm:$0xf]
      %v2613 = vld [vmem:[%s2610 + $0x8] sm:$0xf]
      %v2614 = vld [vmem:[%s2610 + $0xc] sm:$0xf]
      %v2615 = vld [vmem:[%s2610 + $0x10] sm:$0xf]
      %v2616 = vld [vmem:[%s2610 + $0x14] sm:$0xf]
      %v2617 = vld [vmem:[%s2610 + $0x18] sm:$0xf]
      %v2618 = vld [vmem:[%s2610 + $0x1c] sm:$0xf]
      %v2619 = vld [vmem:[%s2610 + $0x20] sm:$0xf]
      %v2620 = vld [vmem:[%s2610 + $0x24] sm:$0xf]
      %v2621 = vld [vmem:[%s2610 + $0x28] sm:$0xf]
      %v2622 = vld [vmem:[%s2610 + $0x2c] sm:$0xf]
      %v2623 = vld [vmem:[%s2610 + $0x30] sm:$0xf]
      %v2624 = vld [vmem:[%s2610 + $0x34] sm:$0xf]
      %v2625 = vld [vmem:[%s2610 + $0x38] sm:$0xf]
      %v2626 = vld [vmem:[%s2610 + $0x3c] sm:$0xf]
      %v2627 = vpack.i.b16 %v2506, %v2505
      %v2628 = vpack.i.b16 %v2508, %v2507
      %v2629 = vpack.i.b16 %v2510, %v2509
      %v2630 = vpack.i.b16 %v2512, %v2511
      %v2631 = vpack.i.b16 %v2514, %v2601
      %v2632 = vpack.i.b16 %v2516, %v2515
      %v2633 = vpack.i.b16 %v2518, %v2517
      %v2634 = vpack.i.b16 %v2520, %v2519
      %v2635 = vpack.i.b16 %v2602, %v2521
      %v2636 = vpack.i.b16 %v2524, %v2523
      %v2637 = vpack.i.b16 %v2526, %v2525
      %v2638 = vpack.i.b16 %v2528, %v2527
      %v2639 = vpack.i.b16 %v2530, %v2529
      %v2640 = vpack.i.b16 %v2532, %v2603
      %v2641 = vpack.i.b16 %v2534, %v2533
      %v2642 = vpack.i.b16 %v2536, %v2535
      %v2643 = vpack.i.b16 %v2538, %v2537
      %v2644 = vpack.i.b16 %v2604, %v2539
      %v2645 = vpack.i.b16 %v2542, %v2541
      %v2646 = vpack.i.b16 %v2544, %v2543
      %v2647 = vpack.i.b16 %v2546, %v2545
      %v2648 = vpack.i.b16 %v2548, %v2547
      %v2649 = vpack.i.b16 %v2550, %v2605
      %v2650 = vpack.i.b16 %v2552, %v2551
      %v2651 = vpack.i.b16 %v2554, %v2553
      %v2652 = vpack.i.b16 %v2556, %v2555
      %v2653 = vpack.i.b16 %v2606, %v2557
      %v2654 = vpack.i.b16 %v2560, %v2559
      %v2655 = vpack.i.b16 %v2562, %v2561
      %v2656 = vpack.i.b16 %v2564, %v2563
      %v2657 = vpack.i.b16 %v2566, %v2565
      %v2658 = vpack.i.b16 %v2568, %v2607
      %v2659 = vpack.i.b16 %v2570, %v2569
      %v2660 = vpack.i.b16 %v2572, %v2571
      %v2661 = vpack.i.b16 %v2574, %v2573
      %v2662 = vpack.i.b16 %v2608, %v2575
      %v2663 = vpack.i.b16 %v2578, %v2577
      %v2664 = vpack.i.b16 %v2580, %v2579
      %v2665 = vpack.i.b16 %v2582, %v2581
      %v2666 = vpack.i.b16 %v2584, %v2583
      %2669 = vst [vmem:[#allocation1] ss:$9 sm:$0xff] %v2627
      %s2671 = scalar_lea.vmem [#allocation1], 1
      %2672 = vst [vmem:[%s2671] ss:$9 sm:$0xff] %v2628
      %s2674 = scalar_lea.vmem [#allocation1], 2
      %2675 = vst [vmem:[%s2674] ss:$9 sm:$0xff] %v2629
      %s2677 = scalar_lea.vmem [#allocation1], 3
      %2678 = vst [vmem:[%s2677] ss:$9 sm:$0xff] %v2630
      %s2680 = scalar_lea.vmem [#allocation1], 4
      %2681 = vst [vmem:[%s2680] ss:$9 sm:$0xff] %v2631
      %s2683 = scalar_lea.vmem [#allocation1], 5
      %2684 = vst [vmem:[%s2683] ss:$9 sm:$0xff] %v2632
      %s2686 = scalar_lea.vmem [#allocation1], 6
      %2687 = vst [vmem:[%s2686] ss:$9 sm:$0xff] %v2633
      %s2689 = scalar_lea.vmem [#allocation1], 7
      %2690 = vst [vmem:[%s2689] ss:$9 sm:$0xff] %v2634
      %v2691 = vld [vmem:[#allocation1] sm:$0xff]
      %2693 = vst [vmem:[#allocation1] ss:$9 sm:$0xff] %v2635
      %2695 = vst [vmem:[%s2671] ss:$9 sm:$0xff] %v2636
      %2697 = vst [vmem:[%s2674] ss:$9 sm:$0xff] %v2637
      %2699 = vst [vmem:[%s2677] ss:$9 sm:$0xff] %v2638
      %2701 = vst [vmem:[%s2680] ss:$9 sm:$0xff] %v2639
      %2703 = vst [vmem:[%s2683] ss:$9 sm:$0xff] %v2640
      %2705 = vst [vmem:[%s2686] ss:$9 sm:$0xff] %v2641
      %2707 = vst [vmem:[%s2689] ss:$9 sm:$0xff] %v2642
      %v2708 = vld [vmem:[#allocation1] sm:$0xff]
      %2710 = vst [vmem:[#allocation1] ss:$9 sm:$0xff] %v2643
      %2712 = vst [vmem:[%s2671] ss:$9 sm:$0xff] %v2644
      %2714 = vst [vmem:[%s2674] ss:$9 sm:$0xff] %v2645
      %2716 = vst [vmem:[%s2677] ss:$9 sm:$0xff] %v2646
      %2718 = vst [vmem:[%s2680] ss:$9 sm:$0xff] %v2647
      %2720 = vst [vmem:[%s2683] ss:$9 sm:$0xff] %v2648
      %2722 = vst [vmem:[%s2686] ss:$9 sm:$0xff] %v2649
      %2724 = vst [vmem:[%s2689] ss:$9 sm:$0xff] %v2650
      %v2725 = vld [vmem:[#allocation1] sm:$0xff]
      %2727 = vst [vmem:[#allocation1] ss:$9 sm:$0xff] %v2651
      %2729 = vst [vmem:[%s2671] ss:$9 sm:$0xff] %v2652
      %2731 = vst [vmem:[%s2674] ss:$9 sm:$0xff] %v2653
      %2733 = vst [vmem:[%s2677] ss:$9 sm:$0xff] %v2654
      %2735 = vst [vmem:[%s2680] ss:$9 sm:$0xff] %v2655
      %2737 = vst [vmem:[%s2683] ss:$9 sm:$0xff] %v2656
      %2739 = vst [vmem:[%s2686] ss:$9 sm:$0xff] %v2657
      %2741 = vst [vmem:[%s2689] ss:$9 sm:$0xff] %v2658
      %v2742 = vld [vmem:[#allocation1] sm:$0xff]
      %2744 = vst [vmem:[#allocation1] ss:$9 sm:$0xff] %v2659
      %2746 = vst [vmem:[%s2671] ss:$9 sm:$0xff] %v2660
      %2748 = vst [vmem:[%s2674] ss:$9 sm:$0xff] %v2661
      %2750 = vst [vmem:[%s2677] ss:$9 sm:$0xff] %v2662
      %2752 = vst [vmem:[%s2680] ss:$9 sm:$0xff] %v2663
      %2754 = vst [vmem:[%s2683] ss:$9 sm:$0xff] %v2664
      %2756 = vst [vmem:[%s2686] ss:$9 sm:$0xff] %v2665
      %2758 = vst [vmem:[%s2689] ss:$9 sm:$0xff] %v2666
      %v2759 = vld [vmem:[#allocation1] sm:$0xff]
      %2761 = vst [vmem:[#allocation1] ss:$9 sm:$0xff] %v2609
      %v2762 = vld [vmem:[#allocation1] sm:$0xff]
      %v2785 = vunpack.c.l.b16 %v2611
      %v2786 = vunpack.c.l.b16 %v2612
      %v2787 = vunpack.c.l.b16 %v2613
      %v2788 = vunpack.c.l.b16 %v2614
      %v2789 = vunpack.c.l.b16 %v2615
      %v2790 = vunpack.c.l.b16 %v2616
      %v2791 = vunpack.c.l.b16 %v2617
      %v2792 = vunpack.c.l.b16 %v2618
      %v2793 = vunpack.c.l.b16 %v2619
      %v2794 = vunpack.c.l.b16 %v2620
      %v2795 = vunpack.c.l.b16 %v2621
      %v2796 = vunpack.c.l.b16 %v2622
      %v2797 = vunpack.c.l.b16 %v2623
      %v2798 = vunpack.c.l.b16 %v2624
      %v2799 = vunpack.c.l.b16 %v2625
      %v2800 = vunpack.c.l.b16 %v2626
      %v2801 = vpack.c.b16 %v2786, %v2785
      %v2802 = vpack.c.b16 %v2788, %v2787
      %v2803 = vpack.c.b16 %v2790, %v2789
      %v2804 = vpack.c.b16 %v2792, %v2791
      %v2805 = vpack.c.b16 %v2794, %v2793
      %v2806 = vpack.c.b16 %v2796, %v2795
      %v2807 = vpack.c.b16 %v2798, %v2797
      %v2808 = vpack.c.b16 %v2800, %v2799
      %2817 = vmatpush.bf16.msra.mxu0 %v2808
      %2818 = vmatpush.bf16.msra.mxu0 %v2807
      %2819 = vmatpush.bf16.msra.mxu0 %v2806
      %2820 = vmatpush.bf16.msra.mxu0 %v2805
      %2821 = vmatpush.bf16.msra.mxu0 %v2804
      %2822 = vmatpush.bf16.msra.mxu0 %v2803
      %2823 = vmatpush.bf16.msra.mxu0 %v2802
      %2824 = vmatpush.bf16.msra.mxu0 %v2801
      %2825 = vmatmul.bf16.gmra.mxu0 %v2691
      %v2826 = vpop.f32.mrf.mxu0
      %v2827 = vadd.f32 0.0, %v2826
      %v2828 = vpop.f32.mrf.mxu0
      %v2829 = vadd.f32 0.0, %v2828
      %2830 = vmatmul.bf16.gmra.mxu0 %v2708
      %v2831 = vpop.f32.mrf.mxu0
      %v2832 = vadd.f32 0.0, %v2831
      %v2833 = vpop.f32.mrf.mxu0
      %v2834 = vadd.f32 0.0, %v2833
      %2835 = vmatmul.bf16.gmra.mxu0 %v2725
      %v2836 = vpop.f32.mrf.mxu0
      %v2837 = vadd.f32 0.0, %v2836
      %v2838 = vpop.f32.mrf.mxu0
      %v2839 = vadd.f32 0.0, %v2838
      %2840 = vmatmul.bf16.gmra.mxu0 %v2742
      %v2841 = vpop.f32.mrf.mxu0
      %v2842 = vadd.f32 0.0, %v2841
      %v2843 = vpop.f32.mrf.mxu0
      %v2844 = vadd.f32 0.0, %v2843
      %2845 = vmatmul.bf16.gmra.mxu0 %v2759
      %v2846 = vpop.f32.mrf.mxu0
      %v2847 = vadd.f32 0.0, %v2846
      %v2848 = vpop.f32.mrf.mxu0
      %v2849 = vadd.f32 0.0, %v2848
      %2850 = vmatmul.bf16.gmra.mxu0 %v2762
      %v2851 = vpop.f32.mrf.mxu0
      %v2852 = vadd.f32 0.0, %v2851
      %v2853 = vpop.f32.mrf.mxu0
      %2854 = vdwg.mxu0
      %v2855 = vpack.i.b16 %v2505, %v2504
      %v2856 = vpack.i.b16 %v2507, %v2506
      %v2857 = vpack.i.b16 %v2509, %v2508
      %v2858 = vpack.i.b16 %v2511, %v2510
      %v2859 = vpack.i.b16 %v2513, %v2512
      %v2860 = vpack.i.b16 %v2515, %v2514
      %v2861 = vpack.i.b16 %v2517, %v2516
      %v2862 = vpack.i.b16 %v2519, %v2518
      %v2863 = vpack.i.b16 %v2521, %v2520
      %v2864 = vpack.i.b16 %v2523, %v2522
      %v2865 = vpack.i.b16 %v2525, %v2524
      %v2866 = vpack.i.b16 %v2527, %v2526
      %v2867 = vpack.i.b16 %v2529, %v2528
      %v2868 = vpack.i.b16 %v2531, %v2530
      %v2869 = vpack.i.b16 %v2533, %v2532
      %v2870 = vpack.i.b16 %v2535, %v2534
      %v2871 = vpack.i.b16 %v2537, %v2536
      %v2872 = vpack.i.b16 %v2539, %v2538
      %v2873 = vpack.i.b16 %v2541, %v2540
      %v2874 = vpack.i.b16 %v2543, %v2542
      %v2875 = vpack.i.b16 %v2545, %v2544
      %v2876 = vpack.i.b16 %v2547, %v2546
      %v2877 = vpack.i.b16 %v2549, %v2548
      %v2878 = vpack.i.b16 %v2551, %v2550
      %v2879 = vpack.i.b16 %v2553, %v2552
      %v2880 = vpack.i.b16 %v2555, %v2554
      %v2881 = vpack.i.b16 %v2557, %v2556
      %v2882 = vpack.i.b16 %v2559, %v2558
      %v2883 = vpack.i.b16 %v2561, %v2560
      %v2884 = vpack.i.b16 %v2563, %v2562
      %v2885 = vpack.i.b16 %v2565, %v2564
      %v2886 = vpack.i.b16 %v2567, %v2566
      %v2887 = vpack.i.b16 %v2569, %v2568
      %v2888 = vpack.i.b16 %v2571, %v2570
      %v2889 = vpack.i.b16 %v2573, %v2572
      %v2890 = vpack.i.b16 %v2575, %v2574
      %v2891 = vpack.i.b16 %v2577, %v2576
      %v2892 = vpack.i.b16 %v2579, %v2578
      %v2893 = vpack.i.b16 %v2581, %v2580
      %v2894 = vpack.i.b16 %v2583, %v2582
      %2897 = vst [vmem:[#allocation1] ss:$9 sm:$0xff] %v2855
      %s2899 = scalar_lea.vmem [#allocation1], 1
      %2900 = vst [vmem:[%s2899] ss:$9 sm:$0xff] %v2856
      %s2902 = scalar_lea.vmem [#allocation1], 2
      %2903 = vst [vmem:[%s2902] ss:$9 sm:$0xff] %v2857
      %s2905 = scalar_lea.vmem [#allocation1], 3
      %2906 = vst [vmem:[%s2905] ss:$9 sm:$0xff] %v2858
      %s2908 = scalar_lea.vmem [#allocation1], 4
      %2909 = vst [vmem:[%s2908] ss:$9 sm:$0xff] %v2859
      %s2911 = scalar_lea.vmem [#allocation1], 5
      %2912 = vst [vmem:[%s2911] ss:$9 sm:$0xff] %v2860
      %s2914 = scalar_lea.vmem [#allocation1], 6
      %2915 = vst [vmem:[%s2914] ss:$9 sm:$0xff] %v2861
      %s2917 = scalar_lea.vmem [#allocation1], 7
      %2918 = vst [vmem:[%s2917] ss:$9 sm:$0xff] %v2862
      %v2919 = vld [vmem:[#allocation1] sm:$0xff]
      %2921 = vst [vmem:[#allocation1] ss:$9 sm:$0xff] %v2863
      %2923 = vst [vmem:[%s2899] ss:$9 sm:$0xff] %v2864
      %2925 = vst [vmem:[%s2902] ss:$9 sm:$0xff] %v2865
      %2927 = vst [vmem:[%s2905] ss:$9 sm:$0xff] %v2866
      %2929 = vst [vmem:[%s2908] ss:$9 sm:$0xff] %v2867
      %2931 = vst [vmem:[%s2911] ss:$9 sm:$0xff] %v2868
      %2933 = vst [vmem:[%s2914] ss:$9 sm:$0xff] %v2869
      %2935 = vst [vmem:[%s2917] ss:$9 sm:$0xff] %v2870
      %v2936 = vld [vmem:[#allocation1] sm:$0xff]
      %2938 = vst [vmem:[#allocation1] ss:$9 sm:$0xff] %v2871
      %2940 = vst [vmem:[%s2899] ss:$9 sm:$0xff] %v2872
      %2942 = vst [vmem:[%s2902] ss:$9 sm:$0xff] %v2873
      %2944 = vst [vmem:[%s2905] ss:$9 sm:$0xff] %v2874
      %2946 = vst [vmem:[%s2908] ss:$9 sm:$0xff] %v2875
      %2948 = vst [vmem:[%s2911] ss:$9 sm:$0xff] %v2876
      %2950 = vst [vmem:[%s2914] ss:$9 sm:$0xff] %v2877
      %2952 = vst [vmem:[%s2917] ss:$9 sm:$0xff] %v2878
      %v2953 = vld [vmem:[#allocation1] sm:$0xff]
      %2955 = vst [vmem:[#allocation1] ss:$9 sm:$0xff] %v2879
      %2957 = vst [vmem:[%s2899] ss:$9 sm:$0xff] %v2880
      %2959 = vst [vmem:[%s2902] ss:$9 sm:$0xff] %v2881
      %2961 = vst [vmem:[%s2905] ss:$9 sm:$0xff] %v2882
      %2963 = vst [vmem:[%s2908] ss:$9 sm:$0xff] %v2883
      %2965 = vst [vmem:[%s2911] ss:$9 sm:$0xff] %v2884
      %2967 = vst [vmem:[%s2914] ss:$9 sm:$0xff] %v2885
      %2969 = vst [vmem:[%s2917] ss:$9 sm:$0xff] %v2886
      %v2970 = vld [vmem:[#allocation1] sm:$0xff]
      %2972 = vst [vmem:[#allocation1] ss:$9 sm:$0xff] %v2887
      %2974 = vst [vmem:[%s2899] ss:$9 sm:$0xff] %v2888
      %2976 = vst [vmem:[%s2902] ss:$9 sm:$0xff] %v2889
      %2978 = vst [vmem:[%s2905] ss:$9 sm:$0xff] %v2890
      %2980 = vst [vmem:[%s2908] ss:$9 sm:$0xff] %v2891
      %2982 = vst [vmem:[%s2911] ss:$9 sm:$0xff] %v2892
      %2984 = vst [vmem:[%s2914] ss:$9 sm:$0xff] %v2893
      %2986 = vst [vmem:[%s2917] ss:$9 sm:$0xff] %v2894
      %v2987 = vld [vmem:[#allocation1] sm:$0xff]
      %2989 = vst [vmem:[#allocation1] ss:$9 sm:$0xff] %v2584
      %v2990 = vld [vmem:[#allocation1] sm:$0xff]
      %v3013 = vunpack.c.l.b16 %v2585
      %v3014 = vunpack.c.l.b16 %v2586
      %v3015 = vunpack.c.l.b16 %v2587
      %v3016 = vunpack.c.l.b16 %v2588
      %v3017 = vunpack.c.l.b16 %v2589
      %v3018 = vunpack.c.l.b16 %v2590
      %v3019 = vunpack.c.l.b16 %v2591
      %v3020 = vunpack.c.l.b16 %v2592
      %v3021 = vunpack.c.l.b16 %v2593
      %v3022 = vunpack.c.l.b16 %v2594
      %v3023 = vunpack.c.l.b16 %v2595
      %v3024 = vunpack.c.l.b16 %v2596
      %v3025 = vunpack.c.l.b16 %v2597
      %v3026 = vunpack.c.l.b16 %v2598
      %v3027 = vunpack.c.l.b16 %v2599
      %v3028 = vunpack.c.l.b16 %v2600
      %v3029 = vpack.c.b16 %v3014, %v3013
      %v3030 = vpack.c.b16 %v3016, %v3015
      %v3031 = vpack.c.b16 %v3018, %v3017
      %v3032 = vpack.c.b16 %v3020, %v3019
      %v3033 = vpack.c.b16 %v3022, %v3021
      %v3034 = vpack.c.b16 %v3024, %v3023
      %v3035 = vpack.c.b16 %v3026, %v3025
      %v3036 = vpack.c.b16 %v3028, %v3027
      %3045 = vmatpush.bf16.msra.mxu0 %v3036
      %3046 = vmatpush.bf16.msra.mxu0 %v3035
      %3047 = vmatpush.bf16.msra.mxu0 %v3034
      %3048 = vmatpush.bf16.msra.mxu0 %v3033
      %3049 = vmatpush.bf16.msra.mxu0 %v3032
      %3050 = vmatpush.bf16.msra.mxu0 %v3031
      %3051 = vmatpush.bf16.msra.mxu0 %v3030
      %3052 = vmatpush.bf16.msra.mxu0 %v3029
      %3053 = vmatmul.bf16.gmra.mxu0 %v2919
      %v3054 = vpop.f32.mrf.mxu0
      %v3055 = vadd.f32 %v2827, %v3054
      %v3056 = vpop.f32.mrf.mxu0
      %v3057 = vadd.f32 %v2829, %v3056
      %3058 = vmatmul.bf16.gmra.mxu0 %v2936
      %v3059 = vpop.f32.mrf.mxu0
      %v3060 = vadd.f32 %v2832, %v3059
      %v3061 = vpop.f32.mrf.mxu0
      %v3062 = vadd.f32 %v2834, %v3061
      %3063 = vmatmul.bf16.gmra.mxu0 %v2953
      %v3064 = vpop.f32.mrf.mxu0
      %v3065 = vadd.f32 %v2837, %v3064
      %v3066 = vpop.f32.mrf.mxu0
      %v3067 = vadd.f32 %v2839, %v3066
      %3068 = vmatmul.bf16.gmra.mxu0 %v2970
      %v3069 = vpop.f32.mrf.mxu0
      %v3070 = vadd.f32 %v2842, %v3069
      %v3071 = vpop.f32.mrf.mxu0
      %v3072 = vadd.f32 %v2844, %v3071
      %3073 = vmatmul.bf16.gmra.mxu0 %v2987
      %v3074 = vpop.f32.mrf.mxu0
      %v3075 = vadd.f32 %v2847, %v3074
      %v3076 = vpop.f32.mrf.mxu0
      %v3077 = vadd.f32 %v2849, %v3076
      %3078 = vmatmul.bf16.gmra.mxu0 %v2990
      %v3079 = vpop.f32.mrf.mxu0
      %v3080 = vadd.f32 %v2852, %v3079
      %v3081 = vpop.f32.mrf.mxu0
      %3082 = vdwg.mxu0
      %v3083 = vunpack.i.l.s16 %v2490
      %v3084 = vunpack.i.h.s16 %v2490
      %v3085 = vunpack.i.l.s16 %v2493
      %v3086 = vunpack.i.h.s16 %v2493
      %v3087 = vunpack.i.l.s16 %v2496
      %v3088 = vunpack.i.h.s16 %v2496
      %v3089 = vunpack.i.l.s16 %v2499
      %v3090 = vunpack.i.h.s16 %v2499
      %v3091 = vunpack.i.l.s16 %v2503
      %s3092 = scalar_lea.vmem %s3, 128
      %v3093 = vld [vmem:[%s3092] sm:$0xf]
      %v3094 = vld [vmem:[%s3092 + $0x4] sm:$0xf]
      %v3095 = vld [vmem:[%s3092 + $0x8] sm:$0xf]
      %v3096 = vld [vmem:[%s3092 + $0xc] sm:$0xf]
      %v3097 = vld [vmem:[%s3092 + $0x10] sm:$0xf]
      %v3098 = vld [vmem:[%s3092 + $0x14] sm:$0xf]
      %v3099 = vld [vmem:[%s3092 + $0x18] sm:$0xf]
      %v3100 = vld [vmem:[%s3092 + $0x1c] sm:$0xf]
      %v3101 = vld [vmem:[%s3092 + $0x20] sm:$0xf]
      %v3102 = vld [vmem:[%s3092 + $0x24] sm:$0xf]
      %v3103 = vld [vmem:[%s3092 + $0x28] sm:$0xf]
      %v3104 = vld [vmem:[%s3092 + $0x2c] sm:$0xf]
      %v3105 = vld [vmem:[%s3092 + $0x30] sm:$0xf]
      %v3106 = vld [vmem:[%s3092 + $0x34] sm:$0xf]
      %v3107 = vld [vmem:[%s3092 + $0x38] sm:$0xf]
      %v3108 = vld [vmem:[%s3092 + $0x3c] sm:$0xf]
      %v3109 = vpack.i.b16 %v2514, %v2513
      %v3110 = vpack.i.b16 %v2522, %v2521
      %v3111 = vpack.i.b16 %v2532, %v2531
      %v3112 = vpack.i.b16 %v2540, %v2539
      %v3113 = vpack.i.b16 %v2550, %v2549
      %v3114 = vpack.i.b16 %v2558, %v2557
      %v3115 = vpack.i.b16 %v2568, %v2567
      %v3116 = vpack.i.b16 %v2576, %v2575
      %v3117 = vpack.i.b16 %v3084, %v3083
      %v3118 = vpack.i.b16 %v3086, %v3085
      %v3119 = vpack.i.b16 %v3088, %v3087
      %v3120 = vpack.i.b16 %v3090, %v3089
      %3123 = vst [vmem:[#allocation1] ss:$9 sm:$0xff] %v3109
      %s3124 = scalar_lea.vmem [#allocation1], 1
      %3125 = vst [vmem:[%s3124] ss:$9 sm:$0xff] %v2632
      %s3126 = scalar_lea.vmem [#allocation1], 2
      %3127 = vst [vmem:[%s3126] ss:$9 sm:$0xff] %v2633
      %s3128 = scalar_lea.vmem [#allocation1], 3
      %3129 = vst [vmem:[%s3128] ss:$9 sm:$0xff] %v2634
      %s3131 = scalar_lea.vmem [#allocation1], 4
      %3132 = vst [vmem:[%s3131] ss:$9 sm:$0xff] %v3110
      %s3133 = scalar_lea.vmem [#allocation1], 5
      %3134 = vst [vmem:[%s3133] ss:$9 sm:$0xff] %v2636
      %s3135 = scalar_lea.vmem [#allocation1], 6
      %3136 = vst [vmem:[%s3135] ss:$9 sm:$0xff] %v2637
      %s3137 = scalar_lea.vmem [#allocation1], 7
      %3138 = vst [vmem:[%s3137] ss:$9 sm:$0xff] %v2638
      %v3139 = vld [vmem:[#allocation1] sm:$0xff]
      %3140 = vst [vmem:[#allocation1] ss:$9 sm:$0xff] %v2639
      %3142 = vst [vmem:[%s3124] ss:$9 sm:$0xff] %v3111
      %3143 = vst [vmem:[%s3126] ss:$9 sm:$0xff] %v2641
      %3144 = vst [vmem:[%s3128] ss:$9 sm:$0xff] %v2642
      %3145 = vst [vmem:[%s3131] ss:$9 sm:$0xff] %v2643
      %3147 = vst [vmem:[%s3133] ss:$9 sm:$0xff] %v3112
      %3148 = vst [vmem:[%s3135] ss:$9 sm:$0xff] %v2645
      %3149 = vst [vmem:[%s3137] ss:$9 sm:$0xff] %v2646
      %v3150 = vld [vmem:[#allocation1] sm:$0xff]
      %3151 = vst [vmem:[#allocation1] ss:$9 sm:$0xff] %v2647
      %3152 = vst [vmem:[%s3124] ss:$9 sm:$0xff] %v2648
      %3154 = vst [vmem:[%s3126] ss:$9 sm:$0xff] %v3113
      %3155 = vst [vmem:[%s3128] ss:$9 sm:$0xff] %v2650
      %3156 = vst [vmem:[%s3131] ss:$9 sm:$0xff] %v2651
      %3157 = vst [vmem:[%s3133] ss:$9 sm:$0xff] %v2652
      %3159 = vst [vmem:[%s3135] ss:$9 sm:$0xff] %v3114
      %3160 = vst [vmem:[%s3137] ss:$9 sm:$0xff] %v2654
      %v3161 = vld [vmem:[#allocation1] sm:$0xff]
      %3162 = vst [vmem:[#allocation1] ss:$9 sm:$0xff] %v2655
      %3163 = vst [vmem:[%s3124] ss:$9 sm:$0xff] %v2656
      %3164 = vst [vmem:[%s3126] ss:$9 sm:$0xff] %v2657
      %3166 = vst [vmem:[%s3128] ss:$9 sm:$0xff] %v3115
      %3167 = vst [vmem:[%s3131] ss:$9 sm:$0xff] %v2659
      %3168 = vst [vmem:[%s3133] ss:$9 sm:$0xff] %v2660
      %3169 = vst [vmem:[%s3135] ss:$9 sm:$0xff] %v2661
      %3171 = vst [vmem:[%s3137] ss:$9 sm:$0xff] %v3116
      %v3172 = vld [vmem:[#allocation1] sm:$0xff]
      %3173 = vst [vmem:[#allocation1] ss:$9 sm:$0xff] %v2663
      %3174 = vst [vmem:[%s3124] ss:$9 sm:$0xff] %v2664
      %3175 = vst [vmem:[%s3126] ss:$9 sm:$0xff] %v2665
      %3176 = vst [vmem:[%s3128] ss:$9 sm:$0xff] %v2666
      %3178 = vst [vmem:[%s3131] ss:$9 sm:$0xff] %v3117
      %3180 = vst [vmem:[%s3133] ss:$9 sm:$0xff] %v3118
      %3182 = vst [vmem:[%s3135] ss:$9 sm:$0xff] %v3119
      %3184 = vst [vmem:[%s3137] ss:$9 sm:$0xff] %v3120
      %v3185 = vld [vmem:[#allocation1] sm:$0xff]
      %3187 = vst [vmem:[#allocation1] ss:$9 sm:$0xff] %v3091
      %v3188 = vld [vmem:[#allocation1] sm:$0xff]
      %v3211 = vunpack.c.l.b16 %v3093
      %v3212 = vunpack.c.l.b16 %v3094
      %v3213 = vunpack.c.l.b16 %v3095
      %v3214 = vunpack.c.l.b16 %v3096
      %v3215 = vunpack.c.l.b16 %v3097
      %v3216 = vunpack.c.l.b16 %v3098
      %v3217 = vunpack.c.l.b16 %v3099
      %v3218 = vunpack.c.l.b16 %v3100
      %v3219 = vunpack.c.l.b16 %v3101
      %v3220 = vunpack.c.l.b16 %v3102
      %v3221 = vunpack.c.l.b16 %v3103
      %v3222 = vunpack.c.l.b16 %v3104
      %v3223 = vunpack.c.l.b16 %v3105
      %v3224 = vunpack.c.l.b16 %v3106
      %v3225 = vunpack.c.l.b16 %v3107
      %v3226 = vunpack.c.l.b16 %v3108
      %v3227 = vpack.c.b16 %v3212, %v3211
      %v3228 = vpack.c.b16 %v3214, %v3213
      %v3229 = vpack.c.b16 %v3216, %v3215
      %v3230 = vpack.c.b16 %v3218, %v3217
      %v3231 = vpack.c.b16 %v3220, %v3219
      %v3232 = vpack.c.b16 %v3222, %v3221
      %v3233 = vpack.c.b16 %v3224, %v3223
      %v3234 = vpack.c.b16 %v3226, %v3225
      %3243 = vmatpush.bf16.msra.mxu0 %v3234
      %3244 = vmatpush.bf16.msra.mxu0 %v3233
      %3245 = vmatpush.bf16.msra.mxu0 %v3232
      %3246 = vmatpush.bf16.msra.mxu0 %v3231
      %3247 = vmatpush.bf16.msra.mxu0 %v3230
      %3248 = vmatpush.bf16.msra.mxu0 %v3229
      %3249 = vmatpush.bf16.msra.mxu0 %v3228
      %3250 = vmatpush.bf16.msra.mxu0 %v3227
      %3251 = vmatmul.bf16.gmra.mxu0 %v3139
      %v3252 = vpop.f32.mrf.mxu0
      %v3253 = vadd.f32 0.0, %v3252
      %v3254 = vpop.f32.mrf.mxu0
      %v3255 = vadd.f32 0.0, %v3254
      %3256 = vmatmul.bf16.gmra.mxu0 %v3150
      %v3257 = vpop.f32.mrf.mxu0
      %v3258 = vadd.f32 0.0, %v3257
      %v3259 = vpop.f32.mrf.mxu0
      %v3260 = vadd.f32 0.0, %v3259
      %3261 = vmatmul.bf16.gmra.mxu0 %v3161
      %v3262 = vpop.f32.mrf.mxu0
      %v3263 = vadd.f32 0.0, %v3262
      %v3264 = vpop.f32.mrf.mxu0
      %v3265 = vadd.f32 0.0, %v3264
      %3266 = vmatmul.bf16.gmra.mxu0 %v3172
      %v3267 = vpop.f32.mrf.mxu0
      %v3268 = vadd.f32 0.0, %v3267
      %v3269 = vpop.f32.mrf.mxu0
      %v3270 = vadd.f32 0.0, %v3269
      %3271 = vmatmul.bf16.gmra.mxu0 %v3185
      %v3272 = vpop.f32.mrf.mxu0
      %v3273 = vadd.f32 0.0, %v3272
      %v3274 = vpop.f32.mrf.mxu0
      %v3275 = vadd.f32 0.0, %v3274
      %3276 = vmatmul.bf16.gmra.mxu0 %v3188
      %v3277 = vpop.f32.mrf.mxu0
      %v3278 = vadd.f32 0.0, %v3277
      %v3279 = vpop.f32.mrf.mxu0
      %3280 = vdwg.mxu0
      %v3281 = vadd.f32 %v3055, %v3253
      %v3282 = vadd.f32 %v3057, %v3255
      %v3283 = vadd.f32 %v3060, %v3258
      %v3284 = vadd.f32 %v3062, %v3260
      %v3285 = vadd.f32 %v3065, %v3263
      %v3286 = vadd.f32 %v3067, %v3265
      %v3287 = vadd.f32 %v3070, %v3268
      %v3288 = vadd.f32 %v3072, %v3270
      %v3289 = vadd.f32 %v3075, %v3273
      %v3290 = vadd.f32 %v3077, %v3275
      %v3291 = vadd.f32 %v3080, %v3278
      %v3292 = vunpack.i.h.s16 %v2503
      %s3293 = scalar_lea.vmem %s3, 192
      %v3294 = vld [vmem:[%s3293] sm:$0xf]
      %v3295 = vld [vmem:[%s3293 + $0x4] sm:$0xf]
      %v3296 = vld [vmem:[%s3293 + $0x8] sm:$0xf]
      %v3297 = vld [vmem:[%s3293 + $0xc] sm:$0xf]
      %v3298 = vld [vmem:[%s3293 + $0x10] sm:$0xf]
      %v3299 = vld [vmem:[%s3293 + $0x14] sm:$0xf]
      %v3300 = vld [vmem:[%s3293 + $0x18] sm:$0xf]
      %v3301 = vld [vmem:[%s3293 + $0x1c] sm:$0xf]
      %v3302 = vld [vmem:[%s3293 + $0x20] sm:$0xf]
      %v3303 = vld [vmem:[%s3293 + $0x24] sm:$0xf]
      %v3304 = vld [vmem:[%s3293 + $0x28] sm:$0xf]
      %v3305 = vld [vmem:[%s3293 + $0x2c] sm:$0xf]
      %v3306 = vld [vmem:[%s3293 + $0x30] sm:$0xf]
      %v3307 = vld [vmem:[%s3293 + $0x34] sm:$0xf]
      %v3308 = vld [vmem:[%s3293 + $0x38] sm:$0xf]
      %v3309 = vld [vmem:[%s3293 + $0x3c] sm:$0xf]
      %v3310 = vpack.i.b16 %v2523, %v2602
      %v3311 = vpack.i.b16 %v2603, %v2530
      %v3312 = vpack.i.b16 %v2541, %v2604
      %v3313 = vpack.i.b16 %v2605, %v2548
      %v3314 = vpack.i.b16 %v2559, %v2606
      %v3315 = vpack.i.b16 %v2607, %v2566
      %v3316 = vpack.i.b16 %v2577, %v2608
      %v3317 = vpack.i.b16 %v2609, %v2584
      %v3318 = vpack.i.b16 %v3085, %v3084
      %v3319 = vpack.i.b16 %v3087, %v3086
      %v3320 = vpack.i.b16 %v3089, %v3088
      %v3321 = vpack.i.b16 %v3091, %v3090
      %3323 = vst [vmem:[#allocation1] ss:$9 sm:$0xff] %v2860
      %s3324 = scalar_lea.vmem [#allocation1], 1
      %3325 = vst [vmem:[%s3324] ss:$9 sm:$0xff] %v2861
      %s3326 = scalar_lea.vmem [#allocation1], 2
      %3327 = vst [vmem:[%s3326] ss:$9 sm:$0xff] %v2862
      %s3328 = scalar_lea.vmem [#allocation1], 3
      %3329 = vst [vmem:[%s3328] ss:$9 sm:$0xff] %v2863
      %s3331 = scalar_lea.vmem [#allocation1], 4
      %3332 = vst [vmem:[%s3331] ss:$9 sm:$0xff] %v3310
      %s3333 = scalar_lea.vmem [#allocation1], 5
      %3334 = vst [vmem:[%s3333] ss:$9 sm:$0xff] %v2865
      %s3335 = scalar_lea.vmem [#allocation1], 6
      %3336 = vst [vmem:[%s3335] ss:$9 sm:$0xff] %v2866
      %s3337 = scalar_lea.vmem [#allocation1], 7
      %3338 = vst [vmem:[%s3337] ss:$9 sm:$0xff] %v2867
      %v3339 = vld [vmem:[#allocation1] sm:$0xff]
      %3341 = vst [vmem:[#allocation1] ss:$9 sm:$0xff] %v3311
      %3342 = vst [vmem:[%s3324] ss:$9 sm:$0xff] %v2869
      %3343 = vst [vmem:[%s3326] ss:$9 sm:$0xff] %v2870
      %3344 = vst [vmem:[%s3328] ss:$9 sm:$0xff] %v2871
      %3345 = vst [vmem:[%s3331] ss:$9 sm:$0xff] %v2872
      %3347 = vst [vmem:[%s3333] ss:$9 sm:$0xff] %v3312
      %3348 = vst [vmem:[%s3335] ss:$9 sm:$0xff] %v2874
      %3349 = vst [vmem:[%s3337] ss:$9 sm:$0xff] %v2875
      %v3350 = vld [vmem:[#allocation1] sm:$0xff]
      %3351 = vst [vmem:[#allocation1] ss:$9 sm:$0xff] %v2876
      %3353 = vst [vmem:[%s3324] ss:$9 sm:$0xff] %v3313
      %3354 = vst [vmem:[%s3326] ss:$9 sm:$0xff] %v2878
      %3355 = vst [vmem:[%s3328] ss:$9 sm:$0xff] %v2879
      %3356 = vst [vmem:[%s3331] ss:$9 sm:$0xff] %v2880
      %3357 = vst [vmem:[%s3333] ss:$9 sm:$0xff] %v2881
      %3359 = vst [vmem:[%s3335] ss:$9 sm:$0xff] %v3314
      %3360 = vst [vmem:[%s3337] ss:$9 sm:$0xff] %v2883
      %v3361 = vld [vmem:[#allocation1] sm:$0xff]
      %3362 = vst [vmem:[#allocation1] ss:$9 sm:$0xff] %v2884
      %3363 = vst [vmem:[%s3324] ss:$9 sm:$0xff] %v2885
      %3365 = vst [vmem:[%s3326] ss:$9 sm:$0xff] %v3315
      %3366 = vst [vmem:[%s3328] ss:$9 sm:$0xff] %v2887
      %3367 = vst [vmem:[%s3331] ss:$9 sm:$0xff] %v2888
      %3368 = vst [vmem:[%s3333] ss:$9 sm:$0xff] %v2889
      %3369 = vst [vmem:[%s3335] ss:$9 sm:$0xff] %v2890
      %3371 = vst [vmem:[%s3337] ss:$9 sm:$0xff] %v3316
      %v3372 = vld [vmem:[#allocation1] sm:$0xff]
      %3373 = vst [vmem:[#allocation1] ss:$9 sm:$0xff] %v2892
      %3374 = vst [vmem:[%s3324] ss:$9 sm:$0xff] %v2893
      %3375 = vst [vmem:[%s3326] ss:$9 sm:$0xff] %v2894
      %3377 = vst [vmem:[%s3328] ss:$9 sm:$0xff] %v3317
      %3379 = vst [vmem:[%s3331] ss:$9 sm:$0xff] %v3318
      %3381 = vst [vmem:[%s3333] ss:$9 sm:$0xff] %v3319
      %3383 = vst [vmem:[%s3335] ss:$9 sm:$0xff] %v3320
      %3385 = vst [vmem:[%s3337] ss:$9 sm:$0xff] %v3321
      %v3386 = vld [vmem:[#allocation1] sm:$0xff]
      %3388 = vst [vmem:[#allocation1] ss:$9 sm:$0xff] %v3292
      %v3389 = vld [vmem:[#allocation1] sm:$0xff]
      %v3412 = vunpack.c.l.b16 %v3294
      %v3413 = vunpack.c.l.b16 %v3295
      %v3414 = vunpack.c.l.b16 %v3296
      %v3415 = vunpack.c.l.b16 %v3297
      %v3416 = vunpack.c.l.b16 %v3298
      %v3417 = vunpack.c.l.b16 %v3299
      %v3418 = vunpack.c.l.b16 %v3300
      %v3419 = vunpack.c.l.b16 %v3301
      %v3420 = vunpack.c.l.b16 %v3302
      %v3421 = vunpack.c.l.b16 %v3303
      %v3422 = vunpack.c.l.b16 %v3304
      %v3423 = vunpack.c.l.b16 %v3305
      %v3424 = vunpack.c.l.b16 %v3306
      %v3425 = vunpack.c.l.b16 %v3307
      %v3426 = vunpack.c.l.b16 %v3308
      %v3427 = vunpack.c.l.b16 %v3309
      %v3428 = vpack.c.b16 %v3413, %v3412
      %v3429 = vpack.c.b16 %v3415, %v3414
      %v3430 = vpack.c.b16 %v3417, %v3416
      %v3431 = vpack.c.b16 %v3419, %v3418
      %v3432 = vpack.c.b16 %v3421, %v3420
      %v3433 = vpack.c.b16 %v3423, %v3422
      %v3434 = vpack.c.b16 %v3425, %v3424
      %v3435 = vpack.c.b16 %v3427, %v3426
      %3444 = vmatpush.bf16.msra.mxu0 %v3435
      %3445 = vmatpush.bf16.msra.mxu0 %v3434
      %3446 = vmatpush.bf16.msra.mxu0 %v3433
      %3447 = vmatpush.bf16.msra.mxu0 %v3432
      %3448 = vmatpush.bf16.msra.mxu0 %v3431
      %3449 = vmatpush.bf16.msra.mxu0 %v3430
      %3450 = vmatpush.bf16.msra.mxu0 %v3429
      %3451 = vmatpush.bf16.msra.mxu0 %v3428
      %3452 = vmatmul.bf16.gmra.mxu0 %v3339
      %v3453 = vpop.f32.mrf.mxu0
      %v3454 = vadd.f32 0.0, %v3453
      %v3455 = vpop.f32.mrf.mxu0
      %v3456 = vadd.f32 0.0, %v3455
      %3457 = vmatmul.bf16.gmra.mxu0 %v3350
      %v3458 = vpop.f32.mrf.mxu0
      %v3459 = vadd.f32 0.0, %v3458
      %v3460 = vpop.f32.mrf.mxu0
      %v3461 = vadd.f32 0.0, %v3460
      %3462 = vmatmul.bf16.gmra.mxu0 %v3361
      %v3463 = vpop.f32.mrf.mxu0
      %v3464 = vadd.f32 0.0, %v3463
      %v3465 = vpop.f32.mrf.mxu0
      %v3466 = vadd.f32 0.0, %v3465
      %3467 = vmatmul.bf16.gmra.mxu0 %v3372
      %v3468 = vpop.f32.mrf.mxu0
      %v3469 = vadd.f32 0.0, %v3468
      %v3470 = vpop.f32.mrf.mxu0
      %v3471 = vadd.f32 0.0, %v3470
      %3472 = vmatmul.bf16.gmra.mxu0 %v3386
      %v3473 = vpop.f32.mrf.mxu0
      %v3474 = vadd.f32 0.0, %v3473
      %v3475 = vpop.f32.mrf.mxu0
      %v3476 = vadd.f32 0.0, %v3475
      %3477 = vmatmul.bf16.gmra.mxu0 %v3389
      %v3478 = vpop.f32.mrf.mxu0
      %v3479 = vadd.f32 0.0, %v3478
      %v3480 = vpop.f32.mrf.mxu0
      %3481 = vdwg.mxu0
      %v3482 = vadd.f32 %v3281, %v3454
      %v3483 = vadd.f32 %v3282, %v3456
      %v3484 = vadd.f32 %v3283, %v3459
      %v3485 = vadd.f32 %v3284, %v3461
      %v3486 = vadd.f32 %v3285, %v3464
      %v3487 = vadd.f32 %v3286, %v3466
      %v3488 = vadd.f32 %v3287, %v3469
      %v3489 = vadd.f32 %v3288, %v3471
      %v3490 = vadd.f32 %v3289, %v3474
      %v3491 = vadd.f32 %v3290, %v3476
      %v3492 = vadd.f32 %v3291, %v3479
      %v3493 = vld [vmem:[%s4] sm:$0x1]
      %v3495 = vperm.slane %v3493, 0
      %v3497 = vadd.f32 %v3482, %v3495
      %v3498 = vadd.f32 %v3483, %v3495
      %v3499 = vadd.f32 %v3484, %v3495
      %v3500 = vadd.f32 %v3485, %v3495
      %v3501 = vadd.f32 %v3486, %v3495
      %v3502 = vadd.f32 %v3487, %v3495
      %v3503 = vadd.f32 %v3488, %v3495
      %v3504 = vadd.f32 %v3489, %v3495
      %v3505 = vadd.f32 %v3490, %v3495
      %v3506 = vadd.f32 %v3491, %v3495
      %v3507 = vadd.f32 %v3492, %v3495
      %v3508 = vmax.f32 %v3497, 0.0
      %v3509 = vmax.f32 %v3498, 0.0
      %v3510 = vmax.f32 %v3499, 0.0
      %v3511 = vmax.f32 %v3500, 0.0
      %v3512 = vmax.f32 %v3501, 0.0
      %v3513 = vmax.f32 %v3502, 0.0
      %v3514 = vmax.f32 %v3503, 0.0
      %v3515 = vmax.f32 %v3504, 0.0
      %v3516 = vmax.f32 %v3505, 0.0
      %v3517 = vmax.f32 %v3506, 0.0
      %v3518 = vmax.f32 %v3507, 0.0
      %v3519 = vpack.c.bf16 %v3508, %v3508
      %v3520 = vpack.c.bf16 %v3509, %v3509
      %v3521 = vpack.c.bf16 %v3510, %v3510
      %v3522 = vpack.c.bf16 %v3511, %v3511
      %v3523 = vpack.c.bf16 %v3512, %v3512
      %v3524 = vpack.c.bf16 %v3513, %v3513
      %v3525 = vpack.c.bf16 %v3514, %v3514
      %v3526 = vpack.c.bf16 %v3515, %v3515
      %v3527 = vpack.c.bf16 %v3516, %v3516
      %v3528 = vpack.c.bf16 %v3517, %v3517
      %v3529 = vpack.c.bf16 %v3518, %v3518
      %v3541 = vrot.slane %v3519, 3
      %v3542 = vrot.slane %v3520, 3
      %v3543 = vrot.slane %v3521, 3
      %v3544 = vrot.slane %v3522, 3
      %v3545 = vrot.slane %v3523, 3
      %v3546 = vrot.slane %v3524, 3
      %v3547 = vrot.slane %v3525, 3
      %v3548 = vrot.slane %v3526, 3
      %v3549 = vrot.slane %v3527, 3
      %v3550 = vrot.slane %v3528, 3
      %v3551 = vrot.slane %v3529, 3
      %v3554 = vsel %vm342, %v3519, %v3541
      %v3556 = vsel %vm346, %v3519, %v3541
      %v3558 = vrot.slane %v3556, 1
      %v3559 = vsel %vm350, %v3519, %v3541
      %v3561 = vrot.slane %v3559, 2
      %v3562 = vsel %vm354, %v3519, %v3541
      %v3564 = vrot.slane %v3562, 3
      %v3567 = vsel %vm342, %v3520, %v3542
      %v3569 = vsel %vm346, %v3520, %v3542
      %v3571 = vrot.slane %v3569, 1
      %v3572 = vsel %vm350, %v3520, %v3542
      %v3574 = vrot.slane %v3572, 2
      %v3575 = vsel %vm354, %v3520, %v3542
      %v3577 = vrot.slane %v3575, 3
      %v3580 = vsel %vm342, %v3521, %v3543
      %v3582 = vsel %vm346, %v3521, %v3543
      %v3584 = vrot.slane %v3582, 1
      %v3585 = vsel %vm350, %v3521, %v3543
      %v3587 = vrot.slane %v3585, 2
      %v3588 = vsel %vm354, %v3521, %v3543
      %v3590 = vrot.slane %v3588, 3
      %v3593 = vsel %vm342, %v3522, %v3544
      %v3595 = vsel %vm346, %v3522, %v3544
      %v3597 = vrot.slane %v3595, 1
      %v3598 = vsel %vm350, %v3522, %v3544
      %v3600 = vrot.slane %v3598, 2
      %v3601 = vsel %vm354, %v3522, %v3544
      %v3603 = vrot.slane %v3601, 3
      %v3606 = vsel %vm342, %v3523, %v3545
      %v3608 = vsel %vm346, %v3523, %v3545
      %v3610 = vrot.slane %v3608, 1
      %v3611 = vsel %vm350, %v3523, %v3545
      %v3613 = vrot.slane %v3611, 2
      %v3614 = vsel %vm354, %v3523, %v3545
      %v3616 = vrot.slane %v3614, 3
      %v3619 = vsel %vm342, %v3524, %v3546
      %v3621 = vsel %vm346, %v3524, %v3546
      %v3623 = vrot.slane %v3621, 1
      %v3624 = vsel %vm350, %v3524, %v3546
      %v3626 = vrot.slane %v3624, 2
      %v3627 = vsel %vm354, %v3524, %v3546
      %v3629 = vrot.slane %v3627, 3
      %v3632 = vsel %vm342, %v3525, %v3547
      %v3634 = vsel %vm346, %v3525, %v3547
      %v3636 = vrot.slane %v3634, 1
      %v3637 = vsel %vm350, %v3525, %v3547
      %v3639 = vrot.slane %v3637, 2
      %v3640 = vsel %vm354, %v3525, %v3547
      %v3642 = vrot.slane %v3640, 3
      %v3645 = vsel %vm342, %v3526, %v3548
      %v3647 = vsel %vm346, %v3526, %v3548
      %v3649 = vrot.slane %v3647, 1
      %v3650 = vsel %vm350, %v3526, %v3548
      %v3652 = vrot.slane %v3650, 2
      %v3653 = vsel %vm354, %v3526, %v3548
      %v3655 = vrot.slane %v3653, 3
      %v3658 = vsel %vm342, %v3527, %v3549
      %v3660 = vsel %vm346, %v3527, %v3549
      %v3662 = vrot.slane %v3660, 1
      %v3663 = vsel %vm350, %v3527, %v3549
      %v3665 = vrot.slane %v3663, 2
      %v3666 = vsel %vm354, %v3527, %v3549
      %v3668 = vrot.slane %v3666, 3
      %v3671 = vsel %vm342, %v3528, %v3550
      %v3673 = vsel %vm346, %v3528, %v3550
      %v3675 = vrot.slane %v3673, 1
      %v3676 = vsel %vm350, %v3528, %v3550
      %v3678 = vrot.slane %v3676, 2
      %v3679 = vsel %vm354, %v3528, %v3550
      %v3681 = vrot.slane %v3679, 3
      %v3684 = vsel %vm342, %v3529, %v3551
      %v3686 = vunpack.i.l.s16 %v3554
      %v3687 = vunpack.i.h.s16 %v3554
      %v3688 = vunpack.i.l.s16 %v3558
      %v3689 = vunpack.i.h.s16 %v3558
      %v3690 = vunpack.i.l.s16 %v3561
      %v3691 = vunpack.i.h.s16 %v3561
      %v3692 = vunpack.i.l.s16 %v3564
      %v3693 = vunpack.i.h.s16 %v3564
      %v3694 = vunpack.i.l.s16 %v3567
      %v3695 = vunpack.i.h.s16 %v3567
      %v3696 = vunpack.i.l.s16 %v3571
      %v3697 = vunpack.i.h.s16 %v3571
      %v3698 = vunpack.i.l.s16 %v3574
      %v3699 = vunpack.i.h.s16 %v3574
      %v3700 = vunpack.i.l.s16 %v3577
      %v3701 = vunpack.i.h.s16 %v3577
      %v3702 = vunpack.i.l.s16 %v3580
      %v3703 = vunpack.i.h.s16 %v3580
      %v3704 = vunpack.i.l.s16 %v3584
      %v3705 = vunpack.i.h.s16 %v3584
      %v3706 = vunpack.i.l.s16 %v3587
      %v3707 = vunpack.i.h.s16 %v3587
      %v3708 = vunpack.i.l.s16 %v3590
      %v3709 = vunpack.i.h.s16 %v3590
      %v3710 = vunpack.i.l.s16 %v3593
      %v3711 = vunpack.i.h.s16 %v3593
      %v3712 = vunpack.i.l.s16 %v3597
      %v3713 = vunpack.i.h.s16 %v3597
      %v3714 = vunpack.i.l.s16 %v3600
      %v3715 = vunpack.i.h.s16 %v3600
      %v3716 = vunpack.i.l.s16 %v3603
      %v3717 = vunpack.i.h.s16 %v3603
      %v3718 = vunpack.i.l.s16 %v3606
      %v3719 = vunpack.i.h.s16 %v3606
      %v3720 = vunpack.i.l.s16 %v3610
      %v3721 = vunpack.i.h.s16 %v3610
      %v3722 = vunpack.i.l.s16 %v3613
      %v3723 = vunpack.i.h.s16 %v3613
      %v3724 = vunpack.i.l.s16 %v3616
      %v3725 = vunpack.i.h.s16 %v3616
      %v3726 = vunpack.i.l.s16 %v3619
      %v3727 = vunpack.i.h.s16 %v3619
      %v3728 = vunpack.i.l.s16 %v3623
      %v3729 = vunpack.i.h.s16 %v3623
      %v3730 = vunpack.i.l.s16 %v3626
      %v3731 = vunpack.i.h.s16 %v3626
      %v3732 = vunpack.i.l.s16 %v3629
      %v3733 = vunpack.i.h.s16 %v3629
      %v3734 = vunpack.i.l.s16 %v3632
      %v3735 = vunpack.i.h.s16 %v3632
      %v3736 = vunpack.i.l.s16 %v3636
      %v3737 = vunpack.i.h.s16 %v3636
      %v3738 = vunpack.i.l.s16 %v3639
      %v3739 = vunpack.i.h.s16 %v3639
      %v3740 = vunpack.i.l.s16 %v3642
      %v3741 = vunpack.i.h.s16 %v3642
      %v3742 = vunpack.i.l.s16 %v3645
      %v3743 = vunpack.i.h.s16 %v3645
      %v3744 = vunpack.i.l.s16 %v3649
      %v3745 = vunpack.i.h.s16 %v3649
      %v3746 = vunpack.i.l.s16 %v3652
      %v3747 = vunpack.i.h.s16 %v3652
      %v3748 = vunpack.i.l.s16 %v3655
      %v3749 = vunpack.i.h.s16 %v3655
      %v3750 = vunpack.i.l.s16 %v3658
      %v3751 = vunpack.i.h.s16 %v3658
      %v3752 = vunpack.i.l.s16 %v3662
      %v3753 = vunpack.i.h.s16 %v3662
      %v3754 = vunpack.i.l.s16 %v3665
      %v3755 = vunpack.i.h.s16 %v3665
      %v3756 = vunpack.i.l.s16 %v3668
      %v3757 = vunpack.i.h.s16 %v3668
      %v3758 = vunpack.i.l.s16 %v3671
      %v3759 = vunpack.i.h.s16 %v3671
      %v3760 = vunpack.i.l.s16 %v3675
      %v3761 = vunpack.i.h.s16 %v3675
      %v3762 = vunpack.i.l.s16 %v3678
      %v3763 = vunpack.i.h.s16 %v3678
      %v3764 = vunpack.i.l.s16 %v3681
      %v3765 = vunpack.i.h.s16 %v3681
      %v3766 = vunpack.i.l.s16 %v3684
      %v3767 = vld [vmem:[%s5] sm:$0xf]
      %v3768 = vld [vmem:[%s5 + $0x4] sm:$0xf]
      %v3769 = vld [vmem:[%s5 + $0x8] sm:$0xf]
      %v3770 = vld [vmem:[%s5 + $0xc] sm:$0xf]
      %v3771 = vld [vmem:[%s5 + $0x10] sm:$0xf]
      %v3772 = vld [vmem:[%s5 + $0x14] sm:$0xf]
      %v3773 = vld [vmem:[%s5 + $0x18] sm:$0xf]
      %v3774 = vld [vmem:[%s5 + $0x1c] sm:$0xf]
      %s3775 = scalar_lea.vmem %s5, 32
      %v3776 = vld [vmem:[%s3775] sm:$0xf]
      %v3777 = vld [vmem:[%s3775 + $0x4] sm:$0xf]
      %v3778 = vld [vmem:[%s3775 + $0x8] sm:$0xf]
      %v3779 = vld [vmem:[%s3775 + $0xc] sm:$0xf]
      %v3780 = vld [vmem:[%s3775 + $0x10] sm:$0xf]
      %v3781 = vld [vmem:[%s3775 + $0x14] sm:$0xf]
      %v3782 = vld [vmem:[%s3775 + $0x18] sm:$0xf]
      %v3783 = vld [vmem:[%s3775 + $0x1c] sm:$0xf]
      %v3784 = vpack.i.b16 %v3688, %v3687
      %v3785 = vpack.i.b16 %v3690, %v3689
      %v3786 = vpack.i.b16 %v3692, %v3691
      %v3787 = vpack.i.b16 %v3696, %v3693
      %v3788 = vpack.i.b16 %v3698, %v3697
      %v3789 = vpack.i.b16 %v3700, %v3699
      %v3790 = vpack.i.b16 %v3702, %v3701
      %v3791 = vpack.i.b16 %v3706, %v3705
      %v3792 = vpack.i.b16 %v3708, %v3707
      %v3793 = vpack.i.b16 %v3710, %v3709
      %v3794 = vpack.i.b16 %v3714, %v3711
      %v3795 = vpack.i.b16 %v3716, %v3715
      %v3796 = vpack.i.b16 %v3718, %v3717
      %v3797 = vpack.i.b16 %v3720, %v3719
      %v3798 = vpack.i.b16 %v3724, %v3723
      %v3799 = vpack.i.b16 %v3726, %v3725
      %v3800 = vpack.i.b16 %v3728, %v3727
      %v3801 = vpack.i.b16 %v3732, %v3729
      %v3802 = vpack.i.b16 %v3734, %v3733
      %v3803 = vpack.i.b16 %v3736, %v3735
      %v3804 = vpack.i.b16 %v3738, %v3737
      %v3805 = vpack.i.b16 %v3742, %v3741
      %v3806 = vpack.i.b16 %v3744, %v3743
      %v3807 = vpack.i.b16 %v3746, %v3745
      %3810 = vst [vmem:[#allocation1] ss:$9 sm:$0xff] %v3784
      %s3812 = scalar_lea.vmem [#allocation1], 1
      %3813 = vst [vmem:[%s3812] ss:$9 sm:$0xff] %v3785
      %s3815 = scalar_lea.vmem [#allocation1], 2
      %3816 = vst [vmem:[%s3815] ss:$9 sm:$0xff] %v3786
      %s3818 = scalar_lea.vmem [#allocation1], 3
      %3819 = vst [vmem:[%s3818] ss:$9 sm:$0xff] %v3787
      %s3821 = scalar_lea.vmem [#allocation1], 4
      %3822 = vst [vmem:[%s3821] ss:$9 sm:$0xff] %v3788
      %s3824 = scalar_lea.vmem [#allocation1], 5
      %3825 = vst [vmem:[%s3824] ss:$9 sm:$0xff] %v3789
      %s3827 = scalar_lea.vmem [#allocation1], 6
      %3828 = vst [vmem:[%s3827] ss:$9 sm:$0xff] %v3790
      %s3830 = scalar_lea.vmem [#allocation1], 7
      %3831 = vst [vmem:[%s3830] ss:$9 sm:$0xff] %v3791
      %v3832 = vld [vmem:[#allocation1] sm:$0xff]
      %3834 = vst [vmem:[#allocation1] ss:$9 sm:$0xff] %v3792
      %3836 = vst [vmem:[%s3812] ss:$9 sm:$0xff] %v3793
      %3838 = vst [vmem:[%s3815] ss:$9 sm:$0xff] %v3794
      %3840 = vst [vmem:[%s3818] ss:$9 sm:$0xff] %v3795
      %3842 = vst [vmem:[%s3821] ss:$9 sm:$0xff] %v3796
      %3844 = vst [vmem:[%s3824] ss:$9 sm:$0xff] %v3797
      %3846 = vst [vmem:[%s3827] ss:$9 sm:$0xff] %v3798
      %3848 = vst [vmem:[%s3830] ss:$9 sm:$0xff] %v3799
      %v3849 = vld [vmem:[#allocation1] sm:$0xff]
      %3851 = vst [vmem:[#allocation1] ss:$9 sm:$0xff] %v3800
      %3853 = vst [vmem:[%s3812] ss:$9 sm:$0xff] %v3801
      %3855 = vst [vmem:[%s3815] ss:$9 sm:$0xff] %v3802
      %3857 = vst [vmem:[%s3818] ss:$9 sm:$0xff] %v3803
      %3859 = vst [vmem:[%s3821] ss:$9 sm:$0xff] %v3804
      %3861 = vst [vmem:[%s3824] ss:$9 sm:$0xff] %v3805
      %3863 = vst [vmem:[%s3827] ss:$9 sm:$0xff] %v3806
      %3865 = vst [vmem:[%s3830] ss:$9 sm:$0xff] %v3807
      %v3866 = vld [vmem:[#allocation1] sm:$0xff]
      %3868 = vst [vmem:[#allocation1] ss:$9 sm:$0xff] %v3747
      %v3869 = vld [vmem:[#allocation1] sm:$0xff]
      %v3878 = vunpack.c.l.b16 %v3776
      %v3879 = vunpack.c.l.b16 %v3777
      %v3880 = vunpack.c.l.b16 %v3778
      %v3881 = vunpack.c.l.b16 %v3779
      %v3882 = vunpack.c.l.b16 %v3780
      %v3883 = vunpack.c.l.b16 %v3781
      %v3884 = vunpack.c.l.b16 %v3782
      %v3885 = vunpack.c.l.b16 %v3783
      %v3886 = vpack.c.b16 %v3879, %v3878
      %v3887 = vpack.c.b16 %v3881, %v3880
      %v3888 = vpack.c.b16 %v3883, %v3882
      %v3889 = vpack.c.b16 %v3885, %v3884
      %vm3894 = vcmask 523264
      %v3895 = vsel %vm3894, %v3832, 0
      %v3897 = vsel %vm3894, %v3849, 0
      %v3899 = vsel %vm3894, %v3866, 0
      %v3901 = vsel %vm3894, %v3869, 0
      %3903 = vmatpush.bf16.msra.mxu0 0
      %3904 = vmatpush.bf16.msra.mxu0 0
      %3905 = vmatpush.bf16.msra.mxu0 0
      %3906 = vmatpush.bf16.msra.mxu0 0
      %3907 = vmatpush.bf16.msra.mxu0 %v3889
      %3908 = vmatpush.bf16.msra.mxu0 %v3888
      %3909 = vmatpush.bf16.msra.mxu0 %v3887
      %3910 = vmatpush.bf16.msra.mxu0 %v3886
      %3911 = vmatmul.bf16.gmra.mxu0 %v3895
      %v3912 = vpop.f32.mrf.mxu0
      %v3913 = vadd.f32 0.0, %v3912
      %v3914 = vpop.f32.mrf.mxu0
      %v3915 = vadd.f32 0.0, %v3914
      %3916 = vmatmul.bf16.gmra.mxu0 %v3897
      %v3917 = vpop.f32.mrf.mxu0
      %v3918 = vadd.f32 0.0, %v3917
      %v3919 = vpop.f32.mrf.mxu0
      %v3920 = vadd.f32 0.0, %v3919
      %3921 = vmatmul.bf16.gmra.mxu0 %v3899
      %v3922 = vpop.f32.mrf.mxu0
      %v3923 = vadd.f32 0.0, %v3922
      %v3924 = vpop.f32.mrf.mxu0
      %v3925 = vadd.f32 0.0, %v3924
      %3926 = vmatmul.bf16.gmra.mxu0 %v3901
      %v3927 = vpop.f32.mrf.mxu0
      %v3928 = vadd.f32 0.0, %v3927
      %v3929 = vpop.f32.mrf.mxu0
      %3930 = vdwg.mxu0
      %v3931 = vpack.i.b16 %v3687, %v3686
      %v3932 = vpack.i.b16 %v3689, %v3688
      %v3933 = vpack.i.b16 %v3691, %v3690
      %v3934 = vpack.i.b16 %v3695, %v3692
      %v3935 = vpack.i.b16 %v3697, %v3696
      %v3936 = vpack.i.b16 %v3699, %v3698
      %v3937 = vpack.i.b16 %v3701, %v3700
      %v3938 = vpack.i.b16 %v3705, %v3704
      %v3939 = vpack.i.b16 %v3707, %v3706
      %v3940 = vpack.i.b16 %v3709, %v3708
      %v3941 = vpack.i.b16 %v3713, %v3710
      %v3942 = vpack.i.b16 %v3715, %v3714
      %v3943 = vpack.i.b16 %v3717, %v3716
      %v3944 = vpack.i.b16 %v3719, %v3718
      %v3945 = vpack.i.b16 %v3723, %v3722
      %v3946 = vpack.i.b16 %v3725, %v3724
      %v3947 = vpack.i.b16 %v3727, %v3726
      %v3948 = vpack.i.b16 %v3731, %v3728
      %v3949 = vpack.i.b16 %v3733, %v3732
      %v3950 = vpack.i.b16 %v3735, %v3734
      %v3951 = vpack.i.b16 %v3737, %v3736
      %v3952 = vpack.i.b16 %v3741, %v3740
      %v3953 = vpack.i.b16 %v3743, %v3742
      %v3954 = vpack.i.b16 %v3745, %v3744
      %3957 = vst [vmem:[#allocation1] ss:$9 sm:$0xff] %v3931
      %s3959 = scalar_lea.vmem [#allocation1], 1
      %3960 = vst [vmem:[%s3959] ss:$9 sm:$0xff] %v3932
      %s3962 = scalar_lea.vmem [#allocation1], 2
      %3963 = vst [vmem:[%s3962] ss:$9 sm:$0xff] %v3933
      %s3965 = scalar_lea.vmem [#allocation1], 3
      %3966 = vst [vmem:[%s3965] ss:$9 sm:$0xff] %v3934
      %s3968 = scalar_lea.vmem [#allocation1], 4
      %3969 = vst [vmem:[%s3968] ss:$9 sm:$0xff] %v3935
      %s3971 = scalar_lea.vmem [#allocation1], 5
      %3972 = vst [vmem:[%s3971] ss:$9 sm:$0xff] %v3936
      %s3974 = scalar_lea.vmem [#allocation1], 6
      %3975 = vst [vmem:[%s3974] ss:$9 sm:$0xff] %v3937
      %s3977 = scalar_lea.vmem [#allocation1], 7
      %3978 = vst [vmem:[%s3977] ss:$9 sm:$0xff] %v3938
      %v3979 = vld [vmem:[#allocation1] sm:$0xff]
      %3981 = vst [vmem:[#allocation1] ss:$9 sm:$0xff] %v3939
      %3983 = vst [vmem:[%s3959] ss:$9 sm:$0xff] %v3940
      %3985 = vst [vmem:[%s3962] ss:$9 sm:$0xff] %v3941
      %3987 = vst [vmem:[%s3965] ss:$9 sm:$0xff] %v3942
      %3989 = vst [vmem:[%s3968] ss:$9 sm:$0xff] %v3943
      %3991 = vst [vmem:[%s3971] ss:$9 sm:$0xff] %v3944
      %3993 = vst [vmem:[%s3974] ss:$9 sm:$0xff] %v3945
      %3995 = vst [vmem:[%s3977] ss:$9 sm:$0xff] %v3946
      %v3996 = vld [vmem:[#allocation1] sm:$0xff]
      %3998 = vst [vmem:[#allocation1] ss:$9 sm:$0xff] %v3947
      %4000 = vst [vmem:[%s3959] ss:$9 sm:$0xff] %v3948
      %4002 = vst [vmem:[%s3962] ss:$9 sm:$0xff] %v3949
      %4004 = vst [vmem:[%s3965] ss:$9 sm:$0xff] %v3950
      %4006 = vst [vmem:[%s3968] ss:$9 sm:$0xff] %v3951
      %4008 = vst [vmem:[%s3971] ss:$9 sm:$0xff] %v3952
      %4010 = vst [vmem:[%s3974] ss:$9 sm:$0xff] %v3953
      %4012 = vst [vmem:[%s3977] ss:$9 sm:$0xff] %v3954
      %v4013 = vld [vmem:[#allocation1] sm:$0xff]
      %4015 = vst [vmem:[#allocation1] ss:$9 sm:$0xff] %v3746
      %v4016 = vld [vmem:[#allocation1] sm:$0xff]
      %v4025 = vunpack.c.l.b16 %v3767
      %v4026 = vunpack.c.l.b16 %v3768
      %v4027 = vunpack.c.l.b16 %v3769
      %v4028 = vunpack.c.l.b16 %v3770
      %v4029 = vunpack.c.l.b16 %v3771
      %v4030 = vunpack.c.l.b16 %v3772
      %v4031 = vunpack.c.l.b16 %v3773
      %v4032 = vunpack.c.l.b16 %v3774
      %v4033 = vpack.c.b16 %v4026, %v4025
      %v4034 = vpack.c.b16 %v4028, %v4027
      %v4035 = vpack.c.b16 %v4030, %v4029
      %v4036 = vpack.c.b16 %v4032, %v4031
      %v4041 = vsel %vm3894, %v3979, 0
      %v4043 = vsel %vm3894, %v3996, 0
      %v4045 = vsel %vm3894, %v4013, 0
      %v4047 = vsel %vm3894, %v4016, 0
      %4049 = vmatpush.bf16.msra.mxu0 0
      %4050 = vmatpush.bf16.msra.mxu0 0
      %4051 = vmatpush.bf16.msra.mxu0 0
      %4052 = vmatpush.bf16.msra.mxu0 0
      %4053 = vmatpush.bf16.msra.mxu0 %v4036
      %4054 = vmatpush.bf16.msra.mxu0 %v4035
      %4055 = vmatpush.bf16.msra.mxu0 %v4034
      %4056 = vmatpush.bf16.msra.mxu0 %v4033
      %4057 = vmatmul.bf16.gmra.mxu0 %v4041
      %v4058 = vpop.f32.mrf.mxu0
      %v4059 = vadd.f32 %v3913, %v4058
      %v4060 = vpop.f32.mrf.mxu0
      %v4061 = vadd.f32 %v3915, %v4060
      %4062 = vmatmul.bf16.gmra.mxu0 %v4043
      %v4063 = vpop.f32.mrf.mxu0
      %v4064 = vadd.f32 %v3918, %v4063
      %v4065 = vpop.f32.mrf.mxu0
      %v4066 = vadd.f32 %v3920, %v4065
      %4067 = vmatmul.bf16.gmra.mxu0 %v4045
      %v4068 = vpop.f32.mrf.mxu0
      %v4069 = vadd.f32 %v3923, %v4068
      %v4070 = vpop.f32.mrf.mxu0
      %v4071 = vadd.f32 %v3925, %v4070
      %4072 = vmatmul.bf16.gmra.mxu0 %v4047
      %v4073 = vpop.f32.mrf.mxu0
      %v4074 = vadd.f32 %v3928, %v4073
      %v4075 = vpop.f32.mrf.mxu0
      %4076 = vdwg.mxu0
      %s4077 = scalar_lea.vmem %s5, 64
      %v4078 = vld [vmem:[%s4077] sm:$0xf]
      %v4079 = vld [vmem:[%s4077 + $0x4] sm:$0xf]
      %v4080 = vld [vmem:[%s4077 + $0x8] sm:$0xf]
      %v4081 = vld [vmem:[%s4077 + $0xc] sm:$0xf]
      %v4082 = vld [vmem:[%s4077 + $0x10] sm:$0xf]
      %v4083 = vld [vmem:[%s4077 + $0x14] sm:$0xf]
      %v4084 = vld [vmem:[%s4077 + $0x18] sm:$0xf]
      %v4085 = vld [vmem:[%s4077 + $0x1c] sm:$0xf]
      %v4086 = vpack.i.b16 %v3693, %v3692
      %v4087 = vpack.i.b16 %v3697, %v3694
      %v4088 = vpack.i.b16 %v3703, %v3702
      %v4089 = vpack.i.b16 %v3711, %v3710
      %v4090 = vpack.i.b16 %v3715, %v3712
      %v4091 = vpack.i.b16 %v3721, %v3720
      %v4092 = vpack.i.b16 %v3729, %v3728
      %v4093 = vpack.i.b16 %v3733, %v3730
      %v4094 = vpack.i.b16 %v3739, %v3738
      %v4095 = vpack.i.b16 %v3747, %v3746
      %4097 = vst [vmem:[#allocation1] ss:$9 sm:$0xff] %v3932
      %s4098 = scalar_lea.vmem [#allocation1], 1
      %4099 = vst [vmem:[%s4098] ss:$9 sm:$0xff] %v3933
      %s4101 = scalar_lea.vmem [#allocation1], 2
      %4102 = vst [vmem:[%s4101] ss:$9 sm:$0xff] %v4086
      %s4104 = scalar_lea.vmem [#allocation1], 3
      %4105 = vst [vmem:[%s4104] ss:$9 sm:$0xff] %v4087
      %s4106 = scalar_lea.vmem [#allocation1], 4
      %4107 = vst [vmem:[%s4106] ss:$9 sm:$0xff] %v3936
      %s4108 = scalar_lea.vmem [#allocation1], 5
      %4109 = vst [vmem:[%s4108] ss:$9 sm:$0xff] %v3937
      %s4111 = scalar_lea.vmem [#allocation1], 6
      %4112 = vst [vmem:[%s4111] ss:$9 sm:$0xff] %v4088
      %s4113 = scalar_lea.vmem [#allocation1], 7
      %4114 = vst [vmem:[%s4113] ss:$9 sm:$0xff] %v3939
      %v4115 = vld [vmem:[#allocation1] sm:$0xff]
      %4116 = vst [vmem:[#allocation1] ss:$9 sm:$0xff] %v3940
      %4118 = vst [vmem:[%s4098] ss:$9 sm:$0xff] %v4089
      %4120 = vst [vmem:[%s4101] ss:$9 sm:$0xff] %v4090
      %4121 = vst [vmem:[%s4104] ss:$9 sm:$0xff] %v3943
      %4122 = vst [vmem:[%s4106] ss:$9 sm:$0xff] %v3944
      %4124 = vst [vmem:[%s4108] ss:$9 sm:$0xff] %v4091
      %4125 = vst [vmem:[%s4111] ss:$9 sm:$0xff] %v3946
      %4126 = vst [vmem:[%s4113] ss:$9 sm:$0xff] %v3947
      %v4127 = vld [vmem:[#allocation1] sm:$0xff]
      %4129 = vst [vmem:[#allocation1] ss:$9 sm:$0xff] %v4092
      %4131 = vst [vmem:[%s4098] ss:$9 sm:$0xff] %v4093
      %4132 = vst [vmem:[%s4101] ss:$9 sm:$0xff] %v3950
      %4133 = vst [vmem:[%s4104] ss:$9 sm:$0xff] %v3951
      %4135 = vst [vmem:[%s4106] ss:$9 sm:$0xff] %v4094
      %4136 = vst [vmem:[%s4108] ss:$9 sm:$0xff] %v3953
      %4137 = vst [vmem:[%s4111] ss:$9 sm:$0xff] %v3954
      %4139 = vst [vmem:[%s4113] ss:$9 sm:$0xff] %v4095
      %v4140 = vld [vmem:[#allocation1] sm:$0xff]
      %4142 = vst [vmem:[#allocation1] ss:$9 sm:$0xff] %v3748
      %v4143 = vld [vmem:[#allocation1] sm:$0xff]
      %v4152 = vunpack.c.l.b16 %v4078
      %v4153 = vunpack.c.l.b16 %v4079
      %v4154 = vunpack.c.l.b16 %v4080
      %v4155 = vunpack.c.l.b16 %v4081
      %v4156 = vunpack.c.l.b16 %v4082
      %v4157 = vunpack.c.l.b16 %v4083
      %v4158 = vunpack.c.l.b16 %v4084
      %v4159 = vunpack.c.l.b16 %v4085
      %v4160 = vpack.c.b16 %v4153, %v4152
      %v4161 = vpack.c.b16 %v4155, %v4154
      %v4162 = vpack.c.b16 %v4157, %v4156
      %v4163 = vpack.c.b16 %v4159, %v4158
      %v4168 = vsel %vm3894, %v4115, 0
      %v4170 = vsel %vm3894, %v4127, 0
      %v4172 = vsel %vm3894, %v4140, 0
      %v4174 = vsel %vm3894, %v4143, 0
      %4176 = vmatpush.bf16.msra.mxu0 0
      %4177 = vmatpush.bf16.msra.mxu0 0
      %4178 = vmatpush.bf16.msra.mxu0 0
      %4179 = vmatpush.bf16.msra.mxu0 0
      %4180 = vmatpush.bf16.msra.mxu0 %v4163
      %4181 = vmatpush.bf16.msra.mxu0 %v4162
      %4182 = vmatpush.bf16.msra.mxu0 %v4161
      %4183 = vmatpush.bf16.msra.mxu0 %v4160
      %4184 = vmatmul.bf16.gmra.mxu0 %v4168
      %v4185 = vpop.f32.mrf.mxu0
      %v4186 = vadd.f32 0.0, %v4185
      %v4187 = vpop.f32.mrf.mxu0
      %v4188 = vadd.f32 0.0, %v4187
      %4189 = vmatmul.bf16.gmra.mxu0 %v4170
      %v4190 = vpop.f32.mrf.mxu0
      %v4191 = vadd.f32 0.0, %v4190
      %v4192 = vpop.f32.mrf.mxu0
      %v4193 = vadd.f32 0.0, %v4192
      %4194 = vmatmul.bf16.gmra.mxu0 %v4172
      %v4195 = vpop.f32.mrf.mxu0
      %v4196 = vadd.f32 0.0, %v4195
      %v4197 = vpop.f32.mrf.mxu0
      %v4198 = vadd.f32 0.0, %v4197
      %4199 = vmatmul.bf16.gmra.mxu0 %v4174
      %v4200 = vpop.f32.mrf.mxu0
      %v4201 = vadd.f32 0.0, %v4200
      %v4202 = vpop.f32.mrf.mxu0
      %4203 = vdwg.mxu0
      %v4204 = vadd.f32 %v4059, %v4186
      %v4205 = vadd.f32 %v4061, %v4188
      %v4206 = vadd.f32 %v4064, %v4191
      %v4207 = vadd.f32 %v4066, %v4193
      %v4208 = vadd.f32 %v4069, %v4196
      %v4209 = vadd.f32 %v4071, %v4198
      %v4210 = vadd.f32 %v4074, %v4201
      %s4211 = scalar_lea.vmem %s5, 96
      %v4212 = vld [vmem:[%s4211] sm:$0xf]
      %v4213 = vld [vmem:[%s4211 + $0x4] sm:$0xf]
      %v4214 = vld [vmem:[%s4211 + $0x8] sm:$0xf]
      %v4215 = vld [vmem:[%s4211 + $0xc] sm:$0xf]
      %v4216 = vld [vmem:[%s4211 + $0x10] sm:$0xf]
      %v4217 = vld [vmem:[%s4211 + $0x14] sm:$0xf]
      %v4218 = vld [vmem:[%s4211 + $0x18] sm:$0xf]
      %v4219 = vld [vmem:[%s4211 + $0x1c] sm:$0xf]
      %v4220 = vpack.i.b16 %v3696, %v3695
      %v4221 = vpack.i.b16 %v3704, %v3701
      %v4222 = vpack.i.b16 %v3714, %v3713
      %v4223 = vpack.i.b16 %v3722, %v3719
      %v4224 = vpack.i.b16 %v3732, %v3731
      %v4225 = vpack.i.b16 %v3740, %v3737
      %v4226 = vpack.i.b16 %v3750, %v3749
      %v4227 = vpack.i.b16 %v3752, %v3751
      %v4228 = vpack.i.b16 %v3754, %v3753
      %4231 = vst [vmem:[#allocation1] ss:$9 sm:$0xff] %v4220
      %s4232 = scalar_lea.vmem [#allocation1], 1
      %4233 = vst [vmem:[%s4232] ss:$9 sm:$0xff] %v3788
      %s4234 = scalar_lea.vmem [#allocation1], 2
      %4235 = vst [vmem:[%s4234] ss:$9 sm:$0xff] %v3789
      %s4237 = scalar_lea.vmem [#allocation1], 3
      %4238 = vst [vmem:[%s4237] ss:$9 sm:$0xff] %v4221
      %s4239 = scalar_lea.vmem [#allocation1], 4
      %4240 = vst [vmem:[%s4239] ss:$9 sm:$0xff] %v3791
      %s4241 = scalar_lea.vmem [#allocation1], 5
      %4242 = vst [vmem:[%s4241] ss:$9 sm:$0xff] %v3792
      %s4243 = scalar_lea.vmem [#allocation1], 6
      %4244 = vst [vmem:[%s4243] ss:$9 sm:$0xff] %v3793
      %s4246 = scalar_lea.vmem [#allocation1], 7
      %4247 = vst [vmem:[%s4246] ss:$9 sm:$0xff] %v4222
      %v4248 = vld [vmem:[#allocation1] sm:$0xff]
      %4249 = vst [vmem:[#allocation1] ss:$9 sm:$0xff] %v3795
      %4250 = vst [vmem:[%s4232] ss:$9 sm:$0xff] %v3796
      %4252 = vst [vmem:[%s4234] ss:$9 sm:$0xff] %v4223
      %4253 = vst [vmem:[%s4237] ss:$9 sm:$0xff] %v3798
      %4254 = vst [vmem:[%s4239] ss:$9 sm:$0xff] %v3799
      %4255 = vst [vmem:[%s4241] ss:$9 sm:$0xff] %v3800
      %4257 = vst [vmem:[%s4243] ss:$9 sm:$0xff] %v4224
      %4258 = vst [vmem:[%s4246] ss:$9 sm:$0xff] %v3802
      %v4259 = vld [vmem:[#allocation1] sm:$0xff]
      %4260 = vst [vmem:[#allocation1] ss:$9 sm:$0xff] %v3803
      %4262 = vst [vmem:[%s4232] ss:$9 sm:$0xff] %v4225
      %4263 = vst [vmem:[%s4234] ss:$9 sm:$0xff] %v3805
      %4264 = vst [vmem:[%s4237] ss:$9 sm:$0xff] %v3806
      %4265 = vst [vmem:[%s4239] ss:$9 sm:$0xff] %v3807
      %4267 = vst [vmem:[%s4241] ss:$9 sm:$0xff] %v4226
      %4269 = vst [vmem:[%s4243] ss:$9 sm:$0xff] %v4227
      %4271 = vst [vmem:[%s4246] ss:$9 sm:$0xff] %v4228
      %v4272 = vld [vmem:[#allocation1] sm:$0xff]
      %4274 = vst [vmem:[#allocation1] ss:$9 sm:$0xff] %v3755
      %v4275 = vld [vmem:[#allocation1] sm:$0xff]
      %v4284 = vunpack.c.l.b16 %v4212
      %v4285 = vunpack.c.l.b16 %v4213
      %v4286 = vunpack.c.l.b16 %v4214
      %v4287 = vunpack.c.l.b16 %v4215
      %v4288 = vunpack.c.l.b16 %v4216
      %v4289 = vunpack.c.l.b16 %v4217
      %v4290 = vunpack.c.l.b16 %v4218
      %v4291 = vunpack.c.l.b16 %v4219
      %v4292 = vpack.c.b16 %v4285, %v4284
      %v4293 = vpack.c.b16 %v4287, %v4286
      %v4294 = vpack.c.b16 %v4289, %v4288
      %v4295 = vpack.c.b16 %v4291, %v4290
      %v4300 = vsel %vm3894, %v4248, 0
      %v4302 = vsel %vm3894, %v4259, 0
      %v4304 = vsel %vm3894, %v4272, 0
      %v4306 = vsel %vm3894, %v4275, 0
      %4308 = vmatpush.bf16.msra.mxu0 0
      %4309 = vmatpush.bf16.msra.mxu0 0
      %4310 = vmatpush.bf16.msra.mxu0 0
      %4311 = vmatpush.bf16.msra.mxu0 0
      %4312 = vmatpush.bf16.msra.mxu0 %v4295
      %4313 = vmatpush.bf16.msra.mxu0 %v4294
      %4314 = vmatpush.bf16.msra.mxu0 %v4293
      %4315 = vmatpush.bf16.msra.mxu0 %v4292
      %4316 = vmatmul.bf16.gmra.mxu0 %v4300
      %v4317 = vpop.f32.mrf.mxu0
      %v4318 = vadd.f32 0.0, %v4317
      %v4319 = vpop.f32.mrf.mxu0
      %v4320 = vadd.f32 0.0, %v4319
      %4321 = vmatmul.bf16.gmra.mxu0 %v4302
      %v4322 = vpop.f32.mrf.mxu0
      %v4323 = vadd.f32 0.0, %v4322
      %v4324 = vpop.f32.mrf.mxu0
      %v4325 = vadd.f32 0.0, %v4324
      %4326 = vmatmul.bf16.gmra.mxu0 %v4304
      %v4327 = vpop.f32.mrf.mxu0
      %v4328 = vadd.f32 0.0, %v4327
      %v4329 = vpop.f32.mrf.mxu0
      %v4330 = vadd.f32 0.0, %v4329
      %4331 = vmatmul.bf16.gmra.mxu0 %v4306
      %v4332 = vpop.f32.mrf.mxu0
      %v4333 = vadd.f32 0.0, %v4332
      %v4334 = vpop.f32.mrf.mxu0
      %4335 = vdwg.mxu0
      %v4336 = vadd.f32 %v4204, %v4318
      %v4337 = vadd.f32 %v4205, %v4320
      %v4338 = vadd.f32 %v4206, %v4323
      %v4339 = vadd.f32 %v4207, %v4325
      %v4340 = vadd.f32 %v4208, %v4328
      %v4341 = vadd.f32 %v4209, %v4330
      %v4342 = vadd.f32 %v4210, %v4333
      %s4343 = scalar_lea.vmem %s5, 128
      %v4344 = vld [vmem:[%s4343] sm:$0xf]
      %v4345 = vld [vmem:[%s4343 + $0x4] sm:$0xf]
      %v4346 = vld [vmem:[%s4343 + $0x8] sm:$0xf]
      %v4347 = vld [vmem:[%s4343 + $0xc] sm:$0xf]
      %v4348 = vld [vmem:[%s4343 + $0x10] sm:$0xf]
      %v4349 = vld [vmem:[%s4343 + $0x14] sm:$0xf]
      %v4350 = vld [vmem:[%s4343 + $0x18] sm:$0xf]
      %v4351 = vld [vmem:[%s4343 + $0x1c] sm:$0xf]
      %v4352 = vpack.i.b16 %v3705, %v3702
      %v4353 = vpack.i.b16 %v3723, %v3720
      %v4354 = vpack.i.b16 %v3741, %v3738
      %v4355 = vpack.i.b16 %v3751, %v3750
      %v4356 = vpack.i.b16 %v3753, %v3752
      %v4357 = vpack.i.b16 %v3755, %v3754
      %4359 = vst [vmem:[#allocation1] ss:$9 sm:$0xff] %v3935
      %s4360 = scalar_lea.vmem [#allocation1], 1
      %4361 = vst [vmem:[%s4360] ss:$9 sm:$0xff] %v3936
      %s4362 = scalar_lea.vmem [#allocation1], 2
      %4363 = vst [vmem:[%s4362] ss:$9 sm:$0xff] %v3937
      %s4365 = scalar_lea.vmem [#allocation1], 3
      %4366 = vst [vmem:[%s4365] ss:$9 sm:$0xff] %v4352
      %s4367 = scalar_lea.vmem [#allocation1], 4
      %4368 = vst [vmem:[%s4367] ss:$9 sm:$0xff] %v3939
      %s4369 = scalar_lea.vmem [#allocation1], 5
      %4370 = vst [vmem:[%s4369] ss:$9 sm:$0xff] %v3940
      %s4371 = scalar_lea.vmem [#allocation1], 6
      %4372 = vst [vmem:[%s4371] ss:$9 sm:$0xff] %v4089
      %s4373 = scalar_lea.vmem [#allocation1], 7
      %4374 = vst [vmem:[%s4373] ss:$9 sm:$0xff] %v3942
      %v4375 = vld [vmem:[#allocation1] sm:$0xff]
      %4376 = vst [vmem:[#allocation1] ss:$9 sm:$0xff] %v3943
      %4377 = vst [vmem:[%s4360] ss:$9 sm:$0xff] %v3944
      %4379 = vst [vmem:[%s4362] ss:$9 sm:$0xff] %v4353
      %4380 = vst [vmem:[%s4365] ss:$9 sm:$0xff] %v3946
      %4381 = vst [vmem:[%s4367] ss:$9 sm:$0xff] %v3947
      %4382 = vst [vmem:[%s4369] ss:$9 sm:$0xff] %v4092
      %4383 = vst [vmem:[%s4371] ss:$9 sm:$0xff] %v3949
      %4384 = vst [vmem:[%s4373] ss:$9 sm:$0xff] %v3950
      %v4385 = vld [vmem:[#allocation1] sm:$0xff]
      %4386 = vst [vmem:[#allocation1] ss:$9 sm:$0xff] %v3951
      %4388 = vst [vmem:[%s4360] ss:$9 sm:$0xff] %v4354
      %4389 = vst [vmem:[%s4362] ss:$9 sm:$0xff] %v3953
      %4390 = vst [vmem:[%s4365] ss:$9 sm:$0xff] %v3954
      %4391 = vst [vmem:[%s4367] ss:$9 sm:$0xff] %v4095
      %4393 = vst [vmem:[%s4369] ss:$9 sm:$0xff] %v4355
      %4395 = vst [vmem:[%s4371] ss:$9 sm:$0xff] %v4356
      %4397 = vst [vmem:[%s4373] ss:$9 sm:$0xff] %v4357
      %v4398 = vld [vmem:[#allocation1] sm:$0xff]
      %4400 = vst [vmem:[#allocation1] ss:$9 sm:$0xff] %v3756
      %v4401 = vld [vmem:[#allocation1] sm:$0xff]
      %v4410 = vunpack.c.l.b16 %v4344
      %v4411 = vunpack.c.l.b16 %v4345
      %v4412 = vunpack.c.l.b16 %v4346
      %v4413 = vunpack.c.l.b16 %v4347
      %v4414 = vunpack.c.l.b16 %v4348
      %v4415 = vunpack.c.l.b16 %v4349
      %v4416 = vunpack.c.l.b16 %v4350
      %v4417 = vunpack.c.l.b16 %v4351
      %v4418 = vpack.c.b16 %v4411, %v4410
      %v4419 = vpack.c.b16 %v4413, %v4412
      %v4420 = vpack.c.b16 %v4415, %v4414
      %v4421 = vpack.c.b16 %v4417, %v4416
      %v4426 = vsel %vm3894, %v4375, 0
      %v4428 = vsel %vm3894, %v4385, 0
      %v4430 = vsel %vm3894, %v4398, 0
      %v4432 = vsel %vm3894, %v4401, 0
      %4434 = vmatpush.bf16.msra.mxu0 0
      %4435 = vmatpush.bf16.msra.mxu0 0
      %4436 = vmatpush.bf16.msra.mxu0 0
      %4437 = vmatpush.bf16.msra.mxu0 0
      %4438 = vmatpush.bf16.msra.mxu0 %v4421
      %4439 = vmatpush.bf16.msra.mxu0 %v4420
      %4440 = vmatpush.bf16.msra.mxu0 %v4419
      %4441 = vmatpush.bf16.msra.mxu0 %v4418
      %4442 = vmatmul.bf16.gmra.mxu0 %v4426
      %v4443 = vpop.f32.mrf.mxu0
      %v4444 = vadd.f32 0.0, %v4443
      %v4445 = vpop.f32.mrf.mxu0
      %v4446 = vadd.f32 0.0, %v4445
      %4447 = vmatmul.bf16.gmra.mxu0 %v4428
      %v4448 = vpop.f32.mrf.mxu0
      %v4449 = vadd.f32 0.0, %v4448
      %v4450 = vpop.f32.mrf.mxu0
      %v4451 = vadd.f32 0.0, %v4450
      %4452 = vmatmul.bf16.gmra.mxu0 %v4430
      %v4453 = vpop.f32.mrf.mxu0
      %v4454 = vadd.f32 0.0, %v4453
      %v4455 = vpop.f32.mrf.mxu0
      %v4456 = vadd.f32 0.0, %v4455
      %4457 = vmatmul.bf16.gmra.mxu0 %v4432
      %v4458 = vpop.f32.mrf.mxu0
      %v4459 = vadd.f32 0.0, %v4458
      %v4460 = vpop.f32.mrf.mxu0
      %4461 = vdwg.mxu0
      %v4462 = vadd.f32 %v4336, %v4444
      %v4463 = vadd.f32 %v4337, %v4446
      %v4464 = vadd.f32 %v4338, %v4449
      %v4465 = vadd.f32 %v4339, %v4451
      %v4466 = vadd.f32 %v4340, %v4454
      %v4467 = vadd.f32 %v4341, %v4456
      %v4468 = vadd.f32 %v4342, %v4459
      %s4469 = scalar_lea.vmem %s5, 160
      %v4470 = vld [vmem:[%s4469] sm:$0xf]
      %v4471 = vld [vmem:[%s4469 + $0x4] sm:$0xf]
      %v4472 = vld [vmem:[%s4469 + $0x8] sm:$0xf]
      %v4473 = vld [vmem:[%s4469 + $0xc] sm:$0xf]
      %v4474 = vld [vmem:[%s4469 + $0x10] sm:$0xf]
      %v4475 = vld [vmem:[%s4469 + $0x14] sm:$0xf]
      %v4476 = vld [vmem:[%s4469 + $0x18] sm:$0xf]
      %v4477 = vld [vmem:[%s4469 + $0x1c] sm:$0xf]
      %v4478 = vpack.i.b16 %v3706, %v3703
      %v4479 = vpack.i.b16 %v3712, %v3711
      %v4480 = vpack.i.b16 %v3724, %v3721
      %v4481 = vpack.i.b16 %v3730, %v3729
      %v4482 = vpack.i.b16 %v3742, %v3739
      %v4483 = vpack.i.b16 %v3748, %v3747
      %v4484 = vpack.i.b16 %v3756, %v3755
      %4486 = vst [vmem:[#allocation1] ss:$9 sm:$0xff] %v3788
      %s4487 = scalar_lea.vmem [#allocation1], 1
      %4488 = vst [vmem:[%s4487] ss:$9 sm:$0xff] %v3789
      %s4489 = scalar_lea.vmem [#allocation1], 2
      %4490 = vst [vmem:[%s4489] ss:$9 sm:$0xff] %v3790
      %s4492 = scalar_lea.vmem [#allocation1], 3
      %4493 = vst [vmem:[%s4492] ss:$9 sm:$0xff] %v4478
      %s4494 = scalar_lea.vmem [#allocation1], 4
      %4495 = vst [vmem:[%s4494] ss:$9 sm:$0xff] %v3792
      %s4496 = scalar_lea.vmem [#allocation1], 5
      %4497 = vst [vmem:[%s4496] ss:$9 sm:$0xff] %v3793
      %s4499 = scalar_lea.vmem [#allocation1], 6
      %4500 = vst [vmem:[%s4499] ss:$9 sm:$0xff] %v4479
      %s4501 = scalar_lea.vmem [#allocation1], 7
      %4502 = vst [vmem:[%s4501] ss:$9 sm:$0xff] %v3795
      %v4503 = vld [vmem:[#allocation1] sm:$0xff]
      %4504 = vst [vmem:[#allocation1] ss:$9 sm:$0xff] %v3796
      %4505 = vst [vmem:[%s4487] ss:$9 sm:$0xff] %v3797
      %4507 = vst [vmem:[%s4489] ss:$9 sm:$0xff] %v4480
      %4508 = vst [vmem:[%s4492] ss:$9 sm:$0xff] %v3799
      %4509 = vst [vmem:[%s4494] ss:$9 sm:$0xff] %v3800
      %4511 = vst [vmem:[%s4496] ss:$9 sm:$0xff] %v4481
      %4512 = vst [vmem:[%s4499] ss:$9 sm:$0xff] %v3802
      %4513 = vst [vmem:[%s4501] ss:$9 sm:$0xff] %v3803
      %v4514 = vld [vmem:[#allocation1] sm:$0xff]
      %4515 = vst [vmem:[#allocation1] ss:$9 sm:$0xff] %v3804
      %4517 = vst [vmem:[%s4487] ss:$9 sm:$0xff] %v4482
      %4518 = vst [vmem:[%s4489] ss:$9 sm:$0xff] %v3806
      %4519 = vst [vmem:[%s4492] ss:$9 sm:$0xff] %v3807
      %4521 = vst [vmem:[%s4494] ss:$9 sm:$0xff] %v4483
      %4522 = vst [vmem:[%s4496] ss:$9 sm:$0xff] %v4227
      %4523 = vst [vmem:[%s4499] ss:$9 sm:$0xff] %v4228
      %4525 = vst [vmem:[%s4501] ss:$9 sm:$0xff] %v4484
      %v4526 = vld [vmem:[#allocation1] sm:$0xff]
      %4528 = vst [vmem:[#allocation1] ss:$9 sm:$0xff] %v3757
      %v4529 = vld [vmem:[#allocation1] sm:$0xff]
      %v4538 = vunpack.c.l.b16 %v4470
      %v4539 = vunpack.c.l.b16 %v4471
      %v4540 = vunpack.c.l.b16 %v4472
      %v4541 = vunpack.c.l.b16 %v4473
      %v4542 = vunpack.c.l.b16 %v4474
      %v4543 = vunpack.c.l.b16 %v4475
      %v4544 = vunpack.c.l.b16 %v4476
      %v4545 = vunpack.c.l.b16 %v4477
      %v4546 = vpack.c.b16 %v4539, %v4538
      %v4547 = vpack.c.b16 %v4541, %v4540
      %v4548 = vpack.c.b16 %v4543, %v4542
      %v4549 = vpack.c.b16 %v4545, %v4544
      %v4554 = vsel %vm3894, %v4503, 0
      %v4556 = vsel %vm3894, %v4514, 0
      %v4558 = vsel %vm3894, %v4526, 0
      %v4560 = vsel %vm3894, %v4529, 0
      %4562 = vmatpush.bf16.msra.mxu0 0
      %4563 = vmatpush.bf16.msra.mxu0 0
      %4564 = vmatpush.bf16.msra.mxu0 0
      %4565 = vmatpush.bf16.msra.mxu0 0
      %4566 = vmatpush.bf16.msra.mxu0 %v4549
      %4567 = vmatpush.bf16.msra.mxu0 %v4548
      %4568 = vmatpush.bf16.msra.mxu0 %v4547
      %4569 = vmatpush.bf16.msra.mxu0 %v4546
      %4570 = vmatmul.bf16.gmra.mxu0 %v4554
      %v4571 = vpop.f32.mrf.mxu0
      %v4572 = vadd.f32 0.0, %v4571
      %v4573 = vpop.f32.mrf.mxu0
      %v4574 = vadd.f32 0.0, %v4573
      %4575 = vmatmul.bf16.gmra.mxu0 %v4556
      %v4576 = vpop.f32.mrf.mxu0
      %v4577 = vadd.f32 0.0, %v4576
      %v4578 = vpop.f32.mrf.mxu0
      %v4579 = vadd.f32 0.0, %v4578
      %4580 = vmatmul.bf16.gmra.mxu0 %v4558
      %v4581 = vpop.f32.mrf.mxu0
      %v4582 = vadd.f32 0.0, %v4581
      %v4583 = vpop.f32.mrf.mxu0
      %v4584 = vadd.f32 0.0, %v4583
      %4585 = vmatmul.bf16.gmra.mxu0 %v4560
      %v4586 = vpop.f32.mrf.mxu0
      %v4587 = vadd.f32 0.0, %v4586
      %v4588 = vpop.f32.mrf.mxu0
      %4589 = vdwg.mxu0
      %v4590 = vadd.f32 %v4462, %v4572
      %v4591 = vadd.f32 %v4463, %v4574
      %v4592 = vadd.f32 %v4464, %v4577
      %v4593 = vadd.f32 %v4465, %v4579
      %v4594 = vadd.f32 %v4466, %v4582
      %v4595 = vadd.f32 %v4467, %v4584
      %v4596 = vadd.f32 %v4468, %v4587
      %s4597 = scalar_lea.vmem %s5, 192
      %v4598 = vld [vmem:[%s4597] sm:$0xf]
      %v4599 = vld [vmem:[%s4597 + $0x4] sm:$0xf]
      %v4600 = vld [vmem:[%s4597 + $0x8] sm:$0xf]
      %v4601 = vld [vmem:[%s4597 + $0xc] sm:$0xf]
      %v4602 = vld [vmem:[%s4597 + $0x10] sm:$0xf]
      %v4603 = vld [vmem:[%s4597 + $0x14] sm:$0xf]
      %v4604 = vld [vmem:[%s4597 + $0x18] sm:$0xf]
      %v4605 = vld [vmem:[%s4597 + $0x1c] sm:$0xf]
      %v4606 = vpack.i.b16 %v3749, %v3746
      %v4607 = vpack.i.b16 %v3759, %v3758
      %v4608 = vpack.i.b16 %v3761, %v3760
      %v4609 = vpack.i.b16 %v3763, %v3762
      %4611 = vst [vmem:[#allocation1] ss:$9 sm:$0xff] %v3938
      %s4612 = scalar_lea.vmem [#allocation1], 1
      %4613 = vst [vmem:[%s4612] ss:$9 sm:$0xff] %v3939
      %s4614 = scalar_lea.vmem [#allocation1], 2
      %4615 = vst [vmem:[%s4614] ss:$9 sm:$0xff] %v3940
      %s4616 = scalar_lea.vmem [#allocation1], 3
      %4617 = vst [vmem:[%s4616] ss:$9 sm:$0xff] %v3941
      %s4618 = scalar_lea.vmem [#allocation1], 4
      %4619 = vst [vmem:[%s4618] ss:$9 sm:$0xff] %v3942
      %s4620 = scalar_lea.vmem [#allocation1], 5
      %4621 = vst [vmem:[%s4620] ss:$9 sm:$0xff] %v3943
      %s4622 = scalar_lea.vmem [#allocation1], 6
      %4623 = vst [vmem:[%s4622] ss:$9 sm:$0xff] %v3944
      %s4624 = scalar_lea.vmem [#allocation1], 7
      %4625 = vst [vmem:[%s4624] ss:$9 sm:$0xff] %v3945
      %v4626 = vld [vmem:[#allocation1] sm:$0xff]
      %4627 = vst [vmem:[#allocation1] ss:$9 sm:$0xff] %v3946
      %4628 = vst [vmem:[%s4612] ss:$9 sm:$0xff] %v3947
      %4629 = vst [vmem:[%s4614] ss:$9 sm:$0xff] %v3948
      %4630 = vst [vmem:[%s4616] ss:$9 sm:$0xff] %v3949
      %4631 = vst [vmem:[%s4618] ss:$9 sm:$0xff] %v3950
      %4632 = vst [vmem:[%s4620] ss:$9 sm:$0xff] %v3951
      %4633 = vst [vmem:[%s4622] ss:$9 sm:$0xff] %v3952
      %4634 = vst [vmem:[%s4624] ss:$9 sm:$0xff] %v3953
      %v4635 = vld [vmem:[#allocation1] sm:$0xff]
      %4636 = vst [vmem:[#allocation1] ss:$9 sm:$0xff] %v3954
      %4638 = vst [vmem:[%s4612] ss:$9 sm:$0xff] %v4606
      %4639 = vst [vmem:[%s4614] ss:$9 sm:$0xff] %v4355
      %4640 = vst [vmem:[%s4616] ss:$9 sm:$0xff] %v4356
      %4641 = vst [vmem:[%s4618] ss:$9 sm:$0xff] %v4357
      %4643 = vst [vmem:[%s4620] ss:$9 sm:$0xff] %v4607
      %4645 = vst [vmem:[%s4622] ss:$9 sm:$0xff] %v4608
      %4647 = vst [vmem:[%s4624] ss:$9 sm:$0xff] %v4609
      %v4648 = vld [vmem:[#allocation1] sm:$0xff]
      %4650 = vst [vmem:[#allocation1] ss:$9 sm:$0xff] %v3764
      %v4651 = vld [vmem:[#allocation1] sm:$0xff]
      %v4660 = vunpack.c.l.b16 %v4598
      %v4661 = vunpack.c.l.b16 %v4599
      %v4662 = vunpack.c.l.b16 %v4600
      %v4663 = vunpack.c.l.b16 %v4601
      %v4664 = vunpack.c.l.b16 %v4602
      %v4665 = vunpack.c.l.b16 %v4603
      %v4666 = vunpack.c.l.b16 %v4604
      %v4667 = vunpack.c.l.b16 %v4605
      %v4668 = vpack.c.b16 %v4661, %v4660
      %v4669 = vpack.c.b16 %v4663, %v4662
      %v4670 = vpack.c.b16 %v4665, %v4664
      %v4671 = vpack.c.b16 %v4667, %v4666
      %v4676 = vsel %vm3894, %v4626, 0
      %v4678 = vsel %vm3894, %v4635, 0
      %v4680 = vsel %vm3894, %v4648, 0
      %v4682 = vsel %vm3894, %v4651, 0
      %4684 = vmatpush.bf16.msra.mxu0 0
      %4685 = vmatpush.bf16.msra.mxu0 0
      %4686 = vmatpush.bf16.msra.mxu0 0
      %4687 = vmatpush.bf16.msra.mxu0 0
      %4688 = vmatpush.bf16.msra.mxu0 %v4671
      %4689 = vmatpush.bf16.msra.mxu0 %v4670
      %4690 = vmatpush.bf16.msra.mxu0 %v4669
      %4691 = vmatpush.bf16.msra.mxu0 %v4668
      %4692 = vmatmul.bf16.gmra.mxu0 %v4676
      %v4693 = vpop.f32.mrf.mxu0
      %v4694 = vadd.f32 0.0, %v4693
      %v4695 = vpop.f32.mrf.mxu0
      %v4696 = vadd.f32 0.0, %v4695
      %4697 = vmatmul.bf16.gmra.mxu0 %v4678
      %v4698 = vpop.f32.mrf.mxu0
      %v4699 = vadd.f32 0.0, %v4698
      %v4700 = vpop.f32.mrf.mxu0
      %v4701 = vadd.f32 0.0, %v4700
      %4702 = vmatmul.bf16.gmra.mxu0 %v4680
      %v4703 = vpop.f32.mrf.mxu0
      %v4704 = vadd.f32 0.0, %v4703
      %v4705 = vpop.f32.mrf.mxu0
      %v4706 = vadd.f32 0.0, %v4705
      %4707 = vmatmul.bf16.gmra.mxu0 %v4682
      %v4708 = vpop.f32.mrf.mxu0
      %v4709 = vadd.f32 0.0, %v4708
      %v4710 = vpop.f32.mrf.mxu0
      %4711 = vdwg.mxu0
      %v4712 = vadd.f32 %v4590, %v4694
      %v4713 = vadd.f32 %v4591, %v4696
      %v4714 = vadd.f32 %v4592, %v4699
      %v4715 = vadd.f32 %v4593, %v4701
      %v4716 = vadd.f32 %v4594, %v4704
      %v4717 = vadd.f32 %v4595, %v4706
      %v4718 = vadd.f32 %v4596, %v4709
      %s4719 = scalar_lea.vmem %s5, 224
      %v4720 = vld [vmem:[%s4719] sm:$0xf]
      %v4721 = vld [vmem:[%s4719 + $0x4] sm:$0xf]
      %v4722 = vld [vmem:[%s4719 + $0x8] sm:$0xf]
      %v4723 = vld [vmem:[%s4719 + $0xc] sm:$0xf]
      %v4724 = vld [vmem:[%s4719 + $0x10] sm:$0xf]
      %v4725 = vld [vmem:[%s4719 + $0x14] sm:$0xf]
      %v4726 = vld [vmem:[%s4719 + $0x18] sm:$0xf]
      %v4727 = vld [vmem:[%s4719 + $0x1c] sm:$0xf]
      %v4728 = vpack.i.b16 %v3750, %v3747
      %v4729 = vpack.i.b16 %v3760, %v3759
      %v4730 = vpack.i.b16 %v3762, %v3761
      %v4731 = vpack.i.b16 %v3764, %v3763
      %4733 = vst [vmem:[#allocation1] ss:$9 sm:$0xff] %v3791
      %s4734 = scalar_lea.vmem [#allocation1], 1
      %4735 = vst [vmem:[%s4734] ss:$9 sm:$0xff] %v3792
      %s4736 = scalar_lea.vmem [#allocation1], 2
      %4737 = vst [vmem:[%s4736] ss:$9 sm:$0xff] %v3793
      %s4738 = scalar_lea.vmem [#allocation1], 3
      %4739 = vst [vmem:[%s4738] ss:$9 sm:$0xff] %v3794
      %s4740 = scalar_lea.vmem [#allocation1], 4
      %4741 = vst [vmem:[%s4740] ss:$9 sm:$0xff] %v3795
      %s4742 = scalar_lea.vmem [#allocation1], 5
      %4743 = vst [vmem:[%s4742] ss:$9 sm:$0xff] %v3796
      %s4744 = scalar_lea.vmem [#allocation1], 6
      %4745 = vst [vmem:[%s4744] ss:$9 sm:$0xff] %v3797
      %s4746 = scalar_lea.vmem [#allocation1], 7
      %4747 = vst [vmem:[%s4746] ss:$9 sm:$0xff] %v3798
      %v4748 = vld [vmem:[#allocation1] sm:$0xff]
      %4749 = vst [vmem:[#allocation1] ss:$9 sm:$0xff] %v3799
      %4750 = vst [vmem:[%s4734] ss:$9 sm:$0xff] %v3800
      %4751 = vst [vmem:[%s4736] ss:$9 sm:$0xff] %v3801
      %4752 = vst [vmem:[%s4738] ss:$9 sm:$0xff] %v3802
      %4753 = vst [vmem:[%s4740] ss:$9 sm:$0xff] %v3803
      %4754 = vst [vmem:[%s4742] ss:$9 sm:$0xff] %v3804
      %4755 = vst [vmem:[%s4744] ss:$9 sm:$0xff] %v3805
      %4756 = vst [vmem:[%s4746] ss:$9 sm:$0xff] %v3806
      %v4757 = vld [vmem:[#allocation1] sm:$0xff]
      %4758 = vst [vmem:[#allocation1] ss:$9 sm:$0xff] %v3807
      %4760 = vst [vmem:[%s4734] ss:$9 sm:$0xff] %v4728
      %4761 = vst [vmem:[%s4736] ss:$9 sm:$0xff] %v4227
      %4762 = vst [vmem:[%s4738] ss:$9 sm:$0xff] %v4228
      %4763 = vst [vmem:[%s4740] ss:$9 sm:$0xff] %v4484
      %4765 = vst [vmem:[%s4742] ss:$9 sm:$0xff] %v4729
      %4767 = vst [vmem:[%s4744] ss:$9 sm:$0xff] %v4730
      %4769 = vst [vmem:[%s4746] ss:$9 sm:$0xff] %v4731
      %v4770 = vld [vmem:[#allocation1] sm:$0xff]
      %4772 = vst [vmem:[#allocation1] ss:$9 sm:$0xff] %v3765
      %v4773 = vld [vmem:[#allocation1] sm:$0xff]
      %v4782 = vunpack.c.l.b16 %v4720
      %v4783 = vunpack.c.l.b16 %v4721
      %v4784 = vunpack.c.l.b16 %v4722
      %v4785 = vunpack.c.l.b16 %v4723
      %v4786 = vunpack.c.l.b16 %v4724
      %v4787 = vunpack.c.l.b16 %v4725
      %v4788 = vunpack.c.l.b16 %v4726
      %v4789 = vunpack.c.l.b16 %v4727
      %v4790 = vpack.c.b16 %v4783, %v4782
      %v4791 = vpack.c.b16 %v4785, %v4784
      %v4792 = vpack.c.b16 %v4787, %v4786
      %v4793 = vpack.c.b16 %v4789, %v4788
      %v4798 = vsel %vm3894, %v4748, 0
      %v4800 = vsel %vm3894, %v4757, 0
      %v4802 = vsel %vm3894, %v4770, 0
      %v4804 = vsel %vm3894, %v4773, 0
      %4806 = vmatpush.bf16.msra.mxu0 0
      %4807 = vmatpush.bf16.msra.mxu0 0
      %4808 = vmatpush.bf16.msra.mxu0 0
      %4809 = vmatpush.bf16.msra.mxu0 0
      %4810 = vmatpush.bf16.msra.mxu0 %v4793
      %4811 = vmatpush.bf16.msra.mxu0 %v4792
      %4812 = vmatpush.bf16.msra.mxu0 %v4791
      %4813 = vmatpush.bf16.msra.mxu0 %v4790
      %4814 = vmatmul.bf16.gmra.mxu0 %v4798
      %v4815 = vpop.f32.mrf.mxu0
      %v4816 = vadd.f32 0.0, %v4815
      %v4817 = vpop.f32.mrf.mxu0
      %v4818 = vadd.f32 0.0, %v4817
      %4819 = vmatmul.bf16.gmra.mxu0 %v4800
      %v4820 = vpop.f32.mrf.mxu0
      %v4821 = vadd.f32 0.0, %v4820
      %v4822 = vpop.f32.mrf.mxu0
      %v4823 = vadd.f32 0.0, %v4822
      %4824 = vmatmul.bf16.gmra.mxu0 %v4802
      %v4825 = vpop.f32.mrf.mxu0
      %v4826 = vadd.f32 0.0, %v4825
      %v4827 = vpop.f32.mrf.mxu0
      %v4828 = vadd.f32 0.0, %v4827
      %4829 = vmatmul.bf16.gmra.mxu0 %v4804
      %v4830 = vpop.f32.mrf.mxu0
      %v4831 = vadd.f32 0.0, %v4830
      %v4832 = vpop.f32.mrf.mxu0
      %4833 = vdwg.mxu0
      %v4834 = vadd.f32 %v4712, %v4816
      %v4835 = vadd.f32 %v4713, %v4818
      %v4836 = vadd.f32 %v4714, %v4821
      %v4837 = vadd.f32 %v4715, %v4823
      %v4838 = vadd.f32 %v4716, %v4826
      %v4839 = vadd.f32 %v4717, %v4828
      %v4840 = vadd.f32 %v4718, %v4831
      %s4841 = scalar_lea.vmem %s5, 256
      %v4842 = vld [vmem:[%s4841] sm:$0xf]
      %v4843 = vld [vmem:[%s4841 + $0x4] sm:$0xf]
      %v4844 = vld [vmem:[%s4841 + $0x8] sm:$0xf]
      %v4845 = vld [vmem:[%s4841 + $0xc] sm:$0xf]
      %v4846 = vld [vmem:[%s4841 + $0x10] sm:$0xf]
      %v4847 = vld [vmem:[%s4841 + $0x14] sm:$0xf]
      %v4848 = vld [vmem:[%s4841 + $0x18] sm:$0xf]
      %v4849 = vld [vmem:[%s4841 + $0x1c] sm:$0xf]
      %v4850 = vpack.i.b16 %v3751, %v3748
      %v4851 = vpack.i.b16 %v3757, %v3756
      %v4852 = vpack.i.b16 %v3765, %v3764
      %4854 = vst [vmem:[#allocation1] ss:$9 sm:$0xff] %v3939
      %s4855 = scalar_lea.vmem [#allocation1], 1
      %4856 = vst [vmem:[%s4855] ss:$9 sm:$0xff] %v3940
      %s4857 = scalar_lea.vmem [#allocation1], 2
      %4858 = vst [vmem:[%s4857] ss:$9 sm:$0xff] %v4089
      %s4859 = scalar_lea.vmem [#allocation1], 3
      %4860 = vst [vmem:[%s4859] ss:$9 sm:$0xff] %v4090
      %s4861 = scalar_lea.vmem [#allocation1], 4
      %4862 = vst [vmem:[%s4861] ss:$9 sm:$0xff] %v3943
      %s4863 = scalar_lea.vmem [#allocation1], 5
      %4864 = vst [vmem:[%s4863] ss:$9 sm:$0xff] %v3944
      %s4865 = scalar_lea.vmem [#allocation1], 6
      %4866 = vst [vmem:[%s4865] ss:$9 sm:$0xff] %v4091
      %s4867 = scalar_lea.vmem [#allocation1], 7
      %4868 = vst [vmem:[%s4867] ss:$9 sm:$0xff] %v3946
      %v4869 = vld [vmem:[#allocation1] sm:$0xff]
      %4870 = vst [vmem:[#allocation1] ss:$9 sm:$0xff] %v3947
      %4871 = vst [vmem:[%s4855] ss:$9 sm:$0xff] %v4092
      %4872 = vst [vmem:[%s4857] ss:$9 sm:$0xff] %v4093
      %4873 = vst [vmem:[%s4859] ss:$9 sm:$0xff] %v3950
      %4874 = vst [vmem:[%s4861] ss:$9 sm:$0xff] %v3951
      %4875 = vst [vmem:[%s4863] ss:$9 sm:$0xff] %v4094
      %4876 = vst [vmem:[%s4865] ss:$9 sm:$0xff] %v3953
      %4877 = vst [vmem:[%s4867] ss:$9 sm:$0xff] %v3954
      %v4878 = vld [vmem:[#allocation1] sm:$0xff]
      %4879 = vst [vmem:[#allocation1] ss:$9 sm:$0xff] %v4095
      %4881 = vst [vmem:[%s4855] ss:$9 sm:$0xff] %v4850
      %4882 = vst [vmem:[%s4857] ss:$9 sm:$0xff] %v4356
      %4883 = vst [vmem:[%s4859] ss:$9 sm:$0xff] %v4357
      %4885 = vst [vmem:[%s4861] ss:$9 sm:$0xff] %v4851
      %4886 = vst [vmem:[%s4863] ss:$9 sm:$0xff] %v4608
      %4887 = vst [vmem:[%s4865] ss:$9 sm:$0xff] %v4609
      %4889 = vst [vmem:[%s4867] ss:$9 sm:$0xff] %v4852
      %v4890 = vld [vmem:[#allocation1] sm:$0xff]
      %4892 = vst [vmem:[#allocation1] ss:$9 sm:$0xff] %v3766
      %v4893 = vld [vmem:[#allocation1] sm:$0xff]
      %v4902 = vunpack.c.l.b16 %v4842
      %v4903 = vunpack.c.l.b16 %v4843
      %v4904 = vunpack.c.l.b16 %v4844
      %v4905 = vunpack.c.l.b16 %v4845
      %v4906 = vunpack.c.l.b16 %v4846
      %v4907 = vunpack.c.l.b16 %v4847
      %v4908 = vunpack.c.l.b16 %v4848
      %v4909 = vunpack.c.l.b16 %v4849
      %v4910 = vpack.c.b16 %v4903, %v4902
      %v4911 = vpack.c.b16 %v4905, %v4904
      %v4912 = vpack.c.b16 %v4907, %v4906
      %v4913 = vpack.c.b16 %v4909, %v4908
      %v4918 = vsel %vm3894, %v4869, 0
      %v4920 = vsel %vm3894, %v4878, 0
      %v4922 = vsel %vm3894, %v4890, 0
      %v4924 = vsel %vm3894, %v4893, 0
      %4926 = vmatpush.bf16.msra.mxu0 0
      %4927 = vmatpush.bf16.msra.mxu0 0
      %4928 = vmatpush.bf16.msra.mxu0 0
      %4929 = vmatpush.bf16.msra.mxu0 0
      %4930 = vmatpush.bf16.msra.mxu0 %v4913
      %4931 = vmatpush.bf16.msra.mxu0 %v4912
      %4932 = vmatpush.bf16.msra.mxu0 %v4911
      %4933 = vmatpush.bf16.msra.mxu0 %v4910
      %4934 = vmatmul.bf16.gmra.mxu0 %v4918
      %v4935 = vpop.f32.mrf.mxu0
      %v4936 = vadd.f32 0.0, %v4935
      %v4937 = vpop.f32.mrf.mxu0
      %v4938 = vadd.f32 0.0, %v4937
      %4939 = vmatmul.bf16.gmra.mxu0 %v4920
      %v4940 = vpop.f32.mrf.mxu0
      %v4941 = vadd.f32 0.0, %v4940
      %v4942 = vpop.f32.mrf.mxu0
      %v4943 = vadd.f32 0.0, %v4942
      %4944 = vmatmul.bf16.gmra.mxu0 %v4922
      %v4945 = vpop.f32.mrf.mxu0
      %v4946 = vadd.f32 0.0, %v4945
      %v4947 = vpop.f32.mrf.mxu0
      %v4948 = vadd.f32 0.0, %v4947
      %4949 = vmatmul.bf16.gmra.mxu0 %v4924
      %v4950 = vpop.f32.mrf.mxu0
      %v4951 = vadd.f32 0.0, %v4950
      %v4952 = vpop.f32.mrf.mxu0
      %4953 = vdwg.mxu0
      %v4954 = vadd.f32 %v4834, %v4936
      %v4955 = vadd.f32 %v4835, %v4938
      %v4956 = vadd.f32 %v4836, %v4941
      %v4957 = vadd.f32 %v4837, %v4943
      %v4958 = vadd.f32 %v4838, %v4946
      %v4959 = vadd.f32 %v4839, %v4948
      %v4960 = vadd.f32 %v4840, %v4951
      %v4961 = vld [vmem:[%s6] sm:$0x1]
      %v4963 = vperm.slane %v4961, 0
      %v4965 = vadd.f32 %v4954, %v4963
      %v4966 = vadd.f32 %v4955, %v4963
      %v4967 = vadd.f32 %v4956, %v4963
      %v4968 = vadd.f32 %v4957, %v4963
      %v4969 = vadd.f32 %v4958, %v4963
      %v4970 = vadd.f32 %v4959, %v4963
      %v4971 = vadd.f32 %v4960, %v4963
      %v4972 = vmax.f32 %v4965, 0.0
      %v4973 = vmax.f32 %v4966, 0.0
      %v4974 = vmax.f32 %v4967, 0.0
      %v4975 = vmax.f32 %v4968, 0.0
      %v4976 = vmax.f32 %v4969, 0.0
      %v4977 = vmax.f32 %v4970, 0.0
      %v4978 = vmax.f32 %v4971, 0.0
      %v4979 = vpack.c.bf16 %v4972, %v4972
      %v4980 = vpack.c.bf16 %v4973, %v4973
      %v4981 = vpack.c.bf16 %v4974, %v4974
      %v4982 = vpack.c.bf16 %v4975, %v4975
      %v4983 = vpack.c.bf16 %v4976, %v4976
      %v4984 = vpack.c.bf16 %v4977, %v4977
      %v4985 = vpack.c.bf16 %v4978, %v4978
      %vm4986 = vcmask 519168
      %4987 = vst.msk [vmem:[%s278] sm:$0xf] %vm4986, %v4979
      %4988 = vst.msk [vmem:[%s278 + $0x4] sm:$0xf] %vm4986, %v4980
      %4989 = vst.msk [vmem:[%s278 + $0x8] sm:$0xf] %vm4986, %v4981
      %4990 = vst.msk [vmem:[%s278 + $0xc] sm:$0xf] %vm4986, %v4982
      %4991 = vst.msk [vmem:[%s278 + $0x10] sm:$0xf] %vm4986, %v4983
      %4992 = vst.msk [vmem:[%s278 + $0x14] sm:$0xf] %vm4986, %v4984
      %vm4993 = vcmask 516096
      %vm4994 = vmand %vm4993, %vm558
      %v4995 = vld [vmem:[%s278 + $0x18] sm:$0x1]
      %v4996 = vsel %vm4994, %v4985, %v4995
      %4997 = vst [vmem:[%s278 + $0x18] sm:$0x1] %v4996
      %p4998 = scmp.lt.s32.totalorder %s18, 1
      %s4999 = scalar_select %p4998, %s18, 1
      %s5000 = smul.addr %s4999, 7
      %s5001 = smul.addr %s5000, 4
      %s5002 = scalar_lea.vmem %s7, %s5001
      // Predicated region
      $region49: #{net_forward.2} parent=47 // pred_check
        %p5003 = pneg %p188
      $region50: #{net_forward.2} parent=47 // pred_check_branch
        %5005 = sbr.rel (%p5003) target = $region52
      $region51: #{net_forward.2} parent=47 // pred_region
        _
      $region52: #{net_forward.2} parent=47 // pred_fallthru
        _
    $region48: #{net_forward.2} parent=5 // pred_fallthru
      _
    %p5006 = scmp.le.s32.totalorder 2, %s13
    // Predicated region
    $region53: #{net_forward.2} parent=5 // pred_check
      %p5007 = pneg %p5006
    $region54: #{net_forward.2} parent=5 // pred_check_branch
      %5009 = sbr.rel (%p5007) target = $region56
    $region55: #{net_forward.2} parent=5 // pred_region
      %s5010 = ssub.s32 %s13, 2
      // Predicated region
      $region57: #{net_forward.2} parent=55 // pred_check
        %p5011 = pneg %p194
      $region58: #{net_forward.2} parent=55 // pred_check_branch
        %5013 = sbr.rel (%p5011) target = $region60
      $region59: #{net_forward.2} parent=55 // pred_region
        %p5014 = scmp.lt.s32.totalorder %s19, 1
        %s5015 = scalar_select %p5014, %s19, 1
        %s5016 = smul.addr %s5015, 7
        %s5017 = smul.addr %s5016, 4
        %s5018 = scalar_lea.vmem %s7, %s5017
      $region60: #{net_forward.2} parent=55 // pred_fallthru
        _
    $region56: #{net_forward.2} parent=5 // pred_fallthru
      _
  $region6: #{net_forward.2} parent=0 // loop_footer
    %s17 = sadd.s32 1, %s13
  $region7: #{net_forward.2} parent=0 // loop_footer_branch
    %12 = sbr.rel target = $region3
  $region8: #{net_forward.2} parent=0 // loop_exit
    _

</llo_original>
